<compile_context>
chip_gen: v6e
topology: v6e:2x2x1
jax: 0.10.0
libtpu: 0.0.40
codegen_flags: <defaults>
</compile_context>

<pallas_src>
import functools

import jax
import jax.numpy as jnp
from jax.experimental import pallas as pl
from jax.experimental.pallas import tpu as pltpu


def _round_up(x, m):
    return (x + m - 1) // m * m


# ---------------------------------------------------------------------------
# Pallas kernel: fused im2col-conv + bias + (InstanceNorm) + activation
# ---------------------------------------------------------------------------
def _conv_norm_act_kernel(p_ref, w_ref, b_ref, o_ref, *, norm, activation):
    """Blocks:
         p_ref: (1, P, K)   bf16  -- one sample's im2col patches (all spatial)
         w_ref: (K, TN)     bf16  -- lane-dense tile of the weight matrix
         b_ref: (1, TN)     f32
         o_ref: (1, P, TN)  bf16 / f32
    InstanceNorm reduces over P (all spatial positions of this sample) per
    channel, so tiling Cout does not break the statistics.
    """
    acc = jnp.dot(p_ref[0], w_ref[...], preferred_element_type=jnp.float32)
    acc = acc + b_ref[...]

    if norm:
        # Single-pass biased statistics (torch.nn.InstanceNorm2d, affine=False)
        inv_p = 1.0 / acc.shape[0]
        mean = jnp.sum(acc, axis=0, keepdims=True) * inv_p
        msq = jnp.sum(acc * acc, axis=0, keepdims=True) * inv_p
        var = msq - mean * mean
        acc = (acc - mean) * jax.lax.rsqrt(var + 1e-5)

    if activation == "leaky":
        acc = jnp.where(acc >= 0.0, acc, 0.2 * acc)
    elif activation == "sigmoid":
        acc = jax.nn.sigmoid(acc)

    o_ref[...] = acc.astype(o_ref.dtype)[None]


# ---------------------------------------------------------------------------
# JAX glue (layout plumbing only)
# ---------------------------------------------------------------------------
def _im2col(x_nhwc, k, stride, pad):
    """Returns patches (N, OH*OW, K*K*C) in the input dtype, plus (OH, OW)."""
    n, h, w, c = x_nhwc.shape
    xp = jnp.pad(x_nhwc, ((0, 0), (pad, pad), (pad, pad), (0, 0)))
    oh = (h + 2 * pad - k) // stride + 1
    ow = (w + 2 * pad - k) // stride + 1
    cols = []
    for dy in range(k):
        for dx in range(k):
            cols.append(
                xp[:, dy:dy + stride * (oh - 1) + 1:stride,
                   dx:dx + stride * (ow - 1) + 1:stride, :]
            )
    cols = jnp.stack(cols, axis=3)                      # (N, OH, OW, K*K, C)
    return cols.reshape(n, oh * ow, k * k * c), oh, ow


def conv_block_pallas(x_nhwc, w, b, *, stride, pad, norm, activation,
                      out_dtype):
    """Fused Conv2d(3x3) [+ InstanceNorm] [+ activation].

    x_nhwc : (N, H, W, Cin_act)  bf16 activation (Cin_act may be lane-padded)
    w      : (3, 3, Cin, Cout)   f32 parameters
    b      : (Cout,)             f32
    Returns (N, OH, OW, Cout_padded) in out_dtype, plus the logical Cout.
    """
    n, _, _, cin_act = x_nhwc.shape
    kh, kw, cin, cout = w.shape

    # Match weight Cin to the (possibly lane-padded) activation channel count.
    if cin_act > cin:
        w = jnp.pad(w, ((0, 0), (0, 0), (0, cin_act - cin), (0, 0)))
    # Lane-dense output: pad Cout to a multiple of 128 with zero weights/bias.
    cout_p = _round_up(cout, 128)
    if cout_p > cout:
        w = jnp.pad(w, ((0, 0), (0, 0), (0, 0), (0, cout_p - cout)))
        b = jnp.pad(b, (0, cout_p - cout))

    patches, oh, ow = _im2col(x_nhwc, kh, stride, pad)   # (N, P, K) bf16
    p_dim = oh * ow
    kdim = kh * kw * cin_act
    w_mat = w.reshape(kdim, cout_p).astype(jnp.bfloat16)
    b_mat = b.reshape(1, cout_p).astype(jnp.float32)

    tn = min(cout_p, 256)                                # lane-dense Cout tile
    grid = (n, cout_p // tn)

    out = pl.pallas_call(
        functools.partial(_conv_norm_act_kernel, norm=norm,
                          activation=activation),
        out_shape=jax.ShapeDtypeStruct((n, p_dim, cout_p), out_dtype),
        grid=grid,
        in_specs=[
            pl.BlockSpec((1, p_dim, kdim), lambda i, j: (i, 0, 0)),
            pl.BlockSpec((kdim, tn), lambda i, j: (0, j)),
            pl.BlockSpec((1, tn), lambda i, j: (0, j)),
        ],
        out_specs=pl.BlockSpec((1, p_dim, tn), lambda i, j: (i, 0, j)),
        compiler_params=pltpu.CompilerParams(
            dimension_semantics=("parallel", "parallel"),
            vmem_limit_bytes=32 * 1024 * 1024,
        ),
    )(patches, w_mat, b_mat)

    return out.reshape(n, oh, ow, cout_p), cout


# ---------------------------------------------------------------------------
# Parameters (deterministic synthetic init; shapes match the PyTorch module)
# ---------------------------------------------------------------------------
def init_params(key, in_channels=3):
    dims = [(in_channels * 2, 64), (64, 128), (128, 256), (256, 512)]
    params = {}
    for idx, (cin, cout) in enumerate(dims, start=1):
        key, kw_, kb_ = jax.random.split(key, 3)
        params[f"stage{idx}_w"] = 0.05 * jax.random.normal(
            kw_, (3, 3, cin, cout), jnp.float32)
        params[f"stage{idx}_b"] = 0.01 * jax.random.normal(
            kb_, (cout,), jnp.float32)
    key, kw_, kb_ = jax.random.split(key, 3)
    params["patch_w"] = 0.05 * jax.random.normal(kw_, (3, 3, 512, 1), jnp.float32)
    params["patch_b"] = 0.01 * jax.random.normal(kb_, (1,), jnp.float32)
    return params


# ---------------------------------------------------------------------------
# Forward pass (mirrors Discriminator.forward)
# ---------------------------------------------------------------------------
def discriminator_forward(params, a_nchw, b_nchw):
    x = jnp.concatenate([a_nchw, b_nchw], axis=1)        # torch.cat((a, b), 1)
    x = jnp.transpose(x, (0, 2, 3, 1)).astype(jnp.bfloat16)   # NCHW -> NHWC

    # stage_1: Conv(s=2,p=1) + LeakyReLU(0.2), no norm (fully fused)
    x, _ = conv_block_pallas(x, params["stage1_w"], params["stage1_b"],
                             stride=2, pad=1, norm=False, activation="leaky",
                             out_dtype=jnp.bfloat16)
    # stage_2..4: Conv(s=2,p=1) + InstanceNorm2d + LeakyReLU(0.2), one kernel each
    for i in (2, 3, 4):
        x, _ = conv_block_pallas(x, params[f"stage{i}_w"], params[f"stage{i}_b"],
                                 stride=2, pad=1, norm=True, activation="leaky",
                                 out_dtype=jnp.bfloat16)
    # patch head: Conv(s=1,p=1) + sigmoid (fused), lane-padded Cout 1 -> 128
    x, cout = conv_block_pallas(x, params["patch_w"], params["patch_b"],
                                stride=1, pad=1, norm=False,
                                activation="sigmoid", out_dtype=jnp.float32)
    x = x[..., :cout]                                    # drop lane padding
    return jnp.transpose(x, (0, 3, 1, 2))                # NHWC -> NCHW


# ---------------------------------------------------------------------------
if __name__ == "__main__":
    key = jax.random.PRNGKey(0)
    kp, ka, kb = jax.random.split(key, 3)
    params = init_params(kp, in_channels=3)

    # 32x32 keeps every InstanceNorm non-degenerate (stage_4 output is 2x2).
    a = jax.random.normal(ka, (2, 3, 32, 32), jnp.float32)
    b = jax.random.normal(kb, (2, 3, 32, 32), jnp.float32)

    out = jax.jit(discriminator_forward)(params, a, b)
    jax.block_until_ready(out)

    # 32 -> 16 -> 8 -> 4 -> 2 spatial, patch conv keeps 2x2 -> (N, 1, 2, 2)
    assert out.shape == (2, 1, 2, 2), out.shape
    assert bool(jnp.all((out >= 0.0) & (out <= 1.0)))
    print("KERNEL_OK")
</pallas_src>

<mosaic_0001>
module attributes {stable_mosaic.version = 11 : i64} {
  func.func @_conv_norm_act_kernel(%arg0: i32, %arg1: i32, %arg2: memref<1x256x54xbf16, #tpu.memory_space<vmem>>, %arg3: memref<54x128xbf16, #tpu.memory_space<vmem>>, %arg4: memref<1x128xf32, #tpu.memory_space<vmem>>, %arg5: memref<1x256x128xbf16, #tpu.memory_space<vmem>>) attributes {dimension_semantics = [#tpu.dimension_semantics<parallel>, #tpu.dimension_semantics<parallel>], iteration_bounds = array<i64: 2, 1>, scalar_prefetch = 0 : i64, scratch_operands = 0 : i64, tpu.core_type = #tpu.core_type<tc>, window_params = [{transform_indices = @transform_0, window_bounds = array<i64: 1, 256, 54>}, {transform_indices = @transform_1, window_bounds = array<i64: 54, 128>}, {transform_indices = @transform_2, window_bounds = array<i64: 1, 128>}, {transform_indices = @transform_3, window_bounds = array<i64: 1, 256, 128>}]} {
    %c0 = arith.constant 0 : index
    %c0_0 = arith.constant 0 : index
    %c0_1 = arith.constant 0 : index
    %0 = vector.load %arg2[%c0, %c0_0, %c0_1] : memref<1x256x54xbf16, #tpu.memory_space<vmem>>, vector<1x256x54xbf16>
    %1 = vector.shape_cast %0 : vector<1x256x54xbf16> to vector<256x54xbf16>
    %c0_2 = arith.constant 0 : index
    %c0_3 = arith.constant 0 : index
    %2 = vector.load %arg3[%c0_2, %c0_3] : memref<54x128xbf16, #tpu.memory_space<vmem>>, vector<54x128xbf16>
    %cst = arith.constant dense<0.000000e+00> : vector<256x128xf32>
    %3 = tpu.matmul %1, %2, %cst {dimension_numbers = #tpu.dot_dimension_numbers<[1], [0], [0], [1], [0, 0, 1, 1], [], []>} : vector<256x54xbf16>, vector<54x128xbf16>, vector<256x128xf32> -> vector<256x128xf32>
    %c0_4 = arith.constant 0 : index
    %c0_5 = arith.constant 0 : index
    %4 = vector.load %arg4[%c0_4, %c0_5] : memref<1x128xf32, #tpu.memory_space<vmem>>, vector<1x128xf32>
    %5 = vector.broadcast %4 : vector<1x128xf32> to vector<256x128xf32>
    %6 = arith.addf %3, %5 : vector<256x128xf32>
    %cst_6 = arith.constant 0.000000e+00 : f32
    %7 = vector.broadcast %cst_6 : f32 to vector<256x128xf32>
    %8 = arith.cmpf oge, %6, %7 : vector<256x128xf32>
    %cst_7 = arith.constant 2.000000e-01 : f32
    %9 = vector.broadcast %cst_7 : f32 to vector<256x128xf32>
    %10 = arith.mulf %9, %6 : vector<256x128xf32>
    %11 = arith.select %8, %6, %10 : vector<256x128xi1>, vector<256x128xf32>
    %12 = arith.truncf %11 : vector<256x128xf32> to vector<256x128xbf16>
    %13 = vector.shape_cast %12 : vector<256x128xbf16> to vector<1x256x128xbf16>
    %c0_8 = arith.constant 0 : index
    %c0_9 = arith.constant 0 : index
    %c0_10 = arith.constant 0 : index
    %14 = vector.load %arg5[%c0_8, %c0_9, %c0_10] : memref<1x256x128xbf16, #tpu.memory_space<vmem>>, vector<1x256x128xbf16>
    tpu.vector_store %arg5[%c0_8, %c0_9, %c0_10], %13 {strides = array<i32>} : memref<1x256x128xbf16, #tpu.memory_space<vmem>>, vector<1x256x128xbf16>,
    return
  }
  func.func @transform_0(%arg0: i32, %arg1: i32) -> (i32, i32, i32) {
    %c0_i32 = arith.constant 0 : i32
    %c0_i32_0 = arith.constant 0 : i32
    %c0_i32_1 = arith.constant 0 : i32
    return %arg0, %c0_i32, %c0_i32_0 : i32, i32, i32
  }
  func.func @transform_1(%arg0: i32, %arg1: i32) -> (i32, i32) {
    %c0_i32 = arith.constant 0 : i32
    %c0_i32_0 = arith.constant 0 : i32
    return %c0_i32, %arg1 : i32, i32
  }
  func.func @transform_2(%arg0: i32, %arg1: i32) -> (i32, i32) {
    %c0_i32 = arith.constant 0 : i32
    %c0_i32_0 = arith.constant 0 : i32
    return %c0_i32, %arg1 : i32, i32
  }
  func.func @transform_3(%arg0: i32, %arg1: i32) -> (i32, i32, i32) {
    %c0_i32 = arith.constant 0 : i32
    %c0_i32_0 = arith.constant 0 : i32
    return %arg0, %c0_i32, %arg1 : i32, i32, i32
  }
}

module attributes {stable_mosaic.version = 11 : i64} {
  func.func @_conv_norm_act_kernel(%arg0: i32, %arg1: i32, %arg2: memref<1x64x1152xbf16, #tpu.memory_space<vmem>>, %arg3: memref<1152x128xbf16, #tpu.memory_space<vmem>>, %arg4: memref<1x128xf32, #tpu.memory_space<vmem>>, %arg5: memref<1x64x128xbf16, #tpu.memory_space<vmem>>) attributes {dimension_semantics = [#tpu.dimension_semantics<parallel>, #tpu.dimension_semantics<parallel>], iteration_bounds = array<i64: 2, 1>, scalar_prefetch = 0 : i64, scratch_operands = 0 : i64, tpu.core_type = #tpu.core_type<tc>, window_params = [{transform_indices = @transform_0, window_bounds = array<i64: 1, 64, 1152>}, {transform_indices = @transform_1, window_bounds = array<i64: 1152, 128>}, {transform_indices = @transform_2, window_bounds = array<i64: 1, 128>}, {transform_indices = @transform_3, window_bounds = array<i64: 1, 64, 128>}]} {
    %c0 = arith.constant 0 : index
    %c0_0 = arith.constant 0 : index
    %c0_1 = arith.constant 0 : index
    %0 = vector.load %arg2[%c0, %c0_0, %c0_1] : memref<1x64x1152xbf16, #tpu.memory_space<vmem>>, vector<1x64x1152xbf16>
    %1 = vector.shape_cast %0 : vector<1x64x1152xbf16> to vector<64x1152xbf16>
    %c0_2 = arith.constant 0 : index
    %c0_3 = arith.constant 0 : index
    %2 = vector.load %arg3[%c0_2, %c0_3] : memref<1152x128xbf16, #tpu.memory_space<vmem>>, vector<1152x128xbf16>
    %cst = arith.constant dense<0.000000e+00> : vector<64x128xf32>
    %3 = tpu.matmul %1, %2, %cst {dimension_numbers = #tpu.dot_dimension_numbers<[1], [0], [0], [1], [0, 0, 1, 1], [], []>} : vector<64x1152xbf16>, vector<1152x128xbf16>, vector<64x128xf32> -> vector<64x128xf32>
    %c0_4 = arith.constant 0 : index
    %c0_5 = arith.constant 0 : index
    %4 = vector.load %arg4[%c0_4, %c0_5] : memref<1x128xf32, #tpu.memory_space<vmem>>, vector<1x128xf32>
    %5 = vector.broadcast %4 : vector<1x128xf32> to vector<64x128xf32>
    %6 = arith.addf %3, %5 : vector<64x128xf32>
    %cst_6 = arith.constant dense<0.000000e+00> : vector<128xf32>
    %7 = vector.multi_reduction <add>, %6, %cst_6 [0] : vector<64x128xf32> to vector<128xf32>
    %8 = vector.shape_cast %7 : vector<128xf32> to vector<1x128xf32>
    %cst_7 = arith.constant 1.562500e-02 : f32
    %9 = vector.broadcast %cst_7 : f32 to vector<1x128xf32>
    %10 = arith.mulf %8, %9 : vector<1x128xf32>
    %11 = arith.mulf %6, %6 : vector<64x128xf32>
    %cst_8 = arith.constant dense<0.000000e+00> : vector<128xf32>
    %12 = vector.multi_reduction <add>, %11, %cst_8 [0] : vector<64x128xf32> to vector<128xf32>
    %13 = vector.shape_cast %12 : vector<128xf32> to vector<1x128xf32>
    %cst_9 = arith.constant 1.562500e-02 : f32
    %14 = vector.broadcast %cst_9 : f32 to vector<1x128xf32>
    %15 = arith.mulf %13, %14 : vector<1x128xf32>
    %16 = arith.mulf %10, %10 : vector<1x128xf32>
    %17 = arith.subf %15, %16 : vector<1x128xf32>
    %18 = vector.broadcast %10 : vector<1x128xf32> to vector<64x128xf32>
    %19 = arith.subf %6, %18 : vector<64x128xf32>
    %cst_10 = arith.constant 9.99999974E-6 : f32
    %20 = vector.broadcast %cst_10 : f32 to vector<1x128xf32>
    %21 = arith.addf %17, %20 : vector<1x128xf32>
    %22 = math.rsqrt %21 : vector<1x128xf32>
    %23 = vector.broadcast %22 : vector<1x128xf32> to vector<64x128xf32>
    %24 = arith.mulf %19, %23 : vector<64x128xf32>
    %cst_11 = arith.constant 0.000000e+00 : f32
    %25 = vector.broadcast %cst_11 : f32 to vector<64x128xf32>
    %26 = arith.cmpf oge, %24, %25 : vector<64x128xf32>
    %cst_12 = arith.constant 2.000000e-01 : f32
    %27 = vector.broadcast %cst_12 : f32 to vector<64x128xf32>
    %28 = arith.mulf %27, %24 : vector<64x128xf32>
    %29 = arith.select %26, %24, %28 : vector<64x128xi1>, vector<64x128xf32>
    %30 = arith.truncf %29 : vector<64x128xf32> to vector<64x128xbf16>
    %31 = vector.shape_cast %30 : vector<64x128xbf16> to vector<1x64x128xbf16>
    %c0_13 = arith.constant 0 : index
    %c0_14 = arith.constant 0 : index
    %c0_15 = arith.constant 0 : index
    %32 = vector.load %arg5[%c0_13, %c0_14, %c0_15] : memref<1x64x128xbf16, #tpu.memory_space<vmem>>, vector<1x64x128xbf16>
    tpu.vector_store %arg5[%c0_13, %c0_14, %c0_15], %31 {strides = array<i32>} : memref<1x64x128xbf16, #tpu.memory_space<vmem>>, vector<1x64x128xbf16>,
    return
  }
  func.func @transform_0(%arg0: i32, %arg1: i32) -> (i32, i32, i32) {
    %c0_i32 = arith.constant 0 : i32
    %c0_i32_0 = arith.constant 0 : i32
    %c0_i32_1 = arith.constant 0 : i32
    return %arg0, %c0_i32, %c0_i32_0 : i32, i32, i32
  }
  func.func @transform_1(%arg0: i32, %arg1: i32) -> (i32, i32) {
    %c0_i32 = arith.constant 0 : i32
    %c0_i32_0 = arith.constant 0 : i32
    return %c0_i32, %arg1 : i32, i32
  }
  func.func @transform_2(%arg0: i32, %arg1: i32) -> (i32, i32) {
    %c0_i32 = arith.constant 0 : i32
    %c0_i32_0 = arith.constant 0 : i32
    return %c0_i32, %arg1 : i32, i32
  }
  func.func @transform_3(%arg0: i32, %arg1: i32) -> (i32, i32, i32) {
    %c0_i32 = arith.constant 0 : i32
    %c0_i32_0 = arith.constant 0 : i32
    return %arg0, %c0_i32, %arg1 : i32, i32, i32
  }
}

module attributes {stable_mosaic.version = 11 : i64} {
  func.func @_conv_norm_act_kernel(%arg0: i32, %arg1: i32, %arg2: memref<1x16x1152xbf16, #tpu.memory_space<vmem>>, %arg3: memref<1152x256xbf16, #tpu.memory_space<vmem>>, %arg4: memref<1x256xf32, #tpu.memory_space<vmem>>, %arg5: memref<1x16x256xbf16, #tpu.memory_space<vmem>>) attributes {dimension_semantics = [#tpu.dimension_semantics<parallel>, #tpu.dimension_semantics<parallel>], iteration_bounds = array<i64: 2, 1>, scalar_prefetch = 0 : i64, scratch_operands = 0 : i64, tpu.core_type = #tpu.core_type<tc>, window_params = [{transform_indices = @transform_0, window_bounds = array<i64: 1, 16, 1152>}, {transform_indices = @transform_1, window_bounds = array<i64: 1152, 256>}, {transform_indices = @transform_2, window_bounds = array<i64: 1, 256>}, {transform_indices = @transform_3, window_bounds = array<i64: 1, 16, 256>}]} {
    %c0 = arith.constant 0 : index
    %c0_0 = arith.constant 0 : index
    %c0_1 = arith.constant 0 : index
    %0 = vector.load %arg2[%c0, %c0_0, %c0_1] : memref<1x16x1152xbf16, #tpu.memory_space<vmem>>, vector<1x16x1152xbf16>
    %1 = vector.shape_cast %0 : vector<1x16x1152xbf16> to vector<16x1152xbf16>
    %c0_2 = arith.constant 0 : index
    %c0_3 = arith.constant 0 : index
    %2 = vector.load %arg3[%c0_2, %c0_3] : memref<1152x256xbf16, #tpu.memory_space<vmem>>, vector<1152x256xbf16>
    %cst = arith.constant dense<0.000000e+00> : vector<16x256xf32>
    %3 = tpu.matmul %1, %2, %cst {dimension_numbers = #tpu.dot_dimension_numbers<[1], [0], [0], [1], [0, 0, 1, 1], [], []>} : vector<16x1152xbf16>, vector<1152x256xbf16>, vector<16x256xf32> -> vector<16x256xf32>
    %c0_4 = arith.constant 0 : index
    %c0_5 = arith.constant 0 : index
    %4 = vector.load %arg4[%c0_4, %c0_5] : memref<1x256xf32, #tpu.memory_space<vmem>>, vector<1x256xf32>
    %5 = vector.broadcast %4 : vector<1x256xf32> to vector<16x256xf32>
    %6 = arith.addf %3, %5 : vector<16x256xf32>
    %cst_6 = arith.constant dense<0.000000e+00> : vector<256xf32>
    %7 = vector.multi_reduction <add>, %6, %cst_6 [0] : vector<16x256xf32> to vector<256xf32>
    %8 = vector.shape_cast %7 : vector<256xf32> to vector<1x256xf32>
    %cst_7 = arith.constant 6.250000e-02 : f32
    %9 = vector.broadcast %cst_7 : f32 to vector<1x256xf32>
    %10 = arith.mulf %8, %9 : vector<1x256xf32>
    %11 = arith.mulf %6, %6 : vector<16x256xf32>
    %cst_8 = arith.constant dense<0.000000e+00> : vector<256xf32>
    %12 = vector.multi_reduction <add>, %11, %cst_8 [0] : vector<16x256xf32> to vector<256xf32>
    %13 = vector.shape_cast %12 : vector<256xf32> to vector<1x256xf32>
    %cst_9 = arith.constant 6.250000e-02 : f32
    %14 = vector.broadcast %cst_9 : f32 to vector<1x256xf32>
    %15 = arith.mulf %13, %14 : vector<1x256xf32>
    %16 = arith.mulf %10, %10 : vector<1x256xf32>
    %17 = arith.subf %15, %16 : vector<1x256xf32>
    %18 = vector.broadcast %10 : vector<1x256xf32> to vector<16x256xf32>
    %19 = arith.subf %6, %18 : vector<16x256xf32>
    %cst_10 = arith.constant 9.99999974E-6 : f32
    %20 = vector.broadcast %cst_10 : f32 to vector<1x256xf32>
    %21 = arith.addf %17, %20 : vector<1x256xf32>
    %22 = math.rsqrt %21 : vector<1x256xf32>
    %23 = vector.broadcast %22 : vector<1x256xf32> to vector<16x256xf32>
    %24 = arith.mulf %19, %23 : vector<16x256xf32>
    %cst_11 = arith.constant 0.000000e+00 : f32
    %25 = vector.broadcast %cst_11 : f32 to vector<16x256xf32>
    %26 = arith.cmpf oge, %24, %25 : vector<16x256xf32>
    %cst_12 = arith.constant 2.000000e-01 : f32
    %27 = vector.broadcast %cst_12 : f32 to vector<16x256xf32>
    %28 = arith.mulf %27, %24 : vector<16x256xf32>
    %29 = arith.select %26, %24, %28 : vector<16x256xi1>, vector<16x256xf32>
    %30 = arith.truncf %29 : vector<16x256xf32> to vector<16x256xbf16>
    %31 = vector.shape_cast %30 : vector<16x256xbf16> to vector<1x16x256xbf16>
    %c0_13 = arith.constant 0 : index
    %c0_14 = arith.constant 0 : index
    %c0_15 = arith.constant 0 : index
    %32 = vector.load %arg5[%c0_13, %c0_14, %c0_15] : memref<1x16x256xbf16, #tpu.memory_space<vmem>>, vector<1x16x256xbf16>
    tpu.vector_store %arg5[%c0_13, %c0_14, %c0_15], %31 {strides = array<i32>} : memref<1x16x256xbf16, #tpu.memory_space<vmem>>, vector<1x16x256xbf16>,
    return
  }
  func.func @transform_0(%arg0: i32, %arg1: i32) -> (i32, i32, i32) {
    %c0_i32 = arith.constant 0 : i32
    %c0_i32_0 = arith.constant 0 : i32
    %c0_i32_1 = arith.constant 0 : i32
    return %arg0, %c0_i32, %c0_i32_0 : i32, i32, i32
  }
  func.func @transform_1(%arg0: i32, %arg1: i32) -> (i32, i32) {
    %c0_i32 = arith.constant 0 : i32
    %c0_i32_0 = arith.constant 0 : i32
    return %c0_i32, %arg1 : i32, i32
  }
  func.func @transform_2(%arg0: i32, %arg1: i32) -> (i32, i32) {
    %c0_i32 = arith.constant 0 : i32
    %c0_i32_0 = arith.constant 0 : i32
    return %c0_i32, %arg1 : i32, i32
  }
  func.func @transform_3(%arg0: i32, %arg1: i32) -> (i32, i32, i32) {
    %c0_i32 = arith.constant 0 : i32
    %c0_i32_0 = arith.constant 0 : i32
    return %arg0, %c0_i32, %arg1 : i32, i32, i32
  }
}

module attributes {stable_mosaic.version = 11 : i64} {
  func.func @_conv_norm_act_kernel(%arg0: i32, %arg1: i32, %arg2: memref<1x4x2304xbf16, #tpu.memory_space<vmem>>, %arg3: memref<2304x256xbf16, #tpu.memory_space<vmem>>, %arg4: memref<1x256xf32, #tpu.memory_space<vmem>>, %arg5: memref<1x4x256xbf16, #tpu.memory_space<vmem>>) attributes {dimension_semantics = [#tpu.dimension_semantics<parallel>, #tpu.dimension_semantics<parallel>], iteration_bounds = array<i64: 2, 2>, scalar_prefetch = 0 : i64, scratch_operands = 0 : i64, tpu.core_type = #tpu.core_type<tc>, window_params = [{transform_indices = @transform_0, window_bounds = array<i64: 1, 4, 2304>}, {transform_indices = @transform_1, window_bounds = array<i64: 2304, 256>}, {transform_indices = @transform_2, window_bounds = array<i64: 1, 256>}, {transform_indices = @transform_3, window_bounds = array<i64: 1, 4, 256>}]} {
    %c0 = arith.constant 0 : index
    %c0_0 = arith.constant 0 : index
    %c0_1 = arith.constant 0 : index
    %0 = vector.load %arg2[%c0, %c0_0, %c0_1] : memref<1x4x2304xbf16, #tpu.memory_space<vmem>>, vector<1x4x2304xbf16>
    %1 = vector.shape_cast %0 : vector<1x4x2304xbf16> to vector<4x2304xbf16>
    %c0_2 = arith.constant 0 : index
    %c0_3 = arith.constant 0 : index
    %2 = vector.load %arg3[%c0_2, %c0_3] : memref<2304x256xbf16, #tpu.memory_space<vmem>>, vector<2304x256xbf16>
    %cst = arith.constant dense<0.000000e+00> : vector<4x256xf32>
    %3 = tpu.matmul %1, %2, %cst {dimension_numbers = #tpu.dot_dimension_numbers<[1], [0], [0], [1], [0, 0, 1, 1], [], []>} : vector<4x2304xbf16>, vector<2304x256xbf16>, vector<4x256xf32> -> vector<4x256xf32>
    %c0_4 = arith.constant 0 : index
    %c0_5 = arith.constant 0 : index
    %4 = vector.load %arg4[%c0_4, %c0_5] : memref<1x256xf32, #tpu.memory_space<vmem>>, vector<1x256xf32>
    %5 = vector.broadcast %4 : vector<1x256xf32> to vector<4x256xf32>
    %6 = arith.addf %3, %5 : vector<4x256xf32>
    %cst_6 = arith.constant dense<0.000000e+00> : vector<256xf32>
    %7 = vector.multi_reduction <add>, %6, %cst_6 [0] : vector<4x256xf32> to vector<256xf32>
    %8 = vector.shape_cast %7 : vector<256xf32> to vector<1x256xf32>
    %cst_7 = arith.constant 2.500000e-01 : f32
    %9 = vector.broadcast %cst_7 : f32 to vector<1x256xf32>
    %10 = arith.mulf %8, %9 : vector<1x256xf32>
    %11 = arith.mulf %6, %6 : vector<4x256xf32>
    %cst_8 = arith.constant dense<0.000000e+00> : vector<256xf32>
    %12 = vector.multi_reduction <add>, %11, %cst_8 [0] : vector<4x256xf32> to vector<256xf32>
    %13 = vector.shape_cast %12 : vector<256xf32> to vector<1x256xf32>
    %cst_9 = arith.constant 2.500000e-01 : f32
    %14 = vector.broadcast %cst_9 : f32 to vector<1x256xf32>
    %15 = arith.mulf %13, %14 : vector<1x256xf32>
    %16 = arith.mulf %10, %10 : vector<1x256xf32>
    %17 = arith.subf %15, %16 : vector<1x256xf32>
    %18 = vector.broadcast %10 : vector<1x256xf32> to vector<4x256xf32>
    %19 = arith.subf %6, %18 : vector<4x256xf32>
    %cst_10 = arith.constant 9.99999974E-6 : f32
    %20 = vector.broadcast %cst_10 : f32 to vector<1x256xf32>
    %21 = arith.addf %17, %20 : vector<1x256xf32>
    %22 = math.rsqrt %21 : vector<1x256xf32>
    %23 = vector.broadcast %22 : vector<1x256xf32> to vector<4x256xf32>
    %24 = arith.mulf %19, %23 : vector<4x256xf32>
    %cst_11 = arith.constant 0.000000e+00 : f32
    %25 = vector.broadcast %cst_11 : f32 to vector<4x256xf32>
    %26 = arith.cmpf oge, %24, %25 : vector<4x256xf32>
    %cst_12 = arith.constant 2.000000e-01 : f32
    %27 = vector.broadcast %cst_12 : f32 to vector<4x256xf32>
    %28 = arith.mulf %27, %24 : vector<4x256xf32>
    %29 = arith.select %26, %24, %28 : vector<4x256xi1>, vector<4x256xf32>
    %30 = arith.truncf %29 : vector<4x256xf32> to vector<4x256xbf16>
    %31 = vector.shape_cast %30 : vector<4x256xbf16> to vector<1x4x256xbf16>
    %c0_13 = arith.constant 0 : index
    %c0_14 = arith.constant 0 : index
    %c0_15 = arith.constant 0 : index
    %32 = vector.load %arg5[%c0_13, %c0_14, %c0_15] : memref<1x4x256xbf16, #tpu.memory_space<vmem>>, vector<1x4x256xbf16>
    tpu.vector_store %arg5[%c0_13, %c0_14, %c0_15], %31 {strides = array<i32>} : memref<1x4x256xbf16, #tpu.memory_space<vmem>>, vector<1x4x256xbf16>,
    return
  }
  func.func @transform_0(%arg0: i32, %arg1: i32) -> (i32, i32, i32) {
    %c0_i32 = arith.constant 0 : i32
    %c0_i32_0 = arith.constant 0 : i32
    %c0_i32_1 = arith.constant 0 : i32
    return %arg0, %c0_i32, %c0_i32_0 : i32, i32, i32
  }
  func.func @transform_1(%arg0: i32, %arg1: i32) -> (i32, i32) {
    %c0_i32 = arith.constant 0 : i32
    %c0_i32_0 = arith.constant 0 : i32
    return %c0_i32, %arg1 : i32, i32
  }
  func.func @transform_2(%arg0: i32, %arg1: i32) -> (i32, i32) {
    %c0_i32 = arith.constant 0 : i32
    %c0_i32_0 = arith.constant 0 : i32
    return %c0_i32, %arg1 : i32, i32
  }
  func.func @transform_3(%arg0: i32, %arg1: i32) -> (i32, i32, i32) {
    %c0_i32 = arith.constant 0 : i32
    %c0_i32_0 = arith.constant 0 : i32
    return %arg0, %c0_i32, %arg1 : i32, i32, i32
  }
}

module attributes {stable_mosaic.version = 11 : i64} {
  func.func @_conv_norm_act_kernel(%arg0: i32, %arg1: i32, %arg2: memref<1x4x4608xbf16, #tpu.memory_space<vmem>>, %arg3: memref<4608x128xbf16, #tpu.memory_space<vmem>>, %arg4: memref<1x128xf32, #tpu.memory_space<vmem>>, %arg5: memref<1x4x128xf32, #tpu.memory_space<vmem>>) attributes {dimension_semantics = [#tpu.dimension_semantics<parallel>, #tpu.dimension_semantics<parallel>], iteration_bounds = array<i64: 2, 1>, scalar_prefetch = 0 : i64, scratch_operands = 0 : i64, tpu.core_type = #tpu.core_type<tc>, window_params = [{transform_indices = @transform_0, window_bounds = array<i64: 1, 4, 4608>}, {transform_indices = @transform_1, window_bounds = array<i64: 4608, 128>}, {transform_indices = @transform_2, window_bounds = array<i64: 1, 128>}, {transform_indices = @transform_3, window_bounds = array<i64: 1, 4, 128>}]} {
    %c0 = arith.constant 0 : index
    %c0_0 = arith.constant 0 : index
    %c0_1 = arith.constant 0 : index
    %0 = vector.load %arg2[%c0, %c0_0, %c0_1] : memref<1x4x4608xbf16, #tpu.memory_space<vmem>>, vector<1x4x4608xbf16>
    %1 = vector.shape_cast %0 : vector<1x4x4608xbf16> to vector<4x4608xbf16>
    %c0_2 = arith.constant 0 : index
    %c0_3 = arith.constant 0 : index
    %2 = vector.load %arg3[%c0_2, %c0_3] : memref<4608x128xbf16, #tpu.memory_space<vmem>>, vector<4608x128xbf16>
    %cst = arith.constant dense<0.000000e+00> : vector<4x128xf32>
    %3 = tpu.matmul %1, %2, %cst {dimension_numbers = #tpu.dot_dimension_numbers<[1], [0], [0], [1], [0, 0, 1, 1], [], []>} : vector<4x4608xbf16>, vector<4608x128xbf16>, vector<4x128xf32> -> vector<4x128xf32>
    %c0_4 = arith.constant 0 : index
    %c0_5 = arith.constant 0 : index
    %4 = vector.load %arg4[%c0_4, %c0_5] : memref<1x128xf32, #tpu.memory_space<vmem>>, vector<1x128xf32>
    %5 = vector.broadcast %4 : vector<1x128xf32> to vector<4x128xf32>
    %6 = arith.addf %3, %5 : vector<4x128xf32>
    %7 = arith.negf %6 : vector<4x128xf32>
    %8 = math.exp %7 : vector<4x128xf32>
    %cst_6 = arith.constant 1.000000e+00 : f32
    %9 = vector.broadcast %cst_6 : f32 to vector<4x128xf32>
    %10 = arith.addf %9, %8 : vector<4x128xf32>
    %11 = arith.divf %9, %10 : vector<4x128xf32>
    %12 = vector.shape_cast %11 : vector<4x128xf32> to vector<1x4x128xf32>
    %c0_7 = arith.constant 0 : index
    %c0_8 = arith.constant 0 : index
    %c0_9 = arith.constant 0 : index
    %13 = vector.load %arg5[%c0_7, %c0_8, %c0_9] : memref<1x4x128xf32, #tpu.memory_space<vmem>>, vector<1x4x128xf32>
    tpu.vector_store %arg5[%c0_7, %c0_8, %c0_9], %12 {strides = array<i32>} : memref<1x4x128xf32, #tpu.memory_space<vmem>>, vector<1x4x128xf32>,
    return
  }
  func.func @transform_0(%arg0: i32, %arg1: i32) -> (i32, i32, i32) {
    %c0_i32 = arith.constant 0 : i32
    %c0_i32_0 = arith.constant 0 : i32
    %c0_i32_1 = arith.constant 0 : i32
    return %arg0, %c0_i32, %c0_i32_0 : i32, i32, i32
  }
  func.func @transform_1(%arg0: i32, %arg1: i32) -> (i32, i32) {
    %c0_i32 = arith.constant 0 : i32
    %c0_i32_0 = arith.constant 0 : i32
    return %c0_i32, %arg1 : i32, i32
  }
  func.func @transform_2(%arg0: i32, %arg1: i32) -> (i32, i32) {
    %c0_i32 = arith.constant 0 : i32
    %c0_i32_0 = arith.constant 0 : i32
    return %c0_i32, %arg1 : i32, i32
  }
  func.func @transform_3(%arg0: i32, %arg1: i32) -> (i32, i32, i32) {
    %c0_i32 = arith.constant 0 : i32
    %c0_i32_0 = arith.constant 0 : i32
    return %arg0, %c0_i32, %arg1 : i32, i32, i32
  }
}

</mosaic_0001>

<llo_original>
// kernel: discriminator_forward.5
$region0: #{discriminator_forward.5}
  #allocation0 [shape = 'u32[]', space=smem, size = 0x4, offset = 0x4, fixed_abs, tag = 'smem constant byte address 0x4 - core index']
  #allocation1 [shape = 'u32[144,128]{1,0:T(1,128)}', space=vmem, size = 0x12000, scoped, tag = 'internal scratch']
  %s0 = inlined_call_operand.vmem [shape: bf16[2,256,54], index: 0, kind: input, shape index: {}]
  %s1 = inlined_call_operand.vmem [shape: bf16[54,128], index: 1, kind: input, shape index: {}]
  %s2 = inlined_call_operand.vmem [shape: f32[1,128], index: 2, kind: input, shape index: {}]
  %s3 = inlined_call_operand.vmem [shape: bf16[2,256,128], index: 3, kind: output, shape index: {}]
  %s4 = sld [smem:[#allocation0]]
  $region45: #{discriminator_forward.5} parent=0
    _
  %s6 = ssub.s32 1, %s4
  %s7 = scalar_select 0, %s6, %s4
  loop: start=0, step=1, limit=4
  $region2: #{discriminator_forward.5} parent=0 // loop_pre_header
    _
  $region3: #{discriminator_forward.5} parent=0 // loop_header
    %s9 = sphi 0, %s13
    %p10 = scmp.ge.s32.totalorder %s9, 4
    %s16 = sphi 0, %s28
    %s17 = sphi 0, %s24
    %s18 = sphi 0, %s16
    %s19 = sphi 0, %s17
    %s20 = sphi 0, %s18
    %s21 = sphi 0, %s19
    %s31 = sphi 0, %s33
    %s34 = sphi 0, %s31
    %s35 = sphi 0, %s34
    %s51 = sphi 0, %s35
    %s57 = sphi 0, %s59
    %s60 = sphi 0, %s57
    %s61 = sphi 0, %s60
    %s77 = sphi 0, %s61
    %s83 = sphi 0, %s85
    %s86 = sphi 0, %s83
    %s87 = sphi 0, %s86
    %s103 = sphi 0, %s87
    %s111 = sphi 0, %s113
    %s114 = sphi 0, %s111
    %s115 = sphi 0, %s114
    %s131 = sphi 0, %s115
  $region4: #{discriminator_forward.5} parent=0 // loop_header_branch
    %12 = sbr.rel (%p10) target = $region8
  $region5: #{discriminator_forward.5} parent=0 // loop_body
    %s14 = ssub.s32 %s9, 1
    %s15 = ssub.s32 %s9, 2
    %s22 = sadd.s32 1, %s17
    %p23 = scmp.ge.s32.totalorder %s22, 1
    %s24 = scalar_select %p23, 0, %s22
    %s25 = sadd.s32 1, %s16
    %s26 = scalar_select %p23, %s25, %s16
    %p27 = scmp.ge.s32.totalorder %s26, 2
    %s28 = scalar_select %p27, 0, %s26
    %s29 = ssub.s32 %s16, %s28
    %p30 = scmp.eq.s32.totalorder %s29, 0
    %s32 = sadd.s32 %s31, 1
    %s33 = scalar_select %p30, %s31, %s32
    %p36 = pneg %p30
    %p37 = scmp.eq.s32.totalorder %s9, 1
    %p38 = por %p36, %p37
    %p39 = scmp.ne.s32.totalorder %s31, %s34
    %p40 = scmp.eq.s32.totalorder %s9, 0
    %p41 = por %p39, %p40
    %p42 = scmp.ne.s32.totalorder %s31, %s34
    %p43 = scmp.eq.s32.totalorder %s14, 1
    %p44 = por %p42, %p43
    %p45 = scmp.ne.s32.totalorder %s34, %s35
    %p46 = scmp.eq.s32.totalorder %s14, 0
    %p47 = por %p45, %p46
    %p48 = scmp.ne.s32.totalorder %s34, %s35
    %p49 = scmp.eq.s32.totalorder %s15, 1
    %p50 = por %p48, %p49
    %p52 = scmp.ne.s32.totalorder %s35, %s51
    %p53 = scmp.eq.s32.totalorder %s15, 0
    %p54 = por %p52, %p53
    %s55 = ssub.s32 %s17, %s24
    %p56 = scmp.eq.s32.totalorder %s55, 0
    %s58 = sadd.s32 %s57, 1
    %s59 = scalar_select %p56, %s57, %s58
    %p62 = pneg %p56
    %p63 = scmp.eq.s32.totalorder %s9, 1
    %p64 = por %p62, %p63
    %p65 = scmp.ne.s32.totalorder %s57, %s60
    %p66 = scmp.eq.s32.totalorder %s9, 0
    %p67 = por %p65, %p66
    %p68 = scmp.ne.s32.totalorder %s57, %s60
    %p69 = scmp.eq.s32.totalorder %s14, 1
    %p70 = por %p68, %p69
    %p71 = scmp.ne.s32.totalorder %s60, %s61
    %p72 = scmp.eq.s32.totalorder %s14, 0
    %p73 = por %p71, %p72
    %p74 = scmp.ne.s32.totalorder %s60, %s61
    %p75 = scmp.eq.s32.totalorder %s15, 1
    %p76 = por %p74, %p75
    %p78 = scmp.ne.s32.totalorder %s61, %s77
    %p79 = scmp.eq.s32.totalorder %s15, 0
    %p80 = por %p78, %p79
    %s81 = ssub.s32 %s17, %s24
    %p82 = scmp.eq.s32.totalorder %s81, 0
    %s84 = sadd.s32 %s83, 1
    %s85 = scalar_select %p82, %s83, %s84
    %p88 = pneg %p82
    %p89 = scmp.eq.s32.totalorder %s9, 1
    %p90 = por %p88, %p89
    %p91 = scmp.ne.s32.totalorder %s83, %s86
    %p92 = scmp.eq.s32.totalorder %s9, 0
    %p93 = por %p91, %p92
    %p94 = scmp.ne.s32.totalorder %s83, %s86
    %p95 = scmp.eq.s32.totalorder %s14, 1
    %p96 = por %p94, %p95
    %p97 = scmp.ne.s32.totalorder %s86, %s87
    %p98 = scmp.eq.s32.totalorder %s14, 0
    %p99 = por %p97, %p98
    %p100 = scmp.ne.s32.totalorder %s86, %s87
    %p101 = scmp.eq.s32.totalorder %s15, 1
    %p102 = por %p100, %p101
    %p104 = scmp.ne.s32.totalorder %s87, %s103
    %p105 = scmp.eq.s32.totalorder %s15, 0
    %p106 = por %p104, %p105
    %s107 = ssub.s32 %s16, %s28
    %s108 = ssub.s32 %s17, %s24
    %s109 = sor.u32 %s107, %s108
    %p110 = scmp.eq.s32.totalorder %s109, 0
    %s112 = sadd.s32 %s111, 1
    %s113 = scalar_select %p110, %s111, %s112
    %p116 = pneg %p110
    %p117 = scmp.eq.s32.totalorder %s9, 1
    %p118 = por %p116, %p117
    %p119 = scmp.ne.s32.totalorder %s111, %s114
    %p120 = scmp.eq.s32.totalorder %s9, 0
    %p121 = por %p119, %p120
    %p122 = scmp.ne.s32.totalorder %s111, %s114
    %p123 = scmp.eq.s32.totalorder %s14, 1
    %p124 = por %p122, %p123
    %p125 = scmp.ne.s32.totalorder %s114, %s115
    %p126 = scmp.eq.s32.totalorder %s14, 0
    %p127 = por %p125, %p126
    %p128 = scmp.ne.s32.totalorder %s114, %s115
    %p129 = scmp.eq.s32.totalorder %s15, 1
    %p130 = por %p128, %p129
    %p132 = scmp.ne.s32.totalorder %s115, %s131
    %p133 = scmp.eq.s32.totalorder %s15, 0
    %p134 = por %p132, %p133
    %p135 = scmp.le.s32.totalorder 1, %s9
    %p136 = scmp.lt.s32.totalorder %s9, 3
    %p137 = pnand %p135, %p136
    %p138 = pneg %p137
    // Predicated region
    $region9: #{discriminator_forward.5} parent=5 // pred_check
      _
    $region10: #{discriminator_forward.5} parent=5 // pred_check_branch
      %140 = sbr.rel (%p137) target = $region12
    $region11: #{discriminator_forward.5} parent=5 // pred_region
      %s141 = ssub.s32 %s9, 1
      // Predicated region
      $region13: #{discriminator_forward.5} parent=11 // pred_check
        %p142 = pneg %p73
      $region14: #{discriminator_forward.5} parent=11 // pred_check_branch
        %144 = sbr.rel (%p142) target = $region16
      $region15: #{discriminator_forward.5} parent=11 // pred_region
        %p145 = scmp.lt.s32.totalorder %s19, 0
        %s146 = scalar_select %p145, %s19, 0
        %s147 = smul.addr %s146, 4
        %s148 = scalar_lea.vmem %s1, %s147
      $region16: #{discriminator_forward.5} parent=11 // pred_fallthru
        _
      // Predicated region
      $region17: #{discriminator_forward.5} parent=11 // pred_check
        %p149 = pneg %p99
      $region18: #{discriminator_forward.5} parent=11 // pred_check_branch
        %151 = sbr.rel (%p149) target = $region20
      $region19: #{discriminator_forward.5} parent=11 // pred_region
        %p152 = scmp.lt.s32.totalorder %s19, 0
        %s153 = scalar_select %p152, %s19, 0
        %s154 = scalar_lea.vmem %s2, %s153
      $region20: #{discriminator_forward.5} parent=11 // pred_fallthru
        _
    $region12: #{discriminator_forward.5} parent=5 // pred_fallthru
      _
    %p155 = scmp.lt.s32.totalorder %s9, 2
    // Predicated region
    $region21: #{discriminator_forward.5} parent=5 // pred_check
      %p156 = pneg %p155
    $region22: #{discriminator_forward.5} parent=5 // pred_check_branch
      %158 = sbr.rel (%p156) target = $region24
    $region23: #{discriminator_forward.5} parent=5 // pred_region
      // Predicated region
      $region25: #{discriminator_forward.5} parent=23 // pred_check
        %p159 = pneg %p41
      $region26: #{discriminator_forward.5} parent=23 // pred_check_branch
        %161 = sbr.rel (%p159) target = $region28
      $region27: #{discriminator_forward.5} parent=23 // pred_region
        %p162 = scmp.lt.s32.totalorder %s16, 1
        %s163 = scalar_select %p162, %s16, 1
        %s164 = smul.addr %s163, 32
        %s165 = smul.addr %s164, 4
        %s166 = scalar_lea.vmem %s0, %s165
      $region28: #{discriminator_forward.5} parent=23 // pred_fallthru
        _
    $region24: #{discriminator_forward.5} parent=5 // pred_fallthru
      _
    %p167 = scmp.le.s32.totalorder 1, %s9
    %p168 = scmp.lt.s32.totalorder %s9, 3
    %p169 = pnand %p167, %p168
    %p170 = pneg %p169
    // Predicated region
    $region29: #{discriminator_forward.5} parent=5 // pred_check
      _
    $region30: #{discriminator_forward.5} parent=5 // pred_check_branch
      %172 = sbr.rel (%p169) target = $region32
    $region31: #{discriminator_forward.5} parent=5 // pred_region
      %s173 = ssub.s32 %s9, 1
      %p174 = scmp.lt.s32.totalorder %s18, 1
      %s175 = scalar_select %p174, %s18, 1
      %s176 = smul.addr %s175, 32
      %s177 = smul.addr %s176, 4
      %s178 = scalar_lea.vmem %s0, %s177
      %p179 = pneg %p47
      %p180 = pneg %p44
      %p181 = scmp.lt.s32.totalorder %s19, 0
      %s182 = scalar_select %p181, %s19, 0
      %s183 = smul.addr %s182, 4
      %s184 = scalar_lea.vmem %s1, %s183
      %p185 = pneg %p73
      %p186 = pneg %p70
      %p187 = scmp.lt.s32.totalorder %s19, 0
      %s188 = scalar_select %p187, %s19, 0
      %s189 = scalar_lea.vmem %s2, %s188
      %p190 = pneg %p99
      %p191 = pneg %p96
      %p192 = pneg %p127
      %p193 = pneg %p124
      %p194 = scmp.lt.s32.totalorder %s18, 1
      %s195 = scalar_select %p194, %s18, 1
      %p196 = scmp.lt.s32.totalorder %s19, 0
      %s197 = scalar_select %p196, %s19, 0
      %s198 = smul.addr %s195, 32
      %s199 = sadd.s32 %s197, %s198
      %s200 = smul.addr %s199, 4
      %s201 = scalar_lea.vmem %s3, %s200
      %p202 = scmp.lt.s32.totalorder %s18, 1
      %s203 = scalar_select %p202, %s18, 1
      %s204 = smul.addr %s203, 32
      %s205 = smul.addr %s204, 4
      %s206 = scalar_lea.vmem %s0, %s205
      %p207 = scmp.lt.s32.totalorder %s19, 0
      %s208 = scalar_select %p207, %s19, 0
      %s209 = smul.addr %s208, 4
      %s210 = scalar_lea.vmem %s1, %s209
      %p211 = scmp.lt.s32.totalorder %s19, 0
      %s212 = scalar_select %p211, %s19, 0
      %s213 = scalar_lea.vmem %s2, %s212
      %p214 = scmp.lt.s32.totalorder %s18, 1
      %s215 = scalar_select %p214, %s18, 1
      %p216 = scmp.lt.s32.totalorder %s19, 0
      %s217 = scalar_select %p216, %s19, 0
      %s218 = smul.addr %s215, 32
      %s219 = sadd.s32 %s217, %s218
      %s220 = smul.addr %s219, 4
      %s221 = scalar_lea.vmem %s3, %s220
      %v223 = vld [vmem:[%s206] sm:$0xf]
      %v224 = vld [vmem:[%s206 + $0x4] sm:$0xf]
      %v225 = vld [vmem:[%s206 + $0x8] sm:$0xf]
      %v226 = vld [vmem:[%s206 + $0xc] sm:$0xf]
      %v227 = vld [vmem:[%s206 + $0x10] sm:$0xf]
      %v228 = vld [vmem:[%s206 + $0x14] sm:$0xf]
      %v229 = vld [vmem:[%s206 + $0x18] sm:$0xf]
      %v230 = vld [vmem:[%s206 + $0x1c] sm:$0xf]
      %v231 = vld [vmem:[%s206 + $0x20] sm:$0xf]
      %v232 = vld [vmem:[%s206 + $0x24] sm:$0xf]
      %v233 = vld [vmem:[%s206 + $0x28] sm:$0xf]
      %v234 = vld [vmem:[%s206 + $0x2c] sm:$0xf]
      %v235 = vld [vmem:[%s206 + $0x30] sm:$0xf]
      %v236 = vld [vmem:[%s206 + $0x34] sm:$0xf]
      %v237 = vld [vmem:[%s206 + $0x38] sm:$0xf]
      %v238 = vld [vmem:[%s206 + $0x3c] sm:$0xf]
      %v239 = vld [vmem:[%s206 + $0x40] sm:$0xf]
      %v240 = vld [vmem:[%s206 + $0x44] sm:$0xf]
      %v241 = vld [vmem:[%s206 + $0x48] sm:$0xf]
      %v242 = vld [vmem:[%s206 + $0x4c] sm:$0xf]
      %v243 = vld [vmem:[%s206 + $0x50] sm:$0xf]
      %v244 = vld [vmem:[%s206 + $0x54] sm:$0xf]
      %v245 = vld [vmem:[%s206 + $0x58] sm:$0xf]
      %v246 = vld [vmem:[%s206 + $0x5c] sm:$0xf]
      %v247 = vld [vmem:[%s206 + $0x60] sm:$0xf]
      %v248 = vld [vmem:[%s206 + $0x64] sm:$0xf]
      %v249 = vld [vmem:[%s206 + $0x68] sm:$0xf]
      %v250 = vld [vmem:[%s206 + $0x6c] sm:$0xf]
      %v251 = vld [vmem:[%s206 + $0x70] sm:$0xf]
      %v252 = vld [vmem:[%s206 + $0x74] sm:$0xf]
      %v253 = vld [vmem:[%s206 + $0x78] sm:$0xf]
      %v254 = vld [vmem:[%s206 + $0x7c] sm:$0xf]
      %v255 = vld [vmem:[%s210] sm:$0xf]
      %v256 = vld [vmem:[%s210 + $0x4] sm:$0xf]
      %v257 = vld [vmem:[%s210 + $0x8] sm:$0xf]
      %v258 = vld [vmem:[%s210 + $0xc] sm:$0xf]
      %v259 = vld [vmem:[%s210 + $0x10] sm:$0xf]
      %v260 = vld [vmem:[%s210 + $0x14] sm:$0xf]
      %v261 = vld [vmem:[%s210 + $0x18] sm:$0x7]
      %v262 = vld [vmem:[%s213] sm:$0x1]
      %v264 = vlaneseq
      %v265 = vshrl.u32 %v264, 7
      %v266 = vsub.s32 0, %v265
      %v267 = vrot.slane %v262, %v266
      %v301 = vunpack.c.l.b16 %v223
      %v302 = vunpack.c.l.b16 %v224
      %v303 = vunpack.c.l.b16 %v225
      %v304 = vunpack.c.l.b16 %v226
      %v305 = vunpack.c.l.b16 %v227
      %v306 = vunpack.c.l.b16 %v228
      %v307 = vunpack.c.l.b16 %v229
      %v308 = vunpack.c.l.b16 %v230
      %v309 = vunpack.c.l.b16 %v231
      %v310 = vunpack.c.l.b16 %v232
      %v311 = vunpack.c.l.b16 %v233
      %v312 = vunpack.c.l.b16 %v234
      %v313 = vunpack.c.l.b16 %v235
      %v314 = vunpack.c.l.b16 %v236
      %v315 = vunpack.c.l.b16 %v237
      %v316 = vunpack.c.l.b16 %v238
      %v317 = vunpack.c.l.b16 %v239
      %v318 = vunpack.c.l.b16 %v240
      %v319 = vunpack.c.l.b16 %v241
      %v320 = vunpack.c.l.b16 %v242
      %v321 = vunpack.c.l.b16 %v243
      %v322 = vunpack.c.l.b16 %v244
      %v323 = vunpack.c.l.b16 %v245
      %v324 = vunpack.c.l.b16 %v246
      %v325 = vunpack.c.l.b16 %v247
      %v326 = vunpack.c.l.b16 %v248
      %v327 = vunpack.c.l.b16 %v249
      %v328 = vunpack.c.l.b16 %v250
      %v329 = vunpack.c.l.b16 %v251
      %v330 = vunpack.c.l.b16 %v252
      %v331 = vunpack.c.l.b16 %v253
      %v332 = vunpack.c.l.b16 %v254
      %v333 = vpack.c.b16 %v302, %v301
      %v334 = vpack.c.b16 %v304, %v303
      %v335 = vpack.c.b16 %v306, %v305
      %v336 = vpack.c.b16 %v308, %v307
      %v337 = vpack.c.b16 %v310, %v309
      %v338 = vpack.c.b16 %v312, %v311
      %v339 = vpack.c.b16 %v314, %v313
      %v340 = vpack.c.b16 %v316, %v315
      %v341 = vpack.c.b16 %v318, %v317
      %v342 = vpack.c.b16 %v320, %v319
      %v343 = vpack.c.b16 %v322, %v321
      %v344 = vpack.c.b16 %v324, %v323
      %v345 = vpack.c.b16 %v326, %v325
      %v346 = vpack.c.b16 %v328, %v327
      %v347 = vpack.c.b16 %v330, %v329
      %v348 = vpack.c.b16 %v332, %v331
      %v356 = vunpack.c.l.b16 %v255
      %v357 = vunpack.c.l.b16 %v256
      %v358 = vunpack.c.l.b16 %v257
      %v359 = vunpack.c.l.b16 %v258
      %v360 = vunpack.c.l.b16 %v259
      %v361 = vunpack.c.l.b16 %v260
      %v362 = vunpack.c.l.b16 %v261
      %v363 = vpack.c.b16 %v357, %v356
      %v364 = vpack.c.b16 %v359, %v358
      %v365 = vpack.c.b16 %v361, %v360
      %v366 = vpack.c.b16 %v362, %v362
      %vm370 = vcmask 441344
      %v372 = vsel %vm370, %v333, 0
      %v375 = vsel %vm370, %v334, 0
      %v378 = vsel %vm370, %v335, 0
      %v381 = vsel %vm370, %v336, 0
      %v384 = vsel %vm370, %v337, 0
      %v387 = vsel %vm370, %v338, 0
      %v390 = vsel %vm370, %v339, 0
      %v393 = vsel %vm370, %v340, 0
      %v396 = vsel %vm370, %v341, 0
      %v399 = vsel %vm370, %v342, 0
      %v402 = vsel %vm370, %v343, 0
      %v405 = vsel %vm370, %v344, 0
      %v408 = vsel %vm370, %v345, 0
      %v411 = vsel %vm370, %v346, 0
      %v414 = vsel %vm370, %v347, 0
      %v417 = vsel %vm370, %v348, 0
      %vm419 = vcmask 1042432
      %v421 = vsel %vm419, %v366, 0
      %423 = vmatprep.subr.bf16.mxu0 0
      %424 = vmatpush1.bf16.msra.mxu0 0
      %425 = vmatprep.subr.bf16.mxu0 0
      %426 = vmatpush1.bf16.msra.mxu0 0
      %427 = vmatprep.subr.bf16.mxu0 0
      %428 = vmatpush1.bf16.msra.mxu0 0
      %429 = vmatprep.subr.bf16.mxu0 0
      %430 = vmatpush1.bf16.msra.mxu0 0
      %431 = vmatprep.subr.bf16.mxu0 0
      %432 = vmatpush1.bf16.msra.mxu0 %v421
      %433 = vmatprep.subr.bf16.mxu0 0
      %434 = vmatpush1.bf16.msra.mxu0 %v365
      %435 = vmatprep.subr.bf16.mxu0 0
      %436 = vmatpush1.bf16.msra.mxu0 %v364
      %437 = vmatprep.subr.bf16.mxu0 0
      %438 = vmatpush1.bf16.msra.mxu0 %v363
      %439 = vmatprep.subr.bf16.mxu0 0
      %440 = vmatpush2.bf16.msra.mxu0 0
      %441 = vmatprep.subr.bf16.mxu0 0
      %442 = vmatpush2.bf16.msra.mxu0 0
      %443 = vmatprep.subr.bf16.mxu0 0
      %444 = vmatpush2.bf16.msra.mxu0 0
      %445 = vmatprep.subr.bf16.mxu0 0
      %446 = vmatpush2.bf16.msra.mxu0 0
      %447 = vmatprep.subr.bf16.mxu0 0
      %448 = vmatpush2.bf16.msra.mxu0 0
      %449 = vmatprep.subr.bf16.mxu0 0
      %450 = vmatpush2.bf16.msra.mxu0 0
      %451 = vmatprep.subr.bf16.mxu0 0
      %452 = vmatpush2.bf16.msra.mxu0 0
      %453 = vmatprep.subr.bf16.mxu0 0
      %454 = vmatpush2.bf16.msra.mxu0 0
      %455 = vmatprep.mubr.bf16.mxu0 0
      %456 = vmatmul.mubr.bf16.gmra.mxu0 %v372
      %v457 = vpop.f32.mrf.mxu0
      %v458 = vadd.f32 %v267, %v457
      %v459 = vpop.f32.mrf.mxu0
      %v460 = vpop.f32.mrf.mxu0
      %v461 = vadd.f32 %v267, %v460
      %v462 = vpop.f32.mrf.mxu0
      %463 = vmatprep.mubr.bf16.mxu0 0
      %464 = vmatmul.mubr.bf16.gmra.mxu0 %v375
      %v465 = vpop.f32.mrf.mxu0
      %v466 = vadd.f32 %v267, %v465
      %v467 = vpop.f32.mrf.mxu0
      %v468 = vpop.f32.mrf.mxu0
      %v469 = vadd.f32 %v267, %v468
      %v470 = vpop.f32.mrf.mxu0
      %471 = vmatprep.mubr.bf16.mxu0 0
      %472 = vmatmul.mubr.bf16.gmra.mxu0 %v378
      %v473 = vpop.f32.mrf.mxu0
      %v474 = vadd.f32 %v267, %v473
      %v475 = vpop.f32.mrf.mxu0
      %v476 = vpop.f32.mrf.mxu0
      %v477 = vadd.f32 %v267, %v476
      %v478 = vpop.f32.mrf.mxu0
      %479 = vmatprep.mubr.bf16.mxu0 0
      %480 = vmatmul.mubr.bf16.gmra.mxu0 %v381
      %v481 = vpop.f32.mrf.mxu0
      %v482 = vadd.f32 %v267, %v481
      %v483 = vpop.f32.mrf.mxu0
      %v484 = vpop.f32.mrf.mxu0
      %v485 = vadd.f32 %v267, %v484
      %v486 = vpop.f32.mrf.mxu0
      %487 = vmatprep.mubr.bf16.mxu0 0
      %488 = vmatmul.mubr.bf16.gmra.mxu0 %v384
      %v489 = vpop.f32.mrf.mxu0
      %v490 = vadd.f32 %v267, %v489
      %v491 = vpop.f32.mrf.mxu0
      %v492 = vpop.f32.mrf.mxu0
      %v493 = vadd.f32 %v267, %v492
      %v494 = vpop.f32.mrf.mxu0
      %495 = vmatprep.mubr.bf16.mxu0 0
      %496 = vmatmul.mubr.bf16.gmra.mxu0 %v387
      %v497 = vpop.f32.mrf.mxu0
      %v498 = vadd.f32 %v267, %v497
      %v499 = vpop.f32.mrf.mxu0
      %v500 = vpop.f32.mrf.mxu0
      %v501 = vadd.f32 %v267, %v500
      %v502 = vpop.f32.mrf.mxu0
      %503 = vmatprep.mubr.bf16.mxu0 0
      %504 = vmatmul.mubr.bf16.gmra.mxu0 %v390
      %v505 = vpop.f32.mrf.mxu0
      %v506 = vadd.f32 %v267, %v505
      %v507 = vpop.f32.mrf.mxu0
      %v508 = vpop.f32.mrf.mxu0
      %v509 = vadd.f32 %v267, %v508
      %v510 = vpop.f32.mrf.mxu0
      %511 = vmatprep.mubr.bf16.mxu0 0
      %512 = vmatmul.mubr.bf16.gmra.mxu0 %v393
      %v513 = vpop.f32.mrf.mxu0
      %v514 = vadd.f32 %v267, %v513
      %v515 = vpop.f32.mrf.mxu0
      %v516 = vpop.f32.mrf.mxu0
      %v517 = vadd.f32 %v267, %v516
      %v518 = vpop.f32.mrf.mxu0
      %519 = vmatprep.mubr.bf16.mxu0 0
      %520 = vmatmul.mubr.bf16.gmra.mxu0 %v396
      %v521 = vpop.f32.mrf.mxu0
      %v522 = vadd.f32 %v267, %v521
      %v523 = vpop.f32.mrf.mxu0
      %v524 = vpop.f32.mrf.mxu0
      %v525 = vadd.f32 %v267, %v524
      %v526 = vpop.f32.mrf.mxu0
      %527 = vmatprep.mubr.bf16.mxu0 0
      %528 = vmatmul.mubr.bf16.gmra.mxu0 %v399
      %v529 = vpop.f32.mrf.mxu0
      %v530 = vadd.f32 %v267, %v529
      %v531 = vpop.f32.mrf.mxu0
      %v532 = vpop.f32.mrf.mxu0
      %v533 = vadd.f32 %v267, %v532
      %v534 = vpop.f32.mrf.mxu0
      %535 = vmatprep.mubr.bf16.mxu0 0
      %536 = vmatmul.mubr.bf16.gmra.mxu0 %v402
      %v537 = vpop.f32.mrf.mxu0
      %v538 = vadd.f32 %v267, %v537
      %v539 = vpop.f32.mrf.mxu0
      %v540 = vpop.f32.mrf.mxu0
      %v541 = vadd.f32 %v267, %v540
      %v542 = vpop.f32.mrf.mxu0
      %543 = vmatprep.mubr.bf16.mxu0 0
      %544 = vmatmul.mubr.bf16.gmra.mxu0 %v405
      %v545 = vpop.f32.mrf.mxu0
      %v546 = vadd.f32 %v267, %v545
      %v547 = vpop.f32.mrf.mxu0
      %v548 = vpop.f32.mrf.mxu0
      %v549 = vadd.f32 %v267, %v548
      %v550 = vpop.f32.mrf.mxu0
      %551 = vmatprep.mubr.bf16.mxu0 0
      %552 = vmatmul.mubr.bf16.gmra.mxu0 %v408
      %v553 = vpop.f32.mrf.mxu0
      %v554 = vadd.f32 %v267, %v553
      %v555 = vpop.f32.mrf.mxu0
      %v556 = vpop.f32.mrf.mxu0
      %v557 = vadd.f32 %v267, %v556
      %v558 = vpop.f32.mrf.mxu0
      %559 = vmatprep.mubr.bf16.mxu0 0
      %560 = vmatmul.mubr.bf16.gmra.mxu0 %v411
      %v561 = vpop.f32.mrf.mxu0
      %v562 = vadd.f32 %v267, %v561
      %v563 = vpop.f32.mrf.mxu0
      %v564 = vpop.f32.mrf.mxu0
      %v565 = vadd.f32 %v267, %v564
      %v566 = vpop.f32.mrf.mxu0
      %567 = vmatprep.mubr.bf16.mxu0 0
      %568 = vmatmul.mubr.bf16.gmra.mxu0 %v414
      %v569 = vpop.f32.mrf.mxu0
      %v570 = vadd.f32 %v267, %v569
      %v571 = vpop.f32.mrf.mxu0
      %v572 = vpop.f32.mrf.mxu0
      %v573 = vadd.f32 %v267, %v572
      %v574 = vpop.f32.mrf.mxu0
      %575 = vmatprep.mubr.bf16.mxu0 0
      %576 = vmatmul.mubr.bf16.gmra.mxu0 %v417
      %v577 = vpop.f32.mrf.mxu0
      %v578 = vadd.f32 %v267, %v577
      %v579 = vpop.f32.mrf.mxu0
      %v580 = vpop.f32.mrf.mxu0
      %v581 = vadd.f32 %v267, %v580
      %v582 = vpop.f32.mrf.mxu0
      %583 = vdwg.mxu0
      %vm584 = vcmp.ge.f32.partialorder %v458, 0.0
      %vm585 = vcmp.ge.f32.partialorder %v461, 0.0
      %vm586 = vcmp.ge.f32.partialorder %v466, 0.0
      %vm587 = vcmp.ge.f32.partialorder %v469, 0.0
      %vm588 = vcmp.ge.f32.partialorder %v474, 0.0
      %vm589 = vcmp.ge.f32.partialorder %v477, 0.0
      %vm590 = vcmp.ge.f32.partialorder %v482, 0.0
      %vm591 = vcmp.ge.f32.partialorder %v485, 0.0
      %vm592 = vcmp.ge.f32.partialorder %v490, 0.0
      %vm593 = vcmp.ge.f32.partialorder %v493, 0.0
      %vm594 = vcmp.ge.f32.partialorder %v498, 0.0
      %vm595 = vcmp.ge.f32.partialorder %v501, 0.0
      %vm596 = vcmp.ge.f32.partialorder %v506, 0.0
      %vm597 = vcmp.ge.f32.partialorder %v509, 0.0
      %vm598 = vcmp.ge.f32.partialorder %v514, 0.0
      %vm599 = vcmp.ge.f32.partialorder %v517, 0.0
      %vm600 = vcmp.ge.f32.partialorder %v522, 0.0
      %vm601 = vcmp.ge.f32.partialorder %v525, 0.0
      %vm602 = vcmp.ge.f32.partialorder %v530, 0.0
      %vm603 = vcmp.ge.f32.partialorder %v533, 0.0
      %vm604 = vcmp.ge.f32.partialorder %v538, 0.0
      %vm605 = vcmp.ge.f32.partialorder %v541, 0.0
      %vm606 = vcmp.ge.f32.partialorder %v546, 0.0
      %vm607 = vcmp.ge.f32.partialorder %v549, 0.0
      %vm608 = vcmp.ge.f32.partialorder %v554, 0.0
      %vm609 = vcmp.ge.f32.partialorder %v557, 0.0
      %vm610 = vcmp.ge.f32.partialorder %v562, 0.0
      %vm611 = vcmp.ge.f32.partialorder %v565, 0.0
      %vm612 = vcmp.ge.f32.partialorder %v570, 0.0
      %vm613 = vcmp.ge.f32.partialorder %v573, 0.0
      %vm614 = vcmp.ge.f32.partialorder %v578, 0.0
      %vm615 = vcmp.ge.f32.partialorder %v581, 0.0
      %v616 = vmul.f32 %v458, 0.2
      %v617 = vmul.f32 %v461, 0.2
      %v618 = vmul.f32 %v466, 0.2
      %v619 = vmul.f32 %v469, 0.2
      %v620 = vmul.f32 %v474, 0.2
      %v621 = vmul.f32 %v477, 0.2
      %v622 = vmul.f32 %v482, 0.2
      %v623 = vmul.f32 %v485, 0.2
      %v624 = vmul.f32 %v490, 0.2
      %v625 = vmul.f32 %v493, 0.2
      %v626 = vmul.f32 %v498, 0.2
      %v627 = vmul.f32 %v501, 0.2
      %v628 = vmul.f32 %v506, 0.2
      %v629 = vmul.f32 %v509, 0.2
      %v630 = vmul.f32 %v514, 0.2
      %v631 = vmul.f32 %v517, 0.2
      %v632 = vmul.f32 %v522, 0.2
      %v633 = vmul.f32 %v525, 0.2
      %v634 = vmul.f32 %v530, 0.2
      %v635 = vmul.f32 %v533, 0.2
      %v636 = vmul.f32 %v538, 0.2
      %v637 = vmul.f32 %v541, 0.2
      %v638 = vmul.f32 %v546, 0.2
      %v639 = vmul.f32 %v549, 0.2
      %v640 = vmul.f32 %v554, 0.2
      %v641 = vmul.f32 %v557, 0.2
      %v642 = vmul.f32 %v562, 0.2
      %v643 = vmul.f32 %v565, 0.2
      %v644 = vmul.f32 %v570, 0.2
      %v645 = vmul.f32 %v573, 0.2
      %v646 = vmul.f32 %v578, 0.2
      %v647 = vmul.f32 %v581, 0.2
      %v648 = vsel %vm584, %v458, %v616
      %v649 = vsel %vm585, %v461, %v617
      %v650 = vsel %vm586, %v466, %v618
      %v651 = vsel %vm587, %v469, %v619
      %v652 = vsel %vm588, %v474, %v620
      %v653 = vsel %vm589, %v477, %v621
      %v654 = vsel %vm590, %v482, %v622
      %v655 = vsel %vm591, %v485, %v623
      %v656 = vsel %vm592, %v490, %v624
      %v657 = vsel %vm593, %v493, %v625
      %v658 = vsel %vm594, %v498, %v626
      %v659 = vsel %vm595, %v501, %v627
      %v660 = vsel %vm596, %v506, %v628
      %v661 = vsel %vm597, %v509, %v629
      %v662 = vsel %vm598, %v514, %v630
      %v663 = vsel %vm599, %v517, %v631
      %v664 = vsel %vm600, %v522, %v632
      %v665 = vsel %vm601, %v525, %v633
      %v666 = vsel %vm602, %v530, %v634
      %v667 = vsel %vm603, %v533, %v635
      %v668 = vsel %vm604, %v538, %v636
      %v669 = vsel %vm605, %v541, %v637
      %v670 = vsel %vm606, %v546, %v638
      %v671 = vsel %vm607, %v549, %v639
      %v672 = vsel %vm608, %v554, %v640
      %v673 = vsel %vm609, %v557, %v641
      %v674 = vsel %vm610, %v562, %v642
      %v675 = vsel %vm611, %v565, %v643
      %v676 = vsel %vm612, %v570, %v644
      %v677 = vsel %vm613, %v573, %v645
      %v678 = vsel %vm614, %v578, %v646
      %v679 = vsel %vm615, %v581, %v647
      %v680 = vpack.c.bf16 %v649, %v648
      %v681 = vpack.c.bf16 %v651, %v650
      %v682 = vpack.c.bf16 %v653, %v652
      %v683 = vpack.c.bf16 %v655, %v654
      %v684 = vpack.c.bf16 %v657, %v656
      %v685 = vpack.c.bf16 %v659, %v658
      %v686 = vpack.c.bf16 %v661, %v660
      %v687 = vpack.c.bf16 %v663, %v662
      %v688 = vpack.c.bf16 %v665, %v664
      %v689 = vpack.c.bf16 %v667, %v666
      %v690 = vpack.c.bf16 %v669, %v668
      %v691 = vpack.c.bf16 %v671, %v670
      %v692 = vpack.c.bf16 %v673, %v672
      %v693 = vpack.c.bf16 %v675, %v674
      %v694 = vpack.c.bf16 %v677, %v676
      %v695 = vpack.c.bf16 %v679, %v678
      %v712 = vunpack.c.l.b16 %v680
      %v713 = vunpack.c.h.b16 %v680
      %v714 = vunpack.c.l.b16 %v681
      %v715 = vunpack.c.h.b16 %v681
      %v716 = vunpack.c.l.b16 %v682
      %v717 = vunpack.c.h.b16 %v682
      %v718 = vunpack.c.l.b16 %v683
      %v719 = vunpack.c.h.b16 %v683
      %v720 = vunpack.c.l.b16 %v684
      %v721 = vunpack.c.h.b16 %v684
      %v722 = vunpack.c.l.b16 %v685
      %v723 = vunpack.c.h.b16 %v685
      %v724 = vunpack.c.l.b16 %v686
      %v725 = vunpack.c.h.b16 %v686
      %v726 = vunpack.c.l.b16 %v687
      %v727 = vunpack.c.h.b16 %v687
      %v728 = vunpack.c.l.b16 %v688
      %v729 = vunpack.c.h.b16 %v688
      %v730 = vunpack.c.l.b16 %v689
      %v731 = vunpack.c.h.b16 %v689
      %v732 = vunpack.c.l.b16 %v690
      %v733 = vunpack.c.h.b16 %v690
      %v734 = vunpack.c.l.b16 %v691
      %v735 = vunpack.c.h.b16 %v691
      %v736 = vunpack.c.l.b16 %v692
      %v737 = vunpack.c.h.b16 %v692
      %v738 = vunpack.c.l.b16 %v693
      %v739 = vunpack.c.h.b16 %v693
      %v740 = vunpack.c.l.b16 %v694
      %v741 = vunpack.c.h.b16 %v694
      %v742 = vunpack.c.l.b16 %v695
      %v743 = vunpack.c.h.b16 %v695
      %v744 = vpack.c.b16 %v712, %v712
      %v745 = vpack.c.b16 %v713, %v713
      %v746 = vpack.c.b16 %v714, %v714
      %v747 = vpack.c.b16 %v715, %v715
      %v748 = vpack.c.b16 %v716, %v716
      %v749 = vpack.c.b16 %v717, %v717
      %v750 = vpack.c.b16 %v718, %v718
      %v751 = vpack.c.b16 %v719, %v719
      %v752 = vpack.c.b16 %v720, %v720
      %v753 = vpack.c.b16 %v721, %v721
      %v754 = vpack.c.b16 %v722, %v722
      %v755 = vpack.c.b16 %v723, %v723
      %v756 = vpack.c.b16 %v724, %v724
      %v757 = vpack.c.b16 %v725, %v725
      %v758 = vpack.c.b16 %v726, %v726
      %v759 = vpack.c.b16 %v727, %v727
      %v760 = vpack.c.b16 %v728, %v728
      %v761 = vpack.c.b16 %v729, %v729
      %v762 = vpack.c.b16 %v730, %v730
      %v763 = vpack.c.b16 %v731, %v731
      %v764 = vpack.c.b16 %v732, %v732
      %v765 = vpack.c.b16 %v733, %v733
      %v766 = vpack.c.b16 %v734, %v734
      %v767 = vpack.c.b16 %v735, %v735
      %v768 = vpack.c.b16 %v736, %v736
      %v769 = vpack.c.b16 %v737, %v737
      %v770 = vpack.c.b16 %v738, %v738
      %v771 = vpack.c.b16 %v739, %v739
      %v772 = vpack.c.b16 %v740, %v740
      %v773 = vpack.c.b16 %v741, %v741
      %v774 = vpack.c.b16 %v742, %v742
      %v775 = vpack.c.b16 %v743, %v743
      %808 = vst [vmem:[%s221] sm:$0xf] %v744
      %809 = vst [vmem:[%s221 + $0x4] sm:$0xf] %v745
      %810 = vst [vmem:[%s221 + $0x8] sm:$0xf] %v746
      %811 = vst [vmem:[%s221 + $0xc] sm:$0xf] %v747
      %812 = vst [vmem:[%s221 + $0x10] sm:$0xf] %v748
      %813 = vst [vmem:[%s221 + $0x14] sm:$0xf] %v749
      %814 = vst [vmem:[%s221 + $0x18] sm:$0xf] %v750
      %815 = vst [vmem:[%s221 + $0x1c] sm:$0xf] %v751
      %816 = vst [vmem:[%s221 + $0x20] sm:$0xf] %v752
      %817 = vst [vmem:[%s221 + $0x24] sm:$0xf] %v753
      %818 = vst [vmem:[%s221 + $0x28] sm:$0xf] %v754
      %819 = vst [vmem:[%s221 + $0x2c] sm:$0xf] %v755
      %820 = vst [vmem:[%s221 + $0x30] sm:$0xf] %v756
      %821 = vst [vmem:[%s221 + $0x34] sm:$0xf] %v757
      %822 = vst [vmem:[%s221 + $0x38] sm:$0xf] %v758
      %823 = vst [vmem:[%s221 + $0x3c] sm:$0xf] %v759
      %824 = vst [vmem:[%s221 + $0x40] sm:$0xf] %v760
      %825 = vst [vmem:[%s221 + $0x44] sm:$0xf] %v761
      %826 = vst [vmem:[%s221 + $0x48] sm:$0xf] %v762
      %827 = vst [vmem:[%s221 + $0x4c] sm:$0xf] %v763
      %828 = vst [vmem:[%s221 + $0x50] sm:$0xf] %v764
      %829 = vst [vmem:[%s221 + $0x54] sm:$0xf] %v765
      %830 = vst [vmem:[%s221 + $0x58] sm:$0xf] %v766
      %831 = vst [vmem:[%s221 + $0x5c] sm:$0xf] %v767
      %832 = vst [vmem:[%s221 + $0x60] sm:$0xf] %v768
      %833 = vst [vmem:[%s221 + $0x64] sm:$0xf] %v769
      %834 = vst [vmem:[%s221 + $0x68] sm:$0xf] %v770
      %835 = vst [vmem:[%s221 + $0x6c] sm:$0xf] %v771
      %836 = vst [vmem:[%s221 + $0x70] sm:$0xf] %v772
      %837 = vst [vmem:[%s221 + $0x74] sm:$0xf] %v773
      %838 = vst [vmem:[%s221 + $0x78] sm:$0xf] %v774
      %839 = vst [vmem:[%s221 + $0x7c] sm:$0xf] %v775
      %p840 = scmp.lt.s32.totalorder %s18, 1
      %s841 = scalar_select %p840, %s18, 1
      %p842 = scmp.lt.s32.totalorder %s19, 0
      %s843 = scalar_select %p842, %s19, 0
      %s844 = smul.addr %s841, 32
      %s845 = sadd.s32 %s843, %s844
      %s846 = smul.addr %s845, 4
      %s847 = scalar_lea.vmem %s3, %s846
      // Predicated region
      $region33: #{discriminator_forward.5} parent=31 // pred_check
        %p848 = pneg %p124
      $region34: #{discriminator_forward.5} parent=31 // pred_check_branch
        %850 = sbr.rel (%p848) target = $region36
      $region35: #{discriminator_forward.5} parent=31 // pred_region
        _
      $region36: #{discriminator_forward.5} parent=31 // pred_fallthru
        _
    $region32: #{discriminator_forward.5} parent=5 // pred_fallthru
      _
    %p851 = scmp.le.s32.totalorder 2, %s9
    // Predicated region
    $region37: #{discriminator_forward.5} parent=5 // pred_check
      %p852 = pneg %p851
    $region38: #{discriminator_forward.5} parent=5 // pred_check_branch
      %854 = sbr.rel (%p852) target = $region40
    $region39: #{discriminator_forward.5} parent=5 // pred_region
      %s855 = ssub.s32 %s9, 2
      // Predicated region
      $region41: #{discriminator_forward.5} parent=39 // pred_check
        %p856 = pneg %p130
      $region42: #{discriminator_forward.5} parent=39 // pred_check_branch
        %858 = sbr.rel (%p856) target = $region44
      $region43: #{discriminator_forward.5} parent=39 // pred_region
        %p859 = scmp.lt.s32.totalorder %s20, 1
        %s860 = scalar_select %p859, %s20, 1
        %p861 = scmp.lt.s32.totalorder %s21, 0
        %s862 = scalar_select %p861, %s21, 0
        %s863 = smul.addr %s860, 32
        %s864 = sadd.s32 %s862, %s863
        %s865 = smul.addr %s864, 4
        %s866 = scalar_lea.vmem %s3, %s865
      $region44: #{discriminator_forward.5} parent=39 // pred_fallthru
        _
    $region40: #{discriminator_forward.5} parent=5 // pred_fallthru
      _
  $region6: #{discriminator_forward.5} parent=0 // loop_footer
    %s13 = sadd.s32 1, %s9
  $region7: #{discriminator_forward.5} parent=0 // loop_footer_branch
    %8 = sbr.rel target = $region3
  $region8: #{discriminator_forward.5} parent=0 // loop_exit
    _

// kernel: discriminator_forward.6
$region0: #{discriminator_forward.6}
  #allocation0 [shape = 'u32[]', space=smem, size = 0x4, offset = 0x4, fixed_abs, tag = 'smem constant byte address 0x4 - core index']
  #allocation1 [shape = 'u32[144,128]{1,0:T(1,128)}', space=vmem, size = 0x12000, scoped, tag = 'internal scratch']
  %s0 = inlined_call_operand.vmem [shape: bf16[2,64,1152], index: 0, kind: input, shape index: {}]
  %s1 = inlined_call_operand.vmem [shape: bf16[1152,128], index: 1, kind: input, shape index: {}]
  %s2 = inlined_call_operand.vmem [shape: f32[1,128], index: 2, kind: input, shape index: {}]
  %s3 = inlined_call_operand.vmem [shape: bf16[2,64,128], index: 3, kind: output, shape index: {}]
  %s4 = sld [smem:[#allocation0]]
  $region45: #{discriminator_forward.6} parent=0
    _
  %s6 = ssub.s32 1, %s4
  %s7 = scalar_select 0, %s6, %s4
  loop: start=0, step=1, limit=4
  $region2: #{discriminator_forward.6} parent=0 // loop_pre_header
    _
  $region3: #{discriminator_forward.6} parent=0 // loop_header
    %s9 = sphi 0, %s13
    %p10 = scmp.ge.s32.totalorder %s9, 4
    %s16 = sphi 0, %s28
    %s17 = sphi 0, %s24
    %s18 = sphi 0, %s16
    %s19 = sphi 0, %s17
    %s20 = sphi 0, %s18
    %s21 = sphi 0, %s19
    %s31 = sphi 0, %s33
    %s34 = sphi 0, %s31
    %s35 = sphi 0, %s34
    %s51 = sphi 0, %s35
    %s57 = sphi 0, %s59
    %s60 = sphi 0, %s57
    %s61 = sphi 0, %s60
    %s77 = sphi 0, %s61
    %s83 = sphi 0, %s85
    %s86 = sphi 0, %s83
    %s87 = sphi 0, %s86
    %s103 = sphi 0, %s87
    %s111 = sphi 0, %s113
    %s114 = sphi 0, %s111
    %s115 = sphi 0, %s114
    %s131 = sphi 0, %s115
  $region4: #{discriminator_forward.6} parent=0 // loop_header_branch
    %12 = sbr.rel (%p10) target = $region8
  $region5: #{discriminator_forward.6} parent=0 // loop_body
    %s14 = ssub.s32 %s9, 1
    %s15 = ssub.s32 %s9, 2
    %s22 = sadd.s32 1, %s17
    %p23 = scmp.ge.s32.totalorder %s22, 1
    %s24 = scalar_select %p23, 0, %s22
    %s25 = sadd.s32 1, %s16
    %s26 = scalar_select %p23, %s25, %s16
    %p27 = scmp.ge.s32.totalorder %s26, 2
    %s28 = scalar_select %p27, 0, %s26
    %s29 = ssub.s32 %s16, %s28
    %p30 = scmp.eq.s32.totalorder %s29, 0
    %s32 = sadd.s32 %s31, 1
    %s33 = scalar_select %p30, %s31, %s32
    %p36 = pneg %p30
    %p37 = scmp.eq.s32.totalorder %s9, 1
    %p38 = por %p36, %p37
    %p39 = scmp.ne.s32.totalorder %s31, %s34
    %p40 = scmp.eq.s32.totalorder %s9, 0
    %p41 = por %p39, %p40
    %p42 = scmp.ne.s32.totalorder %s31, %s34
    %p43 = scmp.eq.s32.totalorder %s14, 1
    %p44 = por %p42, %p43
    %p45 = scmp.ne.s32.totalorder %s34, %s35
    %p46 = scmp.eq.s32.totalorder %s14, 0
    %p47 = por %p45, %p46
    %p48 = scmp.ne.s32.totalorder %s34, %s35
    %p49 = scmp.eq.s32.totalorder %s15, 1
    %p50 = por %p48, %p49
    %p52 = scmp.ne.s32.totalorder %s35, %s51
    %p53 = scmp.eq.s32.totalorder %s15, 0
    %p54 = por %p52, %p53
    %s55 = ssub.s32 %s17, %s24
    %p56 = scmp.eq.s32.totalorder %s55, 0
    %s58 = sadd.s32 %s57, 1
    %s59 = scalar_select %p56, %s57, %s58
    %p62 = pneg %p56
    %p63 = scmp.eq.s32.totalorder %s9, 1
    %p64 = por %p62, %p63
    %p65 = scmp.ne.s32.totalorder %s57, %s60
    %p66 = scmp.eq.s32.totalorder %s9, 0
    %p67 = por %p65, %p66
    %p68 = scmp.ne.s32.totalorder %s57, %s60
    %p69 = scmp.eq.s32.totalorder %s14, 1
    %p70 = por %p68, %p69
    %p71 = scmp.ne.s32.totalorder %s60, %s61
    %p72 = scmp.eq.s32.totalorder %s14, 0
    %p73 = por %p71, %p72
    %p74 = scmp.ne.s32.totalorder %s60, %s61
    %p75 = scmp.eq.s32.totalorder %s15, 1
    %p76 = por %p74, %p75
    %p78 = scmp.ne.s32.totalorder %s61, %s77
    %p79 = scmp.eq.s32.totalorder %s15, 0
    %p80 = por %p78, %p79
    %s81 = ssub.s32 %s17, %s24
    %p82 = scmp.eq.s32.totalorder %s81, 0
    %s84 = sadd.s32 %s83, 1
    %s85 = scalar_select %p82, %s83, %s84
    %p88 = pneg %p82
    %p89 = scmp.eq.s32.totalorder %s9, 1
    %p90 = por %p88, %p89
    %p91 = scmp.ne.s32.totalorder %s83, %s86
    %p92 = scmp.eq.s32.totalorder %s9, 0
    %p93 = por %p91, %p92
    %p94 = scmp.ne.s32.totalorder %s83, %s86
    %p95 = scmp.eq.s32.totalorder %s14, 1
    %p96 = por %p94, %p95
    %p97 = scmp.ne.s32.totalorder %s86, %s87
    %p98 = scmp.eq.s32.totalorder %s14, 0
    %p99 = por %p97, %p98
    %p100 = scmp.ne.s32.totalorder %s86, %s87
    %p101 = scmp.eq.s32.totalorder %s15, 1
    %p102 = por %p100, %p101
    %p104 = scmp.ne.s32.totalorder %s87, %s103
    %p105 = scmp.eq.s32.totalorder %s15, 0
    %p106 = por %p104, %p105
    %s107 = ssub.s32 %s16, %s28
    %s108 = ssub.s32 %s17, %s24
    %s109 = sor.u32 %s107, %s108
    %p110 = scmp.eq.s32.totalorder %s109, 0
    %s112 = sadd.s32 %s111, 1
    %s113 = scalar_select %p110, %s111, %s112
    %p116 = pneg %p110
    %p117 = scmp.eq.s32.totalorder %s9, 1
    %p118 = por %p116, %p117
    %p119 = scmp.ne.s32.totalorder %s111, %s114
    %p120 = scmp.eq.s32.totalorder %s9, 0
    %p121 = por %p119, %p120
    %p122 = scmp.ne.s32.totalorder %s111, %s114
    %p123 = scmp.eq.s32.totalorder %s14, 1
    %p124 = por %p122, %p123
    %p125 = scmp.ne.s32.totalorder %s114, %s115
    %p126 = scmp.eq.s32.totalorder %s14, 0
    %p127 = por %p125, %p126
    %p128 = scmp.ne.s32.totalorder %s114, %s115
    %p129 = scmp.eq.s32.totalorder %s15, 1
    %p130 = por %p128, %p129
    %p132 = scmp.ne.s32.totalorder %s115, %s131
    %p133 = scmp.eq.s32.totalorder %s15, 0
    %p134 = por %p132, %p133
    %p135 = scmp.le.s32.totalorder 1, %s9
    %p136 = scmp.lt.s32.totalorder %s9, 3
    %p137 = pnand %p135, %p136
    %p138 = pneg %p137
    // Predicated region
    $region9: #{discriminator_forward.6} parent=5 // pred_check
      _
    $region10: #{discriminator_forward.6} parent=5 // pred_check_branch
      %140 = sbr.rel (%p137) target = $region12
    $region11: #{discriminator_forward.6} parent=5 // pred_region
      %s141 = ssub.s32 %s9, 1
      // Predicated region
      $region13: #{discriminator_forward.6} parent=11 // pred_check
        %p142 = pneg %p73
      $region14: #{discriminator_forward.6} parent=11 // pred_check_branch
        %144 = sbr.rel (%p142) target = $region16
      $region15: #{discriminator_forward.6} parent=11 // pred_region
        %p145 = scmp.lt.s32.totalorder %s19, 0
        %s146 = scalar_select %p145, %s19, 0
        %s147 = smul.addr %s146, 4
        %s148 = scalar_lea.vmem %s1, %s147
      $region16: #{discriminator_forward.6} parent=11 // pred_fallthru
        _
      // Predicated region
      $region17: #{discriminator_forward.6} parent=11 // pred_check
        %p149 = pneg %p99
      $region18: #{discriminator_forward.6} parent=11 // pred_check_branch
        %151 = sbr.rel (%p149) target = $region20
      $region19: #{discriminator_forward.6} parent=11 // pred_region
        %p152 = scmp.lt.s32.totalorder %s19, 0
        %s153 = scalar_select %p152, %s19, 0
        %s154 = scalar_lea.vmem %s2, %s153
      $region20: #{discriminator_forward.6} parent=11 // pred_fallthru
        _
    $region12: #{discriminator_forward.6} parent=5 // pred_fallthru
      _
    %p155 = scmp.lt.s32.totalorder %s9, 2
    // Predicated region
    $region21: #{discriminator_forward.6} parent=5 // pred_check
      %p156 = pneg %p155
    $region22: #{discriminator_forward.6} parent=5 // pred_check_branch
      %158 = sbr.rel (%p156) target = $region24
    $region23: #{discriminator_forward.6} parent=5 // pred_region
      // Predicated region
      $region25: #{discriminator_forward.6} parent=23 // pred_check
        %p159 = pneg %p41
      $region26: #{discriminator_forward.6} parent=23 // pred_check_branch
        %161 = sbr.rel (%p159) target = $region28
      $region27: #{discriminator_forward.6} parent=23 // pred_region
        %p162 = scmp.lt.s32.totalorder %s16, 1
        %s163 = scalar_select %p162, %s16, 1
        %s164 = smul.addr %s163, 72
        %s165 = smul.addr %s164, 4
        %s166 = scalar_lea.vmem %s0, %s165
      $region28: #{discriminator_forward.6} parent=23 // pred_fallthru
        _
    $region24: #{discriminator_forward.6} parent=5 // pred_fallthru
      _
    %p167 = scmp.le.s32.totalorder 1, %s9
    %p168 = scmp.lt.s32.totalorder %s9, 3
    %p169 = pnand %p167, %p168
    %p170 = pneg %p169
    // Predicated region
    $region29: #{discriminator_forward.6} parent=5 // pred_check
      _
    $region30: #{discriminator_forward.6} parent=5 // pred_check_branch
      %172 = sbr.rel (%p169) target = $region32
    $region31: #{discriminator_forward.6} parent=5 // pred_region
      %s173 = ssub.s32 %s9, 1
      %p174 = scmp.lt.s32.totalorder %s18, 1
      %s175 = scalar_select %p174, %s18, 1
      %s176 = smul.addr %s175, 72
      %s177 = smul.addr %s176, 4
      %s178 = scalar_lea.vmem %s0, %s177
      %p179 = pneg %p47
      %p180 = pneg %p44
      %p181 = scmp.lt.s32.totalorder %s19, 0
      %s182 = scalar_select %p181, %s19, 0
      %s183 = smul.addr %s182, 4
      %s184 = scalar_lea.vmem %s1, %s183
      %p185 = pneg %p73
      %p186 = pneg %p70
      %p187 = scmp.lt.s32.totalorder %s19, 0
      %s188 = scalar_select %p187, %s19, 0
      %s189 = scalar_lea.vmem %s2, %s188
      %p190 = pneg %p99
      %p191 = pneg %p96
      %p192 = pneg %p127
      %p193 = pneg %p124
      %p194 = scmp.lt.s32.totalorder %s18, 1
      %s195 = scalar_select %p194, %s18, 1
      %p196 = scmp.lt.s32.totalorder %s19, 0
      %s197 = scalar_select %p196, %s19, 0
      %s198 = smul.addr %s195, 8
      %s199 = sadd.s32 %s197, %s198
      %s200 = smul.addr %s199, 4
      %s201 = scalar_lea.vmem %s3, %s200
      %p202 = scmp.lt.s32.totalorder %s18, 1
      %s203 = scalar_select %p202, %s18, 1
      %s204 = smul.addr %s203, 72
      %s205 = smul.addr %s204, 4
      %s206 = scalar_lea.vmem %s0, %s205
      %p207 = scmp.lt.s32.totalorder %s19, 0
      %s208 = scalar_select %p207, %s19, 0
      %s209 = smul.addr %s208, 4
      %s210 = scalar_lea.vmem %s1, %s209
      %p211 = scmp.lt.s32.totalorder %s19, 0
      %s212 = scalar_select %p211, %s19, 0
      %s213 = scalar_lea.vmem %s2, %s212
      %p214 = scmp.lt.s32.totalorder %s18, 1
      %s215 = scalar_select %p214, %s18, 1
      %p216 = scmp.lt.s32.totalorder %s19, 0
      %s217 = scalar_select %p216, %s19, 0
      %s218 = smul.addr %s215, 8
      %s219 = sadd.s32 %s217, %s218
      %s220 = smul.addr %s219, 4
      %s221 = scalar_lea.vmem %s3, %s220
      %v223 = vld [vmem:[%s206] sm:$0xff]
      %v224 = vld [vmem:[%s206 + $0x8] sm:$0xff]
      %v225 = vld [vmem:[%s206 + $0x10] sm:$0xff]
      %v226 = vld [vmem:[%s206 + $0x18] sm:$0xff]
      %v227 = vld [vmem:[%s206 + $0x20] sm:$0xf]
      %v228 = vld [vmem:[%s206 + $0x24] sm:$0xff]
      %v229 = vld [vmem:[%s206 + $0x2c] sm:$0xff]
      %v230 = vld [vmem:[%s206 + $0x34] sm:$0xff]
      %v231 = vld [vmem:[%s206 + $0x3c] sm:$0xff]
      %v232 = vld [vmem:[%s206 + $0x44] sm:$0xf]
      %v233 = vld [vmem:[%s206 + $0x48] sm:$0xff]
      %v234 = vld [vmem:[%s206 + $0x50] sm:$0xff]
      %v235 = vld [vmem:[%s206 + $0x58] sm:$0xff]
      %v236 = vld [vmem:[%s206 + $0x60] sm:$0xff]
      %v237 = vld [vmem:[%s206 + $0x68] sm:$0xf]
      %v238 = vld [vmem:[%s206 + $0x6c] sm:$0xff]
      %v239 = vld [vmem:[%s206 + $0x74] sm:$0xff]
      %v240 = vld [vmem:[%s206 + $0x7c] sm:$0xff]
      %v241 = vld [vmem:[%s206 + $0x84] sm:$0xff]
      %v242 = vld [vmem:[%s206 + $0x8c] sm:$0xf]
      %v243 = vld [vmem:[%s206 + $0x90] sm:$0xff]
      %v244 = vld [vmem:[%s206 + $0x98] sm:$0xff]
      %v245 = vld [vmem:[%s206 + $0xa0] sm:$0xff]
      %v246 = vld [vmem:[%s206 + $0xa8] sm:$0xff]
      %v247 = vld [vmem:[%s206 + $0xb0] sm:$0xf]
      %v248 = vld [vmem:[%s206 + $0xb4] sm:$0xff]
      %v249 = vld [vmem:[%s206 + $0xbc] sm:$0xff]
      %v250 = vld [vmem:[%s206 + $0xc4] sm:$0xff]
      %v251 = vld [vmem:[%s206 + $0xcc] sm:$0xff]
      %v252 = vld [vmem:[%s206 + $0xd4] sm:$0xf]
      %v253 = vld [vmem:[%s206 + $0xd8] sm:$0xff]
      %v254 = vld [vmem:[%s206 + $0xe0] sm:$0xff]
      %v255 = vld [vmem:[%s206 + $0xe8] sm:$0xff]
      %v256 = vld [vmem:[%s206 + $0xf0] sm:$0xff]
      %v257 = vld [vmem:[%s206 + $0xf8] sm:$0xf]
      %v258 = vld [vmem:[%s206 + $0xfc] sm:$0xff]
      %v259 = vld [vmem:[%s206 + $0x104] sm:$0xff]
      %v260 = vld [vmem:[%s206 + $0x10c] sm:$0xff]
      %v261 = vld [vmem:[%s206 + $0x114] sm:$0xff]
      %v262 = vld [vmem:[%s206 + $0x11c] sm:$0xf]
      %v263 = vld [vmem:[%s210] sm:$0xf]
      %v264 = vld [vmem:[%s210 + $0x4] sm:$0xf]
      %v265 = vld [vmem:[%s210 + $0x8] sm:$0xf]
      %v266 = vld [vmem:[%s210 + $0xc] sm:$0xf]
      %v267 = vld [vmem:[%s210 + $0x10] sm:$0xf]
      %v268 = vld [vmem:[%s210 + $0x14] sm:$0xf]
      %v269 = vld [vmem:[%s210 + $0x18] sm:$0xf]
      %v270 = vld [vmem:[%s210 + $0x1c] sm:$0xf]
      %v271 = vld [vmem:[%s210 + $0x20] sm:$0xf]
      %v272 = vld [vmem:[%s210 + $0x24] sm:$0xf]
      %v273 = vld [vmem:[%s210 + $0x28] sm:$0xf]
      %v274 = vld [vmem:[%s210 + $0x2c] sm:$0xf]
      %v275 = vld [vmem:[%s210 + $0x30] sm:$0xf]
      %v276 = vld [vmem:[%s210 + $0x34] sm:$0xf]
      %v277 = vld [vmem:[%s210 + $0x38] sm:$0xf]
      %v278 = vld [vmem:[%s210 + $0x3c] sm:$0xf]
      %v279 = vld [vmem:[%s210 + $0x40] sm:$0xf]
      %v280 = vld [vmem:[%s210 + $0x44] sm:$0xf]
      %v281 = vld [vmem:[%s210 + $0x48] sm:$0xf]
      %v282 = vld [vmem:[%s210 + $0x4c] sm:$0xf]
      %v283 = vld [vmem:[%s210 + $0x50] sm:$0xf]
      %v284 = vld [vmem:[%s210 + $0x54] sm:$0xf]
      %v285 = vld [vmem:[%s210 + $0x58] sm:$0xf]
      %v286 = vld [vmem:[%s210 + $0x5c] sm:$0xf]
      %v287 = vld [vmem:[%s210 + $0x60] sm:$0xf]
      %v288 = vld [vmem:[%s210 + $0x64] sm:$0xf]
      %v289 = vld [vmem:[%s210 + $0x68] sm:$0xf]
      %v290 = vld [vmem:[%s210 + $0x6c] sm:$0xf]
      %v291 = vld [vmem:[%s210 + $0x70] sm:$0xf]
      %v292 = vld [vmem:[%s210 + $0x74] sm:$0xf]
      %v293 = vld [vmem:[%s210 + $0x78] sm:$0xf]
      %v294 = vld [vmem:[%s210 + $0x7c] sm:$0xf]
      %v295 = vld [vmem:[%s210 + $0x80] sm:$0xf]
      %v296 = vld [vmem:[%s210 + $0x84] sm:$0xf]
      %v297 = vld [vmem:[%s210 + $0x88] sm:$0xf]
      %v298 = vld [vmem:[%s210 + $0x8c] sm:$0xf]
      %v299 = vld [vmem:[%s210 + $0x90] sm:$0xf]
      %v300 = vld [vmem:[%s210 + $0x94] sm:$0xf]
      %v301 = vld [vmem:[%s210 + $0x98] sm:$0xf]
      %v302 = vld [vmem:[%s210 + $0x9c] sm:$0xf]
      %v303 = vld [vmem:[%s210 + $0xa0] sm:$0xf]
      %v304 = vld [vmem:[%s210 + $0xa4] sm:$0xf]
      %v305 = vld [vmem:[%s210 + $0xa8] sm:$0xf]
      %v306 = vld [vmem:[%s210 + $0xac] sm:$0xf]
      %v307 = vld [vmem:[%s210 + $0xb0] sm:$0xf]
      %v308 = vld [vmem:[%s210 + $0xb4] sm:$0xf]
      %v309 = vld [vmem:[%s210 + $0xb8] sm:$0xf]
      %v310 = vld [vmem:[%s210 + $0xbc] sm:$0xf]
      %v311 = vld [vmem:[%s210 + $0xc0] sm:$0xf]
      %v312 = vld [vmem:[%s210 + $0xc4] sm:$0xf]
      %v313 = vld [vmem:[%s210 + $0xc8] sm:$0xf]
      %v314 = vld [vmem:[%s210 + $0xcc] sm:$0xf]
      %v315 = vld [vmem:[%s210 + $0xd0] sm:$0xf]
      %v316 = vld [vmem:[%s210 + $0xd4] sm:$0xf]
      %v317 = vld [vmem:[%s210 + $0xd8] sm:$0xf]
      %v318 = vld [vmem:[%s210 + $0xdc] sm:$0xf]
      %v319 = vld [vmem:[%s210 + $0xe0] sm:$0xf]
      %v320 = vld [vmem:[%s210 + $0xe4] sm:$0xf]
      %v321 = vld [vmem:[%s210 + $0xe8] sm:$0xf]
      %v322 = vld [vmem:[%s210 + $0xec] sm:$0xf]
      %v323 = vld [vmem:[%s210 + $0xf0] sm:$0xf]
      %v324 = vld [vmem:[%s210 + $0xf4] sm:$0xf]
      %v325 = vld [vmem:[%s210 + $0xf8] sm:$0xf]
      %v326 = vld [vmem:[%s210 + $0xfc] sm:$0xf]
      %v327 = vld [vmem:[%s210 + $0x100] sm:$0xf]
      %v328 = vld [vmem:[%s210 + $0x104] sm:$0xf]
      %v329 = vld [vmem:[%s210 + $0x108] sm:$0xf]
      %v330 = vld [vmem:[%s210 + $0x10c] sm:$0xf]
      %v331 = vld [vmem:[%s210 + $0x110] sm:$0xf]
      %v332 = vld [vmem:[%s210 + $0x114] sm:$0xf]
      %v333 = vld [vmem:[%s210 + $0x118] sm:$0xf]
      %v334 = vld [vmem:[%s210 + $0x11c] sm:$0xf]
      %v335 = vld [vmem:[%s210 + $0x120] sm:$0xf]
      %v336 = vld [vmem:[%s210 + $0x124] sm:$0xf]
      %v337 = vld [vmem:[%s210 + $0x128] sm:$0xf]
      %v338 = vld [vmem:[%s210 + $0x12c] sm:$0xf]
      %v339 = vld [vmem:[%s210 + $0x130] sm:$0xf]
      %v340 = vld [vmem:[%s210 + $0x134] sm:$0xf]
      %v341 = vld [vmem:[%s210 + $0x138] sm:$0xf]
      %v342 = vld [vmem:[%s210 + $0x13c] sm:$0xf]
      %v343 = vld [vmem:[%s210 + $0x140] sm:$0xf]
      %v344 = vld [vmem:[%s210 + $0x144] sm:$0xf]
      %v345 = vld [vmem:[%s210 + $0x148] sm:$0xf]
      %v346 = vld [vmem:[%s210 + $0x14c] sm:$0xf]
      %v347 = vld [vmem:[%s210 + $0x150] sm:$0xf]
      %v348 = vld [vmem:[%s210 + $0x154] sm:$0xf]
      %v349 = vld [vmem:[%s210 + $0x158] sm:$0xf]
      %v350 = vld [vmem:[%s210 + $0x15c] sm:$0xf]
      %v351 = vld [vmem:[%s210 + $0x160] sm:$0xf]
      %v352 = vld [vmem:[%s210 + $0x164] sm:$0xf]
      %v353 = vld [vmem:[%s210 + $0x168] sm:$0xf]
      %v354 = vld [vmem:[%s210 + $0x16c] sm:$0xf]
      %v355 = vld [vmem:[%s210 + $0x170] sm:$0xf]
      %v356 = vld [vmem:[%s210 + $0x174] sm:$0xf]
      %v357 = vld [vmem:[%s210 + $0x178] sm:$0xf]
      %v358 = vld [vmem:[%s210 + $0x17c] sm:$0xf]
      %v359 = vld [vmem:[%s210 + $0x180] sm:$0xf]
      %v360 = vld [vmem:[%s210 + $0x184] sm:$0xf]
      %v361 = vld [vmem:[%s210 + $0x188] sm:$0xf]
      %v362 = vld [vmem:[%s210 + $0x18c] sm:$0xf]
      %v363 = vld [vmem:[%s210 + $0x190] sm:$0xf]
      %v364 = vld [vmem:[%s210 + $0x194] sm:$0xf]
      %v365 = vld [vmem:[%s210 + $0x198] sm:$0xf]
      %v366 = vld [vmem:[%s210 + $0x19c] sm:$0xf]
      %v367 = vld [vmem:[%s210 + $0x1a0] sm:$0xf]
      %v368 = vld [vmem:[%s210 + $0x1a4] sm:$0xf]
      %v369 = vld [vmem:[%s210 + $0x1a8] sm:$0xf]
      %v370 = vld [vmem:[%s210 + $0x1ac] sm:$0xf]
      %v371 = vld [vmem:[%s210 + $0x1b0] sm:$0xf]
      %v372 = vld [vmem:[%s210 + $0x1b4] sm:$0xf]
      %v373 = vld [vmem:[%s210 + $0x1b8] sm:$0xf]
      %v374 = vld [vmem:[%s210 + $0x1bc] sm:$0xf]
      %v375 = vld [vmem:[%s210 + $0x1c0] sm:$0xf]
      %v376 = vld [vmem:[%s210 + $0x1c4] sm:$0xf]
      %v377 = vld [vmem:[%s210 + $0x1c8] sm:$0xf]
      %v378 = vld [vmem:[%s210 + $0x1cc] sm:$0xf]
      %v379 = vld [vmem:[%s210 + $0x1d0] sm:$0xf]
      %v380 = vld [vmem:[%s210 + $0x1d4] sm:$0xf]
      %v381 = vld [vmem:[%s210 + $0x1d8] sm:$0xf]
      %v382 = vld [vmem:[%s210 + $0x1dc] sm:$0xf]
      %v383 = vld [vmem:[%s210 + $0x1e0] sm:$0xf]
      %v384 = vld [vmem:[%s210 + $0x1e4] sm:$0xf]
      %v385 = vld [vmem:[%s210 + $0x1e8] sm:$0xf]
      %v386 = vld [vmem:[%s210 + $0x1ec] sm:$0xf]
      %v387 = vld [vmem:[%s210 + $0x1f0] sm:$0xf]
      %v388 = vld [vmem:[%s210 + $0x1f4] sm:$0xf]
      %v389 = vld [vmem:[%s210 + $0x1f8] sm:$0xf]
      %v390 = vld [vmem:[%s210 + $0x1fc] sm:$0xf]
      %v391 = vld [vmem:[%s210 + $0x200] sm:$0xf]
      %v392 = vld [vmem:[%s210 + $0x204] sm:$0xf]
      %v393 = vld [vmem:[%s210 + $0x208] sm:$0xf]
      %v394 = vld [vmem:[%s210 + $0x20c] sm:$0xf]
      %v395 = vld [vmem:[%s210 + $0x210] sm:$0xf]
      %v396 = vld [vmem:[%s210 + $0x214] sm:$0xf]
      %v397 = vld [vmem:[%s210 + $0x218] sm:$0xf]
      %v398 = vld [vmem:[%s210 + $0x21c] sm:$0xf]
      %v399 = vld [vmem:[%s210 + $0x220] sm:$0xf]
      %v400 = vld [vmem:[%s210 + $0x224] sm:$0xf]
      %v401 = vld [vmem:[%s210 + $0x228] sm:$0xf]
      %v402 = vld [vmem:[%s210 + $0x22c] sm:$0xf]
      %v403 = vld [vmem:[%s210 + $0x230] sm:$0xf]
      %v404 = vld [vmem:[%s210 + $0x234] sm:$0xf]
      %v405 = vld [vmem:[%s210 + $0x238] sm:$0xf]
      %v406 = vld [vmem:[%s210 + $0x23c] sm:$0xf]
      %v407 = vld [vmem:[%s213] sm:$0x1]
      %v409 = vlaneseq
      %v410 = vshrl.u32 %v409, 7
      %v411 = vsub.s32 0, %v410
      %v412 = vrot.slane %v407, %v411
      %v454 = vunpack.c.l.b16 %v223
      %v455 = vunpack.c.h.b16 %v223
      %v456 = vunpack.c.l.b16 %v224
      %v457 = vunpack.c.h.b16 %v224
      %v458 = vunpack.c.l.b16 %v225
      %v459 = vunpack.c.h.b16 %v225
      %v460 = vunpack.c.l.b16 %v226
      %v461 = vunpack.c.h.b16 %v226
      %v462 = vunpack.c.l.b16 %v227
      %v463 = vunpack.c.l.b16 %v228
      %v464 = vunpack.c.h.b16 %v228
      %v465 = vunpack.c.l.b16 %v229
      %v466 = vunpack.c.h.b16 %v229
      %v467 = vunpack.c.l.b16 %v230
      %v468 = vunpack.c.h.b16 %v230
      %v469 = vunpack.c.l.b16 %v231
      %v470 = vunpack.c.h.b16 %v231
      %v471 = vunpack.c.l.b16 %v232
      %v472 = vunpack.c.l.b16 %v233
      %v473 = vunpack.c.h.b16 %v233
      %v474 = vunpack.c.l.b16 %v234
      %v475 = vunpack.c.h.b16 %v234
      %v476 = vunpack.c.l.b16 %v235
      %v477 = vunpack.c.h.b16 %v235
      %v478 = vunpack.c.l.b16 %v236
      %v479 = vunpack.c.h.b16 %v236
      %v480 = vunpack.c.l.b16 %v237
      %v481 = vunpack.c.l.b16 %v238
      %v482 = vunpack.c.h.b16 %v238
      %v483 = vunpack.c.l.b16 %v239
      %v484 = vunpack.c.h.b16 %v239
      %v485 = vunpack.c.l.b16 %v240
      %v486 = vunpack.c.h.b16 %v240
      %v487 = vunpack.c.l.b16 %v241
      %v488 = vunpack.c.h.b16 %v241
      %v489 = vunpack.c.l.b16 %v242
      %v490 = vunpack.c.l.b16 %v243
      %v491 = vunpack.c.h.b16 %v243
      %v492 = vunpack.c.l.b16 %v244
      %v493 = vunpack.c.h.b16 %v244
      %v494 = vunpack.c.l.b16 %v245
      %v495 = vunpack.c.h.b16 %v245
      %v496 = vunpack.c.l.b16 %v246
      %v497 = vunpack.c.h.b16 %v246
      %v498 = vunpack.c.l.b16 %v247
      %v499 = vunpack.c.l.b16 %v248
      %v500 = vunpack.c.h.b16 %v248
      %v501 = vunpack.c.l.b16 %v249
      %v502 = vunpack.c.h.b16 %v249
      %v503 = vunpack.c.l.b16 %v250
      %v504 = vunpack.c.h.b16 %v250
      %v505 = vunpack.c.l.b16 %v251
      %v506 = vunpack.c.h.b16 %v251
      %v507 = vunpack.c.l.b16 %v252
      %v508 = vunpack.c.l.b16 %v253
      %v509 = vunpack.c.h.b16 %v253
      %v510 = vunpack.c.l.b16 %v254
      %v511 = vunpack.c.h.b16 %v254
      %v512 = vunpack.c.l.b16 %v255
      %v513 = vunpack.c.h.b16 %v255
      %v514 = vunpack.c.l.b16 %v256
      %v515 = vunpack.c.h.b16 %v256
      %v516 = vunpack.c.l.b16 %v257
      %v517 = vunpack.c.l.b16 %v258
      %v518 = vunpack.c.h.b16 %v258
      %v519 = vunpack.c.l.b16 %v259
      %v520 = vunpack.c.h.b16 %v259
      %v521 = vunpack.c.l.b16 %v260
      %v522 = vunpack.c.h.b16 %v260
      %v523 = vunpack.c.l.b16 %v261
      %v524 = vunpack.c.h.b16 %v261
      %v525 = vunpack.c.l.b16 %v262
      %v526 = vpack.c.b16 %v463, %v454
      %v527 = vpack.c.b16 %v464, %v455
      %v528 = vpack.c.b16 %v465, %v456
      %v529 = vpack.c.b16 %v466, %v457
      %v530 = vpack.c.b16 %v467, %v458
      %v531 = vpack.c.b16 %v468, %v459
      %v532 = vpack.c.b16 %v469, %v460
      %v533 = vpack.c.b16 %v470, %v461
      %v534 = vpack.c.b16 %v471, %v462
      %v535 = vpack.c.b16 %v481, %v472
      %v536 = vpack.c.b16 %v482, %v473
      %v537 = vpack.c.b16 %v483, %v474
      %v538 = vpack.c.b16 %v484, %v475
      %v539 = vpack.c.b16 %v485, %v476
      %v540 = vpack.c.b16 %v486, %v477
      %v541 = vpack.c.b16 %v487, %v478
      %v542 = vpack.c.b16 %v488, %v479
      %v543 = vpack.c.b16 %v489, %v480
      %v544 = vpack.c.b16 %v499, %v490
      %v545 = vpack.c.b16 %v500, %v491
      %v546 = vpack.c.b16 %v501, %v492
      %v547 = vpack.c.b16 %v502, %v493
      %v548 = vpack.c.b16 %v503, %v494
      %v549 = vpack.c.b16 %v504, %v495
      %v550 = vpack.c.b16 %v505, %v496
      %v551 = vpack.c.b16 %v506, %v497
      %v552 = vpack.c.b16 %v507, %v498
      %v553 = vpack.c.b16 %v517, %v508
      %v554 = vpack.c.b16 %v518, %v509
      %v555 = vpack.c.b16 %v519, %v510
      %v556 = vpack.c.b16 %v520, %v511
      %v557 = vpack.c.b16 %v521, %v512
      %v558 = vpack.c.b16 %v522, %v513
      %v559 = vpack.c.b16 %v523, %v514
      %v560 = vpack.c.b16 %v524, %v515
      %v561 = vpack.c.b16 %v525, %v516
      %v742 = vunpack.c.l.b16 %v263
      %v743 = vunpack.c.l.b16 %v264
      %v744 = vunpack.c.l.b16 %v265
      %v745 = vunpack.c.l.b16 %v266
      %v746 = vunpack.c.l.b16 %v267
      %v747 = vunpack.c.l.b16 %v268
      %v748 = vunpack.c.l.b16 %v269
      %v749 = vunpack.c.l.b16 %v270
      %v750 = vunpack.c.l.b16 %v271
      %v751 = vunpack.c.l.b16 %v272
      %v752 = vunpack.c.l.b16 %v273
      %v753 = vunpack.c.l.b16 %v274
      %v754 = vunpack.c.l.b16 %v275
      %v755 = vunpack.c.l.b16 %v276
      %v756 = vunpack.c.l.b16 %v277
      %v757 = vunpack.c.l.b16 %v278
      %v758 = vunpack.c.l.b16 %v279
      %v759 = vunpack.c.l.b16 %v280
      %v760 = vunpack.c.l.b16 %v281
      %v761 = vunpack.c.l.b16 %v282
      %v762 = vunpack.c.l.b16 %v283
      %v763 = vunpack.c.l.b16 %v284
      %v764 = vunpack.c.l.b16 %v285
      %v765 = vunpack.c.l.b16 %v286
      %v766 = vunpack.c.l.b16 %v287
      %v767 = vunpack.c.l.b16 %v288
      %v768 = vunpack.c.l.b16 %v289
      %v769 = vunpack.c.l.b16 %v290
      %v770 = vunpack.c.l.b16 %v291
      %v771 = vunpack.c.l.b16 %v292
      %v772 = vunpack.c.l.b16 %v293
      %v773 = vunpack.c.l.b16 %v294
      %v774 = vunpack.c.l.b16 %v295
      %v775 = vunpack.c.l.b16 %v296
      %v776 = vunpack.c.l.b16 %v297
      %v777 = vunpack.c.l.b16 %v298
      %v778 = vunpack.c.l.b16 %v299
      %v779 = vunpack.c.l.b16 %v300
      %v780 = vunpack.c.l.b16 %v301
      %v781 = vunpack.c.l.b16 %v302
      %v782 = vunpack.c.l.b16 %v303
      %v783 = vunpack.c.l.b16 %v304
      %v784 = vunpack.c.l.b16 %v305
      %v785 = vunpack.c.l.b16 %v306
      %v786 = vunpack.c.l.b16 %v307
      %v787 = vunpack.c.l.b16 %v308
      %v788 = vunpack.c.l.b16 %v309
      %v789 = vunpack.c.l.b16 %v310
      %v790 = vunpack.c.l.b16 %v311
      %v791 = vunpack.c.l.b16 %v312
      %v792 = vunpack.c.l.b16 %v313
      %v793 = vunpack.c.l.b16 %v314
      %v794 = vunpack.c.l.b16 %v315
      %v795 = vunpack.c.l.b16 %v316
      %v796 = vunpack.c.l.b16 %v317
      %v797 = vunpack.c.l.b16 %v318
      %v798 = vunpack.c.l.b16 %v319
      %v799 = vunpack.c.l.b16 %v320
      %v800 = vunpack.c.l.b16 %v321
      %v801 = vunpack.c.l.b16 %v322
      %v802 = vunpack.c.l.b16 %v323
      %v803 = vunpack.c.l.b16 %v324
      %v804 = vunpack.c.l.b16 %v325
      %v805 = vunpack.c.l.b16 %v326
      %v806 = vunpack.c.l.b16 %v327
      %v807 = vunpack.c.l.b16 %v328
      %v808 = vunpack.c.l.b16 %v329
      %v809 = vunpack.c.l.b16 %v330
      %v810 = vunpack.c.l.b16 %v331
      %v811 = vunpack.c.l.b16 %v332
      %v812 = vunpack.c.l.b16 %v333
      %v813 = vunpack.c.l.b16 %v334
      %v814 = vunpack.c.l.b16 %v335
      %v815 = vunpack.c.l.b16 %v336
      %v816 = vunpack.c.l.b16 %v337
      %v817 = vunpack.c.l.b16 %v338
      %v818 = vunpack.c.l.b16 %v339
      %v819 = vunpack.c.l.b16 %v340
      %v820 = vunpack.c.l.b16 %v341
      %v821 = vunpack.c.l.b16 %v342
      %v822 = vunpack.c.l.b16 %v343
      %v823 = vunpack.c.l.b16 %v344
      %v824 = vunpack.c.l.b16 %v345
      %v825 = vunpack.c.l.b16 %v346
      %v826 = vunpack.c.l.b16 %v347
      %v827 = vunpack.c.l.b16 %v348
      %v828 = vunpack.c.l.b16 %v349
      %v829 = vunpack.c.l.b16 %v350
      %v830 = vunpack.c.l.b16 %v351
      %v831 = vunpack.c.l.b16 %v352
      %v832 = vunpack.c.l.b16 %v353
      %v833 = vunpack.c.l.b16 %v354
      %v834 = vunpack.c.l.b16 %v355
      %v835 = vunpack.c.l.b16 %v356
      %v836 = vunpack.c.l.b16 %v357
      %v837 = vunpack.c.l.b16 %v358
      %v838 = vunpack.c.l.b16 %v359
      %v839 = vunpack.c.l.b16 %v360
      %v840 = vunpack.c.l.b16 %v361
      %v841 = vunpack.c.l.b16 %v362
      %v842 = vunpack.c.l.b16 %v363
      %v843 = vunpack.c.l.b16 %v364
      %v844 = vunpack.c.l.b16 %v365
      %v845 = vunpack.c.l.b16 %v366
      %v846 = vunpack.c.l.b16 %v367
      %v847 = vunpack.c.l.b16 %v368
      %v848 = vunpack.c.l.b16 %v369
      %v849 = vunpack.c.l.b16 %v370
      %v850 = vunpack.c.l.b16 %v371
      %v851 = vunpack.c.l.b16 %v372
      %v852 = vunpack.c.l.b16 %v373
      %v853 = vunpack.c.l.b16 %v374
      %v854 = vunpack.c.l.b16 %v375
      %v855 = vunpack.c.l.b16 %v376
      %v856 = vunpack.c.l.b16 %v377
      %v857 = vunpack.c.l.b16 %v378
      %v858 = vunpack.c.l.b16 %v379
      %v859 = vunpack.c.l.b16 %v380
      %v860 = vunpack.c.l.b16 %v381
      %v861 = vunpack.c.l.b16 %v382
      %v862 = vunpack.c.l.b16 %v383
      %v863 = vunpack.c.l.b16 %v384
      %v864 = vunpack.c.l.b16 %v385
      %v865 = vunpack.c.l.b16 %v386
      %v866 = vunpack.c.l.b16 %v387
      %v867 = vunpack.c.l.b16 %v388
      %v868 = vunpack.c.l.b16 %v389
      %v869 = vunpack.c.l.b16 %v390
      %v870 = vunpack.c.l.b16 %v391
      %v871 = vunpack.c.l.b16 %v392
      %v872 = vunpack.c.l.b16 %v393
      %v873 = vunpack.c.l.b16 %v394
      %v874 = vunpack.c.l.b16 %v395
      %v875 = vunpack.c.l.b16 %v396
      %v876 = vunpack.c.l.b16 %v397
      %v877 = vunpack.c.l.b16 %v398
      %v878 = vunpack.c.l.b16 %v399
      %v879 = vunpack.c.l.b16 %v400
      %v880 = vunpack.c.l.b16 %v401
      %v881 = vunpack.c.l.b16 %v402
      %v882 = vunpack.c.l.b16 %v403
      %v883 = vunpack.c.l.b16 %v404
      %v884 = vunpack.c.l.b16 %v405
      %v885 = vunpack.c.l.b16 %v406
      %v886 = vpack.c.b16 %v743, %v742
      %v887 = vpack.c.b16 %v745, %v744
      %v888 = vpack.c.b16 %v747, %v746
      %v889 = vpack.c.b16 %v749, %v748
      %v890 = vpack.c.b16 %v751, %v750
      %v891 = vpack.c.b16 %v753, %v752
      %v892 = vpack.c.b16 %v755, %v754
      %v893 = vpack.c.b16 %v757, %v756
      %v894 = vpack.c.b16 %v759, %v758
      %v895 = vpack.c.b16 %v761, %v760
      %v896 = vpack.c.b16 %v763, %v762
      %v897 = vpack.c.b16 %v765, %v764
      %v898 = vpack.c.b16 %v767, %v766
      %v899 = vpack.c.b16 %v769, %v768
      %v900 = vpack.c.b16 %v771, %v770
      %v901 = vpack.c.b16 %v773, %v772
      %v902 = vpack.c.b16 %v775, %v774
      %v903 = vpack.c.b16 %v777, %v776
      %v904 = vpack.c.b16 %v779, %v778
      %v905 = vpack.c.b16 %v781, %v780
      %v906 = vpack.c.b16 %v783, %v782
      %v907 = vpack.c.b16 %v785, %v784
      %v908 = vpack.c.b16 %v787, %v786
      %v909 = vpack.c.b16 %v789, %v788
      %v910 = vpack.c.b16 %v791, %v790
      %v911 = vpack.c.b16 %v793, %v792
      %v912 = vpack.c.b16 %v795, %v794
      %v913 = vpack.c.b16 %v797, %v796
      %v914 = vpack.c.b16 %v799, %v798
      %v915 = vpack.c.b16 %v801, %v800
      %v916 = vpack.c.b16 %v803, %v802
      %v917 = vpack.c.b16 %v805, %v804
      %v918 = vpack.c.b16 %v807, %v806
      %v919 = vpack.c.b16 %v809, %v808
      %v920 = vpack.c.b16 %v811, %v810
      %v921 = vpack.c.b16 %v813, %v812
      %v922 = vpack.c.b16 %v815, %v814
      %v923 = vpack.c.b16 %v817, %v816
      %v924 = vpack.c.b16 %v819, %v818
      %v925 = vpack.c.b16 %v821, %v820
      %v926 = vpack.c.b16 %v823, %v822
      %v927 = vpack.c.b16 %v825, %v824
      %v928 = vpack.c.b16 %v827, %v826
      %v929 = vpack.c.b16 %v829, %v828
      %v930 = vpack.c.b16 %v831, %v830
      %v931 = vpack.c.b16 %v833, %v832
      %v932 = vpack.c.b16 %v835, %v834
      %v933 = vpack.c.b16 %v837, %v836
      %v934 = vpack.c.b16 %v839, %v838
      %v935 = vpack.c.b16 %v841, %v840
      %v936 = vpack.c.b16 %v843, %v842
      %v937 = vpack.c.b16 %v845, %v844
      %v938 = vpack.c.b16 %v847, %v846
      %v939 = vpack.c.b16 %v849, %v848
      %v940 = vpack.c.b16 %v851, %v850
      %v941 = vpack.c.b16 %v853, %v852
      %v942 = vpack.c.b16 %v855, %v854
      %v943 = vpack.c.b16 %v857, %v856
      %v944 = vpack.c.b16 %v859, %v858
      %v945 = vpack.c.b16 %v861, %v860
      %v946 = vpack.c.b16 %v863, %v862
      %v947 = vpack.c.b16 %v865, %v864
      %v948 = vpack.c.b16 %v867, %v866
      %v949 = vpack.c.b16 %v869, %v868
      %v950 = vpack.c.b16 %v871, %v870
      %v951 = vpack.c.b16 %v873, %v872
      %v952 = vpack.c.b16 %v875, %v874
      %v953 = vpack.c.b16 %v877, %v876
      %v954 = vpack.c.b16 %v879, %v878
      %v955 = vpack.c.b16 %v881, %v880
      %v956 = vpack.c.b16 %v883, %v882
      %v957 = vpack.c.b16 %v885, %v884
      %1030 = vmatprep.subr.bf16.mxu0 0
      %1031 = vmatpush1.bf16.msra.mxu0 %v893
      %1032 = vmatprep.subr.bf16.mxu0 0
      %1033 = vmatpush1.bf16.msra.mxu0 %v892
      %1034 = vmatprep.subr.bf16.mxu0 0
      %1035 = vmatpush1.bf16.msra.mxu0 %v891
      %1036 = vmatprep.subr.bf16.mxu0 0
      %1037 = vmatpush1.bf16.msra.mxu0 %v890
      %1038 = vmatprep.subr.bf16.mxu0 0
      %1039 = vmatpush1.bf16.msra.mxu0 %v889
      %1040 = vmatprep.subr.bf16.mxu0 0
      %1041 = vmatpush1.bf16.msra.mxu0 %v888
      %1042 = vmatprep.subr.bf16.mxu0 0
      %1043 = vmatpush1.bf16.msra.mxu0 %v887
      %1044 = vmatprep.subr.bf16.mxu0 0
      %1045 = vmatpush1.bf16.msra.mxu0 %v886
      %1046 = vmatprep.subr.bf16.mxu0 0
      %1047 = vmatpush2.bf16.msra.mxu0 %v901
      %1048 = vmatprep.subr.bf16.mxu0 0
      %1049 = vmatpush2.bf16.msra.mxu0 %v900
      %1050 = vmatprep.subr.bf16.mxu0 0
      %1051 = vmatpush2.bf16.msra.mxu0 %v899
      %1052 = vmatprep.subr.bf16.mxu0 0
      %1053 = vmatpush2.bf16.msra.mxu0 %v898
      %1054 = vmatprep.subr.bf16.mxu0 0
      %1055 = vmatpush2.bf16.msra.mxu0 %v897
      %1056 = vmatprep.subr.bf16.mxu0 0
      %1057 = vmatpush2.bf16.msra.mxu0 %v896
      %1058 = vmatprep.subr.bf16.mxu0 0
      %1059 = vmatpush2.bf16.msra.mxu0 %v895
      %1060 = vmatprep.subr.bf16.mxu0 0
      %1061 = vmatpush2.bf16.msra.mxu0 %v894
      %1062 = vmatprep.mubr.bf16.mxu0 %v527
      %1063 = vmatmul.mubr.bf16.gmra.mxu0 %v526
      %v1064 = vpop.f32.mrf.mxu0
      %v1065 = vadd.f32 %v412, %v1064
      %v1066 = vpop.f32.mrf.mxu0
      %v1067 = vpop.f32.mrf.mxu0
      %v1068 = vadd.f32 %v412, %v1067
      %v1069 = vpop.f32.mrf.mxu0
      %1070 = vmatprep.mubr.bf16.mxu0 %v536
      %1071 = vmatmul.mubr.bf16.gmra.mxu0 %v535
      %v1072 = vpop.f32.mrf.mxu0
      %v1073 = vadd.f32 %v412, %v1072
      %v1074 = vpop.f32.mrf.mxu0
      %v1075 = vpop.f32.mrf.mxu0
      %v1076 = vadd.f32 %v412, %v1075
      %v1077 = vpop.f32.mrf.mxu0
      %1078 = vmatprep.mubr.bf16.mxu0 %v545
      %1079 = vmatmul.mubr.bf16.gmra.mxu0 %v544
      %v1080 = vpop.f32.mrf.mxu0
      %v1081 = vadd.f32 %v412, %v1080
      %v1082 = vpop.f32.mrf.mxu0
      %v1083 = vpop.f32.mrf.mxu0
      %v1084 = vadd.f32 %v412, %v1083
      %v1085 = vpop.f32.mrf.mxu0
      %1086 = vmatprep.mubr.bf16.mxu0 %v554
      %1087 = vmatmul.mubr.bf16.gmra.mxu0 %v553
      %v1088 = vpop.f32.mrf.mxu0
      %v1089 = vadd.f32 %v412, %v1088
      %v1090 = vpop.f32.mrf.mxu0
      %v1091 = vpop.f32.mrf.mxu0
      %v1092 = vadd.f32 %v412, %v1091
      %v1093 = vpop.f32.mrf.mxu0
      %1094 = vdwg.mxu0
      %1095 = vmatprep.subr.bf16.mxu0 0
      %1096 = vmatpush1.bf16.msra.mxu0 %v909
      %1097 = vmatprep.subr.bf16.mxu0 0
      %1098 = vmatpush1.bf16.msra.mxu0 %v908
      %1099 = vmatprep.subr.bf16.mxu0 0
      %1100 = vmatpush1.bf16.msra.mxu0 %v907
      %1101 = vmatprep.subr.bf16.mxu0 0
      %1102 = vmatpush1.bf16.msra.mxu0 %v906
      %1103 = vmatprep.subr.bf16.mxu0 0
      %1104 = vmatpush1.bf16.msra.mxu0 %v905
      %1105 = vmatprep.subr.bf16.mxu0 0
      %1106 = vmatpush1.bf16.msra.mxu0 %v904
      %1107 = vmatprep.subr.bf16.mxu0 0
      %1108 = vmatpush1.bf16.msra.mxu0 %v903
      %1109 = vmatprep.subr.bf16.mxu0 0
      %1110 = vmatpush1.bf16.msra.mxu0 %v902
      %1111 = vmatprep.subr.bf16.mxu0 0
      %1112 = vmatpush2.bf16.msra.mxu0 %v917
      %1113 = vmatprep.subr.bf16.mxu0 0
      %1114 = vmatpush2.bf16.msra.mxu0 %v916
      %1115 = vmatprep.subr.bf16.mxu0 0
      %1116 = vmatpush2.bf16.msra.mxu0 %v915
      %1117 = vmatprep.subr.bf16.mxu0 0
      %1118 = vmatpush2.bf16.msra.mxu0 %v914
      %1119 = vmatprep.subr.bf16.mxu0 0
      %1120 = vmatpush2.bf16.msra.mxu0 %v913
      %1121 = vmatprep.subr.bf16.mxu0 0
      %1122 = vmatpush2.bf16.msra.mxu0 %v912
      %1123 = vmatprep.subr.bf16.mxu0 0
      %1124 = vmatpush2.bf16.msra.mxu0 %v911
      %1125 = vmatprep.subr.bf16.mxu0 0
      %1126 = vmatpush2.bf16.msra.mxu0 %v910
      %1127 = vmatprep.mubr.bf16.mxu0 %v529
      %1128 = vmatmul.mubr.bf16.gmra.mxu0 %v528
      %v1129 = vpop.f32.mrf.mxu0
      %v1130 = vadd.f32 %v1065, %v1129
      %v1131 = vpop.f32.mrf.mxu0
      %v1132 = vpop.f32.mrf.mxu0
      %v1133 = vadd.f32 %v1068, %v1132
      %v1134 = vpop.f32.mrf.mxu0
      %1135 = vmatprep.mubr.bf16.mxu0 %v538
      %1136 = vmatmul.mubr.bf16.gmra.mxu0 %v537
      %v1137 = vpop.f32.mrf.mxu0
      %v1138 = vadd.f32 %v1073, %v1137
      %v1139 = vpop.f32.mrf.mxu0
      %v1140 = vpop.f32.mrf.mxu0
      %v1141 = vadd.f32 %v1076, %v1140
      %v1142 = vpop.f32.mrf.mxu0
      %1143 = vmatprep.mubr.bf16.mxu0 %v547
      %1144 = vmatmul.mubr.bf16.gmra.mxu0 %v546
      %v1145 = vpop.f32.mrf.mxu0
      %v1146 = vadd.f32 %v1081, %v1145
      %v1147 = vpop.f32.mrf.mxu0
      %v1148 = vpop.f32.mrf.mxu0
      %v1149 = vadd.f32 %v1084, %v1148
      %v1150 = vpop.f32.mrf.mxu0
      %1151 = vmatprep.mubr.bf16.mxu0 %v556
      %1152 = vmatmul.mubr.bf16.gmra.mxu0 %v555
      %v1153 = vpop.f32.mrf.mxu0
      %v1154 = vadd.f32 %v1089, %v1153
      %v1155 = vpop.f32.mrf.mxu0
      %v1156 = vpop.f32.mrf.mxu0
      %v1157 = vadd.f32 %v1092, %v1156
      %v1158 = vpop.f32.mrf.mxu0
      %1159 = vdwg.mxu0
      %1160 = vmatprep.subr.bf16.mxu0 0
      %1161 = vmatpush1.bf16.msra.mxu0 %v925
      %1162 = vmatprep.subr.bf16.mxu0 0
      %1163 = vmatpush1.bf16.msra.mxu0 %v924
      %1164 = vmatprep.subr.bf16.mxu0 0
      %1165 = vmatpush1.bf16.msra.mxu0 %v923
      %1166 = vmatprep.subr.bf16.mxu0 0
      %1167 = vmatpush1.bf16.msra.mxu0 %v922
      %1168 = vmatprep.subr.bf16.mxu0 0
      %1169 = vmatpush1.bf16.msra.mxu0 %v921
      %1170 = vmatprep.subr.bf16.mxu0 0
      %1171 = vmatpush1.bf16.msra.mxu0 %v920
      %1172 = vmatprep.subr.bf16.mxu0 0
      %1173 = vmatpush1.bf16.msra.mxu0 %v919
      %1174 = vmatprep.subr.bf16.mxu0 0
      %1175 = vmatpush1.bf16.msra.mxu0 %v918
      %1176 = vmatprep.subr.bf16.mxu0 0
      %1177 = vmatpush2.bf16.msra.mxu0 %v933
      %1178 = vmatprep.subr.bf16.mxu0 0
      %1179 = vmatpush2.bf16.msra.mxu0 %v932
      %1180 = vmatprep.subr.bf16.mxu0 0
      %1181 = vmatpush2.bf16.msra.mxu0 %v931
      %1182 = vmatprep.subr.bf16.mxu0 0
      %1183 = vmatpush2.bf16.msra.mxu0 %v930
      %1184 = vmatprep.subr.bf16.mxu0 0
      %1185 = vmatpush2.bf16.msra.mxu0 %v929
      %1186 = vmatprep.subr.bf16.mxu0 0
      %1187 = vmatpush2.bf16.msra.mxu0 %v928
      %1188 = vmatprep.subr.bf16.mxu0 0
      %1189 = vmatpush2.bf16.msra.mxu0 %v927
      %1190 = vmatprep.subr.bf16.mxu0 0
      %1191 = vmatpush2.bf16.msra.mxu0 %v926
      %1192 = vmatprep.mubr.bf16.mxu0 %v531
      %1193 = vmatmul.mubr.bf16.gmra.mxu0 %v530
      %v1194 = vpop.f32.mrf.mxu0
      %v1195 = vadd.f32 %v1130, %v1194
      %v1196 = vpop.f32.mrf.mxu0
      %v1197 = vpop.f32.mrf.mxu0
      %v1198 = vadd.f32 %v1133, %v1197
      %v1199 = vpop.f32.mrf.mxu0
      %1200 = vmatprep.mubr.bf16.mxu0 %v540
      %1201 = vmatmul.mubr.bf16.gmra.mxu0 %v539
      %v1202 = vpop.f32.mrf.mxu0
      %v1203 = vadd.f32 %v1138, %v1202
      %v1204 = vpop.f32.mrf.mxu0
      %v1205 = vpop.f32.mrf.mxu0
      %v1206 = vadd.f32 %v1141, %v1205
      %v1207 = vpop.f32.mrf.mxu0
      %1208 = vmatprep.mubr.bf16.mxu0 %v549
      %1209 = vmatmul.mubr.bf16.gmra.mxu0 %v548
      %v1210 = vpop.f32.mrf.mxu0
      %v1211 = vadd.f32 %v1146, %v1210
      %v1212 = vpop.f32.mrf.mxu0
      %v1213 = vpop.f32.mrf.mxu0
      %v1214 = vadd.f32 %v1149, %v1213
      %v1215 = vpop.f32.mrf.mxu0
      %1216 = vmatprep.mubr.bf16.mxu0 %v558
      %1217 = vmatmul.mubr.bf16.gmra.mxu0 %v557
      %v1218 = vpop.f32.mrf.mxu0
      %v1219 = vadd.f32 %v1154, %v1218
      %v1220 = vpop.f32.mrf.mxu0
      %v1221 = vpop.f32.mrf.mxu0
      %v1222 = vadd.f32 %v1157, %v1221
      %v1223 = vpop.f32.mrf.mxu0
      %1224 = vdwg.mxu0
      %1225 = vmatprep.subr.bf16.mxu0 0
      %1226 = vmatpush1.bf16.msra.mxu0 %v941
      %1227 = vmatprep.subr.bf16.mxu0 0
      %1228 = vmatpush1.bf16.msra.mxu0 %v940
      %1229 = vmatprep.subr.bf16.mxu0 0
      %1230 = vmatpush1.bf16.msra.mxu0 %v939
      %1231 = vmatprep.subr.bf16.mxu0 0
      %1232 = vmatpush1.bf16.msra.mxu0 %v938
      %1233 = vmatprep.subr.bf16.mxu0 0
      %1234 = vmatpush1.bf16.msra.mxu0 %v937
      %1235 = vmatprep.subr.bf16.mxu0 0
      %1236 = vmatpush1.bf16.msra.mxu0 %v936
      %1237 = vmatprep.subr.bf16.mxu0 0
      %1238 = vmatpush1.bf16.msra.mxu0 %v935
      %1239 = vmatprep.subr.bf16.mxu0 0
      %1240 = vmatpush1.bf16.msra.mxu0 %v934
      %1241 = vmatprep.subr.bf16.mxu0 0
      %1242 = vmatpush2.bf16.msra.mxu0 %v949
      %1243 = vmatprep.subr.bf16.mxu0 0
      %1244 = vmatpush2.bf16.msra.mxu0 %v948
      %1245 = vmatprep.subr.bf16.mxu0 0
      %1246 = vmatpush2.bf16.msra.mxu0 %v947
      %1247 = vmatprep.subr.bf16.mxu0 0
      %1248 = vmatpush2.bf16.msra.mxu0 %v946
      %1249 = vmatprep.subr.bf16.mxu0 0
      %1250 = vmatpush2.bf16.msra.mxu0 %v945
      %1251 = vmatprep.subr.bf16.mxu0 0
      %1252 = vmatpush2.bf16.msra.mxu0 %v944
      %1253 = vmatprep.subr.bf16.mxu0 0
      %1254 = vmatpush2.bf16.msra.mxu0 %v943
      %1255 = vmatprep.subr.bf16.mxu0 0
      %1256 = vmatpush2.bf16.msra.mxu0 %v942
      %1257 = vmatprep.mubr.bf16.mxu0 %v533
      %1258 = vmatmul.mubr.bf16.gmra.mxu0 %v532
      %v1259 = vpop.f32.mrf.mxu0
      %v1260 = vadd.f32 %v1195, %v1259
      %v1261 = vpop.f32.mrf.mxu0
      %v1262 = vpop.f32.mrf.mxu0
      %v1263 = vadd.f32 %v1198, %v1262
      %v1264 = vpop.f32.mrf.mxu0
      %1265 = vmatprep.mubr.bf16.mxu0 %v542
      %1266 = vmatmul.mubr.bf16.gmra.mxu0 %v541
      %v1267 = vpop.f32.mrf.mxu0
      %v1268 = vadd.f32 %v1203, %v1267
      %v1269 = vpop.f32.mrf.mxu0
      %v1270 = vpop.f32.mrf.mxu0
      %v1271 = vadd.f32 %v1206, %v1270
      %v1272 = vpop.f32.mrf.mxu0
      %1273 = vmatprep.mubr.bf16.mxu0 %v551
      %1274 = vmatmul.mubr.bf16.gmra.mxu0 %v550
      %v1275 = vpop.f32.mrf.mxu0
      %v1276 = vadd.f32 %v1211, %v1275
      %v1277 = vpop.f32.mrf.mxu0
      %v1278 = vpop.f32.mrf.mxu0
      %v1279 = vadd.f32 %v1214, %v1278
      %v1280 = vpop.f32.mrf.mxu0
      %1281 = vmatprep.mubr.bf16.mxu0 %v560
      %1282 = vmatmul.mubr.bf16.gmra.mxu0 %v559
      %v1283 = vpop.f32.mrf.mxu0
      %v1284 = vadd.f32 %v1219, %v1283
      %v1285 = vpop.f32.mrf.mxu0
      %v1286 = vpop.f32.mrf.mxu0
      %v1287 = vadd.f32 %v1222, %v1286
      %v1288 = vpop.f32.mrf.mxu0
      %1289 = vdwg.mxu0
      %1290 = vmatprep.subr.bf16.mxu0 0
      %1291 = vmatpush1.bf16.msra.mxu0 %v957
      %1292 = vmatprep.subr.bf16.mxu0 0
      %1293 = vmatpush1.bf16.msra.mxu0 %v956
      %1294 = vmatprep.subr.bf16.mxu0 0
      %1295 = vmatpush1.bf16.msra.mxu0 %v955
      %1296 = vmatprep.subr.bf16.mxu0 0
      %1297 = vmatpush1.bf16.msra.mxu0 %v954
      %1298 = vmatprep.subr.bf16.mxu0 0
      %1299 = vmatpush1.bf16.msra.mxu0 %v953
      %1300 = vmatprep.subr.bf16.mxu0 0
      %1301 = vmatpush1.bf16.msra.mxu0 %v952
      %1302 = vmatprep.subr.bf16.mxu0 0
      %1303 = vmatpush1.bf16.msra.mxu0 %v951
      %1304 = vmatprep.subr.bf16.mxu0 0
      %1305 = vmatpush1.bf16.msra.mxu0 %v950
      %1306 = vmatprep.subr.bf16.mxu0 0
      %1307 = vmatpush2.bf16.msra.mxu0 0
      %1308 = vmatprep.subr.bf16.mxu0 0
      %1309 = vmatpush2.bf16.msra.mxu0 0
      %1310 = vmatprep.subr.bf16.mxu0 0
      %1311 = vmatpush2.bf16.msra.mxu0 0
      %1312 = vmatprep.subr.bf16.mxu0 0
      %1313 = vmatpush2.bf16.msra.mxu0 0
      %1314 = vmatprep.subr.bf16.mxu0 0
      %1315 = vmatpush2.bf16.msra.mxu0 0
      %1316 = vmatprep.subr.bf16.mxu0 0
      %1317 = vmatpush2.bf16.msra.mxu0 0
      %1318 = vmatprep.subr.bf16.mxu0 0
      %1319 = vmatpush2.bf16.msra.mxu0 0
      %1320 = vmatprep.subr.bf16.mxu0 0
      %1321 = vmatpush2.bf16.msra.mxu0 0
      %1322 = vmatprep.mubr.bf16.mxu0 0
      %1323 = vmatmul.mubr.bf16.gmra.mxu0 %v534
      %v1324 = vpop.f32.mrf.mxu0
      %v1325 = vadd.f32 %v1260, %v1324
      %v1326 = vpop.f32.mrf.mxu0
      %v1327 = vpop.f32.mrf.mxu0
      %v1328 = vadd.f32 %v1263, %v1327
      %v1329 = vpop.f32.mrf.mxu0
      %1330 = vmatprep.mubr.bf16.mxu0 0
      %1331 = vmatmul.mubr.bf16.gmra.mxu0 %v543
      %v1332 = vpop.f32.mrf.mxu0
      %v1333 = vadd.f32 %v1268, %v1332
      %v1334 = vpop.f32.mrf.mxu0
      %v1335 = vpop.f32.mrf.mxu0
      %v1336 = vadd.f32 %v1271, %v1335
      %v1337 = vpop.f32.mrf.mxu0
      %1338 = vmatprep.mubr.bf16.mxu0 0
      %1339 = vmatmul.mubr.bf16.gmra.mxu0 %v552
      %v1340 = vpop.f32.mrf.mxu0
      %v1341 = vadd.f32 %v1276, %v1340
      %v1342 = vpop.f32.mrf.mxu0
      %v1343 = vpop.f32.mrf.mxu0
      %v1344 = vadd.f32 %v1279, %v1343
      %v1345 = vpop.f32.mrf.mxu0
      %1346 = vmatprep.mubr.bf16.mxu0 0
      %1347 = vmatmul.mubr.bf16.gmra.mxu0 %v561
      %v1348 = vpop.f32.mrf.mxu0
      %v1349 = vadd.f32 %v1284, %v1348
      %v1350 = vpop.f32.mrf.mxu0
      %v1351 = vpop.f32.mrf.mxu0
      %v1352 = vadd.f32 %v1287, %v1351
      %v1353 = vpop.f32.mrf.mxu0
      %1354 = vdwg.mxu0
      %v1355 = vadd.f32 %v1325, %v1328
      %v1356 = vadd.f32 %v1355, %v1333
      %v1357 = vadd.f32 %v1356, %v1336
      %v1358 = vadd.f32 %v1357, %v1341
      %v1359 = vadd.f32 %v1358, %v1344
      %v1360 = vadd.f32 %v1359, %v1349
      %v1361 = vadd.f32 %v1360, %v1352
      %v1362 = vrot.slane %v1361, 4
      %v1363 = vadd.f32 %v1361, %v1362
      %v1364 = vrot.slane %v1363, 2
      %v1365 = vadd.f32 %v1363, %v1364
      %v1366 = vrot.slane %v1365, 1
      %v1367 = vadd.f32 %v1365, %v1366
      %v1368 = vmul.f32 %v1367, 0.015625
      %v1369 = vmul.f32 %v1325, %v1325
      %v1370 = vmul.f32 %v1328, %v1328
      %v1371 = vmul.f32 %v1333, %v1333
      %v1372 = vmul.f32 %v1336, %v1336
      %v1373 = vmul.f32 %v1341, %v1341
      %v1374 = vmul.f32 %v1344, %v1344
      %v1375 = vmul.f32 %v1349, %v1349
      %v1376 = vmul.f32 %v1352, %v1352
      %v1377 = vadd.f32 %v1369, %v1370
      %v1378 = vadd.f32 %v1377, %v1371
      %v1379 = vadd.f32 %v1378, %v1372
      %v1380 = vadd.f32 %v1379, %v1373
      %v1381 = vadd.f32 %v1380, %v1374
      %v1382 = vadd.f32 %v1381, %v1375
      %v1383 = vadd.f32 %v1382, %v1376
      %v1384 = vrot.slane %v1383, 4
      %v1385 = vadd.f32 %v1383, %v1384
      %v1386 = vrot.slane %v1385, 2
      %v1387 = vadd.f32 %v1385, %v1386
      %v1388 = vrot.slane %v1387, 1
      %v1389 = vadd.f32 %v1387, %v1388
      %v1390 = vmul.f32 %v1389, 0.015625
      %v1391 = vmul.f32 %v1368, %v1368
      %v1392 = vsub.f32 %v1390, %v1391
      %v1393 = vsub.f32 %v1325, %v1368
      %v1394 = vsub.f32 %v1328, %v1368
      %v1395 = vsub.f32 %v1333, %v1368
      %v1396 = vsub.f32 %v1336, %v1368
      %v1397 = vsub.f32 %v1341, %v1368
      %v1398 = vsub.f32 %v1344, %v1368
      %v1399 = vsub.f32 %v1349, %v1368
      %v1400 = vsub.f32 %v1352, %v1368
      %v1401 = vadd.f32 %v1392, 1e-05
      %v1402 = vrsqrt.pop %v1401
      %v1403 = vmul.f32 %v1393, %v1402
      %v1404 = vmul.f32 %v1394, %v1402
      %v1405 = vmul.f32 %v1395, %v1402
      %v1406 = vmul.f32 %v1396, %v1402
      %v1407 = vmul.f32 %v1397, %v1402
      %v1408 = vmul.f32 %v1398, %v1402
      %v1409 = vmul.f32 %v1399, %v1402
      %v1410 = vmul.f32 %v1400, %v1402
      %vm1411 = vcmp.ge.f32.partialorder %v1403, 0.0
      %vm1412 = vcmp.ge.f32.partialorder %v1404, 0.0
      %vm1413 = vcmp.ge.f32.partialorder %v1405, 0.0
      %vm1414 = vcmp.ge.f32.partialorder %v1406, 0.0
      %vm1415 = vcmp.ge.f32.partialorder %v1407, 0.0
      %vm1416 = vcmp.ge.f32.partialorder %v1408, 0.0
      %vm1417 = vcmp.ge.f32.partialorder %v1409, 0.0
      %vm1418 = vcmp.ge.f32.partialorder %v1410, 0.0
      %v1419 = vmul.f32 %v1403, 0.2
      %v1420 = vmul.f32 %v1404, 0.2
      %v1421 = vmul.f32 %v1405, 0.2
      %v1422 = vmul.f32 %v1406, 0.2
      %v1423 = vmul.f32 %v1407, 0.2
      %v1424 = vmul.f32 %v1408, 0.2
      %v1425 = vmul.f32 %v1409, 0.2
      %v1426 = vmul.f32 %v1410, 0.2
      %v1427 = vsel %vm1411, %v1403, %v1419
      %v1428 = vsel %vm1412, %v1404, %v1420
      %v1429 = vsel %vm1413, %v1405, %v1421
      %v1430 = vsel %vm1414, %v1406, %v1422
      %v1431 = vsel %vm1415, %v1407, %v1423
      %v1432 = vsel %vm1416, %v1408, %v1424
      %v1433 = vsel %vm1417, %v1409, %v1425
      %v1434 = vsel %vm1418, %v1410, %v1426
      %v1435 = vpack.c.bf16 %v1428, %v1427
      %v1436 = vpack.c.bf16 %v1430, %v1429
      %v1437 = vpack.c.bf16 %v1432, %v1431
      %v1438 = vpack.c.bf16 %v1434, %v1433
      %v1443 = vunpack.c.l.b16 %v1435
      %v1444 = vunpack.c.h.b16 %v1435
      %v1445 = vunpack.c.l.b16 %v1436
      %v1446 = vunpack.c.h.b16 %v1436
      %v1447 = vunpack.c.l.b16 %v1437
      %v1448 = vunpack.c.h.b16 %v1437
      %v1449 = vunpack.c.l.b16 %v1438
      %v1450 = vunpack.c.h.b16 %v1438
      %v1451 = vpack.c.b16 %v1443, %v1443
      %v1452 = vpack.c.b16 %v1444, %v1444
      %v1453 = vpack.c.b16 %v1445, %v1445
      %v1454 = vpack.c.b16 %v1446, %v1446
      %v1455 = vpack.c.b16 %v1447, %v1447
      %v1456 = vpack.c.b16 %v1448, %v1448
      %v1457 = vpack.c.b16 %v1449, %v1449
      %v1458 = vpack.c.b16 %v1450, %v1450
      %1467 = vst [vmem:[%s221] sm:$0xf] %v1451
      %1468 = vst [vmem:[%s221 + $0x4] sm:$0xf] %v1452
      %1469 = vst [vmem:[%s221 + $0x8] sm:$0xf] %v1453
      %1470 = vst [vmem:[%s221 + $0xc] sm:$0xf] %v1454
      %1471 = vst [vmem:[%s221 + $0x10] sm:$0xf] %v1455
      %1472 = vst [vmem:[%s221 + $0x14] sm:$0xf] %v1456
      %1473 = vst [vmem:[%s221 + $0x18] sm:$0xf] %v1457
      %1474 = vst [vmem:[%s221 + $0x1c] sm:$0xf] %v1458
      %p1475 = scmp.lt.s32.totalorder %s18, 1
      %s1476 = scalar_select %p1475, %s18, 1
      %p1477 = scmp.lt.s32.totalorder %s19, 0
      %s1478 = scalar_select %p1477, %s19, 0
      %s1479 = smul.addr %s1476, 8
      %s1480 = sadd.s32 %s1478, %s1479
      %s1481 = smul.addr %s1480, 4
      %s1482 = scalar_lea.vmem %s3, %s1481
      // Predicated region
      $region33: #{discriminator_forward.6} parent=31 // pred_check
        %p1483 = pneg %p124
      $region34: #{discriminator_forward.6} parent=31 // pred_check_branch
        %1485 = sbr.rel (%p1483) target = $region36
      $region35: #{discriminator_forward.6} parent=31 // pred_region
        _
      $region36: #{discriminator_forward.6} parent=31 // pred_fallthru
        _
    $region32: #{discriminator_forward.6} parent=5 // pred_fallthru
      _
    %p1486 = scmp.le.s32.totalorder 2, %s9
    // Predicated region
    $region37: #{discriminator_forward.6} parent=5 // pred_check
      %p1487 = pneg %p1486
    $region38: #{discriminator_forward.6} parent=5 // pred_check_branch
      %1489 = sbr.rel (%p1487) target = $region40
    $region39: #{discriminator_forward.6} parent=5 // pred_region
      %s1490 = ssub.s32 %s9, 2
      // Predicated region
      $region41: #{discriminator_forward.6} parent=39 // pred_check
        %p1491 = pneg %p130
      $region42: #{discriminator_forward.6} parent=39 // pred_check_branch
        %1493 = sbr.rel (%p1491) target = $region44
      $region43: #{discriminator_forward.6} parent=39 // pred_region
        %p1494 = scmp.lt.s32.totalorder %s20, 1
        %s1495 = scalar_select %p1494, %s20, 1
        %p1496 = scmp.lt.s32.totalorder %s21, 0
        %s1497 = scalar_select %p1496, %s21, 0
        %s1498 = smul.addr %s1495, 8
        %s1499 = sadd.s32 %s1497, %s1498
        %s1500 = smul.addr %s1499, 4
        %s1501 = scalar_lea.vmem %s3, %s1500
      $region44: #{discriminator_forward.6} parent=39 // pred_fallthru
        _
    $region40: #{discriminator_forward.6} parent=5 // pred_fallthru
      _
  $region6: #{discriminator_forward.6} parent=0 // loop_footer
    %s13 = sadd.s32 1, %s9
  $region7: #{discriminator_forward.6} parent=0 // loop_footer_branch
    %8 = sbr.rel target = $region3
  $region8: #{discriminator_forward.6} parent=0 // loop_exit
    _

// kernel: discriminator_forward.7
$region0: #{discriminator_forward.7}
  #allocation0 [shape = 'u32[]', space=smem, size = 0x4, offset = 0x4, fixed_abs, tag = 'smem constant byte address 0x4 - core index']
  #allocation1 [shape = 'u32[144,128]{1,0:T(1,128)}', space=vmem, size = 0x12000, scoped, tag = 'internal scratch']
  %s0 = inlined_call_operand.vmem [shape: bf16[2,16,1152], index: 0, kind: input, shape index: {}]
  %s1 = inlined_call_operand.vmem [shape: bf16[1152,256], index: 1, kind: input, shape index: {}]
  %s2 = inlined_call_operand.vmem [shape: f32[1,256], index: 2, kind: input, shape index: {}]
  %s3 = inlined_call_operand.vmem [shape: bf16[2,16,256], index: 3, kind: output, shape index: {}]
  %s4 = sld [smem:[#allocation0]]
  $region45: #{discriminator_forward.7} parent=0
    _
  %s6 = ssub.s32 1, %s4
  %s7 = scalar_select 0, %s6, %s4
  loop: start=0, step=1, limit=4
  $region2: #{discriminator_forward.7} parent=0 // loop_pre_header
    _
  $region3: #{discriminator_forward.7} parent=0 // loop_header
    %s9 = sphi 0, %s13
    %p10 = scmp.ge.s32.totalorder %s9, 4
    %s16 = sphi 0, %s28
    %s17 = sphi 0, %s24
    %s18 = sphi 0, %s16
    %s19 = sphi 0, %s17
    %s20 = sphi 0, %s18
    %s21 = sphi 0, %s19
    %s31 = sphi 0, %s33
    %s34 = sphi 0, %s31
    %s35 = sphi 0, %s34
    %s51 = sphi 0, %s35
    %s57 = sphi 0, %s59
    %s60 = sphi 0, %s57
    %s61 = sphi 0, %s60
    %s77 = sphi 0, %s61
    %s83 = sphi 0, %s85
    %s86 = sphi 0, %s83
    %s87 = sphi 0, %s86
    %s103 = sphi 0, %s87
    %s111 = sphi 0, %s113
    %s114 = sphi 0, %s111
    %s115 = sphi 0, %s114
    %s131 = sphi 0, %s115
  $region4: #{discriminator_forward.7} parent=0 // loop_header_branch
    %12 = sbr.rel (%p10) target = $region8
  $region5: #{discriminator_forward.7} parent=0 // loop_body
    %s14 = ssub.s32 %s9, 1
    %s15 = ssub.s32 %s9, 2
    %s22 = sadd.s32 1, %s17
    %p23 = scmp.ge.s32.totalorder %s22, 1
    %s24 = scalar_select %p23, 0, %s22
    %s25 = sadd.s32 1, %s16
    %s26 = scalar_select %p23, %s25, %s16
    %p27 = scmp.ge.s32.totalorder %s26, 2
    %s28 = scalar_select %p27, 0, %s26
    %s29 = ssub.s32 %s16, %s28
    %p30 = scmp.eq.s32.totalorder %s29, 0
    %s32 = sadd.s32 %s31, 1
    %s33 = scalar_select %p30, %s31, %s32
    %p36 = pneg %p30
    %p37 = scmp.eq.s32.totalorder %s9, 1
    %p38 = por %p36, %p37
    %p39 = scmp.ne.s32.totalorder %s31, %s34
    %p40 = scmp.eq.s32.totalorder %s9, 0
    %p41 = por %p39, %p40
    %p42 = scmp.ne.s32.totalorder %s31, %s34
    %p43 = scmp.eq.s32.totalorder %s14, 1
    %p44 = por %p42, %p43
    %p45 = scmp.ne.s32.totalorder %s34, %s35
    %p46 = scmp.eq.s32.totalorder %s14, 0
    %p47 = por %p45, %p46
    %p48 = scmp.ne.s32.totalorder %s34, %s35
    %p49 = scmp.eq.s32.totalorder %s15, 1
    %p50 = por %p48, %p49
    %p52 = scmp.ne.s32.totalorder %s35, %s51
    %p53 = scmp.eq.s32.totalorder %s15, 0
    %p54 = por %p52, %p53
    %s55 = ssub.s32 %s17, %s24
    %p56 = scmp.eq.s32.totalorder %s55, 0
    %s58 = sadd.s32 %s57, 1
    %s59 = scalar_select %p56, %s57, %s58
    %p62 = pneg %p56
    %p63 = scmp.eq.s32.totalorder %s9, 1
    %p64 = por %p62, %p63
    %p65 = scmp.ne.s32.totalorder %s57, %s60
    %p66 = scmp.eq.s32.totalorder %s9, 0
    %p67 = por %p65, %p66
    %p68 = scmp.ne.s32.totalorder %s57, %s60
    %p69 = scmp.eq.s32.totalorder %s14, 1
    %p70 = por %p68, %p69
    %p71 = scmp.ne.s32.totalorder %s60, %s61
    %p72 = scmp.eq.s32.totalorder %s14, 0
    %p73 = por %p71, %p72
    %p74 = scmp.ne.s32.totalorder %s60, %s61
    %p75 = scmp.eq.s32.totalorder %s15, 1
    %p76 = por %p74, %p75
    %p78 = scmp.ne.s32.totalorder %s61, %s77
    %p79 = scmp.eq.s32.totalorder %s15, 0
    %p80 = por %p78, %p79
    %s81 = ssub.s32 %s17, %s24
    %p82 = scmp.eq.s32.totalorder %s81, 0
    %s84 = sadd.s32 %s83, 1
    %s85 = scalar_select %p82, %s83, %s84
    %p88 = pneg %p82
    %p89 = scmp.eq.s32.totalorder %s9, 1
    %p90 = por %p88, %p89
    %p91 = scmp.ne.s32.totalorder %s83, %s86
    %p92 = scmp.eq.s32.totalorder %s9, 0
    %p93 = por %p91, %p92
    %p94 = scmp.ne.s32.totalorder %s83, %s86
    %p95 = scmp.eq.s32.totalorder %s14, 1
    %p96 = por %p94, %p95
    %p97 = scmp.ne.s32.totalorder %s86, %s87
    %p98 = scmp.eq.s32.totalorder %s14, 0
    %p99 = por %p97, %p98
    %p100 = scmp.ne.s32.totalorder %s86, %s87
    %p101 = scmp.eq.s32.totalorder %s15, 1
    %p102 = por %p100, %p101
    %p104 = scmp.ne.s32.totalorder %s87, %s103
    %p105 = scmp.eq.s32.totalorder %s15, 0
    %p106 = por %p104, %p105
    %s107 = ssub.s32 %s16, %s28
    %s108 = ssub.s32 %s17, %s24
    %s109 = sor.u32 %s107, %s108
    %p110 = scmp.eq.s32.totalorder %s109, 0
    %s112 = sadd.s32 %s111, 1
    %s113 = scalar_select %p110, %s111, %s112
    %p116 = pneg %p110
    %p117 = scmp.eq.s32.totalorder %s9, 1
    %p118 = por %p116, %p117
    %p119 = scmp.ne.s32.totalorder %s111, %s114
    %p120 = scmp.eq.s32.totalorder %s9, 0
    %p121 = por %p119, %p120
    %p122 = scmp.ne.s32.totalorder %s111, %s114
    %p123 = scmp.eq.s32.totalorder %s14, 1
    %p124 = por %p122, %p123
    %p125 = scmp.ne.s32.totalorder %s114, %s115
    %p126 = scmp.eq.s32.totalorder %s14, 0
    %p127 = por %p125, %p126
    %p128 = scmp.ne.s32.totalorder %s114, %s115
    %p129 = scmp.eq.s32.totalorder %s15, 1
    %p130 = por %p128, %p129
    %p132 = scmp.ne.s32.totalorder %s115, %s131
    %p133 = scmp.eq.s32.totalorder %s15, 0
    %p134 = por %p132, %p133
    %p135 = scmp.le.s32.totalorder 1, %s9
    %p136 = scmp.lt.s32.totalorder %s9, 3
    %p137 = pnand %p135, %p136
    %p138 = pneg %p137
    // Predicated region
    $region9: #{discriminator_forward.7} parent=5 // pred_check
      _
    $region10: #{discriminator_forward.7} parent=5 // pred_check_branch
      %140 = sbr.rel (%p137) target = $region12
    $region11: #{discriminator_forward.7} parent=5 // pred_region
      %s141 = ssub.s32 %s9, 1
      // Predicated region
      $region13: #{discriminator_forward.7} parent=11 // pred_check
        %p142 = pneg %p73
      $region14: #{discriminator_forward.7} parent=11 // pred_check_branch
        %144 = sbr.rel (%p142) target = $region16
      $region15: #{discriminator_forward.7} parent=11 // pred_region
        %s145 = smul.u32 2, %s19
        %p146 = scmp.lt.s32.totalorder %s145, 1
        %s147 = scalar_select %p146, %s145, 1
        %s148 = smul.addr %s147, 4
        %s149 = scalar_lea.vmem %s1, %s148
        %s150 = smul.u32 2, %s19
      $region16: #{discriminator_forward.7} parent=11 // pred_fallthru
        _
      // Predicated region
      $region17: #{discriminator_forward.7} parent=11 // pred_check
        %p151 = pneg %p99
      $region18: #{discriminator_forward.7} parent=11 // pred_check_branch
        %153 = sbr.rel (%p151) target = $region20
      $region19: #{discriminator_forward.7} parent=11 // pred_region
        %s154 = smul.u32 2, %s19
        %p155 = scmp.lt.s32.totalorder %s154, 1
        %s156 = scalar_select %p155, %s154, 1
        %s157 = scalar_lea.vmem %s2, %s156
        %s158 = smul.u32 2, %s19
      $region20: #{discriminator_forward.7} parent=11 // pred_fallthru
        _
    $region12: #{discriminator_forward.7} parent=5 // pred_fallthru
      _
    %p159 = scmp.lt.s32.totalorder %s9, 2
    // Predicated region
    $region21: #{discriminator_forward.7} parent=5 // pred_check
      %p160 = pneg %p159
    $region22: #{discriminator_forward.7} parent=5 // pred_check_branch
      %162 = sbr.rel (%p160) target = $region24
    $region23: #{discriminator_forward.7} parent=5 // pred_region
      // Predicated region
      $region25: #{discriminator_forward.7} parent=23 // pred_check
        %p163 = pneg %p41
      $region26: #{discriminator_forward.7} parent=23 // pred_check_branch
        %165 = sbr.rel (%p163) target = $region28
      $region27: #{discriminator_forward.7} parent=23 // pred_region
        %p166 = scmp.lt.s32.totalorder %s16, 1
        %s167 = scalar_select %p166, %s16, 1
        %s168 = smul.addr %s167, 18
        %s169 = smul.addr %s168, 4
        %s170 = scalar_lea.vmem %s0, %s169
      $region28: #{discriminator_forward.7} parent=23 // pred_fallthru
        _
    $region24: #{discriminator_forward.7} parent=5 // pred_fallthru
      _
    %p171 = scmp.le.s32.totalorder 1, %s9
    %p172 = scmp.lt.s32.totalorder %s9, 3
    %p173 = pnand %p171, %p172
    %p174 = pneg %p173
    // Predicated region
    $region29: #{discriminator_forward.7} parent=5 // pred_check
      _
    $region30: #{discriminator_forward.7} parent=5 // pred_check_branch
      %176 = sbr.rel (%p173) target = $region32
    $region31: #{discriminator_forward.7} parent=5 // pred_region
      %s177 = ssub.s32 %s9, 1
      %p178 = scmp.lt.s32.totalorder %s18, 1
      %s179 = scalar_select %p178, %s18, 1
      %s180 = smul.addr %s179, 18
      %s181 = smul.addr %s180, 4
      %s182 = scalar_lea.vmem %s0, %s181
      %p183 = pneg %p47
      %p184 = pneg %p44
      %s185 = smul.u32 2, %s19
      %p186 = scmp.lt.s32.totalorder %s185, 1
      %s187 = scalar_select %p186, %s185, 1
      %s188 = smul.addr %s187, 4
      %s189 = scalar_lea.vmem %s1, %s188
      %p190 = pneg %p73
      %p191 = pneg %p70
      %s192 = smul.u32 2, %s19
      %p193 = scmp.lt.s32.totalorder %s192, 1
      %s194 = scalar_select %p193, %s192, 1
      %s195 = scalar_lea.vmem %s2, %s194
      %p196 = pneg %p99
      %p197 = pneg %p96
      %p198 = pneg %p127
      %p199 = pneg %p124
      %s200 = smul.u32 2, %s19
      %p201 = scmp.lt.s32.totalorder %s18, 1
      %s202 = scalar_select %p201, %s18, 1
      %p203 = scmp.lt.s32.totalorder %s200, 1
      %s204 = scalar_select %p203, %s200, 1
      %s205 = smul.addr %s202, 4
      %s206 = sadd.s32 %s204, %s205
      %s207 = smul.addr %s206, 4
      %s208 = scalar_lea.vmem %s3, %s207
      %p209 = scmp.lt.s32.totalorder %s18, 1
      %s210 = scalar_select %p209, %s18, 1
      %s211 = smul.addr %s210, 18
      %s212 = smul.addr %s211, 4
      %s213 = scalar_lea.vmem %s0, %s212
      %s214 = smul.u32 2, %s19
      %p215 = scmp.lt.s32.totalorder %s214, 1
      %s216 = scalar_select %p215, %s214, 1
      %s217 = smul.addr %s216, 4
      %s218 = scalar_lea.vmem %s1, %s217
      %s219 = smul.u32 2, %s19
      %s220 = smul.u32 2, %s19
      %p221 = scmp.lt.s32.totalorder %s220, 1
      %s222 = scalar_select %p221, %s220, 1
      %s223 = scalar_lea.vmem %s2, %s222
      %s224 = smul.u32 2, %s19
      %s225 = smul.u32 2, %s19
      %p226 = scmp.lt.s32.totalorder %s18, 1
      %s227 = scalar_select %p226, %s18, 1
      %p228 = scmp.lt.s32.totalorder %s225, 1
      %s229 = scalar_select %p228, %s225, 1
      %s230 = smul.addr %s227, 4
      %s231 = sadd.s32 %s229, %s230
      %s232 = smul.addr %s231, 4
      %s233 = scalar_lea.vmem %s3, %s232
      %s234 = smul.u32 2, %s19
      %v236 = vld [vmem:[%s213] sm:$0xff]
      %v237 = vld [vmem:[%s213 + $0x8] sm:$0xff]
      %v238 = vld [vmem:[%s213 + $0x10] sm:$0xff]
      %v239 = vld [vmem:[%s213 + $0x18] sm:$0xff]
      %v240 = vld [vmem:[%s213 + $0x20] sm:$0xf]
      %v241 = vld [vmem:[%s213 + $0x24] sm:$0xff]
      %v242 = vld [vmem:[%s213 + $0x2c] sm:$0xff]
      %v243 = vld [vmem:[%s213 + $0x34] sm:$0xff]
      %v244 = vld [vmem:[%s213 + $0x3c] sm:$0xff]
      %v245 = vld [vmem:[%s213 + $0x44] sm:$0xf]
      %v246 = vld [vmem:[%s218] sm:$0xff]
      %v247 = vld [vmem:[%s218 + $0x8] sm:$0xff]
      %v248 = vld [vmem:[%s218 + $0x10] sm:$0xff]
      %v249 = vld [vmem:[%s218 + $0x18] sm:$0xff]
      %v250 = vld [vmem:[%s218 + $0x20] sm:$0xff]
      %v251 = vld [vmem:[%s218 + $0x28] sm:$0xff]
      %v252 = vld [vmem:[%s218 + $0x30] sm:$0xff]
      %v253 = vld [vmem:[%s218 + $0x38] sm:$0xff]
      %v254 = vld [vmem:[%s218 + $0x40] sm:$0xff]
      %v255 = vld [vmem:[%s218 + $0x48] sm:$0xff]
      %v256 = vld [vmem:[%s218 + $0x50] sm:$0xff]
      %v257 = vld [vmem:[%s218 + $0x58] sm:$0xff]
      %v258 = vld [vmem:[%s218 + $0x60] sm:$0xff]
      %v259 = vld [vmem:[%s218 + $0x68] sm:$0xff]
      %v260 = vld [vmem:[%s218 + $0x70] sm:$0xff]
      %v261 = vld [vmem:[%s218 + $0x78] sm:$0xff]
      %v262 = vld [vmem:[%s218 + $0x80] sm:$0xff]
      %v263 = vld [vmem:[%s218 + $0x88] sm:$0xff]
      %v264 = vld [vmem:[%s218 + $0x90] sm:$0xff]
      %v265 = vld [vmem:[%s218 + $0x98] sm:$0xff]
      %v266 = vld [vmem:[%s218 + $0xa0] sm:$0xff]
      %v267 = vld [vmem:[%s218 + $0xa8] sm:$0xff]
      %v268 = vld [vmem:[%s218 + $0xb0] sm:$0xff]
      %v269 = vld [vmem:[%s218 + $0xb8] sm:$0xff]
      %v270 = vld [vmem:[%s218 + $0xc0] sm:$0xff]
      %v271 = vld [vmem:[%s218 + $0xc8] sm:$0xff]
      %v272 = vld [vmem:[%s218 + $0xd0] sm:$0xff]
      %v273 = vld [vmem:[%s218 + $0xd8] sm:$0xff]
      %v274 = vld [vmem:[%s218 + $0xe0] sm:$0xff]
      %v275 = vld [vmem:[%s218 + $0xe8] sm:$0xff]
      %v276 = vld [vmem:[%s218 + $0xf0] sm:$0xff]
      %v277 = vld [vmem:[%s218 + $0xf8] sm:$0xff]
      %v278 = vld [vmem:[%s218 + $0x100] sm:$0xff]
      %v279 = vld [vmem:[%s218 + $0x108] sm:$0xff]
      %v280 = vld [vmem:[%s218 + $0x110] sm:$0xff]
      %v281 = vld [vmem:[%s218 + $0x118] sm:$0xff]
      %v282 = vld [vmem:[%s218 + $0x120] sm:$0xff]
      %v283 = vld [vmem:[%s218 + $0x128] sm:$0xff]
      %v284 = vld [vmem:[%s218 + $0x130] sm:$0xff]
      %v285 = vld [vmem:[%s218 + $0x138] sm:$0xff]
      %v286 = vld [vmem:[%s218 + $0x140] sm:$0xff]
      %v287 = vld [vmem:[%s218 + $0x148] sm:$0xff]
      %v288 = vld [vmem:[%s218 + $0x150] sm:$0xff]
      %v289 = vld [vmem:[%s218 + $0x158] sm:$0xff]
      %v290 = vld [vmem:[%s218 + $0x160] sm:$0xff]
      %v291 = vld [vmem:[%s218 + $0x168] sm:$0xff]
      %v292 = vld [vmem:[%s218 + $0x170] sm:$0xff]
      %v293 = vld [vmem:[%s218 + $0x178] sm:$0xff]
      %v294 = vld [vmem:[%s218 + $0x180] sm:$0xff]
      %v295 = vld [vmem:[%s218 + $0x188] sm:$0xff]
      %v296 = vld [vmem:[%s218 + $0x190] sm:$0xff]
      %v297 = vld [vmem:[%s218 + $0x198] sm:$0xff]
      %v298 = vld [vmem:[%s218 + $0x1a0] sm:$0xff]
      %v299 = vld [vmem:[%s218 + $0x1a8] sm:$0xff]
      %v300 = vld [vmem:[%s218 + $0x1b0] sm:$0xff]
      %v301 = vld [vmem:[%s218 + $0x1b8] sm:$0xff]
      %v302 = vld [vmem:[%s218 + $0x1c0] sm:$0xff]
      %v303 = vld [vmem:[%s218 + $0x1c8] sm:$0xff]
      %v304 = vld [vmem:[%s218 + $0x1d0] sm:$0xff]
      %v305 = vld [vmem:[%s218 + $0x1d8] sm:$0xff]
      %v306 = vld [vmem:[%s218 + $0x1e0] sm:$0xff]
      %v307 = vld [vmem:[%s218 + $0x1e8] sm:$0xff]
      %v308 = vld [vmem:[%s218 + $0x1f0] sm:$0xff]
      %v309 = vld [vmem:[%s218 + $0x1f8] sm:$0xff]
      %v310 = vld [vmem:[%s218 + $0x200] sm:$0xff]
      %v311 = vld [vmem:[%s218 + $0x208] sm:$0xff]
      %v312 = vld [vmem:[%s218 + $0x210] sm:$0xff]
      %v313 = vld [vmem:[%s218 + $0x218] sm:$0xff]
      %v314 = vld [vmem:[%s218 + $0x220] sm:$0xff]
      %v315 = vld [vmem:[%s218 + $0x228] sm:$0xff]
      %v316 = vld [vmem:[%s218 + $0x230] sm:$0xff]
      %v317 = vld [vmem:[%s218 + $0x238] sm:$0xff]
      %v318 = vld [vmem:[%s218 + $0x240] sm:$0xff]
      %v319 = vld [vmem:[%s218 + $0x248] sm:$0xff]
      %v320 = vld [vmem:[%s218 + $0x250] sm:$0xff]
      %v321 = vld [vmem:[%s218 + $0x258] sm:$0xff]
      %v322 = vld [vmem:[%s218 + $0x260] sm:$0xff]
      %v323 = vld [vmem:[%s218 + $0x268] sm:$0xff]
      %v324 = vld [vmem:[%s218 + $0x270] sm:$0xff]
      %v325 = vld [vmem:[%s218 + $0x278] sm:$0xff]
      %v326 = vld [vmem:[%s218 + $0x280] sm:$0xff]
      %v327 = vld [vmem:[%s218 + $0x288] sm:$0xff]
      %v328 = vld [vmem:[%s218 + $0x290] sm:$0xff]
      %v329 = vld [vmem:[%s218 + $0x298] sm:$0xff]
      %v330 = vld [vmem:[%s218 + $0x2a0] sm:$0xff]
      %v331 = vld [vmem:[%s218 + $0x2a8] sm:$0xff]
      %v332 = vld [vmem:[%s218 + $0x2b0] sm:$0xff]
      %v333 = vld [vmem:[%s218 + $0x2b8] sm:$0xff]
      %v334 = vld [vmem:[%s218 + $0x2c0] sm:$0xff]
      %v335 = vld [vmem:[%s218 + $0x2c8] sm:$0xff]
      %v336 = vld [vmem:[%s218 + $0x2d0] sm:$0xff]
      %v337 = vld [vmem:[%s218 + $0x2d8] sm:$0xff]
      %v338 = vld [vmem:[%s218 + $0x2e0] sm:$0xff]
      %v339 = vld [vmem:[%s218 + $0x2e8] sm:$0xff]
      %v340 = vld [vmem:[%s218 + $0x2f0] sm:$0xff]
      %v341 = vld [vmem:[%s218 + $0x2f8] sm:$0xff]
      %v342 = vld [vmem:[%s218 + $0x300] sm:$0xff]
      %v343 = vld [vmem:[%s218 + $0x308] sm:$0xff]
      %v344 = vld [vmem:[%s218 + $0x310] sm:$0xff]
      %v345 = vld [vmem:[%s218 + $0x318] sm:$0xff]
      %v346 = vld [vmem:[%s218 + $0x320] sm:$0xff]
      %v347 = vld [vmem:[%s218 + $0x328] sm:$0xff]
      %v348 = vld [vmem:[%s218 + $0x330] sm:$0xff]
      %v349 = vld [vmem:[%s218 + $0x338] sm:$0xff]
      %v350 = vld [vmem:[%s218 + $0x340] sm:$0xff]
      %v351 = vld [vmem:[%s218 + $0x348] sm:$0xff]
      %v352 = vld [vmem:[%s218 + $0x350] sm:$0xff]
      %v353 = vld [vmem:[%s218 + $0x358] sm:$0xff]
      %v354 = vld [vmem:[%s218 + $0x360] sm:$0xff]
      %v355 = vld [vmem:[%s218 + $0x368] sm:$0xff]
      %v356 = vld [vmem:[%s218 + $0x370] sm:$0xff]
      %v357 = vld [vmem:[%s218 + $0x378] sm:$0xff]
      %v358 = vld [vmem:[%s218 + $0x380] sm:$0xff]
      %v359 = vld [vmem:[%s218 + $0x388] sm:$0xff]
      %v360 = vld [vmem:[%s218 + $0x390] sm:$0xff]
      %v361 = vld [vmem:[%s218 + $0x398] sm:$0xff]
      %v362 = vld [vmem:[%s218 + $0x3a0] sm:$0xff]
      %v363 = vld [vmem:[%s218 + $0x3a8] sm:$0xff]
      %v364 = vld [vmem:[%s218 + $0x3b0] sm:$0xff]
      %v365 = vld [vmem:[%s218 + $0x3b8] sm:$0xff]
      %v366 = vld [vmem:[%s218 + $0x3c0] sm:$0xff]
      %v367 = vld [vmem:[%s218 + $0x3c8] sm:$0xff]
      %v368 = vld [vmem:[%s218 + $0x3d0] sm:$0xff]
      %v369 = vld [vmem:[%s218 + $0x3d8] sm:$0xff]
      %v370 = vld [vmem:[%s218 + $0x3e0] sm:$0xff]
      %v371 = vld [vmem:[%s218 + $0x3e8] sm:$0xff]
      %v372 = vld [vmem:[%s218 + $0x3f0] sm:$0xff]
      %v373 = vld [vmem:[%s218 + $0x3f8] sm:$0xff]
      %v374 = vld [vmem:[%s218 + $0x400] sm:$0xff]
      %v375 = vld [vmem:[%s218 + $0x408] sm:$0xff]
      %v376 = vld [vmem:[%s218 + $0x410] sm:$0xff]
      %v377 = vld [vmem:[%s218 + $0x418] sm:$0xff]
      %v378 = vld [vmem:[%s218 + $0x420] sm:$0xff]
      %v379 = vld [vmem:[%s218 + $0x428] sm:$0xff]
      %v380 = vld [vmem:[%s218 + $0x430] sm:$0xff]
      %v381 = vld [vmem:[%s218 + $0x438] sm:$0xff]
      %v382 = vld [vmem:[%s218 + $0x440] sm:$0xff]
      %v383 = vld [vmem:[%s218 + $0x448] sm:$0xff]
      %v384 = vld [vmem:[%s218 + $0x450] sm:$0xff]
      %v385 = vld [vmem:[%s218 + $0x458] sm:$0xff]
      %v386 = vld [vmem:[%s218 + $0x460] sm:$0xff]
      %v387 = vld [vmem:[%s218 + $0x468] sm:$0xff]
      %v388 = vld [vmem:[%s218 + $0x470] sm:$0xff]
      %v389 = vld [vmem:[%s218 + $0x478] sm:$0xff]
      %v390 = vld [vmem:[%s223] sm:$0x3]
      %v392 = vlaneseq
      %v393 = vshrl.u32 %v392, 7
      %v394 = vsub.s32 0, %v393
      %v395 = vrot.slane %v390, %v394
      %v396 = vlaneseq
      %v397 = vshrl.u32 %v396, 7
      %v398 = vsub.s32 1, %v397
      %v399 = vrot.slane %v390, %v398
      %v412 = vunpack.c.l.b16 %v236
      %v413 = vunpack.c.h.b16 %v236
      %v414 = vunpack.c.l.b16 %v237
      %v415 = vunpack.c.h.b16 %v237
      %v416 = vunpack.c.l.b16 %v238
      %v417 = vunpack.c.h.b16 %v238
      %v418 = vunpack.c.l.b16 %v239
      %v419 = vunpack.c.h.b16 %v239
      %v420 = vunpack.c.l.b16 %v240
      %v421 = vunpack.c.l.b16 %v241
      %v422 = vunpack.c.h.b16 %v241
      %v423 = vunpack.c.l.b16 %v242
      %v424 = vunpack.c.h.b16 %v242
      %v425 = vunpack.c.l.b16 %v243
      %v426 = vunpack.c.h.b16 %v243
      %v427 = vunpack.c.l.b16 %v244
      %v428 = vunpack.c.h.b16 %v244
      %v429 = vunpack.c.l.b16 %v245
      %v430 = vpack.c.b16 %v421, %v412
      %v431 = vpack.c.b16 %v422, %v413
      %v432 = vpack.c.b16 %v423, %v414
      %v433 = vpack.c.b16 %v424, %v415
      %v434 = vpack.c.b16 %v425, %v416
      %v435 = vpack.c.b16 %v426, %v417
      %v436 = vpack.c.b16 %v427, %v418
      %v437 = vpack.c.b16 %v428, %v419
      %v438 = vpack.c.b16 %v429, %v420
      %v592 = vunpack.c.l.b16 %v246
      %v593 = vunpack.c.h.b16 %v246
      %v594 = vunpack.c.l.b16 %v247
      %v595 = vunpack.c.h.b16 %v247
      %v596 = vunpack.c.l.b16 %v248
      %v597 = vunpack.c.h.b16 %v248
      %v598 = vunpack.c.l.b16 %v249
      %v599 = vunpack.c.h.b16 %v249
      %v600 = vunpack.c.l.b16 %v250
      %v601 = vunpack.c.h.b16 %v250
      %v602 = vunpack.c.l.b16 %v251
      %v603 = vunpack.c.h.b16 %v251
      %v604 = vunpack.c.l.b16 %v252
      %v605 = vunpack.c.h.b16 %v252
      %v606 = vunpack.c.l.b16 %v253
      %v607 = vunpack.c.h.b16 %v253
      %v608 = vunpack.c.l.b16 %v254
      %v609 = vunpack.c.h.b16 %v254
      %v610 = vunpack.c.l.b16 %v255
      %v611 = vunpack.c.h.b16 %v255
      %v612 = vunpack.c.l.b16 %v256
      %v613 = vunpack.c.h.b16 %v256
      %v614 = vunpack.c.l.b16 %v257
      %v615 = vunpack.c.h.b16 %v257
      %v616 = vunpack.c.l.b16 %v258
      %v617 = vunpack.c.h.b16 %v258
      %v618 = vunpack.c.l.b16 %v259
      %v619 = vunpack.c.h.b16 %v259
      %v620 = vunpack.c.l.b16 %v260
      %v621 = vunpack.c.h.b16 %v260
      %v622 = vunpack.c.l.b16 %v261
      %v623 = vunpack.c.h.b16 %v261
      %v624 = vunpack.c.l.b16 %v262
      %v625 = vunpack.c.h.b16 %v262
      %v626 = vunpack.c.l.b16 %v263
      %v627 = vunpack.c.h.b16 %v263
      %v628 = vunpack.c.l.b16 %v264
      %v629 = vunpack.c.h.b16 %v264
      %v630 = vunpack.c.l.b16 %v265
      %v631 = vunpack.c.h.b16 %v265
      %v632 = vunpack.c.l.b16 %v266
      %v633 = vunpack.c.h.b16 %v266
      %v634 = vunpack.c.l.b16 %v267
      %v635 = vunpack.c.h.b16 %v267
      %v636 = vunpack.c.l.b16 %v268
      %v637 = vunpack.c.h.b16 %v268
      %v638 = vunpack.c.l.b16 %v269
      %v639 = vunpack.c.h.b16 %v269
      %v640 = vunpack.c.l.b16 %v270
      %v641 = vunpack.c.h.b16 %v270
      %v642 = vunpack.c.l.b16 %v271
      %v643 = vunpack.c.h.b16 %v271
      %v644 = vunpack.c.l.b16 %v272
      %v645 = vunpack.c.h.b16 %v272
      %v646 = vunpack.c.l.b16 %v273
      %v647 = vunpack.c.h.b16 %v273
      %v648 = vunpack.c.l.b16 %v274
      %v649 = vunpack.c.h.b16 %v274
      %v650 = vunpack.c.l.b16 %v275
      %v651 = vunpack.c.h.b16 %v275
      %v652 = vunpack.c.l.b16 %v276
      %v653 = vunpack.c.h.b16 %v276
      %v654 = vunpack.c.l.b16 %v277
      %v655 = vunpack.c.h.b16 %v277
      %v656 = vunpack.c.l.b16 %v278
      %v657 = vunpack.c.h.b16 %v278
      %v658 = vunpack.c.l.b16 %v279
      %v659 = vunpack.c.h.b16 %v279
      %v660 = vunpack.c.l.b16 %v280
      %v661 = vunpack.c.h.b16 %v280
      %v662 = vunpack.c.l.b16 %v281
      %v663 = vunpack.c.h.b16 %v281
      %v664 = vunpack.c.l.b16 %v282
      %v665 = vunpack.c.h.b16 %v282
      %v666 = vunpack.c.l.b16 %v283
      %v667 = vunpack.c.h.b16 %v283
      %v668 = vunpack.c.l.b16 %v284
      %v669 = vunpack.c.h.b16 %v284
      %v670 = vunpack.c.l.b16 %v285
      %v671 = vunpack.c.h.b16 %v285
      %v672 = vunpack.c.l.b16 %v286
      %v673 = vunpack.c.h.b16 %v286
      %v674 = vunpack.c.l.b16 %v287
      %v675 = vunpack.c.h.b16 %v287
      %v676 = vunpack.c.l.b16 %v288
      %v677 = vunpack.c.h.b16 %v288
      %v678 = vunpack.c.l.b16 %v289
      %v679 = vunpack.c.h.b16 %v289
      %v680 = vunpack.c.l.b16 %v290
      %v681 = vunpack.c.h.b16 %v290
      %v682 = vunpack.c.l.b16 %v291
      %v683 = vunpack.c.h.b16 %v291
      %v684 = vunpack.c.l.b16 %v292
      %v685 = vunpack.c.h.b16 %v292
      %v686 = vunpack.c.l.b16 %v293
      %v687 = vunpack.c.h.b16 %v293
      %v688 = vunpack.c.l.b16 %v294
      %v689 = vunpack.c.h.b16 %v294
      %v690 = vunpack.c.l.b16 %v295
      %v691 = vunpack.c.h.b16 %v295
      %v692 = vunpack.c.l.b16 %v296
      %v693 = vunpack.c.h.b16 %v296
      %v694 = vunpack.c.l.b16 %v297
      %v695 = vunpack.c.h.b16 %v297
      %v696 = vunpack.c.l.b16 %v298
      %v697 = vunpack.c.h.b16 %v298
      %v698 = vunpack.c.l.b16 %v299
      %v699 = vunpack.c.h.b16 %v299
      %v700 = vunpack.c.l.b16 %v300
      %v701 = vunpack.c.h.b16 %v300
      %v702 = vunpack.c.l.b16 %v301
      %v703 = vunpack.c.h.b16 %v301
      %v704 = vunpack.c.l.b16 %v302
      %v705 = vunpack.c.h.b16 %v302
      %v706 = vunpack.c.l.b16 %v303
      %v707 = vunpack.c.h.b16 %v303
      %v708 = vunpack.c.l.b16 %v304
      %v709 = vunpack.c.h.b16 %v304
      %v710 = vunpack.c.l.b16 %v305
      %v711 = vunpack.c.h.b16 %v305
      %v712 = vunpack.c.l.b16 %v306
      %v713 = vunpack.c.h.b16 %v306
      %v714 = vunpack.c.l.b16 %v307
      %v715 = vunpack.c.h.b16 %v307
      %v716 = vunpack.c.l.b16 %v308
      %v717 = vunpack.c.h.b16 %v308
      %v718 = vunpack.c.l.b16 %v309
      %v719 = vunpack.c.h.b16 %v309
      %v720 = vunpack.c.l.b16 %v310
      %v721 = vunpack.c.h.b16 %v310
      %v722 = vunpack.c.l.b16 %v311
      %v723 = vunpack.c.h.b16 %v311
      %v724 = vunpack.c.l.b16 %v312
      %v725 = vunpack.c.h.b16 %v312
      %v726 = vunpack.c.l.b16 %v313
      %v727 = vunpack.c.h.b16 %v313
      %v728 = vunpack.c.l.b16 %v314
      %v729 = vunpack.c.h.b16 %v314
      %v730 = vunpack.c.l.b16 %v315
      %v731 = vunpack.c.h.b16 %v315
      %v732 = vunpack.c.l.b16 %v316
      %v733 = vunpack.c.h.b16 %v316
      %v734 = vunpack.c.l.b16 %v317
      %v735 = vunpack.c.h.b16 %v317
      %v736 = vunpack.c.l.b16 %v318
      %v737 = vunpack.c.h.b16 %v318
      %v738 = vunpack.c.l.b16 %v319
      %v739 = vunpack.c.h.b16 %v319
      %v740 = vunpack.c.l.b16 %v320
      %v741 = vunpack.c.h.b16 %v320
      %v742 = vunpack.c.l.b16 %v321
      %v743 = vunpack.c.h.b16 %v321
      %v744 = vunpack.c.l.b16 %v322
      %v745 = vunpack.c.h.b16 %v322
      %v746 = vunpack.c.l.b16 %v323
      %v747 = vunpack.c.h.b16 %v323
      %v748 = vunpack.c.l.b16 %v324
      %v749 = vunpack.c.h.b16 %v324
      %v750 = vunpack.c.l.b16 %v325
      %v751 = vunpack.c.h.b16 %v325
      %v752 = vunpack.c.l.b16 %v326
      %v753 = vunpack.c.h.b16 %v326
      %v754 = vunpack.c.l.b16 %v327
      %v755 = vunpack.c.h.b16 %v327
      %v756 = vunpack.c.l.b16 %v328
      %v757 = vunpack.c.h.b16 %v328
      %v758 = vunpack.c.l.b16 %v329
      %v759 = vunpack.c.h.b16 %v329
      %v760 = vunpack.c.l.b16 %v330
      %v761 = vunpack.c.h.b16 %v330
      %v762 = vunpack.c.l.b16 %v331
      %v763 = vunpack.c.h.b16 %v331
      %v764 = vunpack.c.l.b16 %v332
      %v765 = vunpack.c.h.b16 %v332
      %v766 = vunpack.c.l.b16 %v333
      %v767 = vunpack.c.h.b16 %v333
      %v768 = vunpack.c.l.b16 %v334
      %v769 = vunpack.c.h.b16 %v334
      %v770 = vunpack.c.l.b16 %v335
      %v771 = vunpack.c.h.b16 %v335
      %v772 = vunpack.c.l.b16 %v336
      %v773 = vunpack.c.h.b16 %v336
      %v774 = vunpack.c.l.b16 %v337
      %v775 = vunpack.c.h.b16 %v337
      %v776 = vunpack.c.l.b16 %v338
      %v777 = vunpack.c.h.b16 %v338
      %v778 = vunpack.c.l.b16 %v339
      %v779 = vunpack.c.h.b16 %v339
      %v780 = vunpack.c.l.b16 %v340
      %v781 = vunpack.c.h.b16 %v340
      %v782 = vunpack.c.l.b16 %v341
      %v783 = vunpack.c.h.b16 %v341
      %v784 = vunpack.c.l.b16 %v342
      %v785 = vunpack.c.h.b16 %v342
      %v786 = vunpack.c.l.b16 %v343
      %v787 = vunpack.c.h.b16 %v343
      %v788 = vunpack.c.l.b16 %v344
      %v789 = vunpack.c.h.b16 %v344
      %v790 = vunpack.c.l.b16 %v345
      %v791 = vunpack.c.h.b16 %v345
      %v792 = vunpack.c.l.b16 %v346
      %v793 = vunpack.c.h.b16 %v346
      %v794 = vunpack.c.l.b16 %v347
      %v795 = vunpack.c.h.b16 %v347
      %v796 = vunpack.c.l.b16 %v348
      %v797 = vunpack.c.h.b16 %v348
      %v798 = vunpack.c.l.b16 %v349
      %v799 = vunpack.c.h.b16 %v349
      %v800 = vunpack.c.l.b16 %v350
      %v801 = vunpack.c.h.b16 %v350
      %v802 = vunpack.c.l.b16 %v351
      %v803 = vunpack.c.h.b16 %v351
      %v804 = vunpack.c.l.b16 %v352
      %v805 = vunpack.c.h.b16 %v352
      %v806 = vunpack.c.l.b16 %v353
      %v807 = vunpack.c.h.b16 %v353
      %v808 = vunpack.c.l.b16 %v354
      %v809 = vunpack.c.h.b16 %v354
      %v810 = vunpack.c.l.b16 %v355
      %v811 = vunpack.c.h.b16 %v355
      %v812 = vunpack.c.l.b16 %v356
      %v813 = vunpack.c.h.b16 %v356
      %v814 = vunpack.c.l.b16 %v357
      %v815 = vunpack.c.h.b16 %v357
      %v816 = vunpack.c.l.b16 %v358
      %v817 = vunpack.c.h.b16 %v358
      %v818 = vunpack.c.l.b16 %v359
      %v819 = vunpack.c.h.b16 %v359
      %v820 = vunpack.c.l.b16 %v360
      %v821 = vunpack.c.h.b16 %v360
      %v822 = vunpack.c.l.b16 %v361
      %v823 = vunpack.c.h.b16 %v361
      %v824 = vunpack.c.l.b16 %v362
      %v825 = vunpack.c.h.b16 %v362
      %v826 = vunpack.c.l.b16 %v363
      %v827 = vunpack.c.h.b16 %v363
      %v828 = vunpack.c.l.b16 %v364
      %v829 = vunpack.c.h.b16 %v364
      %v830 = vunpack.c.l.b16 %v365
      %v831 = vunpack.c.h.b16 %v365
      %v832 = vunpack.c.l.b16 %v366
      %v833 = vunpack.c.h.b16 %v366
      %v834 = vunpack.c.l.b16 %v367
      %v835 = vunpack.c.h.b16 %v367
      %v836 = vunpack.c.l.b16 %v368
      %v837 = vunpack.c.h.b16 %v368
      %v838 = vunpack.c.l.b16 %v369
      %v839 = vunpack.c.h.b16 %v369
      %v840 = vunpack.c.l.b16 %v370
      %v841 = vunpack.c.h.b16 %v370
      %v842 = vunpack.c.l.b16 %v371
      %v843 = vunpack.c.h.b16 %v371
      %v844 = vunpack.c.l.b16 %v372
      %v845 = vunpack.c.h.b16 %v372
      %v846 = vunpack.c.l.b16 %v373
      %v847 = vunpack.c.h.b16 %v373
      %v848 = vunpack.c.l.b16 %v374
      %v849 = vunpack.c.h.b16 %v374
      %v850 = vunpack.c.l.b16 %v375
      %v851 = vunpack.c.h.b16 %v375
      %v852 = vunpack.c.l.b16 %v376
      %v853 = vunpack.c.h.b16 %v376
      %v854 = vunpack.c.l.b16 %v377
      %v855 = vunpack.c.h.b16 %v377
      %v856 = vunpack.c.l.b16 %v378
      %v857 = vunpack.c.h.b16 %v378
      %v858 = vunpack.c.l.b16 %v379
      %v859 = vunpack.c.h.b16 %v379
      %v860 = vunpack.c.l.b16 %v380
      %v861 = vunpack.c.h.b16 %v380
      %v862 = vunpack.c.l.b16 %v381
      %v863 = vunpack.c.h.b16 %v381
      %v864 = vunpack.c.l.b16 %v382
      %v865 = vunpack.c.h.b16 %v382
      %v866 = vunpack.c.l.b16 %v383
      %v867 = vunpack.c.h.b16 %v383
      %v868 = vunpack.c.l.b16 %v384
      %v869 = vunpack.c.h.b16 %v384
      %v870 = vunpack.c.l.b16 %v385
      %v871 = vunpack.c.h.b16 %v385
      %v872 = vunpack.c.l.b16 %v386
      %v873 = vunpack.c.h.b16 %v386
      %v874 = vunpack.c.l.b16 %v387
      %v875 = vunpack.c.h.b16 %v387
      %v876 = vunpack.c.l.b16 %v388
      %v877 = vunpack.c.h.b16 %v388
      %v878 = vunpack.c.l.b16 %v389
      %v879 = vunpack.c.h.b16 %v389
      %v880 = vpack.c.b16 %v594, %v592
      %v881 = vpack.c.b16 %v595, %v593
      %v882 = vpack.c.b16 %v598, %v596
      %v883 = vpack.c.b16 %v599, %v597
      %v884 = vpack.c.b16 %v602, %v600
      %v885 = vpack.c.b16 %v603, %v601
      %v886 = vpack.c.b16 %v606, %v604
      %v887 = vpack.c.b16 %v607, %v605
      %v888 = vpack.c.b16 %v610, %v608
      %v889 = vpack.c.b16 %v611, %v609
      %v890 = vpack.c.b16 %v614, %v612
      %v891 = vpack.c.b16 %v615, %v613
      %v892 = vpack.c.b16 %v618, %v616
      %v893 = vpack.c.b16 %v619, %v617
      %v894 = vpack.c.b16 %v622, %v620
      %v895 = vpack.c.b16 %v623, %v621
      %v896 = vpack.c.b16 %v626, %v624
      %v897 = vpack.c.b16 %v627, %v625
      %v898 = vpack.c.b16 %v630, %v628
      %v899 = vpack.c.b16 %v631, %v629
      %v900 = vpack.c.b16 %v634, %v632
      %v901 = vpack.c.b16 %v635, %v633
      %v902 = vpack.c.b16 %v638, %v636
      %v903 = vpack.c.b16 %v639, %v637
      %v904 = vpack.c.b16 %v642, %v640
      %v905 = vpack.c.b16 %v643, %v641
      %v906 = vpack.c.b16 %v646, %v644
      %v907 = vpack.c.b16 %v647, %v645
      %v908 = vpack.c.b16 %v650, %v648
      %v909 = vpack.c.b16 %v651, %v649
      %v910 = vpack.c.b16 %v654, %v652
      %v911 = vpack.c.b16 %v655, %v653
      %v912 = vpack.c.b16 %v658, %v656
      %v913 = vpack.c.b16 %v659, %v657
      %v914 = vpack.c.b16 %v662, %v660
      %v915 = vpack.c.b16 %v663, %v661
      %v916 = vpack.c.b16 %v666, %v664
      %v917 = vpack.c.b16 %v667, %v665
      %v918 = vpack.c.b16 %v670, %v668
      %v919 = vpack.c.b16 %v671, %v669
      %v920 = vpack.c.b16 %v674, %v672
      %v921 = vpack.c.b16 %v675, %v673
      %v922 = vpack.c.b16 %v678, %v676
      %v923 = vpack.c.b16 %v679, %v677
      %v924 = vpack.c.b16 %v682, %v680
      %v925 = vpack.c.b16 %v683, %v681
      %v926 = vpack.c.b16 %v686, %v684
      %v927 = vpack.c.b16 %v687, %v685
      %v928 = vpack.c.b16 %v690, %v688
      %v929 = vpack.c.b16 %v691, %v689
      %v930 = vpack.c.b16 %v694, %v692
      %v931 = vpack.c.b16 %v695, %v693
      %v932 = vpack.c.b16 %v698, %v696
      %v933 = vpack.c.b16 %v699, %v697
      %v934 = vpack.c.b16 %v702, %v700
      %v935 = vpack.c.b16 %v703, %v701
      %v936 = vpack.c.b16 %v706, %v704
      %v937 = vpack.c.b16 %v707, %v705
      %v938 = vpack.c.b16 %v710, %v708
      %v939 = vpack.c.b16 %v711, %v709
      %v940 = vpack.c.b16 %v714, %v712
      %v941 = vpack.c.b16 %v715, %v713
      %v942 = vpack.c.b16 %v718, %v716
      %v943 = vpack.c.b16 %v719, %v717
      %v944 = vpack.c.b16 %v722, %v720
      %v945 = vpack.c.b16 %v723, %v721
      %v946 = vpack.c.b16 %v726, %v724
      %v947 = vpack.c.b16 %v727, %v725
      %v948 = vpack.c.b16 %v730, %v728
      %v949 = vpack.c.b16 %v731, %v729
      %v950 = vpack.c.b16 %v734, %v732
      %v951 = vpack.c.b16 %v735, %v733
      %v952 = vpack.c.b16 %v738, %v736
      %v953 = vpack.c.b16 %v739, %v737
      %v954 = vpack.c.b16 %v742, %v740
      %v955 = vpack.c.b16 %v743, %v741
      %v956 = vpack.c.b16 %v746, %v744
      %v957 = vpack.c.b16 %v747, %v745
      %v958 = vpack.c.b16 %v750, %v748
      %v959 = vpack.c.b16 %v751, %v749
      %v960 = vpack.c.b16 %v754, %v752
      %v961 = vpack.c.b16 %v755, %v753
      %v962 = vpack.c.b16 %v758, %v756
      %v963 = vpack.c.b16 %v759, %v757
      %v964 = vpack.c.b16 %v762, %v760
      %v965 = vpack.c.b16 %v763, %v761
      %v966 = vpack.c.b16 %v766, %v764
      %v967 = vpack.c.b16 %v767, %v765
      %v968 = vpack.c.b16 %v770, %v768
      %v969 = vpack.c.b16 %v771, %v769
      %v970 = vpack.c.b16 %v774, %v772
      %v971 = vpack.c.b16 %v775, %v773
      %v972 = vpack.c.b16 %v778, %v776
      %v973 = vpack.c.b16 %v779, %v777
      %v974 = vpack.c.b16 %v782, %v780
      %v975 = vpack.c.b16 %v783, %v781
      %v976 = vpack.c.b16 %v786, %v784
      %v977 = vpack.c.b16 %v787, %v785
      %v978 = vpack.c.b16 %v790, %v788
      %v979 = vpack.c.b16 %v791, %v789
      %v980 = vpack.c.b16 %v794, %v792
      %v981 = vpack.c.b16 %v795, %v793
      %v982 = vpack.c.b16 %v798, %v796
      %v983 = vpack.c.b16 %v799, %v797
      %v984 = vpack.c.b16 %v802, %v800
      %v985 = vpack.c.b16 %v803, %v801
      %v986 = vpack.c.b16 %v806, %v804
      %v987 = vpack.c.b16 %v807, %v805
      %v988 = vpack.c.b16 %v810, %v808
      %v989 = vpack.c.b16 %v811, %v809
      %v990 = vpack.c.b16 %v814, %v812
      %v991 = vpack.c.b16 %v815, %v813
      %v992 = vpack.c.b16 %v818, %v816
      %v993 = vpack.c.b16 %v819, %v817
      %v994 = vpack.c.b16 %v822, %v820
      %v995 = vpack.c.b16 %v823, %v821
      %v996 = vpack.c.b16 %v826, %v824
      %v997 = vpack.c.b16 %v827, %v825
      %v998 = vpack.c.b16 %v830, %v828
      %v999 = vpack.c.b16 %v831, %v829
      %v1000 = vpack.c.b16 %v834, %v832
      %v1001 = vpack.c.b16 %v835, %v833
      %v1002 = vpack.c.b16 %v838, %v836
      %v1003 = vpack.c.b16 %v839, %v837
      %v1004 = vpack.c.b16 %v842, %v840
      %v1005 = vpack.c.b16 %v843, %v841
      %v1006 = vpack.c.b16 %v846, %v844
      %v1007 = vpack.c.b16 %v847, %v845
      %v1008 = vpack.c.b16 %v850, %v848
      %v1009 = vpack.c.b16 %v851, %v849
      %v1010 = vpack.c.b16 %v854, %v852
      %v1011 = vpack.c.b16 %v855, %v853
      %v1012 = vpack.c.b16 %v858, %v856
      %v1013 = vpack.c.b16 %v859, %v857
      %v1014 = vpack.c.b16 %v862, %v860
      %v1015 = vpack.c.b16 %v863, %v861
      %v1016 = vpack.c.b16 %v866, %v864
      %v1017 = vpack.c.b16 %v867, %v865
      %v1018 = vpack.c.b16 %v870, %v868
      %v1019 = vpack.c.b16 %v871, %v869
      %v1020 = vpack.c.b16 %v874, %v872
      %v1021 = vpack.c.b16 %v875, %v873
      %v1022 = vpack.c.b16 %v878, %v876
      %v1023 = vpack.c.b16 %v879, %v877
      %1168 = vmatprep.subr.bf16.mxu0 %v895
      %1169 = vmatpush1.bf16.msra.mxu0 %v894
      %1170 = vmatprep.subr.bf16.mxu0 %v893
      %1171 = vmatpush1.bf16.msra.mxu0 %v892
      %1172 = vmatprep.subr.bf16.mxu0 %v891
      %1173 = vmatpush1.bf16.msra.mxu0 %v890
      %1174 = vmatprep.subr.bf16.mxu0 %v889
      %1175 = vmatpush1.bf16.msra.mxu0 %v888
      %1176 = vmatprep.subr.bf16.mxu0 %v887
      %1177 = vmatpush1.bf16.msra.mxu0 %v886
      %1178 = vmatprep.subr.bf16.mxu0 %v885
      %1179 = vmatpush1.bf16.msra.mxu0 %v884
      %1180 = vmatprep.subr.bf16.mxu0 %v883
      %1181 = vmatpush1.bf16.msra.mxu0 %v882
      %1182 = vmatprep.subr.bf16.mxu0 %v881
      %1183 = vmatpush1.bf16.msra.mxu0 %v880
      %1184 = vmatprep.subr.bf16.mxu0 %v911
      %1185 = vmatpush2.bf16.msra.mxu0 %v910
      %1186 = vmatprep.subr.bf16.mxu0 %v909
      %1187 = vmatpush2.bf16.msra.mxu0 %v908
      %1188 = vmatprep.subr.bf16.mxu0 %v907
      %1189 = vmatpush2.bf16.msra.mxu0 %v906
      %1190 = vmatprep.subr.bf16.mxu0 %v905
      %1191 = vmatpush2.bf16.msra.mxu0 %v904
      %1192 = vmatprep.subr.bf16.mxu0 %v903
      %1193 = vmatpush2.bf16.msra.mxu0 %v902
      %1194 = vmatprep.subr.bf16.mxu0 %v901
      %1195 = vmatpush2.bf16.msra.mxu0 %v900
      %1196 = vmatprep.subr.bf16.mxu0 %v899
      %1197 = vmatpush2.bf16.msra.mxu0 %v898
      %1198 = vmatprep.subr.bf16.mxu0 %v897
      %1199 = vmatpush2.bf16.msra.mxu0 %v896
      %1200 = vmatprep.mubr.bf16.mxu0 %v431
      %1201 = vmatmul.mubr.bf16.gmra.mxu0 %v430
      %v1202 = vpop.f32.mrf.mxu0
      %v1203 = vadd.f32 %v395, %v1202
      %v1204 = vpop.f32.mrf.mxu0
      %v1205 = vadd.f32 %v399, %v1204
      %v1206 = vpop.f32.mrf.mxu0
      %v1207 = vadd.f32 %v395, %v1206
      %v1208 = vpop.f32.mrf.mxu0
      %v1209 = vadd.f32 %v399, %v1208
      %1210 = vdwg.mxu0
      %1211 = vmatprep.subr.bf16.mxu0 %v927
      %1212 = vmatpush1.bf16.msra.mxu0 %v926
      %1213 = vmatprep.subr.bf16.mxu0 %v925
      %1214 = vmatpush1.bf16.msra.mxu0 %v924
      %1215 = vmatprep.subr.bf16.mxu0 %v923
      %1216 = vmatpush1.bf16.msra.mxu0 %v922
      %1217 = vmatprep.subr.bf16.mxu0 %v921
      %1218 = vmatpush1.bf16.msra.mxu0 %v920
      %1219 = vmatprep.subr.bf16.mxu0 %v919
      %1220 = vmatpush1.bf16.msra.mxu0 %v918
      %1221 = vmatprep.subr.bf16.mxu0 %v917
      %1222 = vmatpush1.bf16.msra.mxu0 %v916
      %1223 = vmatprep.subr.bf16.mxu0 %v915
      %1224 = vmatpush1.bf16.msra.mxu0 %v914
      %1225 = vmatprep.subr.bf16.mxu0 %v913
      %1226 = vmatpush1.bf16.msra.mxu0 %v912
      %1227 = vmatprep.subr.bf16.mxu0 %v943
      %1228 = vmatpush2.bf16.msra.mxu0 %v942
      %1229 = vmatprep.subr.bf16.mxu0 %v941
      %1230 = vmatpush2.bf16.msra.mxu0 %v940
      %1231 = vmatprep.subr.bf16.mxu0 %v939
      %1232 = vmatpush2.bf16.msra.mxu0 %v938
      %1233 = vmatprep.subr.bf16.mxu0 %v937
      %1234 = vmatpush2.bf16.msra.mxu0 %v936
      %1235 = vmatprep.subr.bf16.mxu0 %v935
      %1236 = vmatpush2.bf16.msra.mxu0 %v934
      %1237 = vmatprep.subr.bf16.mxu0 %v933
      %1238 = vmatpush2.bf16.msra.mxu0 %v932
      %1239 = vmatprep.subr.bf16.mxu0 %v931
      %1240 = vmatpush2.bf16.msra.mxu0 %v930
      %1241 = vmatprep.subr.bf16.mxu0 %v929
      %1242 = vmatpush2.bf16.msra.mxu0 %v928
      %1243 = vmatprep.mubr.bf16.mxu0 %v433
      %1244 = vmatmul.mubr.bf16.gmra.mxu0 %v432
      %v1245 = vpop.f32.mrf.mxu0
      %v1246 = vadd.f32 %v1203, %v1245
      %v1247 = vpop.f32.mrf.mxu0
      %v1248 = vadd.f32 %v1205, %v1247
      %v1249 = vpop.f32.mrf.mxu0
      %v1250 = vadd.f32 %v1207, %v1249
      %v1251 = vpop.f32.mrf.mxu0
      %v1252 = vadd.f32 %v1209, %v1251
      %1253 = vdwg.mxu0
      %1254 = vmatprep.subr.bf16.mxu0 %v959
      %1255 = vmatpush1.bf16.msra.mxu0 %v958
      %1256 = vmatprep.subr.bf16.mxu0 %v957
      %1257 = vmatpush1.bf16.msra.mxu0 %v956
      %1258 = vmatprep.subr.bf16.mxu0 %v955
      %1259 = vmatpush1.bf16.msra.mxu0 %v954
      %1260 = vmatprep.subr.bf16.mxu0 %v953
      %1261 = vmatpush1.bf16.msra.mxu0 %v952
      %1262 = vmatprep.subr.bf16.mxu0 %v951
      %1263 = vmatpush1.bf16.msra.mxu0 %v950
      %1264 = vmatprep.subr.bf16.mxu0 %v949
      %1265 = vmatpush1.bf16.msra.mxu0 %v948
      %1266 = vmatprep.subr.bf16.mxu0 %v947
      %1267 = vmatpush1.bf16.msra.mxu0 %v946
      %1268 = vmatprep.subr.bf16.mxu0 %v945
      %1269 = vmatpush1.bf16.msra.mxu0 %v944
      %1270 = vmatprep.subr.bf16.mxu0 %v975
      %1271 = vmatpush2.bf16.msra.mxu0 %v974
      %1272 = vmatprep.subr.bf16.mxu0 %v973
      %1273 = vmatpush2.bf16.msra.mxu0 %v972
      %1274 = vmatprep.subr.bf16.mxu0 %v971
      %1275 = vmatpush2.bf16.msra.mxu0 %v970
      %1276 = vmatprep.subr.bf16.mxu0 %v969
      %1277 = vmatpush2.bf16.msra.mxu0 %v968
      %1278 = vmatprep.subr.bf16.mxu0 %v967
      %1279 = vmatpush2.bf16.msra.mxu0 %v966
      %1280 = vmatprep.subr.bf16.mxu0 %v965
      %1281 = vmatpush2.bf16.msra.mxu0 %v964
      %1282 = vmatprep.subr.bf16.mxu0 %v963
      %1283 = vmatpush2.bf16.msra.mxu0 %v962
      %1284 = vmatprep.subr.bf16.mxu0 %v961
      %1285 = vmatpush2.bf16.msra.mxu0 %v960
      %1286 = vmatprep.mubr.bf16.mxu0 %v435
      %1287 = vmatmul.mubr.bf16.gmra.mxu0 %v434
      %v1288 = vpop.f32.mrf.mxu0
      %v1289 = vadd.f32 %v1246, %v1288
      %v1290 = vpop.f32.mrf.mxu0
      %v1291 = vadd.f32 %v1248, %v1290
      %v1292 = vpop.f32.mrf.mxu0
      %v1293 = vadd.f32 %v1250, %v1292
      %v1294 = vpop.f32.mrf.mxu0
      %v1295 = vadd.f32 %v1252, %v1294
      %1296 = vdwg.mxu0
      %1297 = vmatprep.subr.bf16.mxu0 %v991
      %1298 = vmatpush1.bf16.msra.mxu0 %v990
      %1299 = vmatprep.subr.bf16.mxu0 %v989
      %1300 = vmatpush1.bf16.msra.mxu0 %v988
      %1301 = vmatprep.subr.bf16.mxu0 %v987
      %1302 = vmatpush1.bf16.msra.mxu0 %v986
      %1303 = vmatprep.subr.bf16.mxu0 %v985
      %1304 = vmatpush1.bf16.msra.mxu0 %v984
      %1305 = vmatprep.subr.bf16.mxu0 %v983
      %1306 = vmatpush1.bf16.msra.mxu0 %v982
      %1307 = vmatprep.subr.bf16.mxu0 %v981
      %1308 = vmatpush1.bf16.msra.mxu0 %v980
      %1309 = vmatprep.subr.bf16.mxu0 %v979
      %1310 = vmatpush1.bf16.msra.mxu0 %v978
      %1311 = vmatprep.subr.bf16.mxu0 %v977
      %1312 = vmatpush1.bf16.msra.mxu0 %v976
      %1313 = vmatprep.subr.bf16.mxu0 %v1007
      %1314 = vmatpush2.bf16.msra.mxu0 %v1006
      %1315 = vmatprep.subr.bf16.mxu0 %v1005
      %1316 = vmatpush2.bf16.msra.mxu0 %v1004
      %1317 = vmatprep.subr.bf16.mxu0 %v1003
      %1318 = vmatpush2.bf16.msra.mxu0 %v1002
      %1319 = vmatprep.subr.bf16.mxu0 %v1001
      %1320 = vmatpush2.bf16.msra.mxu0 %v1000
      %1321 = vmatprep.subr.bf16.mxu0 %v999
      %1322 = vmatpush2.bf16.msra.mxu0 %v998
      %1323 = vmatprep.subr.bf16.mxu0 %v997
      %1324 = vmatpush2.bf16.msra.mxu0 %v996
      %1325 = vmatprep.subr.bf16.mxu0 %v995
      %1326 = vmatpush2.bf16.msra.mxu0 %v994
      %1327 = vmatprep.subr.bf16.mxu0 %v993
      %1328 = vmatpush2.bf16.msra.mxu0 %v992
      %1329 = vmatprep.mubr.bf16.mxu0 %v437
      %1330 = vmatmul.mubr.bf16.gmra.mxu0 %v436
      %v1331 = vpop.f32.mrf.mxu0
      %v1332 = vadd.f32 %v1289, %v1331
      %v1333 = vpop.f32.mrf.mxu0
      %v1334 = vadd.f32 %v1291, %v1333
      %v1335 = vpop.f32.mrf.mxu0
      %v1336 = vadd.f32 %v1293, %v1335
      %v1337 = vpop.f32.mrf.mxu0
      %v1338 = vadd.f32 %v1295, %v1337
      %1339 = vdwg.mxu0
      %1340 = vmatprep.subr.bf16.mxu0 %v1023
      %1341 = vmatpush1.bf16.msra.mxu0 %v1022
      %1342 = vmatprep.subr.bf16.mxu0 %v1021
      %1343 = vmatpush1.bf16.msra.mxu0 %v1020
      %1344 = vmatprep.subr.bf16.mxu0 %v1019
      %1345 = vmatpush1.bf16.msra.mxu0 %v1018
      %1346 = vmatprep.subr.bf16.mxu0 %v1017
      %1347 = vmatpush1.bf16.msra.mxu0 %v1016
      %1348 = vmatprep.subr.bf16.mxu0 %v1015
      %1349 = vmatpush1.bf16.msra.mxu0 %v1014
      %1350 = vmatprep.subr.bf16.mxu0 %v1013
      %1351 = vmatpush1.bf16.msra.mxu0 %v1012
      %1352 = vmatprep.subr.bf16.mxu0 %v1011
      %1353 = vmatpush1.bf16.msra.mxu0 %v1010
      %1354 = vmatprep.subr.bf16.mxu0 %v1009
      %1355 = vmatpush1.bf16.msra.mxu0 %v1008
      %1356 = vmatprep.subr.bf16.mxu0 0
      %1357 = vmatpush2.bf16.msra.mxu0 0
      %1358 = vmatprep.subr.bf16.mxu0 0
      %1359 = vmatpush2.bf16.msra.mxu0 0
      %1360 = vmatprep.subr.bf16.mxu0 0
      %1361 = vmatpush2.bf16.msra.mxu0 0
      %1362 = vmatprep.subr.bf16.mxu0 0
      %1363 = vmatpush2.bf16.msra.mxu0 0
      %1364 = vmatprep.subr.bf16.mxu0 0
      %1365 = vmatpush2.bf16.msra.mxu0 0
      %1366 = vmatprep.subr.bf16.mxu0 0
      %1367 = vmatpush2.bf16.msra.mxu0 0
      %1368 = vmatprep.subr.bf16.mxu0 0
      %1369 = vmatpush2.bf16.msra.mxu0 0
      %1370 = vmatprep.subr.bf16.mxu0 0
      %1371 = vmatpush2.bf16.msra.mxu0 0
      %1372 = vmatprep.mubr.bf16.mxu0 0
      %1373 = vmatmul.mubr.bf16.gmra.mxu0 %v438
      %v1374 = vpop.f32.mrf.mxu0
      %v1375 = vadd.f32 %v1332, %v1374
      %v1376 = vpop.f32.mrf.mxu0
      %v1377 = vadd.f32 %v1334, %v1376
      %v1378 = vpop.f32.mrf.mxu0
      %v1379 = vadd.f32 %v1336, %v1378
      %v1380 = vpop.f32.mrf.mxu0
      %v1381 = vadd.f32 %v1338, %v1380
      %1382 = vdwg.mxu0
      %v1383 = vadd.f32 %v1375, %v1379
      %v1384 = vrot.slane %v1383, 4
      %v1385 = vadd.f32 %v1383, %v1384
      %v1386 = vrot.slane %v1385, 2
      %v1387 = vadd.f32 %v1385, %v1386
      %v1388 = vrot.slane %v1387, 1
      %v1389 = vadd.f32 %v1387, %v1388
      %v1390 = vadd.f32 %v1377, %v1381
      %v1391 = vrot.slane %v1390, 4
      %v1392 = vadd.f32 %v1390, %v1391
      %v1393 = vrot.slane %v1392, 2
      %v1394 = vadd.f32 %v1392, %v1393
      %v1395 = vrot.slane %v1394, 1
      %v1396 = vadd.f32 %v1394, %v1395
      %v1397 = vmul.f32 %v1389, 0.0625
      %v1398 = vmul.f32 %v1396, 0.0625
      %v1399 = vmul.f32 %v1375, %v1375
      %v1400 = vmul.f32 %v1377, %v1377
      %v1401 = vmul.f32 %v1379, %v1379
      %v1402 = vmul.f32 %v1381, %v1381
      %v1403 = vadd.f32 %v1399, %v1401
      %v1404 = vrot.slane %v1403, 4
      %v1405 = vadd.f32 %v1403, %v1404
      %v1406 = vrot.slane %v1405, 2
      %v1407 = vadd.f32 %v1405, %v1406
      %v1408 = vrot.slane %v1407, 1
      %v1409 = vadd.f32 %v1407, %v1408
      %v1410 = vadd.f32 %v1400, %v1402
      %v1411 = vrot.slane %v1410, 4
      %v1412 = vadd.f32 %v1410, %v1411
      %v1413 = vrot.slane %v1412, 2
      %v1414 = vadd.f32 %v1412, %v1413
      %v1415 = vrot.slane %v1414, 1
      %v1416 = vadd.f32 %v1414, %v1415
      %v1417 = vmul.f32 %v1409, 0.0625
      %v1418 = vmul.f32 %v1416, 0.0625
      %v1419 = vmul.f32 %v1397, %v1397
      %v1420 = vmul.f32 %v1398, %v1398
      %v1421 = vsub.f32 %v1417, %v1419
      %v1422 = vsub.f32 %v1418, %v1420
      %v1423 = vsub.f32 %v1375, %v1397
      %v1424 = vsub.f32 %v1377, %v1398
      %v1425 = vsub.f32 %v1379, %v1397
      %v1426 = vsub.f32 %v1381, %v1398
      %v1427 = vadd.f32 %v1421, 1e-05
      %v1428 = vadd.f32 %v1422, 1e-05
      %v1429 = vrsqrt.pop %v1427
      %v1430 = vrsqrt.pop %v1428
      %v1431 = vmul.f32 %v1423, %v1429
      %v1432 = vmul.f32 %v1424, %v1430
      %v1433 = vmul.f32 %v1425, %v1429
      %v1434 = vmul.f32 %v1426, %v1430
      %vm1435 = vcmp.ge.f32.partialorder %v1431, 0.0
      %vm1436 = vcmp.ge.f32.partialorder %v1432, 0.0
      %vm1437 = vcmp.ge.f32.partialorder %v1433, 0.0
      %vm1438 = vcmp.ge.f32.partialorder %v1434, 0.0
      %v1439 = vmul.f32 %v1431, 0.2
      %v1440 = vmul.f32 %v1432, 0.2
      %v1441 = vmul.f32 %v1433, 0.2
      %v1442 = vmul.f32 %v1434, 0.2
      %v1443 = vsel %vm1435, %v1431, %v1439
      %v1444 = vsel %vm1436, %v1432, %v1440
      %v1445 = vsel %vm1437, %v1433, %v1441
      %v1446 = vsel %vm1438, %v1434, %v1442
      %v1447 = vpack.c.bf16 %v1445, %v1443
      %v1448 = vpack.c.bf16 %v1446, %v1444
      %v1451 = vunpack.c.l.b16 %v1447
      %v1452 = vunpack.c.l.b16 %v1448
      %v1453 = vunpack.c.h.b16 %v1447
      %v1454 = vunpack.c.h.b16 %v1448
      %v1455 = vpack.c.b16 %v1452, %v1451
      %v1456 = vpack.c.b16 %v1454, %v1453
      %1459 = vst [vmem:[%s233] sm:$0xff] %v1455
      %1460 = vst [vmem:[%s233 + $0x8] sm:$0xff] %v1456
      %s1461 = smul.u32 2, %s19
      %p1462 = scmp.lt.s32.totalorder %s18, 1
      %s1463 = scalar_select %p1462, %s18, 1
      %p1464 = scmp.lt.s32.totalorder %s1461, 1
      %s1465 = scalar_select %p1464, %s1461, 1
      %s1466 = smul.addr %s1463, 4
      %s1467 = sadd.s32 %s1465, %s1466
      %s1468 = smul.addr %s1467, 4
      %s1469 = scalar_lea.vmem %s3, %s1468
      // Predicated region
      $region33: #{discriminator_forward.7} parent=31 // pred_check
        %p1470 = pneg %p124
      $region34: #{discriminator_forward.7} parent=31 // pred_check_branch
        %1472 = sbr.rel (%p1470) target = $region36
      $region35: #{discriminator_forward.7} parent=31 // pred_region
        %s1473 = smul.u32 2, %s19
      $region36: #{discriminator_forward.7} parent=31 // pred_fallthru
        _
    $region32: #{discriminator_forward.7} parent=5 // pred_fallthru
      _
    %p1474 = scmp.le.s32.totalorder 2, %s9
    // Predicated region
    $region37: #{discriminator_forward.7} parent=5 // pred_check
      %p1475 = pneg %p1474
    $region38: #{discriminator_forward.7} parent=5 // pred_check_branch
      %1477 = sbr.rel (%p1475) target = $region40
    $region39: #{discriminator_forward.7} parent=5 // pred_region
      %s1478 = ssub.s32 %s9, 2
      // Predicated region
      $region41: #{discriminator_forward.7} parent=39 // pred_check
        %p1479 = pneg %p130
      $region42: #{discriminator_forward.7} parent=39 // pred_check_branch
        %1481 = sbr.rel (%p1479) target = $region44
      $region43: #{discriminator_forward.7} parent=39 // pred_region
        %s1482 = smul.u32 2, %s21
        %p1483 = scmp.lt.s32.totalorder %s20, 1
        %s1484 = scalar_select %p1483, %s20, 1
        %p1485 = scmp.lt.s32.totalorder %s1482, 1
        %s1486 = scalar_select %p1485, %s1482, 1
        %s1487 = smul.addr %s1484, 4
        %s1488 = sadd.s32 %s1486, %s1487
        %s1489 = smul.addr %s1488, 4
        %s1490 = scalar_lea.vmem %s3, %s1489
      $region44: #{discriminator_forward.7} parent=39 // pred_fallthru
        _
    $region40: #{discriminator_forward.7} parent=5 // pred_fallthru
      _
  $region6: #{discriminator_forward.7} parent=0 // loop_footer
    %s13 = sadd.s32 1, %s9
  $region7: #{discriminator_forward.7} parent=0 // loop_footer_branch
    %8 = sbr.rel target = $region3
  $region8: #{discriminator_forward.7} parent=0 // loop_exit
    _

// kernel: discriminator_forward.8
$region0: #{discriminator_forward.8}
  #allocation0 [shape = 'u32[]', space=smem, size = 0x4, offset = 0x4, fixed_abs, tag = 'smem constant byte address 0x4 - core index']
  #allocation1 [shape = 'u32[144,128]{1,0:T(1,128)}', space=vmem, size = 0x12000, scoped, tag = 'internal scratch']
  %s0 = inlined_call_operand.vmem [shape: bf16[2,4,2304], index: 0, kind: input, shape index: {}]
  %s1 = inlined_call_operand.vmem [shape: bf16[2304,512], index: 1, kind: input, shape index: {}]
  %s2 = inlined_call_operand.vmem [shape: f32[1,512], index: 2, kind: input, shape index: {}]
  %s3 = inlined_call_operand.vmem [shape: bf16[2,4,512], index: 3, kind: output, shape index: {}]
  %s4 = sld [smem:[#allocation0]]
  $region83: #{discriminator_forward.8} parent=0
    _
  %s6 = ssub.s32 1, %s4
  %s7 = scalar_select 0, %s6, %s4
  $region1: #{discriminator_forward.8} parent=0
    #allocation2 [shape = 'u8[2359296]{0}', space=vmem, size = 0x240000, scoped, tag = 'input window, operand 1']
    loop: start=0, step=1, limit=6
    $region2: #{discriminator_forward.8} parent=1 // loop_pre_header
      _
    $region3: #{discriminator_forward.8} parent=1 // loop_header
      %s9 = sphi 0, %s13
      %p10 = scmp.ge.s32.totalorder %s9, 6
      %s16 = sphi 0, %s28
      %s17 = sphi 0, %s24
      %s18 = sphi 0, %s16
      %s19 = sphi 0, %s17
      %s20 = sphi 0, %s18
      %s21 = sphi 0, %s19
      %s31 = sphi 0, %s33
      %s34 = sphi 0, %s31
      %s35 = sphi 0, %s34
      %s51 = sphi 0, %s35
      %s57 = sphi 0, %s59
      %s60 = sphi 0, %s57
      %s61 = sphi 0, %s60
      %s77 = sphi 0, %s61
      %s83 = sphi 0, %s85
      %s86 = sphi 0, %s83
      %s87 = sphi 0, %s86
      %s103 = sphi 0, %s87
      %s111 = sphi 0, %s113
      %s114 = sphi 0, %s111
      %s115 = sphi 0, %s114
      %s131 = sphi 0, %s115
    $region4: #{discriminator_forward.8} parent=1 // loop_header_branch
      %12 = sbr.rel (%p10) target = $region8
    $region5: #{discriminator_forward.8} parent=1 // loop_body
      %s14 = ssub.s32 %s9, 1
      %s15 = ssub.s32 %s9, 2
      %s22 = sadd.s32 1, %s17
      %p23 = scmp.ge.s32.totalorder %s22, 2
      %s24 = scalar_select %p23, 0, %s22
      %s25 = sadd.s32 1, %s16
      %s26 = scalar_select %p23, %s25, %s16
      %p27 = scmp.ge.s32.totalorder %s26, 2
      %s28 = scalar_select %p27, 0, %s26
      %s29 = ssub.s32 %s16, %s28
      %p30 = scmp.eq.s32.totalorder %s29, 0
      %s32 = sadd.s32 %s31, 1
      %s33 = scalar_select %p30, %s31, %s32
      %p36 = pneg %p30
      %p37 = scmp.eq.s32.totalorder %s9, 3
      %p38 = por %p36, %p37
      %p39 = scmp.ne.s32.totalorder %s31, %s34
      %p40 = scmp.eq.s32.totalorder %s9, 0
      %p41 = por %p39, %p40
      %p42 = scmp.ne.s32.totalorder %s31, %s34
      %p43 = scmp.eq.s32.totalorder %s14, 3
      %p44 = por %p42, %p43
      %p45 = scmp.ne.s32.totalorder %s34, %s35
      %p46 = scmp.eq.s32.totalorder %s14, 0
      %p47 = por %p45, %p46
      %p48 = scmp.ne.s32.totalorder %s34, %s35
      %p49 = scmp.eq.s32.totalorder %s15, 3
      %p50 = por %p48, %p49
      %p52 = scmp.ne.s32.totalorder %s35, %s51
      %p53 = scmp.eq.s32.totalorder %s15, 0
      %p54 = por %p52, %p53
      %s55 = ssub.s32 %s17, %s24
      %p56 = scmp.eq.s32.totalorder %s55, 0
      %s58 = sadd.s32 %s57, 1
      %s59 = scalar_select %p56, %s57, %s58
      %p62 = pneg %p56
      %p63 = scmp.eq.s32.totalorder %s9, 3
      %p64 = por %p62, %p63
      %p65 = scmp.ne.s32.totalorder %s57, %s60
      %p66 = scmp.eq.s32.totalorder %s9, 0
      %p67 = por %p65, %p66
      %p68 = scmp.ne.s32.totalorder %s57, %s60
      %p69 = scmp.eq.s32.totalorder %s14, 3
      %p70 = por %p68, %p69
      %p71 = scmp.ne.s32.totalorder %s60, %s61
      %p72 = scmp.eq.s32.totalorder %s14, 0
      %p73 = por %p71, %p72
      %p74 = scmp.ne.s32.totalorder %s60, %s61
      %p75 = scmp.eq.s32.totalorder %s15, 3
      %p76 = por %p74, %p75
      %p78 = scmp.ne.s32.totalorder %s61, %s77
      %p79 = scmp.eq.s32.totalorder %s15, 0
      %p80 = por %p78, %p79
      %s81 = ssub.s32 %s17, %s24
      %p82 = scmp.eq.s32.totalorder %s81, 0
      %s84 = sadd.s32 %s83, 1
      %s85 = scalar_select %p82, %s83, %s84
      %p88 = pneg %p82
      %p89 = scmp.eq.s32.totalorder %s9, 3
      %p90 = por %p88, %p89
      %p91 = scmp.ne.s32.totalorder %s83, %s86
      %p92 = scmp.eq.s32.totalorder %s9, 0
      %p93 = por %p91, %p92
      %p94 = scmp.ne.s32.totalorder %s83, %s86
      %p95 = scmp.eq.s32.totalorder %s14, 3
      %p96 = por %p94, %p95
      %p97 = scmp.ne.s32.totalorder %s86, %s87
      %p98 = scmp.eq.s32.totalorder %s14, 0
      %p99 = por %p97, %p98
      %p100 = scmp.ne.s32.totalorder %s86, %s87
      %p101 = scmp.eq.s32.totalorder %s15, 3
      %p102 = por %p100, %p101
      %p104 = scmp.ne.s32.totalorder %s87, %s103
      %p105 = scmp.eq.s32.totalorder %s15, 0
      %p106 = por %p104, %p105
      %s107 = ssub.s32 %s16, %s28
      %s108 = ssub.s32 %s17, %s24
      %s109 = sor.u32 %s107, %s108
      %p110 = scmp.eq.s32.totalorder %s109, 0
      %s112 = sadd.s32 %s111, 1
      %s113 = scalar_select %p110, %s111, %s112
      %p116 = pneg %p110
      %p117 = scmp.eq.s32.totalorder %s9, 3
      %p118 = por %p116, %p117
      %p119 = scmp.ne.s32.totalorder %s111, %s114
      %p120 = scmp.eq.s32.totalorder %s9, 0
      %p121 = por %p119, %p120
      %p122 = scmp.ne.s32.totalorder %s111, %s114
      %p123 = scmp.eq.s32.totalorder %s14, 3
      %p124 = por %p122, %p123
      %p125 = scmp.ne.s32.totalorder %s114, %s115
      %p126 = scmp.eq.s32.totalorder %s14, 0
      %p127 = por %p125, %p126
      %p128 = scmp.ne.s32.totalorder %s114, %s115
      %p129 = scmp.eq.s32.totalorder %s15, 3
      %p130 = por %p128, %p129
      %p132 = scmp.ne.s32.totalorder %s115, %s131
      %p133 = scmp.eq.s32.totalorder %s15, 0
      %p134 = por %p132, %p133
      %p135 = scmp.le.s32.totalorder 1, %s9
      %p136 = scmp.lt.s32.totalorder %s9, 5
      %p137 = pnand %p135, %p136
      %p138 = pneg %p137
      // Predicated region
      $region9: #{discriminator_forward.8} parent=5 // pred_check
        _
      $region10: #{discriminator_forward.8} parent=5 // pred_check_branch
        %140 = sbr.rel (%p137) target = $region12
      $region11: #{discriminator_forward.8} parent=5 // pred_region
        %s141 = ssub.s32 %s9, 1
      $region12: #{discriminator_forward.8} parent=5 // pred_fallthru
        _
      %p142 = scmp.lt.s32.totalorder %s9, 4
      // Predicated region
      $region13: #{discriminator_forward.8} parent=5 // pred_check
        %p143 = pneg %p142
      $region14: #{discriminator_forward.8} parent=5 // pred_check_branch
        %145 = sbr.rel (%p143) target = $region16
      $region15: #{discriminator_forward.8} parent=5 // pred_region
        // Predicated region
        $region17: #{discriminator_forward.8} parent=15 // pred_check
          %p146 = pneg %p41
        $region18: #{discriminator_forward.8} parent=15 // pred_check_branch
          %148 = sbr.rel (%p146) target = $region20
        $region19: #{discriminator_forward.8} parent=15 // pred_region
          %p149 = scmp.lt.s32.totalorder %s16, 1
          %s150 = scalar_select %p149, %s16, 1
          %s151 = smul.addr %s150, 18
          %s152 = smul.addr %s151, 2
          %s153 = scalar_lea.vmem %s0, %s152
        $region20: #{discriminator_forward.8} parent=15 // pred_fallthru
          _
        // Predicated region
        $region21: #{discriminator_forward.8} parent=15 // pred_check
          %p154 = pneg %p67
        $region22: #{discriminator_forward.8} parent=15 // pred_check_branch
          %156 = sbr.rel (%p154) target = $region24
        $region23: #{discriminator_forward.8} parent=15 // pred_region
          %s157 = sand.u32 %s57, 1
          %s158 = sand.u32 %s57, 1
          %s159 = smul.addr %s158, 2304
          %s160 = scalar_lea.vmem [#allocation2], %s159
          %s161 = smul.u32 2, %s17
          %s162 = smul.addr %s161, 4
          %s163 = scalar_lea.vmem %s1, %s162
          // Predicated region
          $region25: #{discriminator_forward.8} parent=23 // pred_check
            _
          $region26: #{discriminator_forward.8} parent=23 // pred_check_branch
            %165 = sbr.rel (0) target = $region28
          $region27: #{discriminator_forward.8} parent=23 // pred_region
            // Predicated region
            $region29: #{discriminator_forward.8} parent=27 // pred_check
              _
            $region30: #{discriminator_forward.8} parent=27 // pred_check_branch
              %167 = sbr.rel (0) target = $region32
            $region31: #{discriminator_forward.8} parent=27 // pred_region
              // Predicated region
              $region44: #{discriminator_forward.8} parent=31 // pred_check
                _
              $region45: #{discriminator_forward.8} parent=31 // pred_check_branch
                %757 = sbr.rel (0) target = $region47
              $region46: #{discriminator_forward.8} parent=31 // pred_region
                loop: start=0, step=1, limit=1
                $region48: #{discriminator_forward.8} parent=46 // loop_pre_header
                  _
                $region49: #{discriminator_forward.8} parent=46 // loop_header
                  %s759 = sphi 0, %s763
                  %p760 = scmp.ge.s32.totalorder %s759, 1
                  %s764 = sphi %s163, %s163
                  %s765 = sphi %s160, %s160
                $region50: #{discriminator_forward.8} parent=46 // loop_header_branch
                  %762 = sbr.rel (%p760) target = $region54
                $region51: #{discriminator_forward.8} parent=46 // loop_body
                  %v766 = vld [vmem:[%s764] sm:$0xff]
                  %767 = vst [vmem:[%s765] sm:$0xff] %v766
                  %v768 = vld [vmem:[%s764 + $0x10] sm:$0xff]
                  %769 = vst [vmem:[%s765 + $0x8] sm:$0xff] %v768
                  %v770 = vld [vmem:[%s764 + $0x20] sm:$0xff]
                  %771 = vst [vmem:[%s765 + $0x10] sm:$0xff] %v770
                  %v772 = vld [vmem:[%s764 + $0x30] sm:$0xff]
                  %773 = vst [vmem:[%s765 + $0x18] sm:$0xff] %v772
                  %v774 = vld [vmem:[%s764 + $0x40] sm:$0xff]
                  %775 = vst [vmem:[%s765 + $0x20] sm:$0xff] %v774
                  %v776 = vld [vmem:[%s764 + $0x50] sm:$0xff]
                  %777 = vst [vmem:[%s765 + $0x28] sm:$0xff] %v776
                  %v778 = vld [vmem:[%s764 + $0x60] sm:$0xff]
                  %779 = vst [vmem:[%s765 + $0x30] sm:$0xff] %v778
                  %v780 = vld [vmem:[%s764 + $0x70] sm:$0xff]
                  %781 = vst [vmem:[%s765 + $0x38] sm:$0xff] %v780
                  %v782 = vld [vmem:[%s764 + $0x80] sm:$0xff]
                  %783 = vst [vmem:[%s765 + $0x40] sm:$0xff] %v782
                  %v784 = vld [vmem:[%s764 + $0x90] sm:$0xff]
                  %785 = vst [vmem:[%s765 + $0x48] sm:$0xff] %v784
                  %v786 = vld [vmem:[%s764 + $0xa0] sm:$0xff]
                  %787 = vst [vmem:[%s765 + $0x50] sm:$0xff] %v786
                  %v788 = vld [vmem:[%s764 + $0xb0] sm:$0xff]
                  %789 = vst [vmem:[%s765 + $0x58] sm:$0xff] %v788
                  %v790 = vld [vmem:[%s764 + $0xc0] sm:$0xff]
                  %791 = vst [vmem:[%s765 + $0x60] sm:$0xff] %v790
                  %v792 = vld [vmem:[%s764 + $0xd0] sm:$0xff]
                  %793 = vst [vmem:[%s765 + $0x68] sm:$0xff] %v792
                  %v794 = vld [vmem:[%s764 + $0xe0] sm:$0xff]
                  %795 = vst [vmem:[%s765 + $0x70] sm:$0xff] %v794
                  %v796 = vld [vmem:[%s764 + $0xf0] sm:$0xff]
                  %797 = vst [vmem:[%s765 + $0x78] sm:$0xff] %v796
                  %v798 = vld [vmem:[%s764 + $0x100] sm:$0xff]
                  %799 = vst [vmem:[%s765 + $0x80] sm:$0xff] %v798
                  %v800 = vld [vmem:[%s764 + $0x110] sm:$0xff]
                  %801 = vst [vmem:[%s765 + $0x88] sm:$0xff] %v800
                  %v802 = vld [vmem:[%s764 + $0x120] sm:$0xff]
                  %803 = vst [vmem:[%s765 + $0x90] sm:$0xff] %v802
                  %v804 = vld [vmem:[%s764 + $0x130] sm:$0xff]
                  %805 = vst [vmem:[%s765 + $0x98] sm:$0xff] %v804
                  %v806 = vld [vmem:[%s764 + $0x140] sm:$0xff]
                  %807 = vst [vmem:[%s765 + $0xa0] sm:$0xff] %v806
                  %v808 = vld [vmem:[%s764 + $0x150] sm:$0xff]
                  %809 = vst [vmem:[%s765 + $0xa8] sm:$0xff] %v808
                  %v810 = vld [vmem:[%s764 + $0x160] sm:$0xff]
                  %811 = vst [vmem:[%s765 + $0xb0] sm:$0xff] %v810
                  %v812 = vld [vmem:[%s764 + $0x170] sm:$0xff]
                  %813 = vst [vmem:[%s765 + $0xb8] sm:$0xff] %v812
                  %v814 = vld [vmem:[%s764 + $0x180] sm:$0xff]
                  %815 = vst [vmem:[%s765 + $0xc0] sm:$0xff] %v814
                  %v816 = vld [vmem:[%s764 + $0x190] sm:$0xff]
                  %817 = vst [vmem:[%s765 + $0xc8] sm:$0xff] %v816
                  %v818 = vld [vmem:[%s764 + $0x1a0] sm:$0xff]
                  %819 = vst [vmem:[%s765 + $0xd0] sm:$0xff] %v818
                  %v820 = vld [vmem:[%s764 + $0x1b0] sm:$0xff]
                  %821 = vst [vmem:[%s765 + $0xd8] sm:$0xff] %v820
                  %v822 = vld [vmem:[%s764 + $0x1c0] sm:$0xff]
                  %823 = vst [vmem:[%s765 + $0xe0] sm:$0xff] %v822
                  %v824 = vld [vmem:[%s764 + $0x1d0] sm:$0xff]
                  %825 = vst [vmem:[%s765 + $0xe8] sm:$0xff] %v824
                  %v826 = vld [vmem:[%s764 + $0x1e0] sm:$0xff]
                  %827 = vst [vmem:[%s765 + $0xf0] sm:$0xff] %v826
                  %v828 = vld [vmem:[%s764 + $0x1f0] sm:$0xff]
                  %829 = vst [vmem:[%s765 + $0xf8] sm:$0xff] %v828
                  %v830 = vld [vmem:[%s764 + $0x200] sm:$0xff]
                  %831 = vst [vmem:[%s765 + $0x100] sm:$0xff] %v830
                  %v832 = vld [vmem:[%s764 + $0x210] sm:$0xff]
                  %833 = vst [vmem:[%s765 + $0x108] sm:$0xff] %v832
                  %v834 = vld [vmem:[%s764 + $0x220] sm:$0xff]
                  %835 = vst [vmem:[%s765 + $0x110] sm:$0xff] %v834
                  %v836 = vld [vmem:[%s764 + $0x230] sm:$0xff]
                  %837 = vst [vmem:[%s765 + $0x118] sm:$0xff] %v836
                  %v838 = vld [vmem:[%s764 + $0x240] sm:$0xff]
                  %839 = vst [vmem:[%s765 + $0x120] sm:$0xff] %v838
                  %v840 = vld [vmem:[%s764 + $0x250] sm:$0xff]
                  %841 = vst [vmem:[%s765 + $0x128] sm:$0xff] %v840
                  %v842 = vld [vmem:[%s764 + $0x260] sm:$0xff]
                  %843 = vst [vmem:[%s765 + $0x130] sm:$0xff] %v842
                  %v844 = vld [vmem:[%s764 + $0x270] sm:$0xff]
                  %845 = vst [vmem:[%s765 + $0x138] sm:$0xff] %v844
                  %v846 = vld [vmem:[%s764 + $0x280] sm:$0xff]
                  %847 = vst [vmem:[%s765 + $0x140] sm:$0xff] %v846
                  %v848 = vld [vmem:[%s764 + $0x290] sm:$0xff]
                  %849 = vst [vmem:[%s765 + $0x148] sm:$0xff] %v848
                  %v850 = vld [vmem:[%s764 + $0x2a0] sm:$0xff]
                  %851 = vst [vmem:[%s765 + $0x150] sm:$0xff] %v850
                  %v852 = vld [vmem:[%s764 + $0x2b0] sm:$0xff]
                  %853 = vst [vmem:[%s765 + $0x158] sm:$0xff] %v852
                  %v854 = vld [vmem:[%s764 + $0x2c0] sm:$0xff]
                  %855 = vst [vmem:[%s765 + $0x160] sm:$0xff] %v854
                  %v856 = vld [vmem:[%s764 + $0x2d0] sm:$0xff]
                  %857 = vst [vmem:[%s765 + $0x168] sm:$0xff] %v856
                  %v858 = vld [vmem:[%s764 + $0x2e0] sm:$0xff]
                  %859 = vst [vmem:[%s765 + $0x170] sm:$0xff] %v858
                  %v860 = vld [vmem:[%s764 + $0x2f0] sm:$0xff]
                  %861 = vst [vmem:[%s765 + $0x178] sm:$0xff] %v860
                  %v862 = vld [vmem:[%s764 + $0x300] sm:$0xff]
                  %863 = vst [vmem:[%s765 + $0x180] sm:$0xff] %v862
                  %v864 = vld [vmem:[%s764 + $0x310] sm:$0xff]
                  %865 = vst [vmem:[%s765 + $0x188] sm:$0xff] %v864
                  %v866 = vld [vmem:[%s764 + $0x320] sm:$0xff]
                  %867 = vst [vmem:[%s765 + $0x190] sm:$0xff] %v866
                  %v868 = vld [vmem:[%s764 + $0x330] sm:$0xff]
                  %869 = vst [vmem:[%s765 + $0x198] sm:$0xff] %v868
                  %v870 = vld [vmem:[%s764 + $0x340] sm:$0xff]
                  %871 = vst [vmem:[%s765 + $0x1a0] sm:$0xff] %v870
                  %v872 = vld [vmem:[%s764 + $0x350] sm:$0xff]
                  %873 = vst [vmem:[%s765 + $0x1a8] sm:$0xff] %v872
                  %v874 = vld [vmem:[%s764 + $0x360] sm:$0xff]
                  %875 = vst [vmem:[%s765 + $0x1b0] sm:$0xff] %v874
                  %v876 = vld [vmem:[%s764 + $0x370] sm:$0xff]
                  %877 = vst [vmem:[%s765 + $0x1b8] sm:$0xff] %v876
                  %v878 = vld [vmem:[%s764 + $0x380] sm:$0xff]
                  %879 = vst [vmem:[%s765 + $0x1c0] sm:$0xff] %v878
                  %v880 = vld [vmem:[%s764 + $0x390] sm:$0xff]
                  %881 = vst [vmem:[%s765 + $0x1c8] sm:$0xff] %v880
                  %v882 = vld [vmem:[%s764 + $0x3a0] sm:$0xff]
                  %883 = vst [vmem:[%s765 + $0x1d0] sm:$0xff] %v882
                  %v884 = vld [vmem:[%s764 + $0x3b0] sm:$0xff]
                  %885 = vst [vmem:[%s765 + $0x1d8] sm:$0xff] %v884
                  %v886 = vld [vmem:[%s764 + $0x3c0] sm:$0xff]
                  %887 = vst [vmem:[%s765 + $0x1e0] sm:$0xff] %v886
                  %v888 = vld [vmem:[%s764 + $0x3d0] sm:$0xff]
                  %889 = vst [vmem:[%s765 + $0x1e8] sm:$0xff] %v888
                  %v890 = vld [vmem:[%s764 + $0x3e0] sm:$0xff]
                  %891 = vst [vmem:[%s765 + $0x1f0] sm:$0xff] %v890
                  %v892 = vld [vmem:[%s764 + $0x3f0] sm:$0xff]
                  %893 = vst [vmem:[%s765 + $0x1f8] sm:$0xff] %v892
                  %v894 = vld [vmem:[%s764 + $0x400] sm:$0xff]
                  %895 = vst [vmem:[%s765 + $0x200] sm:$0xff] %v894
                  %v896 = vld [vmem:[%s764 + $0x410] sm:$0xff]
                  %897 = vst [vmem:[%s765 + $0x208] sm:$0xff] %v896
                  %v898 = vld [vmem:[%s764 + $0x420] sm:$0xff]
                  %899 = vst [vmem:[%s765 + $0x210] sm:$0xff] %v898
                  %v900 = vld [vmem:[%s764 + $0x430] sm:$0xff]
                  %901 = vst [vmem:[%s765 + $0x218] sm:$0xff] %v900
                  %v902 = vld [vmem:[%s764 + $0x440] sm:$0xff]
                  %903 = vst [vmem:[%s765 + $0x220] sm:$0xff] %v902
                  %v904 = vld [vmem:[%s764 + $0x450] sm:$0xff]
                  %905 = vst [vmem:[%s765 + $0x228] sm:$0xff] %v904
                  %v906 = vld [vmem:[%s764 + $0x460] sm:$0xff]
                  %907 = vst [vmem:[%s765 + $0x230] sm:$0xff] %v906
                  %v908 = vld [vmem:[%s764 + $0x470] sm:$0xff]
                  %909 = vst [vmem:[%s765 + $0x238] sm:$0xff] %v908
                  %v910 = vld [vmem:[%s764 + $0x480] sm:$0xff]
                  %911 = vst [vmem:[%s765 + $0x240] sm:$0xff] %v910
                  %v912 = vld [vmem:[%s764 + $0x490] sm:$0xff]
                  %913 = vst [vmem:[%s765 + $0x248] sm:$0xff] %v912
                  %v914 = vld [vmem:[%s764 + $0x4a0] sm:$0xff]
                  %915 = vst [vmem:[%s765 + $0x250] sm:$0xff] %v914
                  %v916 = vld [vmem:[%s764 + $0x4b0] sm:$0xff]
                  %917 = vst [vmem:[%s765 + $0x258] sm:$0xff] %v916
                  %v918 = vld [vmem:[%s764 + $0x4c0] sm:$0xff]
                  %919 = vst [vmem:[%s765 + $0x260] sm:$0xff] %v918
                  %v920 = vld [vmem:[%s764 + $0x4d0] sm:$0xff]
                  %921 = vst [vmem:[%s765 + $0x268] sm:$0xff] %v920
                  %v922 = vld [vmem:[%s764 + $0x4e0] sm:$0xff]
                  %923 = vst [vmem:[%s765 + $0x270] sm:$0xff] %v922
                  %v924 = vld [vmem:[%s764 + $0x4f0] sm:$0xff]
                  %925 = vst [vmem:[%s765 + $0x278] sm:$0xff] %v924
                  %v926 = vld [vmem:[%s764 + $0x500] sm:$0xff]
                  %927 = vst [vmem:[%s765 + $0x280] sm:$0xff] %v926
                  %v928 = vld [vmem:[%s764 + $0x510] sm:$0xff]
                  %929 = vst [vmem:[%s765 + $0x288] sm:$0xff] %v928
                  %v930 = vld [vmem:[%s764 + $0x520] sm:$0xff]
                  %931 = vst [vmem:[%s765 + $0x290] sm:$0xff] %v930
                  %v932 = vld [vmem:[%s764 + $0x530] sm:$0xff]
                  %933 = vst [vmem:[%s765 + $0x298] sm:$0xff] %v932
                  %v934 = vld [vmem:[%s764 + $0x540] sm:$0xff]
                  %935 = vst [vmem:[%s765 + $0x2a0] sm:$0xff] %v934
                  %v936 = vld [vmem:[%s764 + $0x550] sm:$0xff]
                  %937 = vst [vmem:[%s765 + $0x2a8] sm:$0xff] %v936
                  %v938 = vld [vmem:[%s764 + $0x560] sm:$0xff]
                  %939 = vst [vmem:[%s765 + $0x2b0] sm:$0xff] %v938
                  %v940 = vld [vmem:[%s764 + $0x570] sm:$0xff]
                  %941 = vst [vmem:[%s765 + $0x2b8] sm:$0xff] %v940
                  %v942 = vld [vmem:[%s764 + $0x580] sm:$0xff]
                  %943 = vst [vmem:[%s765 + $0x2c0] sm:$0xff] %v942
                  %v944 = vld [vmem:[%s764 + $0x590] sm:$0xff]
                  %945 = vst [vmem:[%s765 + $0x2c8] sm:$0xff] %v944
                  %v946 = vld [vmem:[%s764 + $0x5a0] sm:$0xff]
                  %947 = vst [vmem:[%s765 + $0x2d0] sm:$0xff] %v946
                  %v948 = vld [vmem:[%s764 + $0x5b0] sm:$0xff]
                  %949 = vst [vmem:[%s765 + $0x2d8] sm:$0xff] %v948
                  %v950 = vld [vmem:[%s764 + $0x5c0] sm:$0xff]
                  %951 = vst [vmem:[%s765 + $0x2e0] sm:$0xff] %v950
                  %v952 = vld [vmem:[%s764 + $0x5d0] sm:$0xff]
                  %953 = vst [vmem:[%s765 + $0x2e8] sm:$0xff] %v952
                  %v954 = vld [vmem:[%s764 + $0x5e0] sm:$0xff]
                  %955 = vst [vmem:[%s765 + $0x2f0] sm:$0xff] %v954
                  %v956 = vld [vmem:[%s764 + $0x5f0] sm:$0xff]
                  %957 = vst [vmem:[%s765 + $0x2f8] sm:$0xff] %v956
                  %v958 = vld [vmem:[%s764 + $0x600] sm:$0xff]
                  %959 = vst [vmem:[%s765 + $0x300] sm:$0xff] %v958
                  %v960 = vld [vmem:[%s764 + $0x610] sm:$0xff]
                  %961 = vst [vmem:[%s765 + $0x308] sm:$0xff] %v960
                  %v962 = vld [vmem:[%s764 + $0x620] sm:$0xff]
                  %963 = vst [vmem:[%s765 + $0x310] sm:$0xff] %v962
                  %v964 = vld [vmem:[%s764 + $0x630] sm:$0xff]
                  %965 = vst [vmem:[%s765 + $0x318] sm:$0xff] %v964
                  %v966 = vld [vmem:[%s764 + $0x640] sm:$0xff]
                  %967 = vst [vmem:[%s765 + $0x320] sm:$0xff] %v966
                  %v968 = vld [vmem:[%s764 + $0x650] sm:$0xff]
                  %969 = vst [vmem:[%s765 + $0x328] sm:$0xff] %v968
                  %v970 = vld [vmem:[%s764 + $0x660] sm:$0xff]
                  %971 = vst [vmem:[%s765 + $0x330] sm:$0xff] %v970
                  %v972 = vld [vmem:[%s764 + $0x670] sm:$0xff]
                  %973 = vst [vmem:[%s765 + $0x338] sm:$0xff] %v972
                  %v974 = vld [vmem:[%s764 + $0x680] sm:$0xff]
                  %975 = vst [vmem:[%s765 + $0x340] sm:$0xff] %v974
                  %v976 = vld [vmem:[%s764 + $0x690] sm:$0xff]
                  %977 = vst [vmem:[%s765 + $0x348] sm:$0xff] %v976
                  %v978 = vld [vmem:[%s764 + $0x6a0] sm:$0xff]
                  %979 = vst [vmem:[%s765 + $0x350] sm:$0xff] %v978
                  %v980 = vld [vmem:[%s764 + $0x6b0] sm:$0xff]
                  %981 = vst [vmem:[%s765 + $0x358] sm:$0xff] %v980
                  %v982 = vld [vmem:[%s764 + $0x6c0] sm:$0xff]
                  %983 = vst [vmem:[%s765 + $0x360] sm:$0xff] %v982
                  %v984 = vld [vmem:[%s764 + $0x6d0] sm:$0xff]
                  %985 = vst [vmem:[%s765 + $0x368] sm:$0xff] %v984
                  %v986 = vld [vmem:[%s764 + $0x6e0] sm:$0xff]
                  %987 = vst [vmem:[%s765 + $0x370] sm:$0xff] %v986
                  %v988 = vld [vmem:[%s764 + $0x6f0] sm:$0xff]
                  %989 = vst [vmem:[%s765 + $0x378] sm:$0xff] %v988
                  %v990 = vld [vmem:[%s764 + $0x700] sm:$0xff]
                  %991 = vst [vmem:[%s765 + $0x380] sm:$0xff] %v990
                  %v992 = vld [vmem:[%s764 + $0x710] sm:$0xff]
                  %993 = vst [vmem:[%s765 + $0x388] sm:$0xff] %v992
                  %v994 = vld [vmem:[%s764 + $0x720] sm:$0xff]
                  %995 = vst [vmem:[%s765 + $0x390] sm:$0xff] %v994
                  %v996 = vld [vmem:[%s764 + $0x730] sm:$0xff]
                  %997 = vst [vmem:[%s765 + $0x398] sm:$0xff] %v996
                  %v998 = vld [vmem:[%s764 + $0x740] sm:$0xff]
                  %999 = vst [vmem:[%s765 + $0x3a0] sm:$0xff] %v998
                  %v1000 = vld [vmem:[%s764 + $0x750] sm:$0xff]
                  %1001 = vst [vmem:[%s765 + $0x3a8] sm:$0xff] %v1000
                  %v1002 = vld [vmem:[%s764 + $0x760] sm:$0xff]
                  %1003 = vst [vmem:[%s765 + $0x3b0] sm:$0xff] %v1002
                  %v1004 = vld [vmem:[%s764 + $0x770] sm:$0xff]
                  %1005 = vst [vmem:[%s765 + $0x3b8] sm:$0xff] %v1004
                  %v1006 = vld [vmem:[%s764 + $0x780] sm:$0xff]
                  %1007 = vst [vmem:[%s765 + $0x3c0] sm:$0xff] %v1006
                  %v1008 = vld [vmem:[%s764 + $0x790] sm:$0xff]
                  %1009 = vst [vmem:[%s765 + $0x3c8] sm:$0xff] %v1008
                  %v1010 = vld [vmem:[%s764 + $0x7a0] sm:$0xff]
                  %1011 = vst [vmem:[%s765 + $0x3d0] sm:$0xff] %v1010
                  %v1012 = vld [vmem:[%s764 + $0x7b0] sm:$0xff]
                  %1013 = vst [vmem:[%s765 + $0x3d8] sm:$0xff] %v1012
                  %v1014 = vld [vmem:[%s764 + $0x7c0] sm:$0xff]
                  %1015 = vst [vmem:[%s765 + $0x3e0] sm:$0xff] %v1014
                  %v1016 = vld [vmem:[%s764 + $0x7d0] sm:$0xff]
                  %1017 = vst [vmem:[%s765 + $0x3e8] sm:$0xff] %v1016
                  %v1018 = vld [vmem:[%s764 + $0x7e0] sm:$0xff]
                  %1019 = vst [vmem:[%s765 + $0x3f0] sm:$0xff] %v1018
                  %v1020 = vld [vmem:[%s764 + $0x7f0] sm:$0xff]
                  %1021 = vst [vmem:[%s765 + $0x3f8] sm:$0xff] %v1020
                  %v1022 = vld [vmem:[%s764 + $0x800] sm:$0xff]
                  %1023 = vst [vmem:[%s765 + $0x400] sm:$0xff] %v1022
                  %v1024 = vld [vmem:[%s764 + $0x810] sm:$0xff]
                  %1025 = vst [vmem:[%s765 + $0x408] sm:$0xff] %v1024
                  %v1026 = vld [vmem:[%s764 + $0x820] sm:$0xff]
                  %1027 = vst [vmem:[%s765 + $0x410] sm:$0xff] %v1026
                  %v1028 = vld [vmem:[%s764 + $0x830] sm:$0xff]
                  %1029 = vst [vmem:[%s765 + $0x418] sm:$0xff] %v1028
                  %v1030 = vld [vmem:[%s764 + $0x840] sm:$0xff]
                  %1031 = vst [vmem:[%s765 + $0x420] sm:$0xff] %v1030
                  %v1032 = vld [vmem:[%s764 + $0x850] sm:$0xff]
                  %1033 = vst [vmem:[%s765 + $0x428] sm:$0xff] %v1032
                  %v1034 = vld [vmem:[%s764 + $0x860] sm:$0xff]
                  %1035 = vst [vmem:[%s765 + $0x430] sm:$0xff] %v1034
                  %v1036 = vld [vmem:[%s764 + $0x870] sm:$0xff]
                  %1037 = vst [vmem:[%s765 + $0x438] sm:$0xff] %v1036
                  %v1038 = vld [vmem:[%s764 + $0x880] sm:$0xff]
                  %1039 = vst [vmem:[%s765 + $0x440] sm:$0xff] %v1038
                  %v1040 = vld [vmem:[%s764 + $0x890] sm:$0xff]
                  %1041 = vst [vmem:[%s765 + $0x448] sm:$0xff] %v1040
                  %v1042 = vld [vmem:[%s764 + $0x8a0] sm:$0xff]
                  %1043 = vst [vmem:[%s765 + $0x450] sm:$0xff] %v1042
                  %v1044 = vld [vmem:[%s764 + $0x8b0] sm:$0xff]
                  %1045 = vst [vmem:[%s765 + $0x458] sm:$0xff] %v1044
                  %v1046 = vld [vmem:[%s764 + $0x8c0] sm:$0xff]
                  %1047 = vst [vmem:[%s765 + $0x460] sm:$0xff] %v1046
                  %v1048 = vld [vmem:[%s764 + $0x8d0] sm:$0xff]
                  %1049 = vst [vmem:[%s765 + $0x468] sm:$0xff] %v1048
                  %v1050 = vld [vmem:[%s764 + $0x8e0] sm:$0xff]
                  %1051 = vst [vmem:[%s765 + $0x470] sm:$0xff] %v1050
                  %v1052 = vld [vmem:[%s764 + $0x8f0] sm:$0xff]
                  %1053 = vst [vmem:[%s765 + $0x478] sm:$0xff] %v1052
                  %v1054 = vld [vmem:[%s764 + $0x900] sm:$0xff]
                  %1055 = vst [vmem:[%s765 + $0x480] sm:$0xff] %v1054
                  %v1056 = vld [vmem:[%s764 + $0x910] sm:$0xff]
                  %1057 = vst [vmem:[%s765 + $0x488] sm:$0xff] %v1056
                  %v1058 = vld [vmem:[%s764 + $0x920] sm:$0xff]
                  %1059 = vst [vmem:[%s765 + $0x490] sm:$0xff] %v1058
                  %v1060 = vld [vmem:[%s764 + $0x930] sm:$0xff]
                  %1061 = vst [vmem:[%s765 + $0x498] sm:$0xff] %v1060
                  %v1062 = vld [vmem:[%s764 + $0x940] sm:$0xff]
                  %1063 = vst [vmem:[%s765 + $0x4a0] sm:$0xff] %v1062
                  %v1064 = vld [vmem:[%s764 + $0x950] sm:$0xff]
                  %1065 = vst [vmem:[%s765 + $0x4a8] sm:$0xff] %v1064
                  %v1066 = vld [vmem:[%s764 + $0x960] sm:$0xff]
                  %1067 = vst [vmem:[%s765 + $0x4b0] sm:$0xff] %v1066
                  %v1068 = vld [vmem:[%s764 + $0x970] sm:$0xff]
                  %1069 = vst [vmem:[%s765 + $0x4b8] sm:$0xff] %v1068
                  %v1070 = vld [vmem:[%s764 + $0x980] sm:$0xff]
                  %1071 = vst [vmem:[%s765 + $0x4c0] sm:$0xff] %v1070
                  %v1072 = vld [vmem:[%s764 + $0x990] sm:$0xff]
                  %1073 = vst [vmem:[%s765 + $0x4c8] sm:$0xff] %v1072
                  %v1074 = vld [vmem:[%s764 + $0x9a0] sm:$0xff]
                  %1075 = vst [vmem:[%s765 + $0x4d0] sm:$0xff] %v1074
                  %v1076 = vld [vmem:[%s764 + $0x9b0] sm:$0xff]
                  %1077 = vst [vmem:[%s765 + $0x4d8] sm:$0xff] %v1076
                  %v1078 = vld [vmem:[%s764 + $0x9c0] sm:$0xff]
                  %1079 = vst [vmem:[%s765 + $0x4e0] sm:$0xff] %v1078
                  %v1080 = vld [vmem:[%s764 + $0x9d0] sm:$0xff]
                  %1081 = vst [vmem:[%s765 + $0x4e8] sm:$0xff] %v1080
                  %v1082 = vld [vmem:[%s764 + $0x9e0] sm:$0xff]
                  %1083 = vst [vmem:[%s765 + $0x4f0] sm:$0xff] %v1082
                  %v1084 = vld [vmem:[%s764 + $0x9f0] sm:$0xff]
                  %1085 = vst [vmem:[%s765 + $0x4f8] sm:$0xff] %v1084
                  %v1086 = vld [vmem:[%s764 + $0xa00] sm:$0xff]
                  %1087 = vst [vmem:[%s765 + $0x500] sm:$0xff] %v1086
                  %v1088 = vld [vmem:[%s764 + $0xa10] sm:$0xff]
                  %1089 = vst [vmem:[%s765 + $0x508] sm:$0xff] %v1088
                  %v1090 = vld [vmem:[%s764 + $0xa20] sm:$0xff]
                  %1091 = vst [vmem:[%s765 + $0x510] sm:$0xff] %v1090
                  %v1092 = vld [vmem:[%s764 + $0xa30] sm:$0xff]
                  %1093 = vst [vmem:[%s765 + $0x518] sm:$0xff] %v1092
                  %v1094 = vld [vmem:[%s764 + $0xa40] sm:$0xff]
                  %1095 = vst [vmem:[%s765 + $0x520] sm:$0xff] %v1094
                  %v1096 = vld [vmem:[%s764 + $0xa50] sm:$0xff]
                  %1097 = vst [vmem:[%s765 + $0x528] sm:$0xff] %v1096
                  %v1098 = vld [vmem:[%s764 + $0xa60] sm:$0xff]
                  %1099 = vst [vmem:[%s765 + $0x530] sm:$0xff] %v1098
                  %v1100 = vld [vmem:[%s764 + $0xa70] sm:$0xff]
                  %1101 = vst [vmem:[%s765 + $0x538] sm:$0xff] %v1100
                  %v1102 = vld [vmem:[%s764 + $0xa80] sm:$0xff]
                  %1103 = vst [vmem:[%s765 + $0x540] sm:$0xff] %v1102
                  %v1104 = vld [vmem:[%s764 + $0xa90] sm:$0xff]
                  %1105 = vst [vmem:[%s765 + $0x548] sm:$0xff] %v1104
                  %v1106 = vld [vmem:[%s764 + $0xaa0] sm:$0xff]
                  %1107 = vst [vmem:[%s765 + $0x550] sm:$0xff] %v1106
                  %v1108 = vld [vmem:[%s764 + $0xab0] sm:$0xff]
                  %1109 = vst [vmem:[%s765 + $0x558] sm:$0xff] %v1108
                  %v1110 = vld [vmem:[%s764 + $0xac0] sm:$0xff]
                  %1111 = vst [vmem:[%s765 + $0x560] sm:$0xff] %v1110
                  %v1112 = vld [vmem:[%s764 + $0xad0] sm:$0xff]
                  %1113 = vst [vmem:[%s765 + $0x568] sm:$0xff] %v1112
                  %v1114 = vld [vmem:[%s764 + $0xae0] sm:$0xff]
                  %1115 = vst [vmem:[%s765 + $0x570] sm:$0xff] %v1114
                  %v1116 = vld [vmem:[%s764 + $0xaf0] sm:$0xff]
                  %1117 = vst [vmem:[%s765 + $0x578] sm:$0xff] %v1116
                  %v1118 = vld [vmem:[%s764 + $0xb00] sm:$0xff]
                  %1119 = vst [vmem:[%s765 + $0x580] sm:$0xff] %v1118
                  %v1120 = vld [vmem:[%s764 + $0xb10] sm:$0xff]
                  %1121 = vst [vmem:[%s765 + $0x588] sm:$0xff] %v1120
                  %v1122 = vld [vmem:[%s764 + $0xb20] sm:$0xff]
                  %1123 = vst [vmem:[%s765 + $0x590] sm:$0xff] %v1122
                  %v1124 = vld [vmem:[%s764 + $0xb30] sm:$0xff]
                  %1125 = vst [vmem:[%s765 + $0x598] sm:$0xff] %v1124
                  %v1126 = vld [vmem:[%s764 + $0xb40] sm:$0xff]
                  %1127 = vst [vmem:[%s765 + $0x5a0] sm:$0xff] %v1126
                  %v1128 = vld [vmem:[%s764 + $0xb50] sm:$0xff]
                  %1129 = vst [vmem:[%s765 + $0x5a8] sm:$0xff] %v1128
                  %v1130 = vld [vmem:[%s764 + $0xb60] sm:$0xff]
                  %1131 = vst [vmem:[%s765 + $0x5b0] sm:$0xff] %v1130
                  %v1132 = vld [vmem:[%s764 + $0xb70] sm:$0xff]
                  %1133 = vst [vmem:[%s765 + $0x5b8] sm:$0xff] %v1132
                  %v1134 = vld [vmem:[%s764 + $0xb80] sm:$0xff]
                  %1135 = vst [vmem:[%s765 + $0x5c0] sm:$0xff] %v1134
                  %v1136 = vld [vmem:[%s764 + $0xb90] sm:$0xff]
                  %1137 = vst [vmem:[%s765 + $0x5c8] sm:$0xff] %v1136
                  %v1138 = vld [vmem:[%s764 + $0xba0] sm:$0xff]
                  %1139 = vst [vmem:[%s765 + $0x5d0] sm:$0xff] %v1138
                  %v1140 = vld [vmem:[%s764 + $0xbb0] sm:$0xff]
                  %1141 = vst [vmem:[%s765 + $0x5d8] sm:$0xff] %v1140
                  %v1142 = vld [vmem:[%s764 + $0xbc0] sm:$0xff]
                  %1143 = vst [vmem:[%s765 + $0x5e0] sm:$0xff] %v1142
                  %v1144 = vld [vmem:[%s764 + $0xbd0] sm:$0xff]
                  %1145 = vst [vmem:[%s765 + $0x5e8] sm:$0xff] %v1144
                  %v1146 = vld [vmem:[%s764 + $0xbe0] sm:$0xff]
                  %1147 = vst [vmem:[%s765 + $0x5f0] sm:$0xff] %v1146
                  %v1148 = vld [vmem:[%s764 + $0xbf0] sm:$0xff]
                  %1149 = vst [vmem:[%s765 + $0x5f8] sm:$0xff] %v1148
                  %v1150 = vld [vmem:[%s764 + $0xc00] sm:$0xff]
                  %1151 = vst [vmem:[%s765 + $0x600] sm:$0xff] %v1150
                  %v1152 = vld [vmem:[%s764 + $0xc10] sm:$0xff]
                  %1153 = vst [vmem:[%s765 + $0x608] sm:$0xff] %v1152
                  %v1154 = vld [vmem:[%s764 + $0xc20] sm:$0xff]
                  %1155 = vst [vmem:[%s765 + $0x610] sm:$0xff] %v1154
                  %v1156 = vld [vmem:[%s764 + $0xc30] sm:$0xff]
                  %1157 = vst [vmem:[%s765 + $0x618] sm:$0xff] %v1156
                  %v1158 = vld [vmem:[%s764 + $0xc40] sm:$0xff]
                  %1159 = vst [vmem:[%s765 + $0x620] sm:$0xff] %v1158
                  %v1160 = vld [vmem:[%s764 + $0xc50] sm:$0xff]
                  %1161 = vst [vmem:[%s765 + $0x628] sm:$0xff] %v1160
                  %v1162 = vld [vmem:[%s764 + $0xc60] sm:$0xff]
                  %1163 = vst [vmem:[%s765 + $0x630] sm:$0xff] %v1162
                  %v1164 = vld [vmem:[%s764 + $0xc70] sm:$0xff]
                  %1165 = vst [vmem:[%s765 + $0x638] sm:$0xff] %v1164
                  %v1166 = vld [vmem:[%s764 + $0xc80] sm:$0xff]
                  %1167 = vst [vmem:[%s765 + $0x640] sm:$0xff] %v1166
                  %v1168 = vld [vmem:[%s764 + $0xc90] sm:$0xff]
                  %1169 = vst [vmem:[%s765 + $0x648] sm:$0xff] %v1168
                  %v1170 = vld [vmem:[%s764 + $0xca0] sm:$0xff]
                  %1171 = vst [vmem:[%s765 + $0x650] sm:$0xff] %v1170
                  %v1172 = vld [vmem:[%s764 + $0xcb0] sm:$0xff]
                  %1173 = vst [vmem:[%s765 + $0x658] sm:$0xff] %v1172
                  %v1174 = vld [vmem:[%s764 + $0xcc0] sm:$0xff]
                  %1175 = vst [vmem:[%s765 + $0x660] sm:$0xff] %v1174
                  %v1176 = vld [vmem:[%s764 + $0xcd0] sm:$0xff]
                  %1177 = vst [vmem:[%s765 + $0x668] sm:$0xff] %v1176
                  %v1178 = vld [vmem:[%s764 + $0xce0] sm:$0xff]
                  %1179 = vst [vmem:[%s765 + $0x670] sm:$0xff] %v1178
                  %v1180 = vld [vmem:[%s764 + $0xcf0] sm:$0xff]
                  %1181 = vst [vmem:[%s765 + $0x678] sm:$0xff] %v1180
                  %v1182 = vld [vmem:[%s764 + $0xd00] sm:$0xff]
                  %1183 = vst [vmem:[%s765 + $0x680] sm:$0xff] %v1182
                  %v1184 = vld [vmem:[%s764 + $0xd10] sm:$0xff]
                  %1185 = vst [vmem:[%s765 + $0x688] sm:$0xff] %v1184
                  %v1186 = vld [vmem:[%s764 + $0xd20] sm:$0xff]
                  %1187 = vst [vmem:[%s765 + $0x690] sm:$0xff] %v1186
                  %v1188 = vld [vmem:[%s764 + $0xd30] sm:$0xff]
                  %1189 = vst [vmem:[%s765 + $0x698] sm:$0xff] %v1188
                  %v1190 = vld [vmem:[%s764 + $0xd40] sm:$0xff]
                  %1191 = vst [vmem:[%s765 + $0x6a0] sm:$0xff] %v1190
                  %v1192 = vld [vmem:[%s764 + $0xd50] sm:$0xff]
                  %1193 = vst [vmem:[%s765 + $0x6a8] sm:$0xff] %v1192
                  %v1194 = vld [vmem:[%s764 + $0xd60] sm:$0xff]
                  %1195 = vst [vmem:[%s765 + $0x6b0] sm:$0xff] %v1194
                  %v1196 = vld [vmem:[%s764 + $0xd70] sm:$0xff]
                  %1197 = vst [vmem:[%s765 + $0x6b8] sm:$0xff] %v1196
                  %v1198 = vld [vmem:[%s764 + $0xd80] sm:$0xff]
                  %1199 = vst [vmem:[%s765 + $0x6c0] sm:$0xff] %v1198
                  %v1200 = vld [vmem:[%s764 + $0xd90] sm:$0xff]
                  %1201 = vst [vmem:[%s765 + $0x6c8] sm:$0xff] %v1200
                  %v1202 = vld [vmem:[%s764 + $0xda0] sm:$0xff]
                  %1203 = vst [vmem:[%s765 + $0x6d0] sm:$0xff] %v1202
                  %v1204 = vld [vmem:[%s764 + $0xdb0] sm:$0xff]
                  %1205 = vst [vmem:[%s765 + $0x6d8] sm:$0xff] %v1204
                  %v1206 = vld [vmem:[%s764 + $0xdc0] sm:$0xff]
                  %1207 = vst [vmem:[%s765 + $0x6e0] sm:$0xff] %v1206
                  %v1208 = vld [vmem:[%s764 + $0xdd0] sm:$0xff]
                  %1209 = vst [vmem:[%s765 + $0x6e8] sm:$0xff] %v1208
                  %v1210 = vld [vmem:[%s764 + $0xde0] sm:$0xff]
                  %1211 = vst [vmem:[%s765 + $0x6f0] sm:$0xff] %v1210
                  %v1212 = vld [vmem:[%s764 + $0xdf0] sm:$0xff]
                  %1213 = vst [vmem:[%s765 + $0x6f8] sm:$0xff] %v1212
                  %v1214 = vld [vmem:[%s764 + $0xe00] sm:$0xff]
                  %1215 = vst [vmem:[%s765 + $0x700] sm:$0xff] %v1214
                  %v1216 = vld [vmem:[%s764 + $0xe10] sm:$0xff]
                  %1217 = vst [vmem:[%s765 + $0x708] sm:$0xff] %v1216
                  %v1218 = vld [vmem:[%s764 + $0xe20] sm:$0xff]
                  %1219 = vst [vmem:[%s765 + $0x710] sm:$0xff] %v1218
                  %v1220 = vld [vmem:[%s764 + $0xe30] sm:$0xff]
                  %1221 = vst [vmem:[%s765 + $0x718] sm:$0xff] %v1220
                  %v1222 = vld [vmem:[%s764 + $0xe40] sm:$0xff]
                  %1223 = vst [vmem:[%s765 + $0x720] sm:$0xff] %v1222
                  %v1224 = vld [vmem:[%s764 + $0xe50] sm:$0xff]
                  %1225 = vst [vmem:[%s765 + $0x728] sm:$0xff] %v1224
                  %v1226 = vld [vmem:[%s764 + $0xe60] sm:$0xff]
                  %1227 = vst [vmem:[%s765 + $0x730] sm:$0xff] %v1226
                  %v1228 = vld [vmem:[%s764 + $0xe70] sm:$0xff]
                  %1229 = vst [vmem:[%s765 + $0x738] sm:$0xff] %v1228
                  %v1230 = vld [vmem:[%s764 + $0xe80] sm:$0xff]
                  %1231 = vst [vmem:[%s765 + $0x740] sm:$0xff] %v1230
                  %v1232 = vld [vmem:[%s764 + $0xe90] sm:$0xff]
                  %1233 = vst [vmem:[%s765 + $0x748] sm:$0xff] %v1232
                  %v1234 = vld [vmem:[%s764 + $0xea0] sm:$0xff]
                  %1235 = vst [vmem:[%s765 + $0x750] sm:$0xff] %v1234
                  %v1236 = vld [vmem:[%s764 + $0xeb0] sm:$0xff]
                  %1237 = vst [vmem:[%s765 + $0x758] sm:$0xff] %v1236
                  %v1238 = vld [vmem:[%s764 + $0xec0] sm:$0xff]
                  %1239 = vst [vmem:[%s765 + $0x760] sm:$0xff] %v1238
                  %v1240 = vld [vmem:[%s764 + $0xed0] sm:$0xff]
                  %1241 = vst [vmem:[%s765 + $0x768] sm:$0xff] %v1240
                  %v1242 = vld [vmem:[%s764 + $0xee0] sm:$0xff]
                  %1243 = vst [vmem:[%s765 + $0x770] sm:$0xff] %v1242
                  %v1244 = vld [vmem:[%s764 + $0xef0] sm:$0xff]
                  %1245 = vst [vmem:[%s765 + $0x778] sm:$0xff] %v1244
                  %v1246 = vld [vmem:[%s764 + $0xf00] sm:$0xff]
                  %1247 = vst [vmem:[%s765 + $0x780] sm:$0xff] %v1246
                  %v1248 = vld [vmem:[%s764 + $0xf10] sm:$0xff]
                  %1249 = vst [vmem:[%s765 + $0x788] sm:$0xff] %v1248
                  %v1250 = vld [vmem:[%s764 + $0xf20] sm:$0xff]
                  %1251 = vst [vmem:[%s765 + $0x790] sm:$0xff] %v1250
                  %v1252 = vld [vmem:[%s764 + $0xf30] sm:$0xff]
                  %1253 = vst [vmem:[%s765 + $0x798] sm:$0xff] %v1252
                  %v1254 = vld [vmem:[%s764 + $0xf40] sm:$0xff]
                  %1255 = vst [vmem:[%s765 + $0x7a0] sm:$0xff] %v1254
                  %v1256 = vld [vmem:[%s764 + $0xf50] sm:$0xff]
                  %1257 = vst [vmem:[%s765 + $0x7a8] sm:$0xff] %v1256
                  %v1258 = vld [vmem:[%s764 + $0xf60] sm:$0xff]
                  %1259 = vst [vmem:[%s765 + $0x7b0] sm:$0xff] %v1258
                  %v1260 = vld [vmem:[%s764 + $0xf70] sm:$0xff]
                  %1261 = vst [vmem:[%s765 + $0x7b8] sm:$0xff] %v1260
                  %v1262 = vld [vmem:[%s764 + $0xf80] sm:$0xff]
                  %1263 = vst [vmem:[%s765 + $0x7c0] sm:$0xff] %v1262
                  %v1264 = vld [vmem:[%s764 + $0xf90] sm:$0xff]
                  %1265 = vst [vmem:[%s765 + $0x7c8] sm:$0xff] %v1264
                  %v1266 = vld [vmem:[%s764 + $0xfa0] sm:$0xff]
                  %1267 = vst [vmem:[%s765 + $0x7d0] sm:$0xff] %v1266
                  %v1268 = vld [vmem:[%s764 + $0xfb0] sm:$0xff]
                  %1269 = vst [vmem:[%s765 + $0x7d8] sm:$0xff] %v1268
                  %v1270 = vld [vmem:[%s764 + $0xfc0] sm:$0xff]
                  %1271 = vst [vmem:[%s765 + $0x7e0] sm:$0xff] %v1270
                  %v1272 = vld [vmem:[%s764 + $0xfd0] sm:$0xff]
                  %1273 = vst [vmem:[%s765 + $0x7e8] sm:$0xff] %v1272
                  %v1274 = vld [vmem:[%s764 + $0xfe0] sm:$0xff]
                  %1275 = vst [vmem:[%s765 + $0x7f0] sm:$0xff] %v1274
                  %v1276 = vld [vmem:[%s764 + $0xff0] sm:$0xff]
                  %1277 = vst [vmem:[%s765 + $0x7f8] sm:$0xff] %v1276
                  %v1278 = vld [vmem:[%s764 + $0x1000] sm:$0xff]
                  %1279 = vst [vmem:[%s765 + $0x800] sm:$0xff] %v1278
                  %v1280 = vld [vmem:[%s764 + $0x1010] sm:$0xff]
                  %1281 = vst [vmem:[%s765 + $0x808] sm:$0xff] %v1280
                  %v1282 = vld [vmem:[%s764 + $0x1020] sm:$0xff]
                  %1283 = vst [vmem:[%s765 + $0x810] sm:$0xff] %v1282
                  %v1284 = vld [vmem:[%s764 + $0x1030] sm:$0xff]
                  %1285 = vst [vmem:[%s765 + $0x818] sm:$0xff] %v1284
                  %v1286 = vld [vmem:[%s764 + $0x1040] sm:$0xff]
                  %1287 = vst [vmem:[%s765 + $0x820] sm:$0xff] %v1286
                  %v1288 = vld [vmem:[%s764 + $0x1050] sm:$0xff]
                  %1289 = vst [vmem:[%s765 + $0x828] sm:$0xff] %v1288
                  %v1290 = vld [vmem:[%s764 + $0x1060] sm:$0xff]
                  %1291 = vst [vmem:[%s765 + $0x830] sm:$0xff] %v1290
                  %v1292 = vld [vmem:[%s764 + $0x1070] sm:$0xff]
                  %1293 = vst [vmem:[%s765 + $0x838] sm:$0xff] %v1292
                  %v1294 = vld [vmem:[%s764 + $0x1080] sm:$0xff]
                  %1295 = vst [vmem:[%s765 + $0x840] sm:$0xff] %v1294
                  %v1296 = vld [vmem:[%s764 + $0x1090] sm:$0xff]
                  %1297 = vst [vmem:[%s765 + $0x848] sm:$0xff] %v1296
                  %v1298 = vld [vmem:[%s764 + $0x10a0] sm:$0xff]
                  %1299 = vst [vmem:[%s765 + $0x850] sm:$0xff] %v1298
                  %v1300 = vld [vmem:[%s764 + $0x10b0] sm:$0xff]
                  %1301 = vst [vmem:[%s765 + $0x858] sm:$0xff] %v1300
                  %v1302 = vld [vmem:[%s764 + $0x10c0] sm:$0xff]
                  %1303 = vst [vmem:[%s765 + $0x860] sm:$0xff] %v1302
                  %v1304 = vld [vmem:[%s764 + $0x10d0] sm:$0xff]
                  %1305 = vst [vmem:[%s765 + $0x868] sm:$0xff] %v1304
                  %v1306 = vld [vmem:[%s764 + $0x10e0] sm:$0xff]
                  %1307 = vst [vmem:[%s765 + $0x870] sm:$0xff] %v1306
                  %v1308 = vld [vmem:[%s764 + $0x10f0] sm:$0xff]
                  %1309 = vst [vmem:[%s765 + $0x878] sm:$0xff] %v1308
                  %v1310 = vld [vmem:[%s764 + $0x1100] sm:$0xff]
                  %1311 = vst [vmem:[%s765 + $0x880] sm:$0xff] %v1310
                  %v1312 = vld [vmem:[%s764 + $0x1110] sm:$0xff]
                  %1313 = vst [vmem:[%s765 + $0x888] sm:$0xff] %v1312
                  %v1314 = vld [vmem:[%s764 + $0x1120] sm:$0xff]
                  %1315 = vst [vmem:[%s765 + $0x890] sm:$0xff] %v1314
                  %v1316 = vld [vmem:[%s764 + $0x1130] sm:$0xff]
                  %1317 = vst [vmem:[%s765 + $0x898] sm:$0xff] %v1316
                  %v1318 = vld [vmem:[%s764 + $0x1140] sm:$0xff]
                  %1319 = vst [vmem:[%s765 + $0x8a0] sm:$0xff] %v1318
                  %v1320 = vld [vmem:[%s764 + $0x1150] sm:$0xff]
                  %1321 = vst [vmem:[%s765 + $0x8a8] sm:$0xff] %v1320
                  %v1322 = vld [vmem:[%s764 + $0x1160] sm:$0xff]
                  %1323 = vst [vmem:[%s765 + $0x8b0] sm:$0xff] %v1322
                  %v1324 = vld [vmem:[%s764 + $0x1170] sm:$0xff]
                  %1325 = vst [vmem:[%s765 + $0x8b8] sm:$0xff] %v1324
                  %v1326 = vld [vmem:[%s764 + $0x1180] sm:$0xff]
                  %1327 = vst [vmem:[%s765 + $0x8c0] sm:$0xff] %v1326
                  %v1328 = vld [vmem:[%s764 + $0x1190] sm:$0xff]
                  %1329 = vst [vmem:[%s765 + $0x8c8] sm:$0xff] %v1328
                  %v1330 = vld [vmem:[%s764 + $0x11a0] sm:$0xff]
                  %1331 = vst [vmem:[%s765 + $0x8d0] sm:$0xff] %v1330
                  %v1332 = vld [vmem:[%s764 + $0x11b0] sm:$0xff]
                  %1333 = vst [vmem:[%s765 + $0x8d8] sm:$0xff] %v1332
                  %v1334 = vld [vmem:[%s764 + $0x11c0] sm:$0xff]
                  %1335 = vst [vmem:[%s765 + $0x8e0] sm:$0xff] %v1334
                  %v1336 = vld [vmem:[%s764 + $0x11d0] sm:$0xff]
                  %1337 = vst [vmem:[%s765 + $0x8e8] sm:$0xff] %v1336
                  %v1338 = vld [vmem:[%s764 + $0x11e0] sm:$0xff]
                  %1339 = vst [vmem:[%s765 + $0x8f0] sm:$0xff] %v1338
                  %v1340 = vld [vmem:[%s764 + $0x11f0] sm:$0xff]
                  %1341 = vst [vmem:[%s765 + $0x8f8] sm:$0xff] %v1340
                $region52: #{discriminator_forward.8} parent=46 // loop_footer
                  %s763 = sadd.s32 1, %s759
                $region53: #{discriminator_forward.8} parent=46 // loop_footer_branch
                  %758 = sbr.rel target = $region49
                $region54: #{discriminator_forward.8} parent=46 // loop_exit
                  _
              $region47: #{discriminator_forward.8} parent=31 // pred_fallthru
                _
              // Predicated region
              $region55: #{discriminator_forward.8} parent=31 // pred_check
                _
              $region56: #{discriminator_forward.8} parent=31 // pred_check_branch
                %1343 = sbr.rel target = $region58
              $region57: #{discriminator_forward.8} parent=31 // pred_region
                _
              $region58: #{discriminator_forward.8} parent=31 // pred_fallthru
                _
            $region32: #{discriminator_forward.8} parent=27 // pred_fallthru
              _
            // Predicated region
            $region33: #{discriminator_forward.8} parent=27 // pred_check
              _
            $region34: #{discriminator_forward.8} parent=27 // pred_check_branch
              %169 = sbr.rel target = $region36
            $region35: #{discriminator_forward.8} parent=27 // pred_region
              %s171 = ssub.s32 256, 1
              loop: start=0, step=1, limit=1
              $region37: #{discriminator_forward.8} parent=35 // loop_pre_header
                _
              $region38: #{discriminator_forward.8} parent=35 // loop_header
                %s173 = sphi 0, %s177
                %p174 = scmp.ge.s32.totalorder %s173, 1
                %s178 = sphi %s163, %s163
                %s179 = sphi %s160, %s160
              $region39: #{discriminator_forward.8} parent=35 // loop_header_branch
                %176 = sbr.rel (%p174) target = $region43
              $region40: #{discriminator_forward.8} parent=35 // loop_body
                %v180 = vld [vmem:[%s178] sm:%s171]
                %181 = vst [vmem:[%s179] sm:%s171] %v180
                %v182 = vld [vmem:[%s178 + $0x10] sm:%s171]
                %183 = vst [vmem:[%s179 + $0x8] sm:%s171] %v182
                %v184 = vld [vmem:[%s178 + $0x20] sm:%s171]
                %185 = vst [vmem:[%s179 + $0x10] sm:%s171] %v184
                %v186 = vld [vmem:[%s178 + $0x30] sm:%s171]
                %187 = vst [vmem:[%s179 + $0x18] sm:%s171] %v186
                %v188 = vld [vmem:[%s178 + $0x40] sm:%s171]
                %189 = vst [vmem:[%s179 + $0x20] sm:%s171] %v188
                %v190 = vld [vmem:[%s178 + $0x50] sm:%s171]
                %191 = vst [vmem:[%s179 + $0x28] sm:%s171] %v190
                %v192 = vld [vmem:[%s178 + $0x60] sm:%s171]
                %193 = vst [vmem:[%s179 + $0x30] sm:%s171] %v192
                %v194 = vld [vmem:[%s178 + $0x70] sm:%s171]
                %195 = vst [vmem:[%s179 + $0x38] sm:%s171] %v194
                %v196 = vld [vmem:[%s178 + $0x80] sm:%s171]
                %197 = vst [vmem:[%s179 + $0x40] sm:%s171] %v196
                %v198 = vld [vmem:[%s178 + $0x90] sm:%s171]
                %199 = vst [vmem:[%s179 + $0x48] sm:%s171] %v198
                %v200 = vld [vmem:[%s178 + $0xa0] sm:%s171]
                %201 = vst [vmem:[%s179 + $0x50] sm:%s171] %v200
                %v202 = vld [vmem:[%s178 + $0xb0] sm:%s171]
                %203 = vst [vmem:[%s179 + $0x58] sm:%s171] %v202
                %v204 = vld [vmem:[%s178 + $0xc0] sm:%s171]
                %205 = vst [vmem:[%s179 + $0x60] sm:%s171] %v204
                %v206 = vld [vmem:[%s178 + $0xd0] sm:%s171]
                %207 = vst [vmem:[%s179 + $0x68] sm:%s171] %v206
                %v208 = vld [vmem:[%s178 + $0xe0] sm:%s171]
                %209 = vst [vmem:[%s179 + $0x70] sm:%s171] %v208
                %v210 = vld [vmem:[%s178 + $0xf0] sm:%s171]
                %211 = vst [vmem:[%s179 + $0x78] sm:%s171] %v210
                %v212 = vld [vmem:[%s178 + $0x100] sm:%s171]
                %213 = vst [vmem:[%s179 + $0x80] sm:%s171] %v212
                %v214 = vld [vmem:[%s178 + $0x110] sm:%s171]
                %215 = vst [vmem:[%s179 + $0x88] sm:%s171] %v214
                %v216 = vld [vmem:[%s178 + $0x120] sm:%s171]
                %217 = vst [vmem:[%s179 + $0x90] sm:%s171] %v216
                %v218 = vld [vmem:[%s178 + $0x130] sm:%s171]
                %219 = vst [vmem:[%s179 + $0x98] sm:%s171] %v218
                %v220 = vld [vmem:[%s178 + $0x140] sm:%s171]
                %221 = vst [vmem:[%s179 + $0xa0] sm:%s171] %v220
                %v222 = vld [vmem:[%s178 + $0x150] sm:%s171]
                %223 = vst [vmem:[%s179 + $0xa8] sm:%s171] %v222
                %v224 = vld [vmem:[%s178 + $0x160] sm:%s171]
                %225 = vst [vmem:[%s179 + $0xb0] sm:%s171] %v224
                %v226 = vld [vmem:[%s178 + $0x170] sm:%s171]
                %227 = vst [vmem:[%s179 + $0xb8] sm:%s171] %v226
                %v228 = vld [vmem:[%s178 + $0x180] sm:%s171]
                %229 = vst [vmem:[%s179 + $0xc0] sm:%s171] %v228
                %v230 = vld [vmem:[%s178 + $0x190] sm:%s171]
                %231 = vst [vmem:[%s179 + $0xc8] sm:%s171] %v230
                %v232 = vld [vmem:[%s178 + $0x1a0] sm:%s171]
                %233 = vst [vmem:[%s179 + $0xd0] sm:%s171] %v232
                %v234 = vld [vmem:[%s178 + $0x1b0] sm:%s171]
                %235 = vst [vmem:[%s179 + $0xd8] sm:%s171] %v234
                %v236 = vld [vmem:[%s178 + $0x1c0] sm:%s171]
                %237 = vst [vmem:[%s179 + $0xe0] sm:%s171] %v236
                %v238 = vld [vmem:[%s178 + $0x1d0] sm:%s171]
                %239 = vst [vmem:[%s179 + $0xe8] sm:%s171] %v238
                %v240 = vld [vmem:[%s178 + $0x1e0] sm:%s171]
                %241 = vst [vmem:[%s179 + $0xf0] sm:%s171] %v240
                %v242 = vld [vmem:[%s178 + $0x1f0] sm:%s171]
                %243 = vst [vmem:[%s179 + $0xf8] sm:%s171] %v242
                %v244 = vld [vmem:[%s178 + $0x200] sm:%s171]
                %245 = vst [vmem:[%s179 + $0x100] sm:%s171] %v244
                %v246 = vld [vmem:[%s178 + $0x210] sm:%s171]
                %247 = vst [vmem:[%s179 + $0x108] sm:%s171] %v246
                %v248 = vld [vmem:[%s178 + $0x220] sm:%s171]
                %249 = vst [vmem:[%s179 + $0x110] sm:%s171] %v248
                %v250 = vld [vmem:[%s178 + $0x230] sm:%s171]
                %251 = vst [vmem:[%s179 + $0x118] sm:%s171] %v250
                %v252 = vld [vmem:[%s178 + $0x240] sm:%s171]
                %253 = vst [vmem:[%s179 + $0x120] sm:%s171] %v252
                %v254 = vld [vmem:[%s178 + $0x250] sm:%s171]
                %255 = vst [vmem:[%s179 + $0x128] sm:%s171] %v254
                %v256 = vld [vmem:[%s178 + $0x260] sm:%s171]
                %257 = vst [vmem:[%s179 + $0x130] sm:%s171] %v256
                %v258 = vld [vmem:[%s178 + $0x270] sm:%s171]
                %259 = vst [vmem:[%s179 + $0x138] sm:%s171] %v258
                %v260 = vld [vmem:[%s178 + $0x280] sm:%s171]
                %261 = vst [vmem:[%s179 + $0x140] sm:%s171] %v260
                %v262 = vld [vmem:[%s178 + $0x290] sm:%s171]
                %263 = vst [vmem:[%s179 + $0x148] sm:%s171] %v262
                %v264 = vld [vmem:[%s178 + $0x2a0] sm:%s171]
                %265 = vst [vmem:[%s179 + $0x150] sm:%s171] %v264
                %v266 = vld [vmem:[%s178 + $0x2b0] sm:%s171]
                %267 = vst [vmem:[%s179 + $0x158] sm:%s171] %v266
                %v268 = vld [vmem:[%s178 + $0x2c0] sm:%s171]
                %269 = vst [vmem:[%s179 + $0x160] sm:%s171] %v268
                %v270 = vld [vmem:[%s178 + $0x2d0] sm:%s171]
                %271 = vst [vmem:[%s179 + $0x168] sm:%s171] %v270
                %v272 = vld [vmem:[%s178 + $0x2e0] sm:%s171]
                %273 = vst [vmem:[%s179 + $0x170] sm:%s171] %v272
                %v274 = vld [vmem:[%s178 + $0x2f0] sm:%s171]
                %275 = vst [vmem:[%s179 + $0x178] sm:%s171] %v274
                %v276 = vld [vmem:[%s178 + $0x300] sm:%s171]
                %277 = vst [vmem:[%s179 + $0x180] sm:%s171] %v276
                %v278 = vld [vmem:[%s178 + $0x310] sm:%s171]
                %279 = vst [vmem:[%s179 + $0x188] sm:%s171] %v278
                %v280 = vld [vmem:[%s178 + $0x320] sm:%s171]
                %281 = vst [vmem:[%s179 + $0x190] sm:%s171] %v280
                %v282 = vld [vmem:[%s178 + $0x330] sm:%s171]
                %283 = vst [vmem:[%s179 + $0x198] sm:%s171] %v282
                %v284 = vld [vmem:[%s178 + $0x340] sm:%s171]
                %285 = vst [vmem:[%s179 + $0x1a0] sm:%s171] %v284
                %v286 = vld [vmem:[%s178 + $0x350] sm:%s171]
                %287 = vst [vmem:[%s179 + $0x1a8] sm:%s171] %v286
                %v288 = vld [vmem:[%s178 + $0x360] sm:%s171]
                %289 = vst [vmem:[%s179 + $0x1b0] sm:%s171] %v288
                %v290 = vld [vmem:[%s178 + $0x370] sm:%s171]
                %291 = vst [vmem:[%s179 + $0x1b8] sm:%s171] %v290
                %v292 = vld [vmem:[%s178 + $0x380] sm:%s171]
                %293 = vst [vmem:[%s179 + $0x1c0] sm:%s171] %v292
                %v294 = vld [vmem:[%s178 + $0x390] sm:%s171]
                %295 = vst [vmem:[%s179 + $0x1c8] sm:%s171] %v294
                %v296 = vld [vmem:[%s178 + $0x3a0] sm:%s171]
                %297 = vst [vmem:[%s179 + $0x1d0] sm:%s171] %v296
                %v298 = vld [vmem:[%s178 + $0x3b0] sm:%s171]
                %299 = vst [vmem:[%s179 + $0x1d8] sm:%s171] %v298
                %v300 = vld [vmem:[%s178 + $0x3c0] sm:%s171]
                %301 = vst [vmem:[%s179 + $0x1e0] sm:%s171] %v300
                %v302 = vld [vmem:[%s178 + $0x3d0] sm:%s171]
                %303 = vst [vmem:[%s179 + $0x1e8] sm:%s171] %v302
                %v304 = vld [vmem:[%s178 + $0x3e0] sm:%s171]
                %305 = vst [vmem:[%s179 + $0x1f0] sm:%s171] %v304
                %v306 = vld [vmem:[%s178 + $0x3f0] sm:%s171]
                %307 = vst [vmem:[%s179 + $0x1f8] sm:%s171] %v306
                %v308 = vld [vmem:[%s178 + $0x400] sm:%s171]
                %309 = vst [vmem:[%s179 + $0x200] sm:%s171] %v308
                %v310 = vld [vmem:[%s178 + $0x410] sm:%s171]
                %311 = vst [vmem:[%s179 + $0x208] sm:%s171] %v310
                %v312 = vld [vmem:[%s178 + $0x420] sm:%s171]
                %313 = vst [vmem:[%s179 + $0x210] sm:%s171] %v312
                %v314 = vld [vmem:[%s178 + $0x430] sm:%s171]
                %315 = vst [vmem:[%s179 + $0x218] sm:%s171] %v314
                %v316 = vld [vmem:[%s178 + $0x440] sm:%s171]
                %317 = vst [vmem:[%s179 + $0x220] sm:%s171] %v316
                %v318 = vld [vmem:[%s178 + $0x450] sm:%s171]
                %319 = vst [vmem:[%s179 + $0x228] sm:%s171] %v318
                %v320 = vld [vmem:[%s178 + $0x460] sm:%s171]
                %321 = vst [vmem:[%s179 + $0x230] sm:%s171] %v320
                %v322 = vld [vmem:[%s178 + $0x470] sm:%s171]
                %323 = vst [vmem:[%s179 + $0x238] sm:%s171] %v322
                %v324 = vld [vmem:[%s178 + $0x480] sm:%s171]
                %325 = vst [vmem:[%s179 + $0x240] sm:%s171] %v324
                %v326 = vld [vmem:[%s178 + $0x490] sm:%s171]
                %327 = vst [vmem:[%s179 + $0x248] sm:%s171] %v326
                %v328 = vld [vmem:[%s178 + $0x4a0] sm:%s171]
                %329 = vst [vmem:[%s179 + $0x250] sm:%s171] %v328
                %v330 = vld [vmem:[%s178 + $0x4b0] sm:%s171]
                %331 = vst [vmem:[%s179 + $0x258] sm:%s171] %v330
                %v332 = vld [vmem:[%s178 + $0x4c0] sm:%s171]
                %333 = vst [vmem:[%s179 + $0x260] sm:%s171] %v332
                %v334 = vld [vmem:[%s178 + $0x4d0] sm:%s171]
                %335 = vst [vmem:[%s179 + $0x268] sm:%s171] %v334
                %v336 = vld [vmem:[%s178 + $0x4e0] sm:%s171]
                %337 = vst [vmem:[%s179 + $0x270] sm:%s171] %v336
                %v338 = vld [vmem:[%s178 + $0x4f0] sm:%s171]
                %339 = vst [vmem:[%s179 + $0x278] sm:%s171] %v338
                %v340 = vld [vmem:[%s178 + $0x500] sm:%s171]
                %341 = vst [vmem:[%s179 + $0x280] sm:%s171] %v340
                %v342 = vld [vmem:[%s178 + $0x510] sm:%s171]
                %343 = vst [vmem:[%s179 + $0x288] sm:%s171] %v342
                %v344 = vld [vmem:[%s178 + $0x520] sm:%s171]
                %345 = vst [vmem:[%s179 + $0x290] sm:%s171] %v344
                %v346 = vld [vmem:[%s178 + $0x530] sm:%s171]
                %347 = vst [vmem:[%s179 + $0x298] sm:%s171] %v346
                %v348 = vld [vmem:[%s178 + $0x540] sm:%s171]
                %349 = vst [vmem:[%s179 + $0x2a0] sm:%s171] %v348
                %v350 = vld [vmem:[%s178 + $0x550] sm:%s171]
                %351 = vst [vmem:[%s179 + $0x2a8] sm:%s171] %v350
                %v352 = vld [vmem:[%s178 + $0x560] sm:%s171]
                %353 = vst [vmem:[%s179 + $0x2b0] sm:%s171] %v352
                %v354 = vld [vmem:[%s178 + $0x570] sm:%s171]
                %355 = vst [vmem:[%s179 + $0x2b8] sm:%s171] %v354
                %v356 = vld [vmem:[%s178 + $0x580] sm:%s171]
                %357 = vst [vmem:[%s179 + $0x2c0] sm:%s171] %v356
                %v358 = vld [vmem:[%s178 + $0x590] sm:%s171]
                %359 = vst [vmem:[%s179 + $0x2c8] sm:%s171] %v358
                %v360 = vld [vmem:[%s178 + $0x5a0] sm:%s171]
                %361 = vst [vmem:[%s179 + $0x2d0] sm:%s171] %v360
                %v362 = vld [vmem:[%s178 + $0x5b0] sm:%s171]
                %363 = vst [vmem:[%s179 + $0x2d8] sm:%s171] %v362
                %v364 = vld [vmem:[%s178 + $0x5c0] sm:%s171]
                %365 = vst [vmem:[%s179 + $0x2e0] sm:%s171] %v364
                %v366 = vld [vmem:[%s178 + $0x5d0] sm:%s171]
                %367 = vst [vmem:[%s179 + $0x2e8] sm:%s171] %v366
                %v368 = vld [vmem:[%s178 + $0x5e0] sm:%s171]
                %369 = vst [vmem:[%s179 + $0x2f0] sm:%s171] %v368
                %v370 = vld [vmem:[%s178 + $0x5f0] sm:%s171]
                %371 = vst [vmem:[%s179 + $0x2f8] sm:%s171] %v370
                %v372 = vld [vmem:[%s178 + $0x600] sm:%s171]
                %373 = vst [vmem:[%s179 + $0x300] sm:%s171] %v372
                %v374 = vld [vmem:[%s178 + $0x610] sm:%s171]
                %375 = vst [vmem:[%s179 + $0x308] sm:%s171] %v374
                %v376 = vld [vmem:[%s178 + $0x620] sm:%s171]
                %377 = vst [vmem:[%s179 + $0x310] sm:%s171] %v376
                %v378 = vld [vmem:[%s178 + $0x630] sm:%s171]
                %379 = vst [vmem:[%s179 + $0x318] sm:%s171] %v378
                %v380 = vld [vmem:[%s178 + $0x640] sm:%s171]
                %381 = vst [vmem:[%s179 + $0x320] sm:%s171] %v380
                %v382 = vld [vmem:[%s178 + $0x650] sm:%s171]
                %383 = vst [vmem:[%s179 + $0x328] sm:%s171] %v382
                %v384 = vld [vmem:[%s178 + $0x660] sm:%s171]
                %385 = vst [vmem:[%s179 + $0x330] sm:%s171] %v384
                %v386 = vld [vmem:[%s178 + $0x670] sm:%s171]
                %387 = vst [vmem:[%s179 + $0x338] sm:%s171] %v386
                %v388 = vld [vmem:[%s178 + $0x680] sm:%s171]
                %389 = vst [vmem:[%s179 + $0x340] sm:%s171] %v388
                %v390 = vld [vmem:[%s178 + $0x690] sm:%s171]
                %391 = vst [vmem:[%s179 + $0x348] sm:%s171] %v390
                %v392 = vld [vmem:[%s178 + $0x6a0] sm:%s171]
                %393 = vst [vmem:[%s179 + $0x350] sm:%s171] %v392
                %v394 = vld [vmem:[%s178 + $0x6b0] sm:%s171]
                %395 = vst [vmem:[%s179 + $0x358] sm:%s171] %v394
                %v396 = vld [vmem:[%s178 + $0x6c0] sm:%s171]
                %397 = vst [vmem:[%s179 + $0x360] sm:%s171] %v396
                %v398 = vld [vmem:[%s178 + $0x6d0] sm:%s171]
                %399 = vst [vmem:[%s179 + $0x368] sm:%s171] %v398
                %v400 = vld [vmem:[%s178 + $0x6e0] sm:%s171]
                %401 = vst [vmem:[%s179 + $0x370] sm:%s171] %v400
                %v402 = vld [vmem:[%s178 + $0x6f0] sm:%s171]
                %403 = vst [vmem:[%s179 + $0x378] sm:%s171] %v402
                %v404 = vld [vmem:[%s178 + $0x700] sm:%s171]
                %405 = vst [vmem:[%s179 + $0x380] sm:%s171] %v404
                %v406 = vld [vmem:[%s178 + $0x710] sm:%s171]
                %407 = vst [vmem:[%s179 + $0x388] sm:%s171] %v406
                %v408 = vld [vmem:[%s178 + $0x720] sm:%s171]
                %409 = vst [vmem:[%s179 + $0x390] sm:%s171] %v408
                %v410 = vld [vmem:[%s178 + $0x730] sm:%s171]
                %411 = vst [vmem:[%s179 + $0x398] sm:%s171] %v410
                %v412 = vld [vmem:[%s178 + $0x740] sm:%s171]
                %413 = vst [vmem:[%s179 + $0x3a0] sm:%s171] %v412
                %v414 = vld [vmem:[%s178 + $0x750] sm:%s171]
                %415 = vst [vmem:[%s179 + $0x3a8] sm:%s171] %v414
                %v416 = vld [vmem:[%s178 + $0x760] sm:%s171]
                %417 = vst [vmem:[%s179 + $0x3b0] sm:%s171] %v416
                %v418 = vld [vmem:[%s178 + $0x770] sm:%s171]
                %419 = vst [vmem:[%s179 + $0x3b8] sm:%s171] %v418
                %v420 = vld [vmem:[%s178 + $0x780] sm:%s171]
                %421 = vst [vmem:[%s179 + $0x3c0] sm:%s171] %v420
                %v422 = vld [vmem:[%s178 + $0x790] sm:%s171]
                %423 = vst [vmem:[%s179 + $0x3c8] sm:%s171] %v422
                %v424 = vld [vmem:[%s178 + $0x7a0] sm:%s171]
                %425 = vst [vmem:[%s179 + $0x3d0] sm:%s171] %v424
                %v426 = vld [vmem:[%s178 + $0x7b0] sm:%s171]
                %427 = vst [vmem:[%s179 + $0x3d8] sm:%s171] %v426
                %v428 = vld [vmem:[%s178 + $0x7c0] sm:%s171]
                %429 = vst [vmem:[%s179 + $0x3e0] sm:%s171] %v428
                %v430 = vld [vmem:[%s178 + $0x7d0] sm:%s171]
                %431 = vst [vmem:[%s179 + $0x3e8] sm:%s171] %v430
                %v432 = vld [vmem:[%s178 + $0x7e0] sm:%s171]
                %433 = vst [vmem:[%s179 + $0x3f0] sm:%s171] %v432
                %v434 = vld [vmem:[%s178 + $0x7f0] sm:%s171]
                %435 = vst [vmem:[%s179 + $0x3f8] sm:%s171] %v434
                %v436 = vld [vmem:[%s178 + $0x800] sm:%s171]
                %437 = vst [vmem:[%s179 + $0x400] sm:%s171] %v436
                %v438 = vld [vmem:[%s178 + $0x810] sm:%s171]
                %439 = vst [vmem:[%s179 + $0x408] sm:%s171] %v438
                %v440 = vld [vmem:[%s178 + $0x820] sm:%s171]
                %441 = vst [vmem:[%s179 + $0x410] sm:%s171] %v440
                %v442 = vld [vmem:[%s178 + $0x830] sm:%s171]
                %443 = vst [vmem:[%s179 + $0x418] sm:%s171] %v442
                %v444 = vld [vmem:[%s178 + $0x840] sm:%s171]
                %445 = vst [vmem:[%s179 + $0x420] sm:%s171] %v444
                %v446 = vld [vmem:[%s178 + $0x850] sm:%s171]
                %447 = vst [vmem:[%s179 + $0x428] sm:%s171] %v446
                %v448 = vld [vmem:[%s178 + $0x860] sm:%s171]
                %449 = vst [vmem:[%s179 + $0x430] sm:%s171] %v448
                %v450 = vld [vmem:[%s178 + $0x870] sm:%s171]
                %451 = vst [vmem:[%s179 + $0x438] sm:%s171] %v450
                %v452 = vld [vmem:[%s178 + $0x880] sm:%s171]
                %453 = vst [vmem:[%s179 + $0x440] sm:%s171] %v452
                %v454 = vld [vmem:[%s178 + $0x890] sm:%s171]
                %455 = vst [vmem:[%s179 + $0x448] sm:%s171] %v454
                %v456 = vld [vmem:[%s178 + $0x8a0] sm:%s171]
                %457 = vst [vmem:[%s179 + $0x450] sm:%s171] %v456
                %v458 = vld [vmem:[%s178 + $0x8b0] sm:%s171]
                %459 = vst [vmem:[%s179 + $0x458] sm:%s171] %v458
                %v460 = vld [vmem:[%s178 + $0x8c0] sm:%s171]
                %461 = vst [vmem:[%s179 + $0x460] sm:%s171] %v460
                %v462 = vld [vmem:[%s178 + $0x8d0] sm:%s171]
                %463 = vst [vmem:[%s179 + $0x468] sm:%s171] %v462
                %v464 = vld [vmem:[%s178 + $0x8e0] sm:%s171]
                %465 = vst [vmem:[%s179 + $0x470] sm:%s171] %v464
                %v466 = vld [vmem:[%s178 + $0x8f0] sm:%s171]
                %467 = vst [vmem:[%s179 + $0x478] sm:%s171] %v466
                %v468 = vld [vmem:[%s178 + $0x900] sm:%s171]
                %469 = vst [vmem:[%s179 + $0x480] sm:%s171] %v468
                %v470 = vld [vmem:[%s178 + $0x910] sm:%s171]
                %471 = vst [vmem:[%s179 + $0x488] sm:%s171] %v470
                %v472 = vld [vmem:[%s178 + $0x920] sm:%s171]
                %473 = vst [vmem:[%s179 + $0x490] sm:%s171] %v472
                %v474 = vld [vmem:[%s178 + $0x930] sm:%s171]
                %475 = vst [vmem:[%s179 + $0x498] sm:%s171] %v474
                %v476 = vld [vmem:[%s178 + $0x940] sm:%s171]
                %477 = vst [vmem:[%s179 + $0x4a0] sm:%s171] %v476
                %v478 = vld [vmem:[%s178 + $0x950] sm:%s171]
                %479 = vst [vmem:[%s179 + $0x4a8] sm:%s171] %v478
                %v480 = vld [vmem:[%s178 + $0x960] sm:%s171]
                %481 = vst [vmem:[%s179 + $0x4b0] sm:%s171] %v480
                %v482 = vld [vmem:[%s178 + $0x970] sm:%s171]
                %483 = vst [vmem:[%s179 + $0x4b8] sm:%s171] %v482
                %v484 = vld [vmem:[%s178 + $0x980] sm:%s171]
                %485 = vst [vmem:[%s179 + $0x4c0] sm:%s171] %v484
                %v486 = vld [vmem:[%s178 + $0x990] sm:%s171]
                %487 = vst [vmem:[%s179 + $0x4c8] sm:%s171] %v486
                %v488 = vld [vmem:[%s178 + $0x9a0] sm:%s171]
                %489 = vst [vmem:[%s179 + $0x4d0] sm:%s171] %v488
                %v490 = vld [vmem:[%s178 + $0x9b0] sm:%s171]
                %491 = vst [vmem:[%s179 + $0x4d8] sm:%s171] %v490
                %v492 = vld [vmem:[%s178 + $0x9c0] sm:%s171]
                %493 = vst [vmem:[%s179 + $0x4e0] sm:%s171] %v492
                %v494 = vld [vmem:[%s178 + $0x9d0] sm:%s171]
                %495 = vst [vmem:[%s179 + $0x4e8] sm:%s171] %v494
                %v496 = vld [vmem:[%s178 + $0x9e0] sm:%s171]
                %497 = vst [vmem:[%s179 + $0x4f0] sm:%s171] %v496
                %v498 = vld [vmem:[%s178 + $0x9f0] sm:%s171]
                %499 = vst [vmem:[%s179 + $0x4f8] sm:%s171] %v498
                %v500 = vld [vmem:[%s178 + $0xa00] sm:%s171]
                %501 = vst [vmem:[%s179 + $0x500] sm:%s171] %v500
                %v502 = vld [vmem:[%s178 + $0xa10] sm:%s171]
                %503 = vst [vmem:[%s179 + $0x508] sm:%s171] %v502
                %v504 = vld [vmem:[%s178 + $0xa20] sm:%s171]
                %505 = vst [vmem:[%s179 + $0x510] sm:%s171] %v504
                %v506 = vld [vmem:[%s178 + $0xa30] sm:%s171]
                %507 = vst [vmem:[%s179 + $0x518] sm:%s171] %v506
                %v508 = vld [vmem:[%s178 + $0xa40] sm:%s171]
                %509 = vst [vmem:[%s179 + $0x520] sm:%s171] %v508
                %v510 = vld [vmem:[%s178 + $0xa50] sm:%s171]
                %511 = vst [vmem:[%s179 + $0x528] sm:%s171] %v510
                %v512 = vld [vmem:[%s178 + $0xa60] sm:%s171]
                %513 = vst [vmem:[%s179 + $0x530] sm:%s171] %v512
                %v514 = vld [vmem:[%s178 + $0xa70] sm:%s171]
                %515 = vst [vmem:[%s179 + $0x538] sm:%s171] %v514
                %v516 = vld [vmem:[%s178 + $0xa80] sm:%s171]
                %517 = vst [vmem:[%s179 + $0x540] sm:%s171] %v516
                %v518 = vld [vmem:[%s178 + $0xa90] sm:%s171]
                %519 = vst [vmem:[%s179 + $0x548] sm:%s171] %v518
                %v520 = vld [vmem:[%s178 + $0xaa0] sm:%s171]
                %521 = vst [vmem:[%s179 + $0x550] sm:%s171] %v520
                %v522 = vld [vmem:[%s178 + $0xab0] sm:%s171]
                %523 = vst [vmem:[%s179 + $0x558] sm:%s171] %v522
                %v524 = vld [vmem:[%s178 + $0xac0] sm:%s171]
                %525 = vst [vmem:[%s179 + $0x560] sm:%s171] %v524
                %v526 = vld [vmem:[%s178 + $0xad0] sm:%s171]
                %527 = vst [vmem:[%s179 + $0x568] sm:%s171] %v526
                %v528 = vld [vmem:[%s178 + $0xae0] sm:%s171]
                %529 = vst [vmem:[%s179 + $0x570] sm:%s171] %v528
                %v530 = vld [vmem:[%s178 + $0xaf0] sm:%s171]
                %531 = vst [vmem:[%s179 + $0x578] sm:%s171] %v530
                %v532 = vld [vmem:[%s178 + $0xb00] sm:%s171]
                %533 = vst [vmem:[%s179 + $0x580] sm:%s171] %v532
                %v534 = vld [vmem:[%s178 + $0xb10] sm:%s171]
                %535 = vst [vmem:[%s179 + $0x588] sm:%s171] %v534
                %v536 = vld [vmem:[%s178 + $0xb20] sm:%s171]
                %537 = vst [vmem:[%s179 + $0x590] sm:%s171] %v536
                %v538 = vld [vmem:[%s178 + $0xb30] sm:%s171]
                %539 = vst [vmem:[%s179 + $0x598] sm:%s171] %v538
                %v540 = vld [vmem:[%s178 + $0xb40] sm:%s171]
                %541 = vst [vmem:[%s179 + $0x5a0] sm:%s171] %v540
                %v542 = vld [vmem:[%s178 + $0xb50] sm:%s171]
                %543 = vst [vmem:[%s179 + $0x5a8] sm:%s171] %v542
                %v544 = vld [vmem:[%s178 + $0xb60] sm:%s171]
                %545 = vst [vmem:[%s179 + $0x5b0] sm:%s171] %v544
                %v546 = vld [vmem:[%s178 + $0xb70] sm:%s171]
                %547 = vst [vmem:[%s179 + $0x5b8] sm:%s171] %v546
                %v548 = vld [vmem:[%s178 + $0xb80] sm:%s171]
                %549 = vst [vmem:[%s179 + $0x5c0] sm:%s171] %v548
                %v550 = vld [vmem:[%s178 + $0xb90] sm:%s171]
                %551 = vst [vmem:[%s179 + $0x5c8] sm:%s171] %v550
                %v552 = vld [vmem:[%s178 + $0xba0] sm:%s171]
                %553 = vst [vmem:[%s179 + $0x5d0] sm:%s171] %v552
                %v554 = vld [vmem:[%s178 + $0xbb0] sm:%s171]
                %555 = vst [vmem:[%s179 + $0x5d8] sm:%s171] %v554
                %v556 = vld [vmem:[%s178 + $0xbc0] sm:%s171]
                %557 = vst [vmem:[%s179 + $0x5e0] sm:%s171] %v556
                %v558 = vld [vmem:[%s178 + $0xbd0] sm:%s171]
                %559 = vst [vmem:[%s179 + $0x5e8] sm:%s171] %v558
                %v560 = vld [vmem:[%s178 + $0xbe0] sm:%s171]
                %561 = vst [vmem:[%s179 + $0x5f0] sm:%s171] %v560
                %v562 = vld [vmem:[%s178 + $0xbf0] sm:%s171]
                %563 = vst [vmem:[%s179 + $0x5f8] sm:%s171] %v562
                %v564 = vld [vmem:[%s178 + $0xc00] sm:%s171]
                %565 = vst [vmem:[%s179 + $0x600] sm:%s171] %v564
                %v566 = vld [vmem:[%s178 + $0xc10] sm:%s171]
                %567 = vst [vmem:[%s179 + $0x608] sm:%s171] %v566
                %v568 = vld [vmem:[%s178 + $0xc20] sm:%s171]
                %569 = vst [vmem:[%s179 + $0x610] sm:%s171] %v568
                %v570 = vld [vmem:[%s178 + $0xc30] sm:%s171]
                %571 = vst [vmem:[%s179 + $0x618] sm:%s171] %v570
                %v572 = vld [vmem:[%s178 + $0xc40] sm:%s171]
                %573 = vst [vmem:[%s179 + $0x620] sm:%s171] %v572
                %v574 = vld [vmem:[%s178 + $0xc50] sm:%s171]
                %575 = vst [vmem:[%s179 + $0x628] sm:%s171] %v574
                %v576 = vld [vmem:[%s178 + $0xc60] sm:%s171]
                %577 = vst [vmem:[%s179 + $0x630] sm:%s171] %v576
                %v578 = vld [vmem:[%s178 + $0xc70] sm:%s171]
                %579 = vst [vmem:[%s179 + $0x638] sm:%s171] %v578
                %v580 = vld [vmem:[%s178 + $0xc80] sm:%s171]
                %581 = vst [vmem:[%s179 + $0x640] sm:%s171] %v580
                %v582 = vld [vmem:[%s178 + $0xc90] sm:%s171]
                %583 = vst [vmem:[%s179 + $0x648] sm:%s171] %v582
                %v584 = vld [vmem:[%s178 + $0xca0] sm:%s171]
                %585 = vst [vmem:[%s179 + $0x650] sm:%s171] %v584
                %v586 = vld [vmem:[%s178 + $0xcb0] sm:%s171]
                %587 = vst [vmem:[%s179 + $0x658] sm:%s171] %v586
                %v588 = vld [vmem:[%s178 + $0xcc0] sm:%s171]
                %589 = vst [vmem:[%s179 + $0x660] sm:%s171] %v588
                %v590 = vld [vmem:[%s178 + $0xcd0] sm:%s171]
                %591 = vst [vmem:[%s179 + $0x668] sm:%s171] %v590
                %v592 = vld [vmem:[%s178 + $0xce0] sm:%s171]
                %593 = vst [vmem:[%s179 + $0x670] sm:%s171] %v592
                %v594 = vld [vmem:[%s178 + $0xcf0] sm:%s171]
                %595 = vst [vmem:[%s179 + $0x678] sm:%s171] %v594
                %v596 = vld [vmem:[%s178 + $0xd00] sm:%s171]
                %597 = vst [vmem:[%s179 + $0x680] sm:%s171] %v596
                %v598 = vld [vmem:[%s178 + $0xd10] sm:%s171]
                %599 = vst [vmem:[%s179 + $0x688] sm:%s171] %v598
                %v600 = vld [vmem:[%s178 + $0xd20] sm:%s171]
                %601 = vst [vmem:[%s179 + $0x690] sm:%s171] %v600
                %v602 = vld [vmem:[%s178 + $0xd30] sm:%s171]
                %603 = vst [vmem:[%s179 + $0x698] sm:%s171] %v602
                %v604 = vld [vmem:[%s178 + $0xd40] sm:%s171]
                %605 = vst [vmem:[%s179 + $0x6a0] sm:%s171] %v604
                %v606 = vld [vmem:[%s178 + $0xd50] sm:%s171]
                %607 = vst [vmem:[%s179 + $0x6a8] sm:%s171] %v606
                %v608 = vld [vmem:[%s178 + $0xd60] sm:%s171]
                %609 = vst [vmem:[%s179 + $0x6b0] sm:%s171] %v608
                %v610 = vld [vmem:[%s178 + $0xd70] sm:%s171]
                %611 = vst [vmem:[%s179 + $0x6b8] sm:%s171] %v610
                %v612 = vld [vmem:[%s178 + $0xd80] sm:%s171]
                %613 = vst [vmem:[%s179 + $0x6c0] sm:%s171] %v612
                %v614 = vld [vmem:[%s178 + $0xd90] sm:%s171]
                %615 = vst [vmem:[%s179 + $0x6c8] sm:%s171] %v614
                %v616 = vld [vmem:[%s178 + $0xda0] sm:%s171]
                %617 = vst [vmem:[%s179 + $0x6d0] sm:%s171] %v616
                %v618 = vld [vmem:[%s178 + $0xdb0] sm:%s171]
                %619 = vst [vmem:[%s179 + $0x6d8] sm:%s171] %v618
                %v620 = vld [vmem:[%s178 + $0xdc0] sm:%s171]
                %621 = vst [vmem:[%s179 + $0x6e0] sm:%s171] %v620
                %v622 = vld [vmem:[%s178 + $0xdd0] sm:%s171]
                %623 = vst [vmem:[%s179 + $0x6e8] sm:%s171] %v622
                %v624 = vld [vmem:[%s178 + $0xde0] sm:%s171]
                %625 = vst [vmem:[%s179 + $0x6f0] sm:%s171] %v624
                %v626 = vld [vmem:[%s178 + $0xdf0] sm:%s171]
                %627 = vst [vmem:[%s179 + $0x6f8] sm:%s171] %v626
                %v628 = vld [vmem:[%s178 + $0xe00] sm:%s171]
                %629 = vst [vmem:[%s179 + $0x700] sm:%s171] %v628
                %v630 = vld [vmem:[%s178 + $0xe10] sm:%s171]
                %631 = vst [vmem:[%s179 + $0x708] sm:%s171] %v630
                %v632 = vld [vmem:[%s178 + $0xe20] sm:%s171]
                %633 = vst [vmem:[%s179 + $0x710] sm:%s171] %v632
                %v634 = vld [vmem:[%s178 + $0xe30] sm:%s171]
                %635 = vst [vmem:[%s179 + $0x718] sm:%s171] %v634
                %v636 = vld [vmem:[%s178 + $0xe40] sm:%s171]
                %637 = vst [vmem:[%s179 + $0x720] sm:%s171] %v636
                %v638 = vld [vmem:[%s178 + $0xe50] sm:%s171]
                %639 = vst [vmem:[%s179 + $0x728] sm:%s171] %v638
                %v640 = vld [vmem:[%s178 + $0xe60] sm:%s171]
                %641 = vst [vmem:[%s179 + $0x730] sm:%s171] %v640
                %v642 = vld [vmem:[%s178 + $0xe70] sm:%s171]
                %643 = vst [vmem:[%s179 + $0x738] sm:%s171] %v642
                %v644 = vld [vmem:[%s178 + $0xe80] sm:%s171]
                %645 = vst [vmem:[%s179 + $0x740] sm:%s171] %v644
                %v646 = vld [vmem:[%s178 + $0xe90] sm:%s171]
                %647 = vst [vmem:[%s179 + $0x748] sm:%s171] %v646
                %v648 = vld [vmem:[%s178 + $0xea0] sm:%s171]
                %649 = vst [vmem:[%s179 + $0x750] sm:%s171] %v648
                %v650 = vld [vmem:[%s178 + $0xeb0] sm:%s171]
                %651 = vst [vmem:[%s179 + $0x758] sm:%s171] %v650
                %v652 = vld [vmem:[%s178 + $0xec0] sm:%s171]
                %653 = vst [vmem:[%s179 + $0x760] sm:%s171] %v652
                %v654 = vld [vmem:[%s178 + $0xed0] sm:%s171]
                %655 = vst [vmem:[%s179 + $0x768] sm:%s171] %v654
                %v656 = vld [vmem:[%s178 + $0xee0] sm:%s171]
                %657 = vst [vmem:[%s179 + $0x770] sm:%s171] %v656
                %v658 = vld [vmem:[%s178 + $0xef0] sm:%s171]
                %659 = vst [vmem:[%s179 + $0x778] sm:%s171] %v658
                %v660 = vld [vmem:[%s178 + $0xf00] sm:%s171]
                %661 = vst [vmem:[%s179 + $0x780] sm:%s171] %v660
                %v662 = vld [vmem:[%s178 + $0xf10] sm:%s171]
                %663 = vst [vmem:[%s179 + $0x788] sm:%s171] %v662
                %v664 = vld [vmem:[%s178 + $0xf20] sm:%s171]
                %665 = vst [vmem:[%s179 + $0x790] sm:%s171] %v664
                %v666 = vld [vmem:[%s178 + $0xf30] sm:%s171]
                %667 = vst [vmem:[%s179 + $0x798] sm:%s171] %v666
                %v668 = vld [vmem:[%s178 + $0xf40] sm:%s171]
                %669 = vst [vmem:[%s179 + $0x7a0] sm:%s171] %v668
                %v670 = vld [vmem:[%s178 + $0xf50] sm:%s171]
                %671 = vst [vmem:[%s179 + $0x7a8] sm:%s171] %v670
                %v672 = vld [vmem:[%s178 + $0xf60] sm:%s171]
                %673 = vst [vmem:[%s179 + $0x7b0] sm:%s171] %v672
                %v674 = vld [vmem:[%s178 + $0xf70] sm:%s171]
                %675 = vst [vmem:[%s179 + $0x7b8] sm:%s171] %v674
                %v676 = vld [vmem:[%s178 + $0xf80] sm:%s171]
                %677 = vst [vmem:[%s179 + $0x7c0] sm:%s171] %v676
                %v678 = vld [vmem:[%s178 + $0xf90] sm:%s171]
                %679 = vst [vmem:[%s179 + $0x7c8] sm:%s171] %v678
                %v680 = vld [vmem:[%s178 + $0xfa0] sm:%s171]
                %681 = vst [vmem:[%s179 + $0x7d0] sm:%s171] %v680
                %v682 = vld [vmem:[%s178 + $0xfb0] sm:%s171]
                %683 = vst [vmem:[%s179 + $0x7d8] sm:%s171] %v682
                %v684 = vld [vmem:[%s178 + $0xfc0] sm:%s171]
                %685 = vst [vmem:[%s179 + $0x7e0] sm:%s171] %v684
                %v686 = vld [vmem:[%s178 + $0xfd0] sm:%s171]
                %687 = vst [vmem:[%s179 + $0x7e8] sm:%s171] %v686
                %v688 = vld [vmem:[%s178 + $0xfe0] sm:%s171]
                %689 = vst [vmem:[%s179 + $0x7f0] sm:%s171] %v688
                %v690 = vld [vmem:[%s178 + $0xff0] sm:%s171]
                %691 = vst [vmem:[%s179 + $0x7f8] sm:%s171] %v690
                %v692 = vld [vmem:[%s178 + $0x1000] sm:%s171]
                %693 = vst [vmem:[%s179 + $0x800] sm:%s171] %v692
                %v694 = vld [vmem:[%s178 + $0x1010] sm:%s171]
                %695 = vst [vmem:[%s179 + $0x808] sm:%s171] %v694
                %v696 = vld [vmem:[%s178 + $0x1020] sm:%s171]
                %697 = vst [vmem:[%s179 + $0x810] sm:%s171] %v696
                %v698 = vld [vmem:[%s178 + $0x1030] sm:%s171]
                %699 = vst [vmem:[%s179 + $0x818] sm:%s171] %v698
                %v700 = vld [vmem:[%s178 + $0x1040] sm:%s171]
                %701 = vst [vmem:[%s179 + $0x820] sm:%s171] %v700
                %v702 = vld [vmem:[%s178 + $0x1050] sm:%s171]
                %703 = vst [vmem:[%s179 + $0x828] sm:%s171] %v702
                %v704 = vld [vmem:[%s178 + $0x1060] sm:%s171]
                %705 = vst [vmem:[%s179 + $0x830] sm:%s171] %v704
                %v706 = vld [vmem:[%s178 + $0x1070] sm:%s171]
                %707 = vst [vmem:[%s179 + $0x838] sm:%s171] %v706
                %v708 = vld [vmem:[%s178 + $0x1080] sm:%s171]
                %709 = vst [vmem:[%s179 + $0x840] sm:%s171] %v708
                %v710 = vld [vmem:[%s178 + $0x1090] sm:%s171]
                %711 = vst [vmem:[%s179 + $0x848] sm:%s171] %v710
                %v712 = vld [vmem:[%s178 + $0x10a0] sm:%s171]
                %713 = vst [vmem:[%s179 + $0x850] sm:%s171] %v712
                %v714 = vld [vmem:[%s178 + $0x10b0] sm:%s171]
                %715 = vst [vmem:[%s179 + $0x858] sm:%s171] %v714
                %v716 = vld [vmem:[%s178 + $0x10c0] sm:%s171]
                %717 = vst [vmem:[%s179 + $0x860] sm:%s171] %v716
                %v718 = vld [vmem:[%s178 + $0x10d0] sm:%s171]
                %719 = vst [vmem:[%s179 + $0x868] sm:%s171] %v718
                %v720 = vld [vmem:[%s178 + $0x10e0] sm:%s171]
                %721 = vst [vmem:[%s179 + $0x870] sm:%s171] %v720
                %v722 = vld [vmem:[%s178 + $0x10f0] sm:%s171]
                %723 = vst [vmem:[%s179 + $0x878] sm:%s171] %v722
                %v724 = vld [vmem:[%s178 + $0x1100] sm:%s171]
                %725 = vst [vmem:[%s179 + $0x880] sm:%s171] %v724
                %v726 = vld [vmem:[%s178 + $0x1110] sm:%s171]
                %727 = vst [vmem:[%s179 + $0x888] sm:%s171] %v726
                %v728 = vld [vmem:[%s178 + $0x1120] sm:%s171]
                %729 = vst [vmem:[%s179 + $0x890] sm:%s171] %v728
                %v730 = vld [vmem:[%s178 + $0x1130] sm:%s171]
                %731 = vst [vmem:[%s179 + $0x898] sm:%s171] %v730
                %v732 = vld [vmem:[%s178 + $0x1140] sm:%s171]
                %733 = vst [vmem:[%s179 + $0x8a0] sm:%s171] %v732
                %v734 = vld [vmem:[%s178 + $0x1150] sm:%s171]
                %735 = vst [vmem:[%s179 + $0x8a8] sm:%s171] %v734
                %v736 = vld [vmem:[%s178 + $0x1160] sm:%s171]
                %737 = vst [vmem:[%s179 + $0x8b0] sm:%s171] %v736
                %v738 = vld [vmem:[%s178 + $0x1170] sm:%s171]
                %739 = vst [vmem:[%s179 + $0x8b8] sm:%s171] %v738
                %v740 = vld [vmem:[%s178 + $0x1180] sm:%s171]
                %741 = vst [vmem:[%s179 + $0x8c0] sm:%s171] %v740
                %v742 = vld [vmem:[%s178 + $0x1190] sm:%s171]
                %743 = vst [vmem:[%s179 + $0x8c8] sm:%s171] %v742
                %v744 = vld [vmem:[%s178 + $0x11a0] sm:%s171]
                %745 = vst [vmem:[%s179 + $0x8d0] sm:%s171] %v744
                %v746 = vld [vmem:[%s178 + $0x11b0] sm:%s171]
                %747 = vst [vmem:[%s179 + $0x8d8] sm:%s171] %v746
                %v748 = vld [vmem:[%s178 + $0x11c0] sm:%s171]
                %749 = vst [vmem:[%s179 + $0x8e0] sm:%s171] %v748
                %v750 = vld [vmem:[%s178 + $0x11d0] sm:%s171]
                %751 = vst [vmem:[%s179 + $0x8e8] sm:%s171] %v750
                %v752 = vld [vmem:[%s178 + $0x11e0] sm:%s171]
                %753 = vst [vmem:[%s179 + $0x8f0] sm:%s171] %v752
                %v754 = vld [vmem:[%s178 + $0x11f0] sm:%s171]
                %755 = vst [vmem:[%s179 + $0x8f8] sm:%s171] %v754
              $region41: #{discriminator_forward.8} parent=35 // loop_footer
                %s177 = sadd.s32 1, %s173
              $region42: #{discriminator_forward.8} parent=35 // loop_footer_branch
                %172 = sbr.rel target = $region38
              $region43: #{discriminator_forward.8} parent=35 // loop_exit
                _
            $region36: #{discriminator_forward.8} parent=27 // pred_fallthru
              _
          $region28: #{discriminator_forward.8} parent=23 // pred_fallthru
            _
          %1344 = vnop
        $region24: #{discriminator_forward.8} parent=15 // pred_fallthru
          _
        // Predicated region
        $region59: #{discriminator_forward.8} parent=15 // pred_check
          %p1345 = pneg %p93
        $region60: #{discriminator_forward.8} parent=15 // pred_check_branch
          %1347 = sbr.rel (%p1345) target = $region62
        $region61: #{discriminator_forward.8} parent=15 // pred_region
          %s1348 = smul.u32 2, %s17
          %p1349 = scmp.lt.s32.totalorder %s1348, 3
          %s1350 = scalar_select %p1349, %s1348, 3
          %s1351 = scalar_lea.vmem %s2, %s1350
          %s1352 = smul.u32 2, %s17
        $region62: #{discriminator_forward.8} parent=15 // pred_fallthru
          _
      $region16: #{discriminator_forward.8} parent=5 // pred_fallthru
        _
      %p1353 = scmp.le.s32.totalorder 1, %s9
      %p1354 = scmp.lt.s32.totalorder %s9, 5
      %p1355 = pnand %p1353, %p1354
      %p1356 = pneg %p1355
      // Predicated region
      $region63: #{discriminator_forward.8} parent=5 // pred_check
        _
      $region64: #{discriminator_forward.8} parent=5 // pred_check_branch
        %1358 = sbr.rel (%p1355) target = $region66
      $region65: #{discriminator_forward.8} parent=5 // pred_region
        %s1359 = ssub.s32 %s9, 1
        %s1360 = sand.u32 %s60, 1
        %s1361 = sand.u32 %s60, 1
        %s1362 = smul.addr %s1361, 2304
        %s1363 = scalar_lea.vmem [#allocation2], %s1362
        // Predicated region
        $region67: #{discriminator_forward.8} parent=65 // pred_check
          %p1364 = pneg %p73
        $region68: #{discriminator_forward.8} parent=65 // pred_check_branch
          %1366 = sbr.rel (%p1364) target = $region70
        $region69: #{discriminator_forward.8} parent=65 // pred_region
          _
        $region70: #{discriminator_forward.8} parent=65 // pred_fallthru
          _
        %p1367 = scmp.lt.s32.totalorder %s18, 1
        %s1368 = scalar_select %p1367, %s18, 1
        %s1369 = smul.addr %s1368, 18
        %s1370 = smul.addr %s1369, 2
        %s1371 = scalar_lea.vmem %s0, %s1370
        %p1372 = pneg %p47
        %p1373 = pneg %p44
        %s1374 = sand.u32 %s60, 1
        %s1375 = sand.u32 %s60, 1
        %s1376 = smul.addr %s1375, 2304
        %s1377 = scalar_lea.vmem [#allocation2], %s1376
        %p1378 = pneg %p73
        %p1379 = pneg %p70
        %s1380 = smul.u32 2, %s19
        %p1381 = scmp.lt.s32.totalorder %s1380, 3
        %s1382 = scalar_select %p1381, %s1380, 3
        %s1383 = scalar_lea.vmem %s2, %s1382
        %p1384 = pneg %p99
        %p1385 = pneg %p96
        %p1386 = pneg %p127
        %p1387 = pneg %p124
        %s1388 = smul.u32 2, %s19
        %p1389 = scmp.lt.s32.totalorder %s18, 1
        %s1390 = scalar_select %p1389, %s18, 1
        %p1391 = scmp.lt.s32.totalorder %s1388, 3
        %s1392 = scalar_select %p1391, %s1388, 3
        %s1393 = smul.addr %s1390, 4
        %s1394 = sadd.s32 %s1392, %s1393
        %s1395 = smul.addr %s1394, 2
        %s1396 = scalar_lea.vmem %s3, %s1395
        %p1397 = scmp.lt.s32.totalorder %s18, 1
        %s1398 = scalar_select %p1397, %s18, 1
        %s1399 = smul.addr %s1398, 18
        %s1400 = smul.addr %s1399, 2
        %s1401 = scalar_lea.vmem %s0, %s1400
        %s1402 = smul.u32 2, %s19
        %s1403 = smul.u32 2, %s19
        %p1404 = scmp.lt.s32.totalorder %s1403, 3
        %s1405 = scalar_select %p1404, %s1403, 3
        %s1406 = scalar_lea.vmem %s2, %s1405
        %s1407 = smul.u32 2, %s19
        %s1408 = smul.u32 2, %s19
        %p1409 = scmp.lt.s32.totalorder %s18, 1
        %s1410 = scalar_select %p1409, %s18, 1
        %p1411 = scmp.lt.s32.totalorder %s1408, 3
        %s1412 = scalar_select %p1411, %s1408, 3
        %s1413 = smul.addr %s1410, 4
        %s1414 = sadd.s32 %s1412, %s1413
        %s1415 = smul.addr %s1414, 2
        %s1416 = scalar_lea.vmem %s3, %s1415
        %s1417 = smul.u32 2, %s19
        %v1418 = vld [vmem:[%s1401] sm:$0xff]
        %v1419 = vld [vmem:[%s1401 + $0x8] sm:$0xff]
        %v1420 = vld [vmem:[%s1401 + $0x10] sm:$0xff]
        %v1421 = vld [vmem:[%s1401 + $0x18] sm:$0xff]
        %v1422 = vld [vmem:[%s1401 + $0x20] sm:$0xf]
        %v1423 = vld [vmem:[%s1363] sm:$0xff]
        %v1424 = vld [vmem:[%s1363 + $0x8] sm:$0xff]
        %v1425 = vld [vmem:[%s1363 + $0x10] sm:$0xff]
        %v1426 = vld [vmem:[%s1363 + $0x18] sm:$0xff]
        %v1427 = vld [vmem:[%s1363 + $0x20] sm:$0xff]
        %v1428 = vld [vmem:[%s1363 + $0x28] sm:$0xff]
        %v1429 = vld [vmem:[%s1363 + $0x30] sm:$0xff]
        %v1430 = vld [vmem:[%s1363 + $0x38] sm:$0xff]
        %v1431 = vld [vmem:[%s1363 + $0x40] sm:$0xff]
        %v1432 = vld [vmem:[%s1363 + $0x48] sm:$0xff]
        %v1433 = vld [vmem:[%s1363 + $0x50] sm:$0xff]
        %v1434 = vld [vmem:[%s1363 + $0x58] sm:$0xff]
        %v1435 = vld [vmem:[%s1363 + $0x60] sm:$0xff]
        %v1436 = vld [vmem:[%s1363 + $0x68] sm:$0xff]
        %v1437 = vld [vmem:[%s1363 + $0x70] sm:$0xff]
        %v1438 = vld [vmem:[%s1363 + $0x78] sm:$0xff]
        %v1439 = vld [vmem:[%s1363 + $0x80] sm:$0xff]
        %v1440 = vld [vmem:[%s1363 + $0x88] sm:$0xff]
        %v1441 = vld [vmem:[%s1363 + $0x90] sm:$0xff]
        %v1442 = vld [vmem:[%s1363 + $0x98] sm:$0xff]
        %v1443 = vld [vmem:[%s1363 + $0xa0] sm:$0xff]
        %v1444 = vld [vmem:[%s1363 + $0xa8] sm:$0xff]
        %v1445 = vld [vmem:[%s1363 + $0xb0] sm:$0xff]
        %v1446 = vld [vmem:[%s1363 + $0xb8] sm:$0xff]
        %v1447 = vld [vmem:[%s1363 + $0xc0] sm:$0xff]
        %v1448 = vld [vmem:[%s1363 + $0xc8] sm:$0xff]
        %v1449 = vld [vmem:[%s1363 + $0xd0] sm:$0xff]
        %v1450 = vld [vmem:[%s1363 + $0xd8] sm:$0xff]
        %v1451 = vld [vmem:[%s1363 + $0xe0] sm:$0xff]
        %v1452 = vld [vmem:[%s1363 + $0xe8] sm:$0xff]
        %v1453 = vld [vmem:[%s1363 + $0xf0] sm:$0xff]
        %v1454 = vld [vmem:[%s1363 + $0xf8] sm:$0xff]
        %v1455 = vld [vmem:[%s1363 + $0x100] sm:$0xff]
        %v1456 = vld [vmem:[%s1363 + $0x108] sm:$0xff]
        %v1457 = vld [vmem:[%s1363 + $0x110] sm:$0xff]
        %v1458 = vld [vmem:[%s1363 + $0x118] sm:$0xff]
        %v1459 = vld [vmem:[%s1363 + $0x120] sm:$0xff]
        %v1460 = vld [vmem:[%s1363 + $0x128] sm:$0xff]
        %v1461 = vld [vmem:[%s1363 + $0x130] sm:$0xff]
        %v1462 = vld [vmem:[%s1363 + $0x138] sm:$0xff]
        %v1463 = vld [vmem:[%s1363 + $0x140] sm:$0xff]
        %v1464 = vld [vmem:[%s1363 + $0x148] sm:$0xff]
        %v1465 = vld [vmem:[%s1363 + $0x150] sm:$0xff]
        %v1466 = vld [vmem:[%s1363 + $0x158] sm:$0xff]
        %v1467 = vld [vmem:[%s1363 + $0x160] sm:$0xff]
        %v1468 = vld [vmem:[%s1363 + $0x168] sm:$0xff]
        %v1469 = vld [vmem:[%s1363 + $0x170] sm:$0xff]
        %v1470 = vld [vmem:[%s1363 + $0x178] sm:$0xff]
        %v1471 = vld [vmem:[%s1363 + $0x180] sm:$0xff]
        %v1472 = vld [vmem:[%s1363 + $0x188] sm:$0xff]
        %v1473 = vld [vmem:[%s1363 + $0x190] sm:$0xff]
        %v1474 = vld [vmem:[%s1363 + $0x198] sm:$0xff]
        %v1475 = vld [vmem:[%s1363 + $0x1a0] sm:$0xff]
        %v1476 = vld [vmem:[%s1363 + $0x1a8] sm:$0xff]
        %v1477 = vld [vmem:[%s1363 + $0x1b0] sm:$0xff]
        %v1478 = vld [vmem:[%s1363 + $0x1b8] sm:$0xff]
        %v1479 = vld [vmem:[%s1363 + $0x1c0] sm:$0xff]
        %v1480 = vld [vmem:[%s1363 + $0x1c8] sm:$0xff]
        %v1481 = vld [vmem:[%s1363 + $0x1d0] sm:$0xff]
        %v1482 = vld [vmem:[%s1363 + $0x1d8] sm:$0xff]
        %v1483 = vld [vmem:[%s1363 + $0x1e0] sm:$0xff]
        %v1484 = vld [vmem:[%s1363 + $0x1e8] sm:$0xff]
        %v1485 = vld [vmem:[%s1363 + $0x1f0] sm:$0xff]
        %v1486 = vld [vmem:[%s1363 + $0x1f8] sm:$0xff]
        %v1487 = vld [vmem:[%s1363 + $0x200] sm:$0xff]
        %v1488 = vld [vmem:[%s1363 + $0x208] sm:$0xff]
        %v1489 = vld [vmem:[%s1363 + $0x210] sm:$0xff]
        %v1490 = vld [vmem:[%s1363 + $0x218] sm:$0xff]
        %v1491 = vld [vmem:[%s1363 + $0x220] sm:$0xff]
        %v1492 = vld [vmem:[%s1363 + $0x228] sm:$0xff]
        %v1493 = vld [vmem:[%s1363 + $0x230] sm:$0xff]
        %v1494 = vld [vmem:[%s1363 + $0x238] sm:$0xff]
        %v1495 = vld [vmem:[%s1363 + $0x240] sm:$0xff]
        %v1496 = vld [vmem:[%s1363 + $0x248] sm:$0xff]
        %v1497 = vld [vmem:[%s1363 + $0x250] sm:$0xff]
        %v1498 = vld [vmem:[%s1363 + $0x258] sm:$0xff]
        %v1499 = vld [vmem:[%s1363 + $0x260] sm:$0xff]
        %v1500 = vld [vmem:[%s1363 + $0x268] sm:$0xff]
        %v1501 = vld [vmem:[%s1363 + $0x270] sm:$0xff]
        %v1502 = vld [vmem:[%s1363 + $0x278] sm:$0xff]
        %v1503 = vld [vmem:[%s1363 + $0x280] sm:$0xff]
        %v1504 = vld [vmem:[%s1363 + $0x288] sm:$0xff]
        %v1505 = vld [vmem:[%s1363 + $0x290] sm:$0xff]
        %v1506 = vld [vmem:[%s1363 + $0x298] sm:$0xff]
        %v1507 = vld [vmem:[%s1363 + $0x2a0] sm:$0xff]
        %v1508 = vld [vmem:[%s1363 + $0x2a8] sm:$0xff]
        %v1509 = vld [vmem:[%s1363 + $0x2b0] sm:$0xff]
        %v1510 = vld [vmem:[%s1363 + $0x2b8] sm:$0xff]
        %v1511 = vld [vmem:[%s1363 + $0x2c0] sm:$0xff]
        %v1512 = vld [vmem:[%s1363 + $0x2c8] sm:$0xff]
        %v1513 = vld [vmem:[%s1363 + $0x2d0] sm:$0xff]
        %v1514 = vld [vmem:[%s1363 + $0x2d8] sm:$0xff]
        %v1515 = vld [vmem:[%s1363 + $0x2e0] sm:$0xff]
        %v1516 = vld [vmem:[%s1363 + $0x2e8] sm:$0xff]
        %v1517 = vld [vmem:[%s1363 + $0x2f0] sm:$0xff]
        %v1518 = vld [vmem:[%s1363 + $0x2f8] sm:$0xff]
        %v1519 = vld [vmem:[%s1363 + $0x300] sm:$0xff]
        %v1520 = vld [vmem:[%s1363 + $0x308] sm:$0xff]
        %v1521 = vld [vmem:[%s1363 + $0x310] sm:$0xff]
        %v1522 = vld [vmem:[%s1363 + $0x318] sm:$0xff]
        %v1523 = vld [vmem:[%s1363 + $0x320] sm:$0xff]
        %v1524 = vld [vmem:[%s1363 + $0x328] sm:$0xff]
        %v1525 = vld [vmem:[%s1363 + $0x330] sm:$0xff]
        %v1526 = vld [vmem:[%s1363 + $0x338] sm:$0xff]
        %v1527 = vld [vmem:[%s1363 + $0x340] sm:$0xff]
        %v1528 = vld [vmem:[%s1363 + $0x348] sm:$0xff]
        %v1529 = vld [vmem:[%s1363 + $0x350] sm:$0xff]
        %v1530 = vld [vmem:[%s1363 + $0x358] sm:$0xff]
        %v1531 = vld [vmem:[%s1363 + $0x360] sm:$0xff]
        %v1532 = vld [vmem:[%s1363 + $0x368] sm:$0xff]
        %v1533 = vld [vmem:[%s1363 + $0x370] sm:$0xff]
        %v1534 = vld [vmem:[%s1363 + $0x378] sm:$0xff]
        %v1535 = vld [vmem:[%s1363 + $0x380] sm:$0xff]
        %v1536 = vld [vmem:[%s1363 + $0x388] sm:$0xff]
        %v1537 = vld [vmem:[%s1363 + $0x390] sm:$0xff]
        %v1538 = vld [vmem:[%s1363 + $0x398] sm:$0xff]
        %v1539 = vld [vmem:[%s1363 + $0x3a0] sm:$0xff]
        %v1540 = vld [vmem:[%s1363 + $0x3a8] sm:$0xff]
        %v1541 = vld [vmem:[%s1363 + $0x3b0] sm:$0xff]
        %v1542 = vld [vmem:[%s1363 + $0x3b8] sm:$0xff]
        %v1543 = vld [vmem:[%s1363 + $0x3c0] sm:$0xff]
        %v1544 = vld [vmem:[%s1363 + $0x3c8] sm:$0xff]
        %v1545 = vld [vmem:[%s1363 + $0x3d0] sm:$0xff]
        %v1546 = vld [vmem:[%s1363 + $0x3d8] sm:$0xff]
        %v1547 = vld [vmem:[%s1363 + $0x3e0] sm:$0xff]
        %v1548 = vld [vmem:[%s1363 + $0x3e8] sm:$0xff]
        %v1549 = vld [vmem:[%s1363 + $0x3f0] sm:$0xff]
        %v1550 = vld [vmem:[%s1363 + $0x3f8] sm:$0xff]
        %v1551 = vld [vmem:[%s1363 + $0x400] sm:$0xff]
        %v1552 = vld [vmem:[%s1363 + $0x408] sm:$0xff]
        %v1553 = vld [vmem:[%s1363 + $0x410] sm:$0xff]
        %v1554 = vld [vmem:[%s1363 + $0x418] sm:$0xff]
        %v1555 = vld [vmem:[%s1363 + $0x420] sm:$0xff]
        %v1556 = vld [vmem:[%s1363 + $0x428] sm:$0xff]
        %v1557 = vld [vmem:[%s1363 + $0x430] sm:$0xff]
        %v1558 = vld [vmem:[%s1363 + $0x438] sm:$0xff]
        %v1559 = vld [vmem:[%s1363 + $0x440] sm:$0xff]
        %v1560 = vld [vmem:[%s1363 + $0x448] sm:$0xff]
        %v1561 = vld [vmem:[%s1363 + $0x450] sm:$0xff]
        %v1562 = vld [vmem:[%s1363 + $0x458] sm:$0xff]
        %v1563 = vld [vmem:[%s1363 + $0x460] sm:$0xff]
        %v1564 = vld [vmem:[%s1363 + $0x468] sm:$0xff]
        %v1565 = vld [vmem:[%s1363 + $0x470] sm:$0xff]
        %v1566 = vld [vmem:[%s1363 + $0x478] sm:$0xff]
        %v1567 = vld [vmem:[%s1363 + $0x480] sm:$0xff]
        %v1568 = vld [vmem:[%s1363 + $0x488] sm:$0xff]
        %v1569 = vld [vmem:[%s1363 + $0x490] sm:$0xff]
        %v1570 = vld [vmem:[%s1363 + $0x498] sm:$0xff]
        %v1571 = vld [vmem:[%s1363 + $0x4a0] sm:$0xff]
        %v1572 = vld [vmem:[%s1363 + $0x4a8] sm:$0xff]
        %v1573 = vld [vmem:[%s1363 + $0x4b0] sm:$0xff]
        %v1574 = vld [vmem:[%s1363 + $0x4b8] sm:$0xff]
        %v1575 = vld [vmem:[%s1363 + $0x4c0] sm:$0xff]
        %v1576 = vld [vmem:[%s1363 + $0x4c8] sm:$0xff]
        %v1577 = vld [vmem:[%s1363 + $0x4d0] sm:$0xff]
        %v1578 = vld [vmem:[%s1363 + $0x4d8] sm:$0xff]
        %v1579 = vld [vmem:[%s1363 + $0x4e0] sm:$0xff]
        %v1580 = vld [vmem:[%s1363 + $0x4e8] sm:$0xff]
        %v1581 = vld [vmem:[%s1363 + $0x4f0] sm:$0xff]
        %v1582 = vld [vmem:[%s1363 + $0x4f8] sm:$0xff]
        %v1583 = vld [vmem:[%s1363 + $0x500] sm:$0xff]
        %v1584 = vld [vmem:[%s1363 + $0x508] sm:$0xff]
        %v1585 = vld [vmem:[%s1363 + $0x510] sm:$0xff]
        %v1586 = vld [vmem:[%s1363 + $0x518] sm:$0xff]
        %v1587 = vld [vmem:[%s1363 + $0x520] sm:$0xff]
        %v1588 = vld [vmem:[%s1363 + $0x528] sm:$0xff]
        %v1589 = vld [vmem:[%s1363 + $0x530] sm:$0xff]
        %v1590 = vld [vmem:[%s1363 + $0x538] sm:$0xff]
        %v1591 = vld [vmem:[%s1363 + $0x540] sm:$0xff]
        %v1592 = vld [vmem:[%s1363 + $0x548] sm:$0xff]
        %v1593 = vld [vmem:[%s1363 + $0x550] sm:$0xff]
        %v1594 = vld [vmem:[%s1363 + $0x558] sm:$0xff]
        %v1595 = vld [vmem:[%s1363 + $0x560] sm:$0xff]
        %v1596 = vld [vmem:[%s1363 + $0x568] sm:$0xff]
        %v1597 = vld [vmem:[%s1363 + $0x570] sm:$0xff]
        %v1598 = vld [vmem:[%s1363 + $0x578] sm:$0xff]
        %v1599 = vld [vmem:[%s1363 + $0x580] sm:$0xff]
        %v1600 = vld [vmem:[%s1363 + $0x588] sm:$0xff]
        %v1601 = vld [vmem:[%s1363 + $0x590] sm:$0xff]
        %v1602 = vld [vmem:[%s1363 + $0x598] sm:$0xff]
        %v1603 = vld [vmem:[%s1363 + $0x5a0] sm:$0xff]
        %v1604 = vld [vmem:[%s1363 + $0x5a8] sm:$0xff]
        %v1605 = vld [vmem:[%s1363 + $0x5b0] sm:$0xff]
        %v1606 = vld [vmem:[%s1363 + $0x5b8] sm:$0xff]
        %v1607 = vld [vmem:[%s1363 + $0x5c0] sm:$0xff]
        %v1608 = vld [vmem:[%s1363 + $0x5c8] sm:$0xff]
        %v1609 = vld [vmem:[%s1363 + $0x5d0] sm:$0xff]
        %v1610 = vld [vmem:[%s1363 + $0x5d8] sm:$0xff]
        %v1611 = vld [vmem:[%s1363 + $0x5e0] sm:$0xff]
        %v1612 = vld [vmem:[%s1363 + $0x5e8] sm:$0xff]
        %v1613 = vld [vmem:[%s1363 + $0x5f0] sm:$0xff]
        %v1614 = vld [vmem:[%s1363 + $0x5f8] sm:$0xff]
        %v1615 = vld [vmem:[%s1363 + $0x600] sm:$0xff]
        %v1616 = vld [vmem:[%s1363 + $0x608] sm:$0xff]
        %v1617 = vld [vmem:[%s1363 + $0x610] sm:$0xff]
        %v1618 = vld [vmem:[%s1363 + $0x618] sm:$0xff]
        %v1619 = vld [vmem:[%s1363 + $0x620] sm:$0xff]
        %v1620 = vld [vmem:[%s1363 + $0x628] sm:$0xff]
        %v1621 = vld [vmem:[%s1363 + $0x630] sm:$0xff]
        %v1622 = vld [vmem:[%s1363 + $0x638] sm:$0xff]
        %v1623 = vld [vmem:[%s1363 + $0x640] sm:$0xff]
        %v1624 = vld [vmem:[%s1363 + $0x648] sm:$0xff]
        %v1625 = vld [vmem:[%s1363 + $0x650] sm:$0xff]
        %v1626 = vld [vmem:[%s1363 + $0x658] sm:$0xff]
        %v1627 = vld [vmem:[%s1363 + $0x660] sm:$0xff]
        %v1628 = vld [vmem:[%s1363 + $0x668] sm:$0xff]
        %v1629 = vld [vmem:[%s1363 + $0x670] sm:$0xff]
        %v1630 = vld [vmem:[%s1363 + $0x678] sm:$0xff]
        %v1631 = vld [vmem:[%s1363 + $0x680] sm:$0xff]
        %v1632 = vld [vmem:[%s1363 + $0x688] sm:$0xff]
        %v1633 = vld [vmem:[%s1363 + $0x690] sm:$0xff]
        %v1634 = vld [vmem:[%s1363 + $0x698] sm:$0xff]
        %v1635 = vld [vmem:[%s1363 + $0x6a0] sm:$0xff]
        %v1636 = vld [vmem:[%s1363 + $0x6a8] sm:$0xff]
        %v1637 = vld [vmem:[%s1363 + $0x6b0] sm:$0xff]
        %v1638 = vld [vmem:[%s1363 + $0x6b8] sm:$0xff]
        %v1639 = vld [vmem:[%s1363 + $0x6c0] sm:$0xff]
        %v1640 = vld [vmem:[%s1363 + $0x6c8] sm:$0xff]
        %v1641 = vld [vmem:[%s1363 + $0x6d0] sm:$0xff]
        %v1642 = vld [vmem:[%s1363 + $0x6d8] sm:$0xff]
        %v1643 = vld [vmem:[%s1363 + $0x6e0] sm:$0xff]
        %v1644 = vld [vmem:[%s1363 + $0x6e8] sm:$0xff]
        %v1645 = vld [vmem:[%s1363 + $0x6f0] sm:$0xff]
        %v1646 = vld [vmem:[%s1363 + $0x6f8] sm:$0xff]
        %v1647 = vld [vmem:[%s1363 + $0x700] sm:$0xff]
        %v1648 = vld [vmem:[%s1363 + $0x708] sm:$0xff]
        %v1649 = vld [vmem:[%s1363 + $0x710] sm:$0xff]
        %v1650 = vld [vmem:[%s1363 + $0x718] sm:$0xff]
        %v1651 = vld [vmem:[%s1363 + $0x720] sm:$0xff]
        %v1652 = vld [vmem:[%s1363 + $0x728] sm:$0xff]
        %v1653 = vld [vmem:[%s1363 + $0x730] sm:$0xff]
        %v1654 = vld [vmem:[%s1363 + $0x738] sm:$0xff]
        %v1655 = vld [vmem:[%s1363 + $0x740] sm:$0xff]
        %v1656 = vld [vmem:[%s1363 + $0x748] sm:$0xff]
        %v1657 = vld [vmem:[%s1363 + $0x750] sm:$0xff]
        %v1658 = vld [vmem:[%s1363 + $0x758] sm:$0xff]
        %v1659 = vld [vmem:[%s1363 + $0x760] sm:$0xff]
        %v1660 = vld [vmem:[%s1363 + $0x768] sm:$0xff]
        %v1661 = vld [vmem:[%s1363 + $0x770] sm:$0xff]
        %v1662 = vld [vmem:[%s1363 + $0x778] sm:$0xff]
        %v1663 = vld [vmem:[%s1363 + $0x780] sm:$0xff]
        %v1664 = vld [vmem:[%s1363 + $0x788] sm:$0xff]
        %v1665 = vld [vmem:[%s1363 + $0x790] sm:$0xff]
        %v1666 = vld [vmem:[%s1363 + $0x798] sm:$0xff]
        %v1667 = vld [vmem:[%s1363 + $0x7a0] sm:$0xff]
        %v1668 = vld [vmem:[%s1363 + $0x7a8] sm:$0xff]
        %v1669 = vld [vmem:[%s1363 + $0x7b0] sm:$0xff]
        %v1670 = vld [vmem:[%s1363 + $0x7b8] sm:$0xff]
        %v1671 = vld [vmem:[%s1363 + $0x7c0] sm:$0xff]
        %v1672 = vld [vmem:[%s1363 + $0x7c8] sm:$0xff]
        %v1673 = vld [vmem:[%s1363 + $0x7d0] sm:$0xff]
        %v1674 = vld [vmem:[%s1363 + $0x7d8] sm:$0xff]
        %v1675 = vld [vmem:[%s1363 + $0x7e0] sm:$0xff]
        %v1676 = vld [vmem:[%s1363 + $0x7e8] sm:$0xff]
        %v1677 = vld [vmem:[%s1363 + $0x7f0] sm:$0xff]
        %v1678 = vld [vmem:[%s1363 + $0x7f8] sm:$0xff]
        %v1679 = vld [vmem:[%s1363 + $0x800] sm:$0xff]
        %v1680 = vld [vmem:[%s1363 + $0x808] sm:$0xff]
        %v1681 = vld [vmem:[%s1363 + $0x810] sm:$0xff]
        %v1682 = vld [vmem:[%s1363 + $0x818] sm:$0xff]
        %v1683 = vld [vmem:[%s1363 + $0x820] sm:$0xff]
        %v1684 = vld [vmem:[%s1363 + $0x828] sm:$0xff]
        %v1685 = vld [vmem:[%s1363 + $0x830] sm:$0xff]
        %v1686 = vld [vmem:[%s1363 + $0x838] sm:$0xff]
        %v1687 = vld [vmem:[%s1363 + $0x840] sm:$0xff]
        %v1688 = vld [vmem:[%s1363 + $0x848] sm:$0xff]
        %v1689 = vld [vmem:[%s1363 + $0x850] sm:$0xff]
        %v1690 = vld [vmem:[%s1363 + $0x858] sm:$0xff]
        %v1691 = vld [vmem:[%s1363 + $0x860] sm:$0xff]
        %v1692 = vld [vmem:[%s1363 + $0x868] sm:$0xff]
        %v1693 = vld [vmem:[%s1363 + $0x870] sm:$0xff]
        %v1694 = vld [vmem:[%s1363 + $0x878] sm:$0xff]
        %v1695 = vld [vmem:[%s1363 + $0x880] sm:$0xff]
        %v1696 = vld [vmem:[%s1363 + $0x888] sm:$0xff]
        %v1697 = vld [vmem:[%s1363 + $0x890] sm:$0xff]
        %v1698 = vld [vmem:[%s1363 + $0x898] sm:$0xff]
        %v1699 = vld [vmem:[%s1363 + $0x8a0] sm:$0xff]
        %v1700 = vld [vmem:[%s1363 + $0x8a8] sm:$0xff]
        %v1701 = vld [vmem:[%s1363 + $0x8b0] sm:$0xff]
        %v1702 = vld [vmem:[%s1363 + $0x8b8] sm:$0xff]
        %v1703 = vld [vmem:[%s1363 + $0x8c0] sm:$0xff]
        %v1704 = vld [vmem:[%s1363 + $0x8c8] sm:$0xff]
        %v1705 = vld [vmem:[%s1363 + $0x8d0] sm:$0xff]
        %v1706 = vld [vmem:[%s1363 + $0x8d8] sm:$0xff]
        %v1707 = vld [vmem:[%s1363 + $0x8e0] sm:$0xff]
        %v1708 = vld [vmem:[%s1363 + $0x8e8] sm:$0xff]
        %v1709 = vld [vmem:[%s1363 + $0x8f0] sm:$0xff]
        %v1710 = vld [vmem:[%s1363 + $0x8f8] sm:$0xff]
        %v1711 = vld [vmem:[%s1406] sm:$0x3]
        %v1713 = vlaneseq
        %v1714 = vshrl.u32 %v1713, 7
        %v1715 = vsub.s32 0, %v1714
        %v1716 = vrot.slane %v1711, %v1715
        %v1717 = vlaneseq
        %v1718 = vshrl.u32 %v1717, 7
        %v1719 = vsub.s32 1, %v1718
        %v1720 = vrot.slane %v1711, %v1719
        %v1728 = vcombine.high %v1418, %v1418
        %v1730 = vunpack.c.l.s4 1983009808
        %v1731 = vunpack.c.0.s8 %v1730
        %v1732 = vlaneseq
        %v1733 = vshrl.u32 %v1732, 7
        %v1734 = vsub.s32 %v1731, %v1733
        %v1735 = vrot.slane %v1418, %v1734
        %v1737 = vunpack.c.l.s4 1983009808
        %v1738 = vunpack.c.0.s8 %v1737
        %v1739 = vlaneseq
        %v1740 = vshrl.u32 %v1739, 7
        %v1741 = vsub.s32 %v1738, %v1740
        %v1742 = vrot.slane %v1728, %v1741
        %v1743 = vcombine.high %v1735, %v1735
        %v1744 = vcombine.high %v1742, %v1742
        %v1745 = vcombine.high %v1419, %v1419
        %v1747 = vunpack.c.l.s4 1983009808
        %v1748 = vunpack.c.0.s8 %v1747
        %v1749 = vlaneseq
        %v1750 = vshrl.u32 %v1749, 7
        %v1751 = vsub.s32 %v1748, %v1750
        %v1752 = vrot.slane %v1419, %v1751
        %v1754 = vunpack.c.l.s4 1983009808
        %v1755 = vunpack.c.0.s8 %v1754
        %v1756 = vlaneseq
        %v1757 = vshrl.u32 %v1756, 7
        %v1758 = vsub.s32 %v1755, %v1757
        %v1759 = vrot.slane %v1745, %v1758
        %v1760 = vcombine.high %v1752, %v1752
        %v1761 = vcombine.high %v1759, %v1759
        %v1762 = vcombine.high %v1420, %v1420
        %v1764 = vunpack.c.l.s4 1983009808
        %v1765 = vunpack.c.0.s8 %v1764
        %v1766 = vlaneseq
        %v1767 = vshrl.u32 %v1766, 7
        %v1768 = vsub.s32 %v1765, %v1767
        %v1769 = vrot.slane %v1420, %v1768
        %v1771 = vunpack.c.l.s4 1983009808
        %v1772 = vunpack.c.0.s8 %v1771
        %v1773 = vlaneseq
        %v1774 = vshrl.u32 %v1773, 7
        %v1775 = vsub.s32 %v1772, %v1774
        %v1776 = vrot.slane %v1762, %v1775
        %v1777 = vcombine.high %v1769, %v1769
        %v1778 = vcombine.high %v1776, %v1776
        %v1779 = vcombine.high %v1421, %v1421
        %v1781 = vunpack.c.l.s4 1983009808
        %v1782 = vunpack.c.0.s8 %v1781
        %v1783 = vlaneseq
        %v1784 = vshrl.u32 %v1783, 7
        %v1785 = vsub.s32 %v1782, %v1784
        %v1786 = vrot.slane %v1421, %v1785
        %v1788 = vunpack.c.l.s4 1983009808
        %v1789 = vunpack.c.0.s8 %v1788
        %v1790 = vlaneseq
        %v1791 = vshrl.u32 %v1790, 7
        %v1792 = vsub.s32 %v1789, %v1791
        %v1793 = vrot.slane %v1779, %v1792
        %v1794 = vcombine.high %v1786, %v1786
        %v1795 = vcombine.high %v1793, %v1793
        %v1797 = vunpack.c.l.s4 1983009808
        %v1798 = vunpack.c.0.s8 %v1797
        %v1799 = vlaneseq
        %v1800 = vshrl.u32 %v1799, 7
        %v1801 = vsub.s32 %v1798, %v1800
        %v1802 = vrot.slane %v1422, %v1801
        %v1803 = vcombine.high %v1802, %v1802
        %v2110 = vunpack.c.l.b16 %v1423
        %v2111 = vunpack.c.h.b16 %v1423
        %v2112 = vunpack.c.l.b16 %v1424
        %v2113 = vunpack.c.h.b16 %v1424
        %v2114 = vunpack.c.l.b16 %v1425
        %v2115 = vunpack.c.h.b16 %v1425
        %v2116 = vunpack.c.l.b16 %v1426
        %v2117 = vunpack.c.h.b16 %v1426
        %v2118 = vunpack.c.l.b16 %v1427
        %v2119 = vunpack.c.h.b16 %v1427
        %v2120 = vunpack.c.l.b16 %v1428
        %v2121 = vunpack.c.h.b16 %v1428
        %v2122 = vunpack.c.l.b16 %v1429
        %v2123 = vunpack.c.h.b16 %v1429
        %v2124 = vunpack.c.l.b16 %v1430
        %v2125 = vunpack.c.h.b16 %v1430
        %v2126 = vunpack.c.l.b16 %v1431
        %v2127 = vunpack.c.h.b16 %v1431
        %v2128 = vunpack.c.l.b16 %v1432
        %v2129 = vunpack.c.h.b16 %v1432
        %v2130 = vunpack.c.l.b16 %v1433
        %v2131 = vunpack.c.h.b16 %v1433
        %v2132 = vunpack.c.l.b16 %v1434
        %v2133 = vunpack.c.h.b16 %v1434
        %v2134 = vunpack.c.l.b16 %v1435
        %v2135 = vunpack.c.h.b16 %v1435
        %v2136 = vunpack.c.l.b16 %v1436
        %v2137 = vunpack.c.h.b16 %v1436
        %v2138 = vunpack.c.l.b16 %v1437
        %v2139 = vunpack.c.h.b16 %v1437
        %v2140 = vunpack.c.l.b16 %v1438
        %v2141 = vunpack.c.h.b16 %v1438
        %v2142 = vunpack.c.l.b16 %v1439
        %v2143 = vunpack.c.h.b16 %v1439
        %v2144 = vunpack.c.l.b16 %v1440
        %v2145 = vunpack.c.h.b16 %v1440
        %v2146 = vunpack.c.l.b16 %v1441
        %v2147 = vunpack.c.h.b16 %v1441
        %v2148 = vunpack.c.l.b16 %v1442
        %v2149 = vunpack.c.h.b16 %v1442
        %v2150 = vunpack.c.l.b16 %v1443
        %v2151 = vunpack.c.h.b16 %v1443
        %v2152 = vunpack.c.l.b16 %v1444
        %v2153 = vunpack.c.h.b16 %v1444
        %v2154 = vunpack.c.l.b16 %v1445
        %v2155 = vunpack.c.h.b16 %v1445
        %v2156 = vunpack.c.l.b16 %v1446
        %v2157 = vunpack.c.h.b16 %v1446
        %v2158 = vunpack.c.l.b16 %v1447
        %v2159 = vunpack.c.h.b16 %v1447
        %v2160 = vunpack.c.l.b16 %v1448
        %v2161 = vunpack.c.h.b16 %v1448
        %v2162 = vunpack.c.l.b16 %v1449
        %v2163 = vunpack.c.h.b16 %v1449
        %v2164 = vunpack.c.l.b16 %v1450
        %v2165 = vunpack.c.h.b16 %v1450
        %v2166 = vunpack.c.l.b16 %v1451
        %v2167 = vunpack.c.h.b16 %v1451
        %v2168 = vunpack.c.l.b16 %v1452
        %v2169 = vunpack.c.h.b16 %v1452
        %v2170 = vunpack.c.l.b16 %v1453
        %v2171 = vunpack.c.h.b16 %v1453
        %v2172 = vunpack.c.l.b16 %v1454
        %v2173 = vunpack.c.h.b16 %v1454
        %v2174 = vunpack.c.l.b16 %v1455
        %v2175 = vunpack.c.h.b16 %v1455
        %v2176 = vunpack.c.l.b16 %v1456
        %v2177 = vunpack.c.h.b16 %v1456
        %v2178 = vunpack.c.l.b16 %v1457
        %v2179 = vunpack.c.h.b16 %v1457
        %v2180 = vunpack.c.l.b16 %v1458
        %v2181 = vunpack.c.h.b16 %v1458
        %v2182 = vunpack.c.l.b16 %v1459
        %v2183 = vunpack.c.h.b16 %v1459
        %v2184 = vunpack.c.l.b16 %v1460
        %v2185 = vunpack.c.h.b16 %v1460
        %v2186 = vunpack.c.l.b16 %v1461
        %v2187 = vunpack.c.h.b16 %v1461
        %v2188 = vunpack.c.l.b16 %v1462
        %v2189 = vunpack.c.h.b16 %v1462
        %v2190 = vunpack.c.l.b16 %v1463
        %v2191 = vunpack.c.h.b16 %v1463
        %v2192 = vunpack.c.l.b16 %v1464
        %v2193 = vunpack.c.h.b16 %v1464
        %v2194 = vunpack.c.l.b16 %v1465
        %v2195 = vunpack.c.h.b16 %v1465
        %v2196 = vunpack.c.l.b16 %v1466
        %v2197 = vunpack.c.h.b16 %v1466
        %v2198 = vunpack.c.l.b16 %v1467
        %v2199 = vunpack.c.h.b16 %v1467
        %v2200 = vunpack.c.l.b16 %v1468
        %v2201 = vunpack.c.h.b16 %v1468
        %v2202 = vunpack.c.l.b16 %v1469
        %v2203 = vunpack.c.h.b16 %v1469
        %v2204 = vunpack.c.l.b16 %v1470
        %v2205 = vunpack.c.h.b16 %v1470
        %v2206 = vunpack.c.l.b16 %v1471
        %v2207 = vunpack.c.h.b16 %v1471
        %v2208 = vunpack.c.l.b16 %v1472
        %v2209 = vunpack.c.h.b16 %v1472
        %v2210 = vunpack.c.l.b16 %v1473
        %v2211 = vunpack.c.h.b16 %v1473
        %v2212 = vunpack.c.l.b16 %v1474
        %v2213 = vunpack.c.h.b16 %v1474
        %v2214 = vunpack.c.l.b16 %v1475
        %v2215 = vunpack.c.h.b16 %v1475
        %v2216 = vunpack.c.l.b16 %v1476
        %v2217 = vunpack.c.h.b16 %v1476
        %v2218 = vunpack.c.l.b16 %v1477
        %v2219 = vunpack.c.h.b16 %v1477
        %v2220 = vunpack.c.l.b16 %v1478
        %v2221 = vunpack.c.h.b16 %v1478
        %v2222 = vunpack.c.l.b16 %v1479
        %v2223 = vunpack.c.h.b16 %v1479
        %v2224 = vunpack.c.l.b16 %v1480
        %v2225 = vunpack.c.h.b16 %v1480
        %v2226 = vunpack.c.l.b16 %v1481
        %v2227 = vunpack.c.h.b16 %v1481
        %v2228 = vunpack.c.l.b16 %v1482
        %v2229 = vunpack.c.h.b16 %v1482
        %v2230 = vunpack.c.l.b16 %v1483
        %v2231 = vunpack.c.h.b16 %v1483
        %v2232 = vunpack.c.l.b16 %v1484
        %v2233 = vunpack.c.h.b16 %v1484
        %v2234 = vunpack.c.l.b16 %v1485
        %v2235 = vunpack.c.h.b16 %v1485
        %v2236 = vunpack.c.l.b16 %v1486
        %v2237 = vunpack.c.h.b16 %v1486
        %v2238 = vunpack.c.l.b16 %v1487
        %v2239 = vunpack.c.h.b16 %v1487
        %v2240 = vunpack.c.l.b16 %v1488
        %v2241 = vunpack.c.h.b16 %v1488
        %v2242 = vunpack.c.l.b16 %v1489
        %v2243 = vunpack.c.h.b16 %v1489
        %v2244 = vunpack.c.l.b16 %v1490
        %v2245 = vunpack.c.h.b16 %v1490
        %v2246 = vunpack.c.l.b16 %v1491
        %v2247 = vunpack.c.h.b16 %v1491
        %v2248 = vunpack.c.l.b16 %v1492
        %v2249 = vunpack.c.h.b16 %v1492
        %v2250 = vunpack.c.l.b16 %v1493
        %v2251 = vunpack.c.h.b16 %v1493
        %v2252 = vunpack.c.l.b16 %v1494
        %v2253 = vunpack.c.h.b16 %v1494
        %v2254 = vunpack.c.l.b16 %v1495
        %v2255 = vunpack.c.h.b16 %v1495
        %v2256 = vunpack.c.l.b16 %v1496
        %v2257 = vunpack.c.h.b16 %v1496
        %v2258 = vunpack.c.l.b16 %v1497
        %v2259 = vunpack.c.h.b16 %v1497
        %v2260 = vunpack.c.l.b16 %v1498
        %v2261 = vunpack.c.h.b16 %v1498
        %v2262 = vunpack.c.l.b16 %v1499
        %v2263 = vunpack.c.h.b16 %v1499
        %v2264 = vunpack.c.l.b16 %v1500
        %v2265 = vunpack.c.h.b16 %v1500
        %v2266 = vunpack.c.l.b16 %v1501
        %v2267 = vunpack.c.h.b16 %v1501
        %v2268 = vunpack.c.l.b16 %v1502
        %v2269 = vunpack.c.h.b16 %v1502
        %v2270 = vunpack.c.l.b16 %v1503
        %v2271 = vunpack.c.h.b16 %v1503
        %v2272 = vunpack.c.l.b16 %v1504
        %v2273 = vunpack.c.h.b16 %v1504
        %v2274 = vunpack.c.l.b16 %v1505
        %v2275 = vunpack.c.h.b16 %v1505
        %v2276 = vunpack.c.l.b16 %v1506
        %v2277 = vunpack.c.h.b16 %v1506
        %v2278 = vunpack.c.l.b16 %v1507
        %v2279 = vunpack.c.h.b16 %v1507
        %v2280 = vunpack.c.l.b16 %v1508
        %v2281 = vunpack.c.h.b16 %v1508
        %v2282 = vunpack.c.l.b16 %v1509
        %v2283 = vunpack.c.h.b16 %v1509
        %v2284 = vunpack.c.l.b16 %v1510
        %v2285 = vunpack.c.h.b16 %v1510
        %v2286 = vunpack.c.l.b16 %v1511
        %v2287 = vunpack.c.h.b16 %v1511
        %v2288 = vunpack.c.l.b16 %v1512
        %v2289 = vunpack.c.h.b16 %v1512
        %v2290 = vunpack.c.l.b16 %v1513
        %v2291 = vunpack.c.h.b16 %v1513
        %v2292 = vunpack.c.l.b16 %v1514
        %v2293 = vunpack.c.h.b16 %v1514
        %v2294 = vunpack.c.l.b16 %v1515
        %v2295 = vunpack.c.h.b16 %v1515
        %v2296 = vunpack.c.l.b16 %v1516
        %v2297 = vunpack.c.h.b16 %v1516
        %v2298 = vunpack.c.l.b16 %v1517
        %v2299 = vunpack.c.h.b16 %v1517
        %v2300 = vunpack.c.l.b16 %v1518
        %v2301 = vunpack.c.h.b16 %v1518
        %v2302 = vunpack.c.l.b16 %v1519
        %v2303 = vunpack.c.h.b16 %v1519
        %v2304 = vunpack.c.l.b16 %v1520
        %v2305 = vunpack.c.h.b16 %v1520
        %v2306 = vunpack.c.l.b16 %v1521
        %v2307 = vunpack.c.h.b16 %v1521
        %v2308 = vunpack.c.l.b16 %v1522
        %v2309 = vunpack.c.h.b16 %v1522
        %v2310 = vunpack.c.l.b16 %v1523
        %v2311 = vunpack.c.h.b16 %v1523
        %v2312 = vunpack.c.l.b16 %v1524
        %v2313 = vunpack.c.h.b16 %v1524
        %v2314 = vunpack.c.l.b16 %v1525
        %v2315 = vunpack.c.h.b16 %v1525
        %v2316 = vunpack.c.l.b16 %v1526
        %v2317 = vunpack.c.h.b16 %v1526
        %v2318 = vunpack.c.l.b16 %v1527
        %v2319 = vunpack.c.h.b16 %v1527
        %v2320 = vunpack.c.l.b16 %v1528
        %v2321 = vunpack.c.h.b16 %v1528
        %v2322 = vunpack.c.l.b16 %v1529
        %v2323 = vunpack.c.h.b16 %v1529
        %v2324 = vunpack.c.l.b16 %v1530
        %v2325 = vunpack.c.h.b16 %v1530
        %v2326 = vunpack.c.l.b16 %v1531
        %v2327 = vunpack.c.h.b16 %v1531
        %v2328 = vunpack.c.l.b16 %v1532
        %v2329 = vunpack.c.h.b16 %v1532
        %v2330 = vunpack.c.l.b16 %v1533
        %v2331 = vunpack.c.h.b16 %v1533
        %v2332 = vunpack.c.l.b16 %v1534
        %v2333 = vunpack.c.h.b16 %v1534
        %v2334 = vunpack.c.l.b16 %v1535
        %v2335 = vunpack.c.h.b16 %v1535
        %v2336 = vunpack.c.l.b16 %v1536
        %v2337 = vunpack.c.h.b16 %v1536
        %v2338 = vunpack.c.l.b16 %v1537
        %v2339 = vunpack.c.h.b16 %v1537
        %v2340 = vunpack.c.l.b16 %v1538
        %v2341 = vunpack.c.h.b16 %v1538
        %v2342 = vunpack.c.l.b16 %v1539
        %v2343 = vunpack.c.h.b16 %v1539
        %v2344 = vunpack.c.l.b16 %v1540
        %v2345 = vunpack.c.h.b16 %v1540
        %v2346 = vunpack.c.l.b16 %v1541
        %v2347 = vunpack.c.h.b16 %v1541
        %v2348 = vunpack.c.l.b16 %v1542
        %v2349 = vunpack.c.h.b16 %v1542
        %v2350 = vunpack.c.l.b16 %v1543
        %v2351 = vunpack.c.h.b16 %v1543
        %v2352 = vunpack.c.l.b16 %v1544
        %v2353 = vunpack.c.h.b16 %v1544
        %v2354 = vunpack.c.l.b16 %v1545
        %v2355 = vunpack.c.h.b16 %v1545
        %v2356 = vunpack.c.l.b16 %v1546
        %v2357 = vunpack.c.h.b16 %v1546
        %v2358 = vunpack.c.l.b16 %v1547
        %v2359 = vunpack.c.h.b16 %v1547
        %v2360 = vunpack.c.l.b16 %v1548
        %v2361 = vunpack.c.h.b16 %v1548
        %v2362 = vunpack.c.l.b16 %v1549
        %v2363 = vunpack.c.h.b16 %v1549
        %v2364 = vunpack.c.l.b16 %v1550
        %v2365 = vunpack.c.h.b16 %v1550
        %v2366 = vunpack.c.l.b16 %v1551
        %v2367 = vunpack.c.h.b16 %v1551
        %v2368 = vunpack.c.l.b16 %v1552
        %v2369 = vunpack.c.h.b16 %v1552
        %v2370 = vunpack.c.l.b16 %v1553
        %v2371 = vunpack.c.h.b16 %v1553
        %v2372 = vunpack.c.l.b16 %v1554
        %v2373 = vunpack.c.h.b16 %v1554
        %v2374 = vunpack.c.l.b16 %v1555
        %v2375 = vunpack.c.h.b16 %v1555
        %v2376 = vunpack.c.l.b16 %v1556
        %v2377 = vunpack.c.h.b16 %v1556
        %v2378 = vunpack.c.l.b16 %v1557
        %v2379 = vunpack.c.h.b16 %v1557
        %v2380 = vunpack.c.l.b16 %v1558
        %v2381 = vunpack.c.h.b16 %v1558
        %v2382 = vunpack.c.l.b16 %v1559
        %v2383 = vunpack.c.h.b16 %v1559
        %v2384 = vunpack.c.l.b16 %v1560
        %v2385 = vunpack.c.h.b16 %v1560
        %v2386 = vunpack.c.l.b16 %v1561
        %v2387 = vunpack.c.h.b16 %v1561
        %v2388 = vunpack.c.l.b16 %v1562
        %v2389 = vunpack.c.h.b16 %v1562
        %v2390 = vunpack.c.l.b16 %v1563
        %v2391 = vunpack.c.h.b16 %v1563
        %v2392 = vunpack.c.l.b16 %v1564
        %v2393 = vunpack.c.h.b16 %v1564
        %v2394 = vunpack.c.l.b16 %v1565
        %v2395 = vunpack.c.h.b16 %v1565
        %v2396 = vunpack.c.l.b16 %v1566
        %v2397 = vunpack.c.h.b16 %v1566
        %v2398 = vunpack.c.l.b16 %v1567
        %v2399 = vunpack.c.h.b16 %v1567
        %v2400 = vunpack.c.l.b16 %v1568
        %v2401 = vunpack.c.h.b16 %v1568
        %v2402 = vunpack.c.l.b16 %v1569
        %v2403 = vunpack.c.h.b16 %v1569
        %v2404 = vunpack.c.l.b16 %v1570
        %v2405 = vunpack.c.h.b16 %v1570
        %v2406 = vunpack.c.l.b16 %v1571
        %v2407 = vunpack.c.h.b16 %v1571
        %v2408 = vunpack.c.l.b16 %v1572
        %v2409 = vunpack.c.h.b16 %v1572
        %v2410 = vunpack.c.l.b16 %v1573
        %v2411 = vunpack.c.h.b16 %v1573
        %v2412 = vunpack.c.l.b16 %v1574
        %v2413 = vunpack.c.h.b16 %v1574
        %v2414 = vunpack.c.l.b16 %v1575
        %v2415 = vunpack.c.h.b16 %v1575
        %v2416 = vunpack.c.l.b16 %v1576
        %v2417 = vunpack.c.h.b16 %v1576
        %v2418 = vunpack.c.l.b16 %v1577
        %v2419 = vunpack.c.h.b16 %v1577
        %v2420 = vunpack.c.l.b16 %v1578
        %v2421 = vunpack.c.h.b16 %v1578
        %v2422 = vunpack.c.l.b16 %v1579
        %v2423 = vunpack.c.h.b16 %v1579
        %v2424 = vunpack.c.l.b16 %v1580
        %v2425 = vunpack.c.h.b16 %v1580
        %v2426 = vunpack.c.l.b16 %v1581
        %v2427 = vunpack.c.h.b16 %v1581
        %v2428 = vunpack.c.l.b16 %v1582
        %v2429 = vunpack.c.h.b16 %v1582
        %v2430 = vunpack.c.l.b16 %v1583
        %v2431 = vunpack.c.h.b16 %v1583
        %v2432 = vunpack.c.l.b16 %v1584
        %v2433 = vunpack.c.h.b16 %v1584
        %v2434 = vunpack.c.l.b16 %v1585
        %v2435 = vunpack.c.h.b16 %v1585
        %v2436 = vunpack.c.l.b16 %v1586
        %v2437 = vunpack.c.h.b16 %v1586
        %v2438 = vunpack.c.l.b16 %v1587
        %v2439 = vunpack.c.h.b16 %v1587
        %v2440 = vunpack.c.l.b16 %v1588
        %v2441 = vunpack.c.h.b16 %v1588
        %v2442 = vunpack.c.l.b16 %v1589
        %v2443 = vunpack.c.h.b16 %v1589
        %v2444 = vunpack.c.l.b16 %v1590
        %v2445 = vunpack.c.h.b16 %v1590
        %v2446 = vunpack.c.l.b16 %v1591
        %v2447 = vunpack.c.h.b16 %v1591
        %v2448 = vunpack.c.l.b16 %v1592
        %v2449 = vunpack.c.h.b16 %v1592
        %v2450 = vunpack.c.l.b16 %v1593
        %v2451 = vunpack.c.h.b16 %v1593
        %v2452 = vunpack.c.l.b16 %v1594
        %v2453 = vunpack.c.h.b16 %v1594
        %v2454 = vunpack.c.l.b16 %v1595
        %v2455 = vunpack.c.h.b16 %v1595
        %v2456 = vunpack.c.l.b16 %v1596
        %v2457 = vunpack.c.h.b16 %v1596
        %v2458 = vunpack.c.l.b16 %v1597
        %v2459 = vunpack.c.h.b16 %v1597
        %v2460 = vunpack.c.l.b16 %v1598
        %v2461 = vunpack.c.h.b16 %v1598
        %v2462 = vunpack.c.l.b16 %v1599
        %v2463 = vunpack.c.h.b16 %v1599
        %v2464 = vunpack.c.l.b16 %v1600
        %v2465 = vunpack.c.h.b16 %v1600
        %v2466 = vunpack.c.l.b16 %v1601
        %v2467 = vunpack.c.h.b16 %v1601
        %v2468 = vunpack.c.l.b16 %v1602
        %v2469 = vunpack.c.h.b16 %v1602
        %v2470 = vunpack.c.l.b16 %v1603
        %v2471 = vunpack.c.h.b16 %v1603
        %v2472 = vunpack.c.l.b16 %v1604
        %v2473 = vunpack.c.h.b16 %v1604
        %v2474 = vunpack.c.l.b16 %v1605
        %v2475 = vunpack.c.h.b16 %v1605
        %v2476 = vunpack.c.l.b16 %v1606
        %v2477 = vunpack.c.h.b16 %v1606
        %v2478 = vunpack.c.l.b16 %v1607
        %v2479 = vunpack.c.h.b16 %v1607
        %v2480 = vunpack.c.l.b16 %v1608
        %v2481 = vunpack.c.h.b16 %v1608
        %v2482 = vunpack.c.l.b16 %v1609
        %v2483 = vunpack.c.h.b16 %v1609
        %v2484 = vunpack.c.l.b16 %v1610
        %v2485 = vunpack.c.h.b16 %v1610
        %v2486 = vunpack.c.l.b16 %v1611
        %v2487 = vunpack.c.h.b16 %v1611
        %v2488 = vunpack.c.l.b16 %v1612
        %v2489 = vunpack.c.h.b16 %v1612
        %v2490 = vunpack.c.l.b16 %v1613
        %v2491 = vunpack.c.h.b16 %v1613
        %v2492 = vunpack.c.l.b16 %v1614
        %v2493 = vunpack.c.h.b16 %v1614
        %v2494 = vunpack.c.l.b16 %v1615
        %v2495 = vunpack.c.h.b16 %v1615
        %v2496 = vunpack.c.l.b16 %v1616
        %v2497 = vunpack.c.h.b16 %v1616
        %v2498 = vunpack.c.l.b16 %v1617
        %v2499 = vunpack.c.h.b16 %v1617
        %v2500 = vunpack.c.l.b16 %v1618
        %v2501 = vunpack.c.h.b16 %v1618
        %v2502 = vunpack.c.l.b16 %v1619
        %v2503 = vunpack.c.h.b16 %v1619
        %v2504 = vunpack.c.l.b16 %v1620
        %v2505 = vunpack.c.h.b16 %v1620
        %v2506 = vunpack.c.l.b16 %v1621
        %v2507 = vunpack.c.h.b16 %v1621
        %v2508 = vunpack.c.l.b16 %v1622
        %v2509 = vunpack.c.h.b16 %v1622
        %v2510 = vunpack.c.l.b16 %v1623
        %v2511 = vunpack.c.h.b16 %v1623
        %v2512 = vunpack.c.l.b16 %v1624
        %v2513 = vunpack.c.h.b16 %v1624
        %v2514 = vunpack.c.l.b16 %v1625
        %v2515 = vunpack.c.h.b16 %v1625
        %v2516 = vunpack.c.l.b16 %v1626
        %v2517 = vunpack.c.h.b16 %v1626
        %v2518 = vunpack.c.l.b16 %v1627
        %v2519 = vunpack.c.h.b16 %v1627
        %v2520 = vunpack.c.l.b16 %v1628
        %v2521 = vunpack.c.h.b16 %v1628
        %v2522 = vunpack.c.l.b16 %v1629
        %v2523 = vunpack.c.h.b16 %v1629
        %v2524 = vunpack.c.l.b16 %v1630
        %v2525 = vunpack.c.h.b16 %v1630
        %v2526 = vunpack.c.l.b16 %v1631
        %v2527 = vunpack.c.h.b16 %v1631
        %v2528 = vunpack.c.l.b16 %v1632
        %v2529 = vunpack.c.h.b16 %v1632
        %v2530 = vunpack.c.l.b16 %v1633
        %v2531 = vunpack.c.h.b16 %v1633
        %v2532 = vunpack.c.l.b16 %v1634
        %v2533 = vunpack.c.h.b16 %v1634
        %v2534 = vunpack.c.l.b16 %v1635
        %v2535 = vunpack.c.h.b16 %v1635
        %v2536 = vunpack.c.l.b16 %v1636
        %v2537 = vunpack.c.h.b16 %v1636
        %v2538 = vunpack.c.l.b16 %v1637
        %v2539 = vunpack.c.h.b16 %v1637
        %v2540 = vunpack.c.l.b16 %v1638
        %v2541 = vunpack.c.h.b16 %v1638
        %v2542 = vunpack.c.l.b16 %v1639
        %v2543 = vunpack.c.h.b16 %v1639
        %v2544 = vunpack.c.l.b16 %v1640
        %v2545 = vunpack.c.h.b16 %v1640
        %v2546 = vunpack.c.l.b16 %v1641
        %v2547 = vunpack.c.h.b16 %v1641
        %v2548 = vunpack.c.l.b16 %v1642
        %v2549 = vunpack.c.h.b16 %v1642
        %v2550 = vunpack.c.l.b16 %v1643
        %v2551 = vunpack.c.h.b16 %v1643
        %v2552 = vunpack.c.l.b16 %v1644
        %v2553 = vunpack.c.h.b16 %v1644
        %v2554 = vunpack.c.l.b16 %v1645
        %v2555 = vunpack.c.h.b16 %v1645
        %v2556 = vunpack.c.l.b16 %v1646
        %v2557 = vunpack.c.h.b16 %v1646
        %v2558 = vunpack.c.l.b16 %v1647
        %v2559 = vunpack.c.h.b16 %v1647
        %v2560 = vunpack.c.l.b16 %v1648
        %v2561 = vunpack.c.h.b16 %v1648
        %v2562 = vunpack.c.l.b16 %v1649
        %v2563 = vunpack.c.h.b16 %v1649
        %v2564 = vunpack.c.l.b16 %v1650
        %v2565 = vunpack.c.h.b16 %v1650
        %v2566 = vunpack.c.l.b16 %v1651
        %v2567 = vunpack.c.h.b16 %v1651
        %v2568 = vunpack.c.l.b16 %v1652
        %v2569 = vunpack.c.h.b16 %v1652
        %v2570 = vunpack.c.l.b16 %v1653
        %v2571 = vunpack.c.h.b16 %v1653
        %v2572 = vunpack.c.l.b16 %v1654
        %v2573 = vunpack.c.h.b16 %v1654
        %v2574 = vunpack.c.l.b16 %v1655
        %v2575 = vunpack.c.h.b16 %v1655
        %v2576 = vunpack.c.l.b16 %v1656
        %v2577 = vunpack.c.h.b16 %v1656
        %v2578 = vunpack.c.l.b16 %v1657
        %v2579 = vunpack.c.h.b16 %v1657
        %v2580 = vunpack.c.l.b16 %v1658
        %v2581 = vunpack.c.h.b16 %v1658
        %v2582 = vunpack.c.l.b16 %v1659
        %v2583 = vunpack.c.h.b16 %v1659
        %v2584 = vunpack.c.l.b16 %v1660
        %v2585 = vunpack.c.h.b16 %v1660
        %v2586 = vunpack.c.l.b16 %v1661
        %v2587 = vunpack.c.h.b16 %v1661
        %v2588 = vunpack.c.l.b16 %v1662
        %v2589 = vunpack.c.h.b16 %v1662
        %v2590 = vunpack.c.l.b16 %v1663
        %v2591 = vunpack.c.h.b16 %v1663
        %v2592 = vunpack.c.l.b16 %v1664
        %v2593 = vunpack.c.h.b16 %v1664
        %v2594 = vunpack.c.l.b16 %v1665
        %v2595 = vunpack.c.h.b16 %v1665
        %v2596 = vunpack.c.l.b16 %v1666
        %v2597 = vunpack.c.h.b16 %v1666
        %v2598 = vunpack.c.l.b16 %v1667
        %v2599 = vunpack.c.h.b16 %v1667
        %v2600 = vunpack.c.l.b16 %v1668
        %v2601 = vunpack.c.h.b16 %v1668
        %v2602 = vunpack.c.l.b16 %v1669
        %v2603 = vunpack.c.h.b16 %v1669
        %v2604 = vunpack.c.l.b16 %v1670
        %v2605 = vunpack.c.h.b16 %v1670
        %v2606 = vunpack.c.l.b16 %v1671
        %v2607 = vunpack.c.h.b16 %v1671
        %v2608 = vunpack.c.l.b16 %v1672
        %v2609 = vunpack.c.h.b16 %v1672
        %v2610 = vunpack.c.l.b16 %v1673
        %v2611 = vunpack.c.h.b16 %v1673
        %v2612 = vunpack.c.l.b16 %v1674
        %v2613 = vunpack.c.h.b16 %v1674
        %v2614 = vunpack.c.l.b16 %v1675
        %v2615 = vunpack.c.h.b16 %v1675
        %v2616 = vunpack.c.l.b16 %v1676
        %v2617 = vunpack.c.h.b16 %v1676
        %v2618 = vunpack.c.l.b16 %v1677
        %v2619 = vunpack.c.h.b16 %v1677
        %v2620 = vunpack.c.l.b16 %v1678
        %v2621 = vunpack.c.h.b16 %v1678
        %v2622 = vunpack.c.l.b16 %v1679
        %v2623 = vunpack.c.h.b16 %v1679
        %v2624 = vunpack.c.l.b16 %v1680
        %v2625 = vunpack.c.h.b16 %v1680
        %v2626 = vunpack.c.l.b16 %v1681
        %v2627 = vunpack.c.h.b16 %v1681
        %v2628 = vunpack.c.l.b16 %v1682
        %v2629 = vunpack.c.h.b16 %v1682
        %v2630 = vunpack.c.l.b16 %v1683
        %v2631 = vunpack.c.h.b16 %v1683
        %v2632 = vunpack.c.l.b16 %v1684
        %v2633 = vunpack.c.h.b16 %v1684
        %v2634 = vunpack.c.l.b16 %v1685
        %v2635 = vunpack.c.h.b16 %v1685
        %v2636 = vunpack.c.l.b16 %v1686
        %v2637 = vunpack.c.h.b16 %v1686
        %v2638 = vunpack.c.l.b16 %v1687
        %v2639 = vunpack.c.h.b16 %v1687
        %v2640 = vunpack.c.l.b16 %v1688
        %v2641 = vunpack.c.h.b16 %v1688
        %v2642 = vunpack.c.l.b16 %v1689
        %v2643 = vunpack.c.h.b16 %v1689
        %v2644 = vunpack.c.l.b16 %v1690
        %v2645 = vunpack.c.h.b16 %v1690
        %v2646 = vunpack.c.l.b16 %v1691
        %v2647 = vunpack.c.h.b16 %v1691
        %v2648 = vunpack.c.l.b16 %v1692
        %v2649 = vunpack.c.h.b16 %v1692
        %v2650 = vunpack.c.l.b16 %v1693
        %v2651 = vunpack.c.h.b16 %v1693
        %v2652 = vunpack.c.l.b16 %v1694
        %v2653 = vunpack.c.h.b16 %v1694
        %v2654 = vunpack.c.l.b16 %v1695
        %v2655 = vunpack.c.h.b16 %v1695
        %v2656 = vunpack.c.l.b16 %v1696
        %v2657 = vunpack.c.h.b16 %v1696
        %v2658 = vunpack.c.l.b16 %v1697
        %v2659 = vunpack.c.h.b16 %v1697
        %v2660 = vunpack.c.l.b16 %v1698
        %v2661 = vunpack.c.h.b16 %v1698
        %v2662 = vunpack.c.l.b16 %v1699
        %v2663 = vunpack.c.h.b16 %v1699
        %v2664 = vunpack.c.l.b16 %v1700
        %v2665 = vunpack.c.h.b16 %v1700
        %v2666 = vunpack.c.l.b16 %v1701
        %v2667 = vunpack.c.h.b16 %v1701
        %v2668 = vunpack.c.l.b16 %v1702
        %v2669 = vunpack.c.h.b16 %v1702
        %v2670 = vunpack.c.l.b16 %v1703
        %v2671 = vunpack.c.h.b16 %v1703
        %v2672 = vunpack.c.l.b16 %v1704
        %v2673 = vunpack.c.h.b16 %v1704
        %v2674 = vunpack.c.l.b16 %v1705
        %v2675 = vunpack.c.h.b16 %v1705
        %v2676 = vunpack.c.l.b16 %v1706
        %v2677 = vunpack.c.h.b16 %v1706
        %v2678 = vunpack.c.l.b16 %v1707
        %v2679 = vunpack.c.h.b16 %v1707
        %v2680 = vunpack.c.l.b16 %v1708
        %v2681 = vunpack.c.h.b16 %v1708
        %v2682 = vunpack.c.l.b16 %v1709
        %v2683 = vunpack.c.h.b16 %v1709
        %v2684 = vunpack.c.l.b16 %v1710
        %v2685 = vunpack.c.h.b16 %v1710
        %v2686 = vpack.c.b16 %v2112, %v2110
        %v2687 = vpack.c.b16 %v2113, %v2111
        %v2688 = vpack.c.b16 %v2116, %v2114
        %v2689 = vpack.c.b16 %v2117, %v2115
        %v2690 = vpack.c.b16 %v2120, %v2118
        %v2691 = vpack.c.b16 %v2121, %v2119
        %v2692 = vpack.c.b16 %v2124, %v2122
        %v2693 = vpack.c.b16 %v2125, %v2123
        %v2694 = vpack.c.b16 %v2128, %v2126
        %v2695 = vpack.c.b16 %v2129, %v2127
        %v2696 = vpack.c.b16 %v2132, %v2130
        %v2697 = vpack.c.b16 %v2133, %v2131
        %v2698 = vpack.c.b16 %v2136, %v2134
        %v2699 = vpack.c.b16 %v2137, %v2135
        %v2700 = vpack.c.b16 %v2140, %v2138
        %v2701 = vpack.c.b16 %v2141, %v2139
        %v2702 = vpack.c.b16 %v2144, %v2142
        %v2703 = vpack.c.b16 %v2145, %v2143
        %v2704 = vpack.c.b16 %v2148, %v2146
        %v2705 = vpack.c.b16 %v2149, %v2147
        %v2706 = vpack.c.b16 %v2152, %v2150
        %v2707 = vpack.c.b16 %v2153, %v2151
        %v2708 = vpack.c.b16 %v2156, %v2154
        %v2709 = vpack.c.b16 %v2157, %v2155
        %v2710 = vpack.c.b16 %v2160, %v2158
        %v2711 = vpack.c.b16 %v2161, %v2159
        %v2712 = vpack.c.b16 %v2164, %v2162
        %v2713 = vpack.c.b16 %v2165, %v2163
        %v2714 = vpack.c.b16 %v2168, %v2166
        %v2715 = vpack.c.b16 %v2169, %v2167
        %v2716 = vpack.c.b16 %v2172, %v2170
        %v2717 = vpack.c.b16 %v2173, %v2171
        %v2718 = vpack.c.b16 %v2176, %v2174
        %v2719 = vpack.c.b16 %v2177, %v2175
        %v2720 = vpack.c.b16 %v2180, %v2178
        %v2721 = vpack.c.b16 %v2181, %v2179
        %v2722 = vpack.c.b16 %v2184, %v2182
        %v2723 = vpack.c.b16 %v2185, %v2183
        %v2724 = vpack.c.b16 %v2188, %v2186
        %v2725 = vpack.c.b16 %v2189, %v2187
        %v2726 = vpack.c.b16 %v2192, %v2190
        %v2727 = vpack.c.b16 %v2193, %v2191
        %v2728 = vpack.c.b16 %v2196, %v2194
        %v2729 = vpack.c.b16 %v2197, %v2195
        %v2730 = vpack.c.b16 %v2200, %v2198
        %v2731 = vpack.c.b16 %v2201, %v2199
        %v2732 = vpack.c.b16 %v2204, %v2202
        %v2733 = vpack.c.b16 %v2205, %v2203
        %v2734 = vpack.c.b16 %v2208, %v2206
        %v2735 = vpack.c.b16 %v2209, %v2207
        %v2736 = vpack.c.b16 %v2212, %v2210
        %v2737 = vpack.c.b16 %v2213, %v2211
        %v2738 = vpack.c.b16 %v2216, %v2214
        %v2739 = vpack.c.b16 %v2217, %v2215
        %v2740 = vpack.c.b16 %v2220, %v2218
        %v2741 = vpack.c.b16 %v2221, %v2219
        %v2742 = vpack.c.b16 %v2224, %v2222
        %v2743 = vpack.c.b16 %v2225, %v2223
        %v2744 = vpack.c.b16 %v2228, %v2226
        %v2745 = vpack.c.b16 %v2229, %v2227
        %v2746 = vpack.c.b16 %v2232, %v2230
        %v2747 = vpack.c.b16 %v2233, %v2231
        %v2748 = vpack.c.b16 %v2236, %v2234
        %v2749 = vpack.c.b16 %v2237, %v2235
        %v2750 = vpack.c.b16 %v2240, %v2238
        %v2751 = vpack.c.b16 %v2241, %v2239
        %v2752 = vpack.c.b16 %v2244, %v2242
        %v2753 = vpack.c.b16 %v2245, %v2243
        %v2754 = vpack.c.b16 %v2248, %v2246
        %v2755 = vpack.c.b16 %v2249, %v2247
        %v2756 = vpack.c.b16 %v2252, %v2250
        %v2757 = vpack.c.b16 %v2253, %v2251
        %v2758 = vpack.c.b16 %v2256, %v2254
        %v2759 = vpack.c.b16 %v2257, %v2255
        %v2760 = vpack.c.b16 %v2260, %v2258
        %v2761 = vpack.c.b16 %v2261, %v2259
        %v2762 = vpack.c.b16 %v2264, %v2262
        %v2763 = vpack.c.b16 %v2265, %v2263
        %v2764 = vpack.c.b16 %v2268, %v2266
        %v2765 = vpack.c.b16 %v2269, %v2267
        %v2766 = vpack.c.b16 %v2272, %v2270
        %v2767 = vpack.c.b16 %v2273, %v2271
        %v2768 = vpack.c.b16 %v2276, %v2274
        %v2769 = vpack.c.b16 %v2277, %v2275
        %v2770 = vpack.c.b16 %v2280, %v2278
        %v2771 = vpack.c.b16 %v2281, %v2279
        %v2772 = vpack.c.b16 %v2284, %v2282
        %v2773 = vpack.c.b16 %v2285, %v2283
        %v2774 = vpack.c.b16 %v2288, %v2286
        %v2775 = vpack.c.b16 %v2289, %v2287
        %v2776 = vpack.c.b16 %v2292, %v2290
        %v2777 = vpack.c.b16 %v2293, %v2291
        %v2778 = vpack.c.b16 %v2296, %v2294
        %v2779 = vpack.c.b16 %v2297, %v2295
        %v2780 = vpack.c.b16 %v2300, %v2298
        %v2781 = vpack.c.b16 %v2301, %v2299
        %v2782 = vpack.c.b16 %v2304, %v2302
        %v2783 = vpack.c.b16 %v2305, %v2303
        %v2784 = vpack.c.b16 %v2308, %v2306
        %v2785 = vpack.c.b16 %v2309, %v2307
        %v2786 = vpack.c.b16 %v2312, %v2310
        %v2787 = vpack.c.b16 %v2313, %v2311
        %v2788 = vpack.c.b16 %v2316, %v2314
        %v2789 = vpack.c.b16 %v2317, %v2315
        %v2790 = vpack.c.b16 %v2320, %v2318
        %v2791 = vpack.c.b16 %v2321, %v2319
        %v2792 = vpack.c.b16 %v2324, %v2322
        %v2793 = vpack.c.b16 %v2325, %v2323
        %v2794 = vpack.c.b16 %v2328, %v2326
        %v2795 = vpack.c.b16 %v2329, %v2327
        %v2796 = vpack.c.b16 %v2332, %v2330
        %v2797 = vpack.c.b16 %v2333, %v2331
        %v2798 = vpack.c.b16 %v2336, %v2334
        %v2799 = vpack.c.b16 %v2337, %v2335
        %v2800 = vpack.c.b16 %v2340, %v2338
        %v2801 = vpack.c.b16 %v2341, %v2339
        %v2802 = vpack.c.b16 %v2344, %v2342
        %v2803 = vpack.c.b16 %v2345, %v2343
        %v2804 = vpack.c.b16 %v2348, %v2346
        %v2805 = vpack.c.b16 %v2349, %v2347
        %v2806 = vpack.c.b16 %v2352, %v2350
        %v2807 = vpack.c.b16 %v2353, %v2351
        %v2808 = vpack.c.b16 %v2356, %v2354
        %v2809 = vpack.c.b16 %v2357, %v2355
        %v2810 = vpack.c.b16 %v2360, %v2358
        %v2811 = vpack.c.b16 %v2361, %v2359
        %v2812 = vpack.c.b16 %v2364, %v2362
        %v2813 = vpack.c.b16 %v2365, %v2363
        %v2814 = vpack.c.b16 %v2368, %v2366
        %v2815 = vpack.c.b16 %v2369, %v2367
        %v2816 = vpack.c.b16 %v2372, %v2370
        %v2817 = vpack.c.b16 %v2373, %v2371
        %v2818 = vpack.c.b16 %v2376, %v2374
        %v2819 = vpack.c.b16 %v2377, %v2375
        %v2820 = vpack.c.b16 %v2380, %v2378
        %v2821 = vpack.c.b16 %v2381, %v2379
        %v2822 = vpack.c.b16 %v2384, %v2382
        %v2823 = vpack.c.b16 %v2385, %v2383
        %v2824 = vpack.c.b16 %v2388, %v2386
        %v2825 = vpack.c.b16 %v2389, %v2387
        %v2826 = vpack.c.b16 %v2392, %v2390
        %v2827 = vpack.c.b16 %v2393, %v2391
        %v2828 = vpack.c.b16 %v2396, %v2394
        %v2829 = vpack.c.b16 %v2397, %v2395
        %v2830 = vpack.c.b16 %v2400, %v2398
        %v2831 = vpack.c.b16 %v2401, %v2399
        %v2832 = vpack.c.b16 %v2404, %v2402
        %v2833 = vpack.c.b16 %v2405, %v2403
        %v2834 = vpack.c.b16 %v2408, %v2406
        %v2835 = vpack.c.b16 %v2409, %v2407
        %v2836 = vpack.c.b16 %v2412, %v2410
        %v2837 = vpack.c.b16 %v2413, %v2411
        %v2838 = vpack.c.b16 %v2416, %v2414
        %v2839 = vpack.c.b16 %v2417, %v2415
        %v2840 = vpack.c.b16 %v2420, %v2418
        %v2841 = vpack.c.b16 %v2421, %v2419
        %v2842 = vpack.c.b16 %v2424, %v2422
        %v2843 = vpack.c.b16 %v2425, %v2423
        %v2844 = vpack.c.b16 %v2428, %v2426
        %v2845 = vpack.c.b16 %v2429, %v2427
        %v2846 = vpack.c.b16 %v2432, %v2430
        %v2847 = vpack.c.b16 %v2433, %v2431
        %v2848 = vpack.c.b16 %v2436, %v2434
        %v2849 = vpack.c.b16 %v2437, %v2435
        %v2850 = vpack.c.b16 %v2440, %v2438
        %v2851 = vpack.c.b16 %v2441, %v2439
        %v2852 = vpack.c.b16 %v2444, %v2442
        %v2853 = vpack.c.b16 %v2445, %v2443
        %v2854 = vpack.c.b16 %v2448, %v2446
        %v2855 = vpack.c.b16 %v2449, %v2447
        %v2856 = vpack.c.b16 %v2452, %v2450
        %v2857 = vpack.c.b16 %v2453, %v2451
        %v2858 = vpack.c.b16 %v2456, %v2454
        %v2859 = vpack.c.b16 %v2457, %v2455
        %v2860 = vpack.c.b16 %v2460, %v2458
        %v2861 = vpack.c.b16 %v2461, %v2459
        %v2862 = vpack.c.b16 %v2464, %v2462
        %v2863 = vpack.c.b16 %v2465, %v2463
        %v2864 = vpack.c.b16 %v2468, %v2466
        %v2865 = vpack.c.b16 %v2469, %v2467
        %v2866 = vpack.c.b16 %v2472, %v2470
        %v2867 = vpack.c.b16 %v2473, %v2471
        %v2868 = vpack.c.b16 %v2476, %v2474
        %v2869 = vpack.c.b16 %v2477, %v2475
        %v2870 = vpack.c.b16 %v2480, %v2478
        %v2871 = vpack.c.b16 %v2481, %v2479
        %v2872 = vpack.c.b16 %v2484, %v2482
        %v2873 = vpack.c.b16 %v2485, %v2483
        %v2874 = vpack.c.b16 %v2488, %v2486
        %v2875 = vpack.c.b16 %v2489, %v2487
        %v2876 = vpack.c.b16 %v2492, %v2490
        %v2877 = vpack.c.b16 %v2493, %v2491
        %v2878 = vpack.c.b16 %v2496, %v2494
        %v2879 = vpack.c.b16 %v2497, %v2495
        %v2880 = vpack.c.b16 %v2500, %v2498
        %v2881 = vpack.c.b16 %v2501, %v2499
        %v2882 = vpack.c.b16 %v2504, %v2502
        %v2883 = vpack.c.b16 %v2505, %v2503
        %v2884 = vpack.c.b16 %v2508, %v2506
        %v2885 = vpack.c.b16 %v2509, %v2507
        %v2886 = vpack.c.b16 %v2512, %v2510
        %v2887 = vpack.c.b16 %v2513, %v2511
        %v2888 = vpack.c.b16 %v2516, %v2514
        %v2889 = vpack.c.b16 %v2517, %v2515
        %v2890 = vpack.c.b16 %v2520, %v2518
        %v2891 = vpack.c.b16 %v2521, %v2519
        %v2892 = vpack.c.b16 %v2524, %v2522
        %v2893 = vpack.c.b16 %v2525, %v2523
        %v2894 = vpack.c.b16 %v2528, %v2526
        %v2895 = vpack.c.b16 %v2529, %v2527
        %v2896 = vpack.c.b16 %v2532, %v2530
        %v2897 = vpack.c.b16 %v2533, %v2531
        %v2898 = vpack.c.b16 %v2536, %v2534
        %v2899 = vpack.c.b16 %v2537, %v2535
        %v2900 = vpack.c.b16 %v2540, %v2538
        %v2901 = vpack.c.b16 %v2541, %v2539
        %v2902 = vpack.c.b16 %v2544, %v2542
        %v2903 = vpack.c.b16 %v2545, %v2543
        %v2904 = vpack.c.b16 %v2548, %v2546
        %v2905 = vpack.c.b16 %v2549, %v2547
        %v2906 = vpack.c.b16 %v2552, %v2550
        %v2907 = vpack.c.b16 %v2553, %v2551
        %v2908 = vpack.c.b16 %v2556, %v2554
        %v2909 = vpack.c.b16 %v2557, %v2555
        %v2910 = vpack.c.b16 %v2560, %v2558
        %v2911 = vpack.c.b16 %v2561, %v2559
        %v2912 = vpack.c.b16 %v2564, %v2562
        %v2913 = vpack.c.b16 %v2565, %v2563
        %v2914 = vpack.c.b16 %v2568, %v2566
        %v2915 = vpack.c.b16 %v2569, %v2567
        %v2916 = vpack.c.b16 %v2572, %v2570
        %v2917 = vpack.c.b16 %v2573, %v2571
        %v2918 = vpack.c.b16 %v2576, %v2574
        %v2919 = vpack.c.b16 %v2577, %v2575
        %v2920 = vpack.c.b16 %v2580, %v2578
        %v2921 = vpack.c.b16 %v2581, %v2579
        %v2922 = vpack.c.b16 %v2584, %v2582
        %v2923 = vpack.c.b16 %v2585, %v2583
        %v2924 = vpack.c.b16 %v2588, %v2586
        %v2925 = vpack.c.b16 %v2589, %v2587
        %v2926 = vpack.c.b16 %v2592, %v2590
        %v2927 = vpack.c.b16 %v2593, %v2591
        %v2928 = vpack.c.b16 %v2596, %v2594
        %v2929 = vpack.c.b16 %v2597, %v2595
        %v2930 = vpack.c.b16 %v2600, %v2598
        %v2931 = vpack.c.b16 %v2601, %v2599
        %v2932 = vpack.c.b16 %v2604, %v2602
        %v2933 = vpack.c.b16 %v2605, %v2603
        %v2934 = vpack.c.b16 %v2608, %v2606
        %v2935 = vpack.c.b16 %v2609, %v2607
        %v2936 = vpack.c.b16 %v2612, %v2610
        %v2937 = vpack.c.b16 %v2613, %v2611
        %v2938 = vpack.c.b16 %v2616, %v2614
        %v2939 = vpack.c.b16 %v2617, %v2615
        %v2940 = vpack.c.b16 %v2620, %v2618
        %v2941 = vpack.c.b16 %v2621, %v2619
        %v2942 = vpack.c.b16 %v2624, %v2622
        %v2943 = vpack.c.b16 %v2625, %v2623
        %v2944 = vpack.c.b16 %v2628, %v2626
        %v2945 = vpack.c.b16 %v2629, %v2627
        %v2946 = vpack.c.b16 %v2632, %v2630
        %v2947 = vpack.c.b16 %v2633, %v2631
        %v2948 = vpack.c.b16 %v2636, %v2634
        %v2949 = vpack.c.b16 %v2637, %v2635
        %v2950 = vpack.c.b16 %v2640, %v2638
        %v2951 = vpack.c.b16 %v2641, %v2639
        %v2952 = vpack.c.b16 %v2644, %v2642
        %v2953 = vpack.c.b16 %v2645, %v2643
        %v2954 = vpack.c.b16 %v2648, %v2646
        %v2955 = vpack.c.b16 %v2649, %v2647
        %v2956 = vpack.c.b16 %v2652, %v2650
        %v2957 = vpack.c.b16 %v2653, %v2651
        %v2958 = vpack.c.b16 %v2656, %v2654
        %v2959 = vpack.c.b16 %v2657, %v2655
        %v2960 = vpack.c.b16 %v2660, %v2658
        %v2961 = vpack.c.b16 %v2661, %v2659
        %v2962 = vpack.c.b16 %v2664, %v2662
        %v2963 = vpack.c.b16 %v2665, %v2663
        %v2964 = vpack.c.b16 %v2668, %v2666
        %v2965 = vpack.c.b16 %v2669, %v2667
        %v2966 = vpack.c.b16 %v2672, %v2670
        %v2967 = vpack.c.b16 %v2673, %v2671
        %v2968 = vpack.c.b16 %v2676, %v2674
        %v2969 = vpack.c.b16 %v2677, %v2675
        %v2970 = vpack.c.b16 %v2680, %v2678
        %v2971 = vpack.c.b16 %v2681, %v2679
        %v2972 = vpack.c.b16 %v2684, %v2682
        %v2973 = vpack.c.b16 %v2685, %v2683
        %3262 = vmatprep.subr.bf16.mxu0 %v2701
        %3263 = vmatpush1.bf16.msra.mxu0 %v2700
        %3264 = vmatprep.subr.bf16.mxu0 %v2699
        %3265 = vmatpush1.bf16.msra.mxu0 %v2698
        %3266 = vmatprep.subr.bf16.mxu0 %v2697
        %3267 = vmatpush1.bf16.msra.mxu0 %v2696
        %3268 = vmatprep.subr.bf16.mxu0 %v2695
        %3269 = vmatpush1.bf16.msra.mxu0 %v2694
        %3270 = vmatprep.subr.bf16.mxu0 %v2693
        %3271 = vmatpush1.bf16.msra.mxu0 %v2692
        %3272 = vmatprep.subr.bf16.mxu0 %v2691
        %3273 = vmatpush1.bf16.msra.mxu0 %v2690
        %3274 = vmatprep.subr.bf16.mxu0 %v2689
        %3275 = vmatpush1.bf16.msra.mxu0 %v2688
        %3276 = vmatprep.subr.bf16.mxu0 %v2687
        %3277 = vmatpush1.bf16.msra.mxu0 %v2686
        %3278 = vmatprep.subr.bf16.mxu0 %v2717
        %3279 = vmatpush2.bf16.msra.mxu0 %v2716
        %3280 = vmatprep.subr.bf16.mxu0 %v2715
        %3281 = vmatpush2.bf16.msra.mxu0 %v2714
        %3282 = vmatprep.subr.bf16.mxu0 %v2713
        %3283 = vmatpush2.bf16.msra.mxu0 %v2712
        %3284 = vmatprep.subr.bf16.mxu0 %v2711
        %3285 = vmatpush2.bf16.msra.mxu0 %v2710
        %3286 = vmatprep.subr.bf16.mxu0 %v2709
        %3287 = vmatpush2.bf16.msra.mxu0 %v2708
        %3288 = vmatprep.subr.bf16.mxu0 %v2707
        %3289 = vmatpush2.bf16.msra.mxu0 %v2706
        %3290 = vmatprep.subr.bf16.mxu0 %v2705
        %3291 = vmatpush2.bf16.msra.mxu0 %v2704
        %3292 = vmatprep.subr.bf16.mxu0 %v2703
        %3293 = vmatpush2.bf16.msra.mxu0 %v2702
        %3294 = vmatprep.mubr.bf16.mxu0 %v1743
        %3295 = vmatmul.mubr.bf16.gmra.mxu0 %v1735
        %v3296 = vpop.f32.mrf.mxu0
        %v3297 = vadd.f32 %v1716, %v3296
        %v3298 = vpop.f32.mrf.mxu0
        %v3299 = vadd.f32 %v1720, %v3298
        %v3300 = vpop.f32.mrf.mxu0
        %v3301 = vpop.f32.mrf.mxu0
        %3302 = vdwg.mxu0
        %3303 = vmatprep.subr.bf16.mxu0 %v2733
        %3304 = vmatpush1.bf16.msra.mxu0 %v2732
        %3305 = vmatprep.subr.bf16.mxu0 %v2731
        %3306 = vmatpush1.bf16.msra.mxu0 %v2730
        %3307 = vmatprep.subr.bf16.mxu0 %v2729
        %3308 = vmatpush1.bf16.msra.mxu0 %v2728
        %3309 = vmatprep.subr.bf16.mxu0 %v2727
        %3310 = vmatpush1.bf16.msra.mxu0 %v2726
        %3311 = vmatprep.subr.bf16.mxu0 %v2725
        %3312 = vmatpush1.bf16.msra.mxu0 %v2724
        %3313 = vmatprep.subr.bf16.mxu0 %v2723
        %3314 = vmatpush1.bf16.msra.mxu0 %v2722
        %3315 = vmatprep.subr.bf16.mxu0 %v2721
        %3316 = vmatpush1.bf16.msra.mxu0 %v2720
        %3317 = vmatprep.subr.bf16.mxu0 %v2719
        %3318 = vmatpush1.bf16.msra.mxu0 %v2718
        %3319 = vmatprep.subr.bf16.mxu0 %v2749
        %3320 = vmatpush2.bf16.msra.mxu0 %v2748
        %3321 = vmatprep.subr.bf16.mxu0 %v2747
        %3322 = vmatpush2.bf16.msra.mxu0 %v2746
        %3323 = vmatprep.subr.bf16.mxu0 %v2745
        %3324 = vmatpush2.bf16.msra.mxu0 %v2744
        %3325 = vmatprep.subr.bf16.mxu0 %v2743
        %3326 = vmatpush2.bf16.msra.mxu0 %v2742
        %3327 = vmatprep.subr.bf16.mxu0 %v2741
        %3328 = vmatpush2.bf16.msra.mxu0 %v2740
        %3329 = vmatprep.subr.bf16.mxu0 %v2739
        %3330 = vmatpush2.bf16.msra.mxu0 %v2738
        %3331 = vmatprep.subr.bf16.mxu0 %v2737
        %3332 = vmatpush2.bf16.msra.mxu0 %v2736
        %3333 = vmatprep.subr.bf16.mxu0 %v2735
        %3334 = vmatpush2.bf16.msra.mxu0 %v2734
        %3335 = vmatprep.mubr.bf16.mxu0 %v1744
        %3336 = vmatmul.mubr.bf16.gmra.mxu0 %v1742
        %v3337 = vpop.f32.mrf.mxu0
        %v3338 = vadd.f32 %v3297, %v3337
        %v3339 = vpop.f32.mrf.mxu0
        %v3340 = vadd.f32 %v3299, %v3339
        %v3341 = vpop.f32.mrf.mxu0
        %v3342 = vpop.f32.mrf.mxu0
        %3343 = vdwg.mxu0
        %3344 = vmatprep.subr.bf16.mxu0 %v2765
        %3345 = vmatpush1.bf16.msra.mxu0 %v2764
        %3346 = vmatprep.subr.bf16.mxu0 %v2763
        %3347 = vmatpush1.bf16.msra.mxu0 %v2762
        %3348 = vmatprep.subr.bf16.mxu0 %v2761
        %3349 = vmatpush1.bf16.msra.mxu0 %v2760
        %3350 = vmatprep.subr.bf16.mxu0 %v2759
        %3351 = vmatpush1.bf16.msra.mxu0 %v2758
        %3352 = vmatprep.subr.bf16.mxu0 %v2757
        %3353 = vmatpush1.bf16.msra.mxu0 %v2756
        %3354 = vmatprep.subr.bf16.mxu0 %v2755
        %3355 = vmatpush1.bf16.msra.mxu0 %v2754
        %3356 = vmatprep.subr.bf16.mxu0 %v2753
        %3357 = vmatpush1.bf16.msra.mxu0 %v2752
        %3358 = vmatprep.subr.bf16.mxu0 %v2751
        %3359 = vmatpush1.bf16.msra.mxu0 %v2750
        %3360 = vmatprep.subr.bf16.mxu0 %v2781
        %3361 = vmatpush2.bf16.msra.mxu0 %v2780
        %3362 = vmatprep.subr.bf16.mxu0 %v2779
        %3363 = vmatpush2.bf16.msra.mxu0 %v2778
        %3364 = vmatprep.subr.bf16.mxu0 %v2777
        %3365 = vmatpush2.bf16.msra.mxu0 %v2776
        %3366 = vmatprep.subr.bf16.mxu0 %v2775
        %3367 = vmatpush2.bf16.msra.mxu0 %v2774
        %3368 = vmatprep.subr.bf16.mxu0 %v2773
        %3369 = vmatpush2.bf16.msra.mxu0 %v2772
        %3370 = vmatprep.subr.bf16.mxu0 %v2771
        %3371 = vmatpush2.bf16.msra.mxu0 %v2770
        %3372 = vmatprep.subr.bf16.mxu0 %v2769
        %3373 = vmatpush2.bf16.msra.mxu0 %v2768
        %3374 = vmatprep.subr.bf16.mxu0 %v2767
        %3375 = vmatpush2.bf16.msra.mxu0 %v2766
        %3376 = vmatprep.mubr.bf16.mxu0 %v1760
        %3377 = vmatmul.mubr.bf16.gmra.mxu0 %v1752
        %v3378 = vpop.f32.mrf.mxu0
        %v3379 = vadd.f32 %v3338, %v3378
        %v3380 = vpop.f32.mrf.mxu0
        %v3381 = vadd.f32 %v3340, %v3380
        %v3382 = vpop.f32.mrf.mxu0
        %v3383 = vpop.f32.mrf.mxu0
        %3384 = vdwg.mxu0
        %3385 = vmatprep.subr.bf16.mxu0 %v2797
        %3386 = vmatpush1.bf16.msra.mxu0 %v2796
        %3387 = vmatprep.subr.bf16.mxu0 %v2795
        %3388 = vmatpush1.bf16.msra.mxu0 %v2794
        %3389 = vmatprep.subr.bf16.mxu0 %v2793
        %3390 = vmatpush1.bf16.msra.mxu0 %v2792
        %3391 = vmatprep.subr.bf16.mxu0 %v2791
        %3392 = vmatpush1.bf16.msra.mxu0 %v2790
        %3393 = vmatprep.subr.bf16.mxu0 %v2789
        %3394 = vmatpush1.bf16.msra.mxu0 %v2788
        %3395 = vmatprep.subr.bf16.mxu0 %v2787
        %3396 = vmatpush1.bf16.msra.mxu0 %v2786
        %3397 = vmatprep.subr.bf16.mxu0 %v2785
        %3398 = vmatpush1.bf16.msra.mxu0 %v2784
        %3399 = vmatprep.subr.bf16.mxu0 %v2783
        %3400 = vmatpush1.bf16.msra.mxu0 %v2782
        %3401 = vmatprep.subr.bf16.mxu0 %v2813
        %3402 = vmatpush2.bf16.msra.mxu0 %v2812
        %3403 = vmatprep.subr.bf16.mxu0 %v2811
        %3404 = vmatpush2.bf16.msra.mxu0 %v2810
        %3405 = vmatprep.subr.bf16.mxu0 %v2809
        %3406 = vmatpush2.bf16.msra.mxu0 %v2808
        %3407 = vmatprep.subr.bf16.mxu0 %v2807
        %3408 = vmatpush2.bf16.msra.mxu0 %v2806
        %3409 = vmatprep.subr.bf16.mxu0 %v2805
        %3410 = vmatpush2.bf16.msra.mxu0 %v2804
        %3411 = vmatprep.subr.bf16.mxu0 %v2803
        %3412 = vmatpush2.bf16.msra.mxu0 %v2802
        %3413 = vmatprep.subr.bf16.mxu0 %v2801
        %3414 = vmatpush2.bf16.msra.mxu0 %v2800
        %3415 = vmatprep.subr.bf16.mxu0 %v2799
        %3416 = vmatpush2.bf16.msra.mxu0 %v2798
        %3417 = vmatprep.mubr.bf16.mxu0 %v1761
        %3418 = vmatmul.mubr.bf16.gmra.mxu0 %v1759
        %v3419 = vpop.f32.mrf.mxu0
        %v3420 = vadd.f32 %v3379, %v3419
        %v3421 = vpop.f32.mrf.mxu0
        %v3422 = vadd.f32 %v3381, %v3421
        %v3423 = vpop.f32.mrf.mxu0
        %v3424 = vpop.f32.mrf.mxu0
        %3425 = vdwg.mxu0
        %3426 = vmatprep.subr.bf16.mxu0 %v2829
        %3427 = vmatpush1.bf16.msra.mxu0 %v2828
        %3428 = vmatprep.subr.bf16.mxu0 %v2827
        %3429 = vmatpush1.bf16.msra.mxu0 %v2826
        %3430 = vmatprep.subr.bf16.mxu0 %v2825
        %3431 = vmatpush1.bf16.msra.mxu0 %v2824
        %3432 = vmatprep.subr.bf16.mxu0 %v2823
        %3433 = vmatpush1.bf16.msra.mxu0 %v2822
        %3434 = vmatprep.subr.bf16.mxu0 %v2821
        %3435 = vmatpush1.bf16.msra.mxu0 %v2820
        %3436 = vmatprep.subr.bf16.mxu0 %v2819
        %3437 = vmatpush1.bf16.msra.mxu0 %v2818
        %3438 = vmatprep.subr.bf16.mxu0 %v2817
        %3439 = vmatpush1.bf16.msra.mxu0 %v2816
        %3440 = vmatprep.subr.bf16.mxu0 %v2815
        %3441 = vmatpush1.bf16.msra.mxu0 %v2814
        %3442 = vmatprep.subr.bf16.mxu0 %v2845
        %3443 = vmatpush2.bf16.msra.mxu0 %v2844
        %3444 = vmatprep.subr.bf16.mxu0 %v2843
        %3445 = vmatpush2.bf16.msra.mxu0 %v2842
        %3446 = vmatprep.subr.bf16.mxu0 %v2841
        %3447 = vmatpush2.bf16.msra.mxu0 %v2840
        %3448 = vmatprep.subr.bf16.mxu0 %v2839
        %3449 = vmatpush2.bf16.msra.mxu0 %v2838
        %3450 = vmatprep.subr.bf16.mxu0 %v2837
        %3451 = vmatpush2.bf16.msra.mxu0 %v2836
        %3452 = vmatprep.subr.bf16.mxu0 %v2835
        %3453 = vmatpush2.bf16.msra.mxu0 %v2834
        %3454 = vmatprep.subr.bf16.mxu0 %v2833
        %3455 = vmatpush2.bf16.msra.mxu0 %v2832
        %3456 = vmatprep.subr.bf16.mxu0 %v2831
        %3457 = vmatpush2.bf16.msra.mxu0 %v2830
        %3458 = vmatprep.mubr.bf16.mxu0 %v1777
        %3459 = vmatmul.mubr.bf16.gmra.mxu0 %v1769
        %v3460 = vpop.f32.mrf.mxu0
        %v3461 = vadd.f32 %v3420, %v3460
        %v3462 = vpop.f32.mrf.mxu0
        %v3463 = vadd.f32 %v3422, %v3462
        %v3464 = vpop.f32.mrf.mxu0
        %v3465 = vpop.f32.mrf.mxu0
        %3466 = vdwg.mxu0
        %3467 = vmatprep.subr.bf16.mxu0 %v2861
        %3468 = vmatpush1.bf16.msra.mxu0 %v2860
        %3469 = vmatprep.subr.bf16.mxu0 %v2859
        %3470 = vmatpush1.bf16.msra.mxu0 %v2858
        %3471 = vmatprep.subr.bf16.mxu0 %v2857
        %3472 = vmatpush1.bf16.msra.mxu0 %v2856
        %3473 = vmatprep.subr.bf16.mxu0 %v2855
        %3474 = vmatpush1.bf16.msra.mxu0 %v2854
        %3475 = vmatprep.subr.bf16.mxu0 %v2853
        %3476 = vmatpush1.bf16.msra.mxu0 %v2852
        %3477 = vmatprep.subr.bf16.mxu0 %v2851
        %3478 = vmatpush1.bf16.msra.mxu0 %v2850
        %3479 = vmatprep.subr.bf16.mxu0 %v2849
        %3480 = vmatpush1.bf16.msra.mxu0 %v2848
        %3481 = vmatprep.subr.bf16.mxu0 %v2847
        %3482 = vmatpush1.bf16.msra.mxu0 %v2846
        %3483 = vmatprep.subr.bf16.mxu0 %v2877
        %3484 = vmatpush2.bf16.msra.mxu0 %v2876
        %3485 = vmatprep.subr.bf16.mxu0 %v2875
        %3486 = vmatpush2.bf16.msra.mxu0 %v2874
        %3487 = vmatprep.subr.bf16.mxu0 %v2873
        %3488 = vmatpush2.bf16.msra.mxu0 %v2872
        %3489 = vmatprep.subr.bf16.mxu0 %v2871
        %3490 = vmatpush2.bf16.msra.mxu0 %v2870
        %3491 = vmatprep.subr.bf16.mxu0 %v2869
        %3492 = vmatpush2.bf16.msra.mxu0 %v2868
        %3493 = vmatprep.subr.bf16.mxu0 %v2867
        %3494 = vmatpush2.bf16.msra.mxu0 %v2866
        %3495 = vmatprep.subr.bf16.mxu0 %v2865
        %3496 = vmatpush2.bf16.msra.mxu0 %v2864
        %3497 = vmatprep.subr.bf16.mxu0 %v2863
        %3498 = vmatpush2.bf16.msra.mxu0 %v2862
        %3499 = vmatprep.mubr.bf16.mxu0 %v1778
        %3500 = vmatmul.mubr.bf16.gmra.mxu0 %v1776
        %v3501 = vpop.f32.mrf.mxu0
        %v3502 = vadd.f32 %v3461, %v3501
        %v3503 = vpop.f32.mrf.mxu0
        %v3504 = vadd.f32 %v3463, %v3503
        %v3505 = vpop.f32.mrf.mxu0
        %v3506 = vpop.f32.mrf.mxu0
        %3507 = vdwg.mxu0
        %3508 = vmatprep.subr.bf16.mxu0 %v2893
        %3509 = vmatpush1.bf16.msra.mxu0 %v2892
        %3510 = vmatprep.subr.bf16.mxu0 %v2891
        %3511 = vmatpush1.bf16.msra.mxu0 %v2890
        %3512 = vmatprep.subr.bf16.mxu0 %v2889
        %3513 = vmatpush1.bf16.msra.mxu0 %v2888
        %3514 = vmatprep.subr.bf16.mxu0 %v2887
        %3515 = vmatpush1.bf16.msra.mxu0 %v2886
        %3516 = vmatprep.subr.bf16.mxu0 %v2885
        %3517 = vmatpush1.bf16.msra.mxu0 %v2884
        %3518 = vmatprep.subr.bf16.mxu0 %v2883
        %3519 = vmatpush1.bf16.msra.mxu0 %v2882
        %3520 = vmatprep.subr.bf16.mxu0 %v2881
        %3521 = vmatpush1.bf16.msra.mxu0 %v2880
        %3522 = vmatprep.subr.bf16.mxu0 %v2879
        %3523 = vmatpush1.bf16.msra.mxu0 %v2878
        %3524 = vmatprep.subr.bf16.mxu0 %v2909
        %3525 = vmatpush2.bf16.msra.mxu0 %v2908
        %3526 = vmatprep.subr.bf16.mxu0 %v2907
        %3527 = vmatpush2.bf16.msra.mxu0 %v2906
        %3528 = vmatprep.subr.bf16.mxu0 %v2905
        %3529 = vmatpush2.bf16.msra.mxu0 %v2904
        %3530 = vmatprep.subr.bf16.mxu0 %v2903
        %3531 = vmatpush2.bf16.msra.mxu0 %v2902
        %3532 = vmatprep.subr.bf16.mxu0 %v2901
        %3533 = vmatpush2.bf16.msra.mxu0 %v2900
        %3534 = vmatprep.subr.bf16.mxu0 %v2899
        %3535 = vmatpush2.bf16.msra.mxu0 %v2898
        %3536 = vmatprep.subr.bf16.mxu0 %v2897
        %3537 = vmatpush2.bf16.msra.mxu0 %v2896
        %3538 = vmatprep.subr.bf16.mxu0 %v2895
        %3539 = vmatpush2.bf16.msra.mxu0 %v2894
        %3540 = vmatprep.mubr.bf16.mxu0 %v1794
        %3541 = vmatmul.mubr.bf16.gmra.mxu0 %v1786
        %v3542 = vpop.f32.mrf.mxu0
        %v3543 = vadd.f32 %v3502, %v3542
        %v3544 = vpop.f32.mrf.mxu0
        %v3545 = vadd.f32 %v3504, %v3544
        %v3546 = vpop.f32.mrf.mxu0
        %v3547 = vpop.f32.mrf.mxu0
        %3548 = vdwg.mxu0
        %3549 = vmatprep.subr.bf16.mxu0 %v2925
        %3550 = vmatpush1.bf16.msra.mxu0 %v2924
        %3551 = vmatprep.subr.bf16.mxu0 %v2923
        %3552 = vmatpush1.bf16.msra.mxu0 %v2922
        %3553 = vmatprep.subr.bf16.mxu0 %v2921
        %3554 = vmatpush1.bf16.msra.mxu0 %v2920
        %3555 = vmatprep.subr.bf16.mxu0 %v2919
        %3556 = vmatpush1.bf16.msra.mxu0 %v2918
        %3557 = vmatprep.subr.bf16.mxu0 %v2917
        %3558 = vmatpush1.bf16.msra.mxu0 %v2916
        %3559 = vmatprep.subr.bf16.mxu0 %v2915
        %3560 = vmatpush1.bf16.msra.mxu0 %v2914
        %3561 = vmatprep.subr.bf16.mxu0 %v2913
        %3562 = vmatpush1.bf16.msra.mxu0 %v2912
        %3563 = vmatprep.subr.bf16.mxu0 %v2911
        %3564 = vmatpush1.bf16.msra.mxu0 %v2910
        %3565 = vmatprep.subr.bf16.mxu0 %v2941
        %3566 = vmatpush2.bf16.msra.mxu0 %v2940
        %3567 = vmatprep.subr.bf16.mxu0 %v2939
        %3568 = vmatpush2.bf16.msra.mxu0 %v2938
        %3569 = vmatprep.subr.bf16.mxu0 %v2937
        %3570 = vmatpush2.bf16.msra.mxu0 %v2936
        %3571 = vmatprep.subr.bf16.mxu0 %v2935
        %3572 = vmatpush2.bf16.msra.mxu0 %v2934
        %3573 = vmatprep.subr.bf16.mxu0 %v2933
        %3574 = vmatpush2.bf16.msra.mxu0 %v2932
        %3575 = vmatprep.subr.bf16.mxu0 %v2931
        %3576 = vmatpush2.bf16.msra.mxu0 %v2930
        %3577 = vmatprep.subr.bf16.mxu0 %v2929
        %3578 = vmatpush2.bf16.msra.mxu0 %v2928
        %3579 = vmatprep.subr.bf16.mxu0 %v2927
        %3580 = vmatpush2.bf16.msra.mxu0 %v2926
        %3581 = vmatprep.mubr.bf16.mxu0 %v1795
        %3582 = vmatmul.mubr.bf16.gmra.mxu0 %v1793
        %v3583 = vpop.f32.mrf.mxu0
        %v3584 = vadd.f32 %v3543, %v3583
        %v3585 = vpop.f32.mrf.mxu0
        %v3586 = vadd.f32 %v3545, %v3585
        %v3587 = vpop.f32.mrf.mxu0
        %v3588 = vpop.f32.mrf.mxu0
        %3589 = vdwg.mxu0
        %3590 = vmatprep.subr.bf16.mxu0 %v2957
        %3591 = vmatpush1.bf16.msra.mxu0 %v2956
        %3592 = vmatprep.subr.bf16.mxu0 %v2955
        %3593 = vmatpush1.bf16.msra.mxu0 %v2954
        %3594 = vmatprep.subr.bf16.mxu0 %v2953
        %3595 = vmatpush1.bf16.msra.mxu0 %v2952
        %3596 = vmatprep.subr.bf16.mxu0 %v2951
        %3597 = vmatpush1.bf16.msra.mxu0 %v2950
        %3598 = vmatprep.subr.bf16.mxu0 %v2949
        %3599 = vmatpush1.bf16.msra.mxu0 %v2948
        %3600 = vmatprep.subr.bf16.mxu0 %v2947
        %3601 = vmatpush1.bf16.msra.mxu0 %v2946
        %3602 = vmatprep.subr.bf16.mxu0 %v2945
        %3603 = vmatpush1.bf16.msra.mxu0 %v2944
        %3604 = vmatprep.subr.bf16.mxu0 %v2943
        %3605 = vmatpush1.bf16.msra.mxu0 %v2942
        %3606 = vmatprep.subr.bf16.mxu0 %v2973
        %3607 = vmatpush2.bf16.msra.mxu0 %v2972
        %3608 = vmatprep.subr.bf16.mxu0 %v2971
        %3609 = vmatpush2.bf16.msra.mxu0 %v2970
        %3610 = vmatprep.subr.bf16.mxu0 %v2969
        %3611 = vmatpush2.bf16.msra.mxu0 %v2968
        %3612 = vmatprep.subr.bf16.mxu0 %v2967
        %3613 = vmatpush2.bf16.msra.mxu0 %v2966
        %3614 = vmatprep.subr.bf16.mxu0 %v2965
        %3615 = vmatpush2.bf16.msra.mxu0 %v2964
        %3616 = vmatprep.subr.bf16.mxu0 %v2963
        %3617 = vmatpush2.bf16.msra.mxu0 %v2962
        %3618 = vmatprep.subr.bf16.mxu0 %v2961
        %3619 = vmatpush2.bf16.msra.mxu0 %v2960
        %3620 = vmatprep.subr.bf16.mxu0 %v2959
        %3621 = vmatpush2.bf16.msra.mxu0 %v2958
        %3622 = vmatprep.mubr.bf16.mxu0 %v1803
        %3623 = vmatmul.mubr.bf16.gmra.mxu0 %v1802
        %v3624 = vpop.f32.mrf.mxu0
        %v3625 = vadd.f32 %v3584, %v3624
        %v3626 = vpop.f32.mrf.mxu0
        %v3627 = vadd.f32 %v3586, %v3626
        %v3628 = vpop.f32.mrf.mxu0
        %v3629 = vpop.f32.mrf.mxu0
        %3630 = vdwg.mxu0
        %vm3631 = vcmask 1043456
        %v3632 = vsel %vm3631, %v3625, 0.0
        %v3633 = vrot.slane %v3632, 4
        %v3634 = vadd.f32 %v3632, %v3633
        %v3635 = vrot.slane %v3634, 2
        %v3636 = vadd.f32 %v3634, %v3635
        %v3637 = vrot.slane %v3636, 1
        %v3638 = vadd.f32 %v3636, %v3637
        %v3639 = vsel %vm3631, %v3627, 0.0
        %v3640 = vrot.slane %v3639, 4
        %v3641 = vadd.f32 %v3639, %v3640
        %v3642 = vrot.slane %v3641, 2
        %v3643 = vadd.f32 %v3641, %v3642
        %v3644 = vrot.slane %v3643, 1
        %v3645 = vadd.f32 %v3643, %v3644
        %v3646 = vmul.f32 %v3638, 0.25
        %v3647 = vmul.f32 %v3645, 0.25
        %v3648 = vmul.f32 %v3625, %v3625
        %v3649 = vmul.f32 %v3627, %v3627
        %v3650 = vsel %vm3631, %v3648, 0.0
        %v3651 = vrot.slane %v3650, 4
        %v3652 = vadd.f32 %v3650, %v3651
        %v3653 = vrot.slane %v3652, 2
        %v3654 = vadd.f32 %v3652, %v3653
        %v3655 = vrot.slane %v3654, 1
        %v3656 = vadd.f32 %v3654, %v3655
        %v3657 = vsel %vm3631, %v3649, 0.0
        %v3658 = vrot.slane %v3657, 4
        %v3659 = vadd.f32 %v3657, %v3658
        %v3660 = vrot.slane %v3659, 2
        %v3661 = vadd.f32 %v3659, %v3660
        %v3662 = vrot.slane %v3661, 1
        %v3663 = vadd.f32 %v3661, %v3662
        %v3664 = vmul.f32 %v3656, 0.25
        %v3665 = vmul.f32 %v3663, 0.25
        %v3666 = vmul.f32 %v3646, %v3646
        %v3667 = vmul.f32 %v3647, %v3647
        %v3668 = vsub.f32 %v3664, %v3666
        %v3669 = vsub.f32 %v3665, %v3667
        %v3670 = vsub.f32 %v3625, %v3646
        %v3671 = vsub.f32 %v3627, %v3647
        %v3672 = vadd.f32 %v3668, 1e-05
        %v3673 = vadd.f32 %v3669, 1e-05
        %v3674 = vrsqrt.pop %v3672
        %v3675 = vrsqrt.pop %v3673
        %v3676 = vmul.f32 %v3670, %v3674
        %v3677 = vmul.f32 %v3671, %v3675
        %vm3678 = vcmp.ge.f32.partialorder %v3676, 0.0
        %vm3679 = vcmp.ge.f32.partialorder %v3677, 0.0
        %v3680 = vmul.f32 %v3676, 0.2
        %v3681 = vmul.f32 %v3677, 0.2
        %v3682 = vsel %vm3678, %v3676, %v3680
        %v3683 = vsel %vm3679, %v3677, %v3681
        %v3684 = vpack.c.bf16 %v3682, %v3682
        %v3685 = vpack.c.bf16 %v3683, %v3683
        %v3688 = vcombine.low %v3684, %v3685
        %v3690 = vunpack.c.l.s4 1983009808
        %v3691 = vunpack.c.0.s8 %v3690
        %v3692 = vlaneseq
        %v3693 = vshrl.u32 %v3692, 7
        %v3694 = vsub.s32 %v3691, %v3693
        %v3695 = vrot.slane %v3688, %v3694
        %3697 = vst [vmem:[%s1416] sm:$0xf] %v3695
        %s3698 = smul.u32 2, %s19
        %p3699 = scmp.lt.s32.totalorder %s18, 1
        %s3700 = scalar_select %p3699, %s18, 1
        %p3701 = scmp.lt.s32.totalorder %s3698, 3
        %s3702 = scalar_select %p3701, %s3698, 3
        %s3703 = smul.addr %s3700, 4
        %s3704 = sadd.s32 %s3702, %s3703
        %s3705 = smul.addr %s3704, 2
        %s3706 = scalar_lea.vmem %s3, %s3705
        // Predicated region
        $region71: #{discriminator_forward.8} parent=65 // pred_check
          %p3707 = pneg %p124
        $region72: #{discriminator_forward.8} parent=65 // pred_check_branch
          %3709 = sbr.rel (%p3707) target = $region74
        $region73: #{discriminator_forward.8} parent=65 // pred_region
          %s3710 = smul.u32 2, %s19
        $region74: #{discriminator_forward.8} parent=65 // pred_fallthru
          _
      $region66: #{discriminator_forward.8} parent=5 // pred_fallthru
        _
      %p3711 = scmp.le.s32.totalorder 2, %s9
      // Predicated region
      $region75: #{discriminator_forward.8} parent=5 // pred_check
        %p3712 = pneg %p3711
      $region76: #{discriminator_forward.8} parent=5 // pred_check_branch
        %3714 = sbr.rel (%p3712) target = $region78
      $region77: #{discriminator_forward.8} parent=5 // pred_region
        %s3715 = ssub.s32 %s9, 2
        // Predicated region
        $region79: #{discriminator_forward.8} parent=77 // pred_check
          %p3716 = pneg %p130
        $region80: #{discriminator_forward.8} parent=77 // pred_check_branch
          %3718 = sbr.rel (%p3716) target = $region82
        $region81: #{discriminator_forward.8} parent=77 // pred_region
          %s3719 = smul.u32 2, %s21
          %p3720 = scmp.lt.s32.totalorder %s20, 1
          %s3721 = scalar_select %p3720, %s20, 1
          %p3722 = scmp.lt.s32.totalorder %s3719, 3
          %s3723 = scalar_select %p3722, %s3719, 3
          %s3724 = smul.addr %s3721, 4
          %s3725 = sadd.s32 %s3723, %s3724
          %s3726 = smul.addr %s3725, 2
          %s3727 = scalar_lea.vmem %s3, %s3726
        $region82: #{discriminator_forward.8} parent=77 // pred_fallthru
          _
      $region78: #{discriminator_forward.8} parent=5 // pred_fallthru
        _
    $region6: #{discriminator_forward.8} parent=1 // loop_footer
      %s13 = sadd.s32 1, %s9
    $region7: #{discriminator_forward.8} parent=1 // loop_footer_branch
      %8 = sbr.rel target = $region3
    $region8: #{discriminator_forward.8} parent=1 // loop_exit
      _

// kernel: discriminator_forward.9
$region0: #{discriminator_forward.9}
  #allocation0 [shape = 'u32[]', space=smem, size = 0x4, offset = 0x4, fixed_abs, tag = 'smem constant byte address 0x4 - core index']
  #allocation1 [shape = 'u32[144,128]{1,0:T(1,128)}', space=vmem, size = 0x12000, scoped, tag = 'internal scratch']
  %s0 = inlined_call_operand.vmem [shape: bf16[2,4,4608], index: 0, kind: input, shape index: {}]
  %s1 = inlined_call_operand.vmem [shape: bf16[4608,128], index: 1, kind: input, shape index: {}]
  %s2 = inlined_call_operand.vmem [shape: f32[1,128], index: 2, kind: input, shape index: {}]
  %s3 = inlined_call_operand.vmem [shape: f32[2,4,128], index: 3, kind: output, shape index: {}]
  %s4 = sld [smem:[#allocation0]]
  $region45: #{discriminator_forward.9} parent=0
    _
  %s6 = ssub.s32 1, %s4
  %s7 = scalar_select 0, %s6, %s4
  loop: start=0, step=1, limit=4
  $region2: #{discriminator_forward.9} parent=0 // loop_pre_header
    _
  $region3: #{discriminator_forward.9} parent=0 // loop_header
    %s9 = sphi 0, %s13
    %p10 = scmp.ge.s32.totalorder %s9, 4
    %s16 = sphi 0, %s28
    %s17 = sphi 0, %s24
    %s18 = sphi 0, %s16
    %s19 = sphi 0, %s17
    %s20 = sphi 0, %s18
    %s21 = sphi 0, %s19
    %s31 = sphi 0, %s33
    %s34 = sphi 0, %s31
    %s35 = sphi 0, %s34
    %s51 = sphi 0, %s35
    %s57 = sphi 0, %s59
    %s60 = sphi 0, %s57
    %s61 = sphi 0, %s60
    %s77 = sphi 0, %s61
    %s83 = sphi 0, %s85
    %s86 = sphi 0, %s83
    %s87 = sphi 0, %s86
    %s103 = sphi 0, %s87
    %s111 = sphi 0, %s113
    %s114 = sphi 0, %s111
    %s115 = sphi 0, %s114
    %s131 = sphi 0, %s115
  $region4: #{discriminator_forward.9} parent=0 // loop_header_branch
    %12 = sbr.rel (%p10) target = $region8
  $region5: #{discriminator_forward.9} parent=0 // loop_body
    %s14 = ssub.s32 %s9, 1
    %s15 = ssub.s32 %s9, 2
    %s22 = sadd.s32 1, %s17
    %p23 = scmp.ge.s32.totalorder %s22, 1
    %s24 = scalar_select %p23, 0, %s22
    %s25 = sadd.s32 1, %s16
    %s26 = scalar_select %p23, %s25, %s16
    %p27 = scmp.ge.s32.totalorder %s26, 2
    %s28 = scalar_select %p27, 0, %s26
    %s29 = ssub.s32 %s16, %s28
    %p30 = scmp.eq.s32.totalorder %s29, 0
    %s32 = sadd.s32 %s31, 1
    %s33 = scalar_select %p30, %s31, %s32
    %p36 = pneg %p30
    %p37 = scmp.eq.s32.totalorder %s9, 1
    %p38 = por %p36, %p37
    %p39 = scmp.ne.s32.totalorder %s31, %s34
    %p40 = scmp.eq.s32.totalorder %s9, 0
    %p41 = por %p39, %p40
    %p42 = scmp.ne.s32.totalorder %s31, %s34
    %p43 = scmp.eq.s32.totalorder %s14, 1
    %p44 = por %p42, %p43
    %p45 = scmp.ne.s32.totalorder %s34, %s35
    %p46 = scmp.eq.s32.totalorder %s14, 0
    %p47 = por %p45, %p46
    %p48 = scmp.ne.s32.totalorder %s34, %s35
    %p49 = scmp.eq.s32.totalorder %s15, 1
    %p50 = por %p48, %p49
    %p52 = scmp.ne.s32.totalorder %s35, %s51
    %p53 = scmp.eq.s32.totalorder %s15, 0
    %p54 = por %p52, %p53
    %s55 = ssub.s32 %s17, %s24
    %p56 = scmp.eq.s32.totalorder %s55, 0
    %s58 = sadd.s32 %s57, 1
    %s59 = scalar_select %p56, %s57, %s58
    %p62 = pneg %p56
    %p63 = scmp.eq.s32.totalorder %s9, 1
    %p64 = por %p62, %p63
    %p65 = scmp.ne.s32.totalorder %s57, %s60
    %p66 = scmp.eq.s32.totalorder %s9, 0
    %p67 = por %p65, %p66
    %p68 = scmp.ne.s32.totalorder %s57, %s60
    %p69 = scmp.eq.s32.totalorder %s14, 1
    %p70 = por %p68, %p69
    %p71 = scmp.ne.s32.totalorder %s60, %s61
    %p72 = scmp.eq.s32.totalorder %s14, 0
    %p73 = por %p71, %p72
    %p74 = scmp.ne.s32.totalorder %s60, %s61
    %p75 = scmp.eq.s32.totalorder %s15, 1
    %p76 = por %p74, %p75
    %p78 = scmp.ne.s32.totalorder %s61, %s77
    %p79 = scmp.eq.s32.totalorder %s15, 0
    %p80 = por %p78, %p79
    %s81 = ssub.s32 %s17, %s24
    %p82 = scmp.eq.s32.totalorder %s81, 0
    %s84 = sadd.s32 %s83, 1
    %s85 = scalar_select %p82, %s83, %s84
    %p88 = pneg %p82
    %p89 = scmp.eq.s32.totalorder %s9, 1
    %p90 = por %p88, %p89
    %p91 = scmp.ne.s32.totalorder %s83, %s86
    %p92 = scmp.eq.s32.totalorder %s9, 0
    %p93 = por %p91, %p92
    %p94 = scmp.ne.s32.totalorder %s83, %s86
    %p95 = scmp.eq.s32.totalorder %s14, 1
    %p96 = por %p94, %p95
    %p97 = scmp.ne.s32.totalorder %s86, %s87
    %p98 = scmp.eq.s32.totalorder %s14, 0
    %p99 = por %p97, %p98
    %p100 = scmp.ne.s32.totalorder %s86, %s87
    %p101 = scmp.eq.s32.totalorder %s15, 1
    %p102 = por %p100, %p101
    %p104 = scmp.ne.s32.totalorder %s87, %s103
    %p105 = scmp.eq.s32.totalorder %s15, 0
    %p106 = por %p104, %p105
    %s107 = ssub.s32 %s16, %s28
    %s108 = ssub.s32 %s17, %s24
    %s109 = sor.u32 %s107, %s108
    %p110 = scmp.eq.s32.totalorder %s109, 0
    %s112 = sadd.s32 %s111, 1
    %s113 = scalar_select %p110, %s111, %s112
    %p116 = pneg %p110
    %p117 = scmp.eq.s32.totalorder %s9, 1
    %p118 = por %p116, %p117
    %p119 = scmp.ne.s32.totalorder %s111, %s114
    %p120 = scmp.eq.s32.totalorder %s9, 0
    %p121 = por %p119, %p120
    %p122 = scmp.ne.s32.totalorder %s111, %s114
    %p123 = scmp.eq.s32.totalorder %s14, 1
    %p124 = por %p122, %p123
    %p125 = scmp.ne.s32.totalorder %s114, %s115
    %p126 = scmp.eq.s32.totalorder %s14, 0
    %p127 = por %p125, %p126
    %p128 = scmp.ne.s32.totalorder %s114, %s115
    %p129 = scmp.eq.s32.totalorder %s15, 1
    %p130 = por %p128, %p129
    %p132 = scmp.ne.s32.totalorder %s115, %s131
    %p133 = scmp.eq.s32.totalorder %s15, 0
    %p134 = por %p132, %p133
    %p135 = scmp.le.s32.totalorder 1, %s9
    %p136 = scmp.lt.s32.totalorder %s9, 3
    %p137 = pnand %p135, %p136
    %p138 = pneg %p137
    // Predicated region
    $region9: #{discriminator_forward.9} parent=5 // pred_check
      _
    $region10: #{discriminator_forward.9} parent=5 // pred_check_branch
      %140 = sbr.rel (%p137) target = $region12
    $region11: #{discriminator_forward.9} parent=5 // pred_region
      %s141 = ssub.s32 %s9, 1
      // Predicated region
      $region13: #{discriminator_forward.9} parent=11 // pred_check
        %p142 = pneg %p73
      $region14: #{discriminator_forward.9} parent=11 // pred_check_branch
        %144 = sbr.rel (%p142) target = $region16
      $region15: #{discriminator_forward.9} parent=11 // pred_region
        %p145 = scmp.lt.s32.totalorder %s19, 0
        %s146 = scalar_select %p145, %s19, 0
        %s147 = smul.addr %s146, 4
        %s148 = scalar_lea.vmem %s1, %s147
      $region16: #{discriminator_forward.9} parent=11 // pred_fallthru
        _
      // Predicated region
      $region17: #{discriminator_forward.9} parent=11 // pred_check
        %p149 = pneg %p99
      $region18: #{discriminator_forward.9} parent=11 // pred_check_branch
        %151 = sbr.rel (%p149) target = $region20
      $region19: #{discriminator_forward.9} parent=11 // pred_region
        %p152 = scmp.lt.s32.totalorder %s19, 0
        %s153 = scalar_select %p152, %s19, 0
        %s154 = scalar_lea.vmem %s2, %s153
      $region20: #{discriminator_forward.9} parent=11 // pred_fallthru
        _
    $region12: #{discriminator_forward.9} parent=5 // pred_fallthru
      _
    %p155 = scmp.lt.s32.totalorder %s9, 2
    // Predicated region
    $region21: #{discriminator_forward.9} parent=5 // pred_check
      %p156 = pneg %p155
    $region22: #{discriminator_forward.9} parent=5 // pred_check_branch
      %158 = sbr.rel (%p156) target = $region24
    $region23: #{discriminator_forward.9} parent=5 // pred_region
      // Predicated region
      $region25: #{discriminator_forward.9} parent=23 // pred_check
        %p159 = pneg %p41
      $region26: #{discriminator_forward.9} parent=23 // pred_check_branch
        %161 = sbr.rel (%p159) target = $region28
      $region27: #{discriminator_forward.9} parent=23 // pred_region
        %p162 = scmp.lt.s32.totalorder %s16, 1
        %s163 = scalar_select %p162, %s16, 1
        %s164 = smul.addr %s163, 36
        %s165 = smul.addr %s164, 2
        %s166 = scalar_lea.vmem %s0, %s165
      $region28: #{discriminator_forward.9} parent=23 // pred_fallthru
        _
    $region24: #{discriminator_forward.9} parent=5 // pred_fallthru
      _
    %p167 = scmp.le.s32.totalorder 1, %s9
    %p168 = scmp.lt.s32.totalorder %s9, 3
    %p169 = pnand %p167, %p168
    %p170 = pneg %p169
    // Predicated region
    $region29: #{discriminator_forward.9} parent=5 // pred_check
      _
    $region30: #{discriminator_forward.9} parent=5 // pred_check_branch
      %172 = sbr.rel (%p169) target = $region32
    $region31: #{discriminator_forward.9} parent=5 // pred_region
      %s173 = ssub.s32 %s9, 1
      %p174 = scmp.lt.s32.totalorder %s18, 1
      %s175 = scalar_select %p174, %s18, 1
      %s176 = smul.addr %s175, 36
      %s177 = smul.addr %s176, 2
      %s178 = scalar_lea.vmem %s0, %s177
      %p179 = pneg %p47
      %p180 = pneg %p44
      %p181 = scmp.lt.s32.totalorder %s19, 0
      %s182 = scalar_select %p181, %s19, 0
      %s183 = smul.addr %s182, 4
      %s184 = scalar_lea.vmem %s1, %s183
      %p185 = pneg %p73
      %p186 = pneg %p70
      %p187 = scmp.lt.s32.totalorder %s19, 0
      %s188 = scalar_select %p187, %s19, 0
      %s189 = scalar_lea.vmem %s2, %s188
      %p190 = pneg %p99
      %p191 = pneg %p96
      %p192 = pneg %p127
      %p193 = pneg %p124
      %p194 = scmp.lt.s32.totalorder %s18, 1
      %s195 = scalar_select %p194, %s18, 1
      %p196 = scmp.lt.s32.totalorder %s19, 0
      %s197 = scalar_select %p196, %s19, 0
      %s198 = sadd.s32 %s197, %s195
      %s199 = smul.addr %s198, 4
      %s200 = scalar_lea.vmem %s3, %s199
      %p201 = scmp.lt.s32.totalorder %s18, 1
      %s202 = scalar_select %p201, %s18, 1
      %s203 = smul.addr %s202, 36
      %s204 = smul.addr %s203, 2
      %s205 = scalar_lea.vmem %s0, %s204
      %p206 = scmp.lt.s32.totalorder %s19, 0
      %s207 = scalar_select %p206, %s19, 0
      %s208 = smul.addr %s207, 4
      %s209 = scalar_lea.vmem %s1, %s208
      %p210 = scmp.lt.s32.totalorder %s19, 0
      %s211 = scalar_select %p210, %s19, 0
      %s212 = scalar_lea.vmem %s2, %s211
      %p213 = scmp.lt.s32.totalorder %s18, 1
      %s214 = scalar_select %p213, %s18, 1
      %p215 = scmp.lt.s32.totalorder %s19, 0
      %s216 = scalar_select %p215, %s19, 0
      %s217 = sadd.s32 %s216, %s214
      %s218 = smul.addr %s217, 4
      %s219 = scalar_lea.vmem %s3, %s218
      %v221 = vld [vmem:[%s205] sm:$0xff]
      %v222 = vld [vmem:[%s205 + $0x8] sm:$0xff]
      %v223 = vld [vmem:[%s205 + $0x10] sm:$0xff]
      %v224 = vld [vmem:[%s205 + $0x18] sm:$0xff]
      %v225 = vld [vmem:[%s205 + $0x20] sm:$0xff]
      %v226 = vld [vmem:[%s205 + $0x28] sm:$0xff]
      %v227 = vld [vmem:[%s205 + $0x30] sm:$0xff]
      %v228 = vld [vmem:[%s205 + $0x38] sm:$0xff]
      %v229 = vld [vmem:[%s205 + $0x40] sm:$0xff]
      %v230 = vld [vmem:[%s209] sm:$0xf]
      %v231 = vld [vmem:[%s209 + $0x4] sm:$0xf]
      %v232 = vld [vmem:[%s209 + $0x8] sm:$0xf]
      %v233 = vld [vmem:[%s209 + $0xc] sm:$0xf]
      %v234 = vld [vmem:[%s209 + $0x10] sm:$0xf]
      %v235 = vld [vmem:[%s209 + $0x14] sm:$0xf]
      %v236 = vld [vmem:[%s209 + $0x18] sm:$0xf]
      %v237 = vld [vmem:[%s209 + $0x1c] sm:$0xf]
      %v238 = vld [vmem:[%s209 + $0x20] sm:$0xf]
      %v239 = vld [vmem:[%s209 + $0x24] sm:$0xf]
      %v240 = vld [vmem:[%s209 + $0x28] sm:$0xf]
      %v241 = vld [vmem:[%s209 + $0x2c] sm:$0xf]
      %v242 = vld [vmem:[%s209 + $0x30] sm:$0xf]
      %v243 = vld [vmem:[%s209 + $0x34] sm:$0xf]
      %v244 = vld [vmem:[%s209 + $0x38] sm:$0xf]
      %v245 = vld [vmem:[%s209 + $0x3c] sm:$0xf]
      %v246 = vld [vmem:[%s209 + $0x40] sm:$0xf]
      %v247 = vld [vmem:[%s209 + $0x44] sm:$0xf]
      %v248 = vld [vmem:[%s209 + $0x48] sm:$0xf]
      %v249 = vld [vmem:[%s209 + $0x4c] sm:$0xf]
      %v250 = vld [vmem:[%s209 + $0x50] sm:$0xf]
      %v251 = vld [vmem:[%s209 + $0x54] sm:$0xf]
      %v252 = vld [vmem:[%s209 + $0x58] sm:$0xf]
      %v253 = vld [vmem:[%s209 + $0x5c] sm:$0xf]
      %v254 = vld [vmem:[%s209 + $0x60] sm:$0xf]
      %v255 = vld [vmem:[%s209 + $0x64] sm:$0xf]
      %v256 = vld [vmem:[%s209 + $0x68] sm:$0xf]
      %v257 = vld [vmem:[%s209 + $0x6c] sm:$0xf]
      %v258 = vld [vmem:[%s209 + $0x70] sm:$0xf]
      %v259 = vld [vmem:[%s209 + $0x74] sm:$0xf]
      %v260 = vld [vmem:[%s209 + $0x78] sm:$0xf]
      %v261 = vld [vmem:[%s209 + $0x7c] sm:$0xf]
      %v262 = vld [vmem:[%s209 + $0x80] sm:$0xf]
      %v263 = vld [vmem:[%s209 + $0x84] sm:$0xf]
      %v264 = vld [vmem:[%s209 + $0x88] sm:$0xf]
      %v265 = vld [vmem:[%s209 + $0x8c] sm:$0xf]
      %v266 = vld [vmem:[%s209 + $0x90] sm:$0xf]
      %v267 = vld [vmem:[%s209 + $0x94] sm:$0xf]
      %v268 = vld [vmem:[%s209 + $0x98] sm:$0xf]
      %v269 = vld [vmem:[%s209 + $0x9c] sm:$0xf]
      %v270 = vld [vmem:[%s209 + $0xa0] sm:$0xf]
      %v271 = vld [vmem:[%s209 + $0xa4] sm:$0xf]
      %v272 = vld [vmem:[%s209 + $0xa8] sm:$0xf]
      %v273 = vld [vmem:[%s209 + $0xac] sm:$0xf]
      %v274 = vld [vmem:[%s209 + $0xb0] sm:$0xf]
      %v275 = vld [vmem:[%s209 + $0xb4] sm:$0xf]
      %v276 = vld [vmem:[%s209 + $0xb8] sm:$0xf]
      %v277 = vld [vmem:[%s209 + $0xbc] sm:$0xf]
      %v278 = vld [vmem:[%s209 + $0xc0] sm:$0xf]
      %v279 = vld [vmem:[%s209 + $0xc4] sm:$0xf]
      %v280 = vld [vmem:[%s209 + $0xc8] sm:$0xf]
      %v281 = vld [vmem:[%s209 + $0xcc] sm:$0xf]
      %v282 = vld [vmem:[%s209 + $0xd0] sm:$0xf]
      %v283 = vld [vmem:[%s209 + $0xd4] sm:$0xf]
      %v284 = vld [vmem:[%s209 + $0xd8] sm:$0xf]
      %v285 = vld [vmem:[%s209 + $0xdc] sm:$0xf]
      %v286 = vld [vmem:[%s209 + $0xe0] sm:$0xf]
      %v287 = vld [vmem:[%s209 + $0xe4] sm:$0xf]
      %v288 = vld [vmem:[%s209 + $0xe8] sm:$0xf]
      %v289 = vld [vmem:[%s209 + $0xec] sm:$0xf]
      %v290 = vld [vmem:[%s209 + $0xf0] sm:$0xf]
      %v291 = vld [vmem:[%s209 + $0xf4] sm:$0xf]
      %v292 = vld [vmem:[%s209 + $0xf8] sm:$0xf]
      %v293 = vld [vmem:[%s209 + $0xfc] sm:$0xf]
      %v294 = vld [vmem:[%s209 + $0x100] sm:$0xf]
      %v295 = vld [vmem:[%s209 + $0x104] sm:$0xf]
      %v296 = vld [vmem:[%s209 + $0x108] sm:$0xf]
      %v297 = vld [vmem:[%s209 + $0x10c] sm:$0xf]
      %v298 = vld [vmem:[%s209 + $0x110] sm:$0xf]
      %v299 = vld [vmem:[%s209 + $0x114] sm:$0xf]
      %v300 = vld [vmem:[%s209 + $0x118] sm:$0xf]
      %v301 = vld [vmem:[%s209 + $0x11c] sm:$0xf]
      %v302 = vld [vmem:[%s209 + $0x120] sm:$0xf]
      %v303 = vld [vmem:[%s209 + $0x124] sm:$0xf]
      %v304 = vld [vmem:[%s209 + $0x128] sm:$0xf]
      %v305 = vld [vmem:[%s209 + $0x12c] sm:$0xf]
      %v306 = vld [vmem:[%s209 + $0x130] sm:$0xf]
      %v307 = vld [vmem:[%s209 + $0x134] sm:$0xf]
      %v308 = vld [vmem:[%s209 + $0x138] sm:$0xf]
      %v309 = vld [vmem:[%s209 + $0x13c] sm:$0xf]
      %v310 = vld [vmem:[%s209 + $0x140] sm:$0xf]
      %v311 = vld [vmem:[%s209 + $0x144] sm:$0xf]
      %v312 = vld [vmem:[%s209 + $0x148] sm:$0xf]
      %v313 = vld [vmem:[%s209 + $0x14c] sm:$0xf]
      %v314 = vld [vmem:[%s209 + $0x150] sm:$0xf]
      %v315 = vld [vmem:[%s209 + $0x154] sm:$0xf]
      %v316 = vld [vmem:[%s209 + $0x158] sm:$0xf]
      %v317 = vld [vmem:[%s209 + $0x15c] sm:$0xf]
      %v318 = vld [vmem:[%s209 + $0x160] sm:$0xf]
      %v319 = vld [vmem:[%s209 + $0x164] sm:$0xf]
      %v320 = vld [vmem:[%s209 + $0x168] sm:$0xf]
      %v321 = vld [vmem:[%s209 + $0x16c] sm:$0xf]
      %v322 = vld [vmem:[%s209 + $0x170] sm:$0xf]
      %v323 = vld [vmem:[%s209 + $0x174] sm:$0xf]
      %v324 = vld [vmem:[%s209 + $0x178] sm:$0xf]
      %v325 = vld [vmem:[%s209 + $0x17c] sm:$0xf]
      %v326 = vld [vmem:[%s209 + $0x180] sm:$0xf]
      %v327 = vld [vmem:[%s209 + $0x184] sm:$0xf]
      %v328 = vld [vmem:[%s209 + $0x188] sm:$0xf]
      %v329 = vld [vmem:[%s209 + $0x18c] sm:$0xf]
      %v330 = vld [vmem:[%s209 + $0x190] sm:$0xf]
      %v331 = vld [vmem:[%s209 + $0x194] sm:$0xf]
      %v332 = vld [vmem:[%s209 + $0x198] sm:$0xf]
      %v333 = vld [vmem:[%s209 + $0x19c] sm:$0xf]
      %v334 = vld [vmem:[%s209 + $0x1a0] sm:$0xf]
      %v335 = vld [vmem:[%s209 + $0x1a4] sm:$0xf]
      %v336 = vld [vmem:[%s209 + $0x1a8] sm:$0xf]
      %v337 = vld [vmem:[%s209 + $0x1ac] sm:$0xf]
      %v338 = vld [vmem:[%s209 + $0x1b0] sm:$0xf]
      %v339 = vld [vmem:[%s209 + $0x1b4] sm:$0xf]
      %v340 = vld [vmem:[%s209 + $0x1b8] sm:$0xf]
      %v341 = vld [vmem:[%s209 + $0x1bc] sm:$0xf]
      %v342 = vld [vmem:[%s209 + $0x1c0] sm:$0xf]
      %v343 = vld [vmem:[%s209 + $0x1c4] sm:$0xf]
      %v344 = vld [vmem:[%s209 + $0x1c8] sm:$0xf]
      %v345 = vld [vmem:[%s209 + $0x1cc] sm:$0xf]
      %v346 = vld [vmem:[%s209 + $0x1d0] sm:$0xf]
      %v347 = vld [vmem:[%s209 + $0x1d4] sm:$0xf]
      %v348 = vld [vmem:[%s209 + $0x1d8] sm:$0xf]
      %v349 = vld [vmem:[%s209 + $0x1dc] sm:$0xf]
      %v350 = vld [vmem:[%s209 + $0x1e0] sm:$0xf]
      %v351 = vld [vmem:[%s209 + $0x1e4] sm:$0xf]
      %v352 = vld [vmem:[%s209 + $0x1e8] sm:$0xf]
      %v353 = vld [vmem:[%s209 + $0x1ec] sm:$0xf]
      %v354 = vld [vmem:[%s209 + $0x1f0] sm:$0xf]
      %v355 = vld [vmem:[%s209 + $0x1f4] sm:$0xf]
      %v356 = vld [vmem:[%s209 + $0x1f8] sm:$0xf]
      %v357 = vld [vmem:[%s209 + $0x1fc] sm:$0xf]
      %v358 = vld [vmem:[%s209 + $0x200] sm:$0xf]
      %v359 = vld [vmem:[%s209 + $0x204] sm:$0xf]
      %v360 = vld [vmem:[%s209 + $0x208] sm:$0xf]
      %v361 = vld [vmem:[%s209 + $0x20c] sm:$0xf]
      %v362 = vld [vmem:[%s209 + $0x210] sm:$0xf]
      %v363 = vld [vmem:[%s209 + $0x214] sm:$0xf]
      %v364 = vld [vmem:[%s209 + $0x218] sm:$0xf]
      %v365 = vld [vmem:[%s209 + $0x21c] sm:$0xf]
      %v366 = vld [vmem:[%s209 + $0x220] sm:$0xf]
      %v367 = vld [vmem:[%s209 + $0x224] sm:$0xf]
      %v368 = vld [vmem:[%s209 + $0x228] sm:$0xf]
      %v369 = vld [vmem:[%s209 + $0x22c] sm:$0xf]
      %v370 = vld [vmem:[%s209 + $0x230] sm:$0xf]
      %v371 = vld [vmem:[%s209 + $0x234] sm:$0xf]
      %v372 = vld [vmem:[%s209 + $0x238] sm:$0xf]
      %v373 = vld [vmem:[%s209 + $0x23c] sm:$0xf]
      %v374 = vld [vmem:[%s209 + $0x240] sm:$0xf]
      %v375 = vld [vmem:[%s209 + $0x244] sm:$0xf]
      %v376 = vld [vmem:[%s209 + $0x248] sm:$0xf]
      %v377 = vld [vmem:[%s209 + $0x24c] sm:$0xf]
      %v378 = vld [vmem:[%s209 + $0x250] sm:$0xf]
      %v379 = vld [vmem:[%s209 + $0x254] sm:$0xf]
      %v380 = vld [vmem:[%s209 + $0x258] sm:$0xf]
      %v381 = vld [vmem:[%s209 + $0x25c] sm:$0xf]
      %v382 = vld [vmem:[%s209 + $0x260] sm:$0xf]
      %v383 = vld [vmem:[%s209 + $0x264] sm:$0xf]
      %v384 = vld [vmem:[%s209 + $0x268] sm:$0xf]
      %v385 = vld [vmem:[%s209 + $0x26c] sm:$0xf]
      %v386 = vld [vmem:[%s209 + $0x270] sm:$0xf]
      %v387 = vld [vmem:[%s209 + $0x274] sm:$0xf]
      %v388 = vld [vmem:[%s209 + $0x278] sm:$0xf]
      %v389 = vld [vmem:[%s209 + $0x27c] sm:$0xf]
      %v390 = vld [vmem:[%s209 + $0x280] sm:$0xf]
      %v391 = vld [vmem:[%s209 + $0x284] sm:$0xf]
      %v392 = vld [vmem:[%s209 + $0x288] sm:$0xf]
      %v393 = vld [vmem:[%s209 + $0x28c] sm:$0xf]
      %v394 = vld [vmem:[%s209 + $0x290] sm:$0xf]
      %v395 = vld [vmem:[%s209 + $0x294] sm:$0xf]
      %v396 = vld [vmem:[%s209 + $0x298] sm:$0xf]
      %v397 = vld [vmem:[%s209 + $0x29c] sm:$0xf]
      %v398 = vld [vmem:[%s209 + $0x2a0] sm:$0xf]
      %v399 = vld [vmem:[%s209 + $0x2a4] sm:$0xf]
      %v400 = vld [vmem:[%s209 + $0x2a8] sm:$0xf]
      %v401 = vld [vmem:[%s209 + $0x2ac] sm:$0xf]
      %v402 = vld [vmem:[%s209 + $0x2b0] sm:$0xf]
      %v403 = vld [vmem:[%s209 + $0x2b4] sm:$0xf]
      %v404 = vld [vmem:[%s209 + $0x2b8] sm:$0xf]
      %v405 = vld [vmem:[%s209 + $0x2bc] sm:$0xf]
      %v406 = vld [vmem:[%s209 + $0x2c0] sm:$0xf]
      %v407 = vld [vmem:[%s209 + $0x2c4] sm:$0xf]
      %v408 = vld [vmem:[%s209 + $0x2c8] sm:$0xf]
      %v409 = vld [vmem:[%s209 + $0x2cc] sm:$0xf]
      %v410 = vld [vmem:[%s209 + $0x2d0] sm:$0xf]
      %v411 = vld [vmem:[%s209 + $0x2d4] sm:$0xf]
      %v412 = vld [vmem:[%s209 + $0x2d8] sm:$0xf]
      %v413 = vld [vmem:[%s209 + $0x2dc] sm:$0xf]
      %v414 = vld [vmem:[%s209 + $0x2e0] sm:$0xf]
      %v415 = vld [vmem:[%s209 + $0x2e4] sm:$0xf]
      %v416 = vld [vmem:[%s209 + $0x2e8] sm:$0xf]
      %v417 = vld [vmem:[%s209 + $0x2ec] sm:$0xf]
      %v418 = vld [vmem:[%s209 + $0x2f0] sm:$0xf]
      %v419 = vld [vmem:[%s209 + $0x2f4] sm:$0xf]
      %v420 = vld [vmem:[%s209 + $0x2f8] sm:$0xf]
      %v421 = vld [vmem:[%s209 + $0x2fc] sm:$0xf]
      %v422 = vld [vmem:[%s209 + $0x300] sm:$0xf]
      %v423 = vld [vmem:[%s209 + $0x304] sm:$0xf]
      %v424 = vld [vmem:[%s209 + $0x308] sm:$0xf]
      %v425 = vld [vmem:[%s209 + $0x30c] sm:$0xf]
      %v426 = vld [vmem:[%s209 + $0x310] sm:$0xf]
      %v427 = vld [vmem:[%s209 + $0x314] sm:$0xf]
      %v428 = vld [vmem:[%s209 + $0x318] sm:$0xf]
      %v429 = vld [vmem:[%s209 + $0x31c] sm:$0xf]
      %v430 = vld [vmem:[%s209 + $0x320] sm:$0xf]
      %v431 = vld [vmem:[%s209 + $0x324] sm:$0xf]
      %v432 = vld [vmem:[%s209 + $0x328] sm:$0xf]
      %v433 = vld [vmem:[%s209 + $0x32c] sm:$0xf]
      %v434 = vld [vmem:[%s209 + $0x330] sm:$0xf]
      %v435 = vld [vmem:[%s209 + $0x334] sm:$0xf]
      %v436 = vld [vmem:[%s209 + $0x338] sm:$0xf]
      %v437 = vld [vmem:[%s209 + $0x33c] sm:$0xf]
      %v438 = vld [vmem:[%s209 + $0x340] sm:$0xf]
      %v439 = vld [vmem:[%s209 + $0x344] sm:$0xf]
      %v440 = vld [vmem:[%s209 + $0x348] sm:$0xf]
      %v441 = vld [vmem:[%s209 + $0x34c] sm:$0xf]
      %v442 = vld [vmem:[%s209 + $0x350] sm:$0xf]
      %v443 = vld [vmem:[%s209 + $0x354] sm:$0xf]
      %v444 = vld [vmem:[%s209 + $0x358] sm:$0xf]
      %v445 = vld [vmem:[%s209 + $0x35c] sm:$0xf]
      %v446 = vld [vmem:[%s209 + $0x360] sm:$0xf]
      %v447 = vld [vmem:[%s209 + $0x364] sm:$0xf]
      %v448 = vld [vmem:[%s209 + $0x368] sm:$0xf]
      %v449 = vld [vmem:[%s209 + $0x36c] sm:$0xf]
      %v450 = vld [vmem:[%s209 + $0x370] sm:$0xf]
      %v451 = vld [vmem:[%s209 + $0x374] sm:$0xf]
      %v452 = vld [vmem:[%s209 + $0x378] sm:$0xf]
      %v453 = vld [vmem:[%s209 + $0x37c] sm:$0xf]
      %v454 = vld [vmem:[%s209 + $0x380] sm:$0xf]
      %v455 = vld [vmem:[%s209 + $0x384] sm:$0xf]
      %v456 = vld [vmem:[%s209 + $0x388] sm:$0xf]
      %v457 = vld [vmem:[%s209 + $0x38c] sm:$0xf]
      %v458 = vld [vmem:[%s209 + $0x390] sm:$0xf]
      %v459 = vld [vmem:[%s209 + $0x394] sm:$0xf]
      %v460 = vld [vmem:[%s209 + $0x398] sm:$0xf]
      %v461 = vld [vmem:[%s209 + $0x39c] sm:$0xf]
      %v462 = vld [vmem:[%s209 + $0x3a0] sm:$0xf]
      %v463 = vld [vmem:[%s209 + $0x3a4] sm:$0xf]
      %v464 = vld [vmem:[%s209 + $0x3a8] sm:$0xf]
      %v465 = vld [vmem:[%s209 + $0x3ac] sm:$0xf]
      %v466 = vld [vmem:[%s209 + $0x3b0] sm:$0xf]
      %v467 = vld [vmem:[%s209 + $0x3b4] sm:$0xf]
      %v468 = vld [vmem:[%s209 + $0x3b8] sm:$0xf]
      %v469 = vld [vmem:[%s209 + $0x3bc] sm:$0xf]
      %v470 = vld [vmem:[%s209 + $0x3c0] sm:$0xf]
      %v471 = vld [vmem:[%s209 + $0x3c4] sm:$0xf]
      %v472 = vld [vmem:[%s209 + $0x3c8] sm:$0xf]
      %v473 = vld [vmem:[%s209 + $0x3cc] sm:$0xf]
      %v474 = vld [vmem:[%s209 + $0x3d0] sm:$0xf]
      %v475 = vld [vmem:[%s209 + $0x3d4] sm:$0xf]
      %v476 = vld [vmem:[%s209 + $0x3d8] sm:$0xf]
      %v477 = vld [vmem:[%s209 + $0x3dc] sm:$0xf]
      %v478 = vld [vmem:[%s209 + $0x3e0] sm:$0xf]
      %v479 = vld [vmem:[%s209 + $0x3e4] sm:$0xf]
      %v480 = vld [vmem:[%s209 + $0x3e8] sm:$0xf]
      %v481 = vld [vmem:[%s209 + $0x3ec] sm:$0xf]
      %v482 = vld [vmem:[%s209 + $0x3f0] sm:$0xf]
      %v483 = vld [vmem:[%s209 + $0x3f4] sm:$0xf]
      %v484 = vld [vmem:[%s209 + $0x3f8] sm:$0xf]
      %v485 = vld [vmem:[%s209 + $0x3fc] sm:$0xf]
      %v486 = vld [vmem:[%s209 + $0x400] sm:$0xf]
      %v487 = vld [vmem:[%s209 + $0x404] sm:$0xf]
      %v488 = vld [vmem:[%s209 + $0x408] sm:$0xf]
      %v489 = vld [vmem:[%s209 + $0x40c] sm:$0xf]
      %v490 = vld [vmem:[%s209 + $0x410] sm:$0xf]
      %v491 = vld [vmem:[%s209 + $0x414] sm:$0xf]
      %v492 = vld [vmem:[%s209 + $0x418] sm:$0xf]
      %v493 = vld [vmem:[%s209 + $0x41c] sm:$0xf]
      %v494 = vld [vmem:[%s209 + $0x420] sm:$0xf]
      %v495 = vld [vmem:[%s209 + $0x424] sm:$0xf]
      %v496 = vld [vmem:[%s209 + $0x428] sm:$0xf]
      %v497 = vld [vmem:[%s209 + $0x42c] sm:$0xf]
      %v498 = vld [vmem:[%s209 + $0x430] sm:$0xf]
      %v499 = vld [vmem:[%s209 + $0x434] sm:$0xf]
      %v500 = vld [vmem:[%s209 + $0x438] sm:$0xf]
      %v501 = vld [vmem:[%s209 + $0x43c] sm:$0xf]
      %v502 = vld [vmem:[%s209 + $0x440] sm:$0xf]
      %v503 = vld [vmem:[%s209 + $0x444] sm:$0xf]
      %v504 = vld [vmem:[%s209 + $0x448] sm:$0xf]
      %v505 = vld [vmem:[%s209 + $0x44c] sm:$0xf]
      %v506 = vld [vmem:[%s209 + $0x450] sm:$0xf]
      %v507 = vld [vmem:[%s209 + $0x454] sm:$0xf]
      %v508 = vld [vmem:[%s209 + $0x458] sm:$0xf]
      %v509 = vld [vmem:[%s209 + $0x45c] sm:$0xf]
      %v510 = vld [vmem:[%s209 + $0x460] sm:$0xf]
      %v511 = vld [vmem:[%s209 + $0x464] sm:$0xf]
      %v512 = vld [vmem:[%s209 + $0x468] sm:$0xf]
      %v513 = vld [vmem:[%s209 + $0x46c] sm:$0xf]
      %v514 = vld [vmem:[%s209 + $0x470] sm:$0xf]
      %v515 = vld [vmem:[%s209 + $0x474] sm:$0xf]
      %v516 = vld [vmem:[%s209 + $0x478] sm:$0xf]
      %v517 = vld [vmem:[%s209 + $0x47c] sm:$0xf]
      %v518 = vld [vmem:[%s209 + $0x480] sm:$0xf]
      %v519 = vld [vmem:[%s209 + $0x484] sm:$0xf]
      %v520 = vld [vmem:[%s209 + $0x488] sm:$0xf]
      %v521 = vld [vmem:[%s209 + $0x48c] sm:$0xf]
      %v522 = vld [vmem:[%s209 + $0x490] sm:$0xf]
      %v523 = vld [vmem:[%s209 + $0x494] sm:$0xf]
      %v524 = vld [vmem:[%s209 + $0x498] sm:$0xf]
      %v525 = vld [vmem:[%s209 + $0x49c] sm:$0xf]
      %v526 = vld [vmem:[%s209 + $0x4a0] sm:$0xf]
      %v527 = vld [vmem:[%s209 + $0x4a4] sm:$0xf]
      %v528 = vld [vmem:[%s209 + $0x4a8] sm:$0xf]
      %v529 = vld [vmem:[%s209 + $0x4ac] sm:$0xf]
      %v530 = vld [vmem:[%s209 + $0x4b0] sm:$0xf]
      %v531 = vld [vmem:[%s209 + $0x4b4] sm:$0xf]
      %v532 = vld [vmem:[%s209 + $0x4b8] sm:$0xf]
      %v533 = vld [vmem:[%s209 + $0x4bc] sm:$0xf]
      %v534 = vld [vmem:[%s209 + $0x4c0] sm:$0xf]
      %v535 = vld [vmem:[%s209 + $0x4c4] sm:$0xf]
      %v536 = vld [vmem:[%s209 + $0x4c8] sm:$0xf]
      %v537 = vld [vmem:[%s209 + $0x4cc] sm:$0xf]
      %v538 = vld [vmem:[%s209 + $0x4d0] sm:$0xf]
      %v539 = vld [vmem:[%s209 + $0x4d4] sm:$0xf]
      %v540 = vld [vmem:[%s209 + $0x4d8] sm:$0xf]
      %v541 = vld [vmem:[%s209 + $0x4dc] sm:$0xf]
      %v542 = vld [vmem:[%s209 + $0x4e0] sm:$0xf]
      %v543 = vld [vmem:[%s209 + $0x4e4] sm:$0xf]
      %v544 = vld [vmem:[%s209 + $0x4e8] sm:$0xf]
      %v545 = vld [vmem:[%s209 + $0x4ec] sm:$0xf]
      %v546 = vld [vmem:[%s209 + $0x4f0] sm:$0xf]
      %v547 = vld [vmem:[%s209 + $0x4f4] sm:$0xf]
      %v548 = vld [vmem:[%s209 + $0x4f8] sm:$0xf]
      %v549 = vld [vmem:[%s209 + $0x4fc] sm:$0xf]
      %v550 = vld [vmem:[%s209 + $0x500] sm:$0xf]
      %v551 = vld [vmem:[%s209 + $0x504] sm:$0xf]
      %v552 = vld [vmem:[%s209 + $0x508] sm:$0xf]
      %v553 = vld [vmem:[%s209 + $0x50c] sm:$0xf]
      %v554 = vld [vmem:[%s209 + $0x510] sm:$0xf]
      %v555 = vld [vmem:[%s209 + $0x514] sm:$0xf]
      %v556 = vld [vmem:[%s209 + $0x518] sm:$0xf]
      %v557 = vld [vmem:[%s209 + $0x51c] sm:$0xf]
      %v558 = vld [vmem:[%s209 + $0x520] sm:$0xf]
      %v559 = vld [vmem:[%s209 + $0x524] sm:$0xf]
      %v560 = vld [vmem:[%s209 + $0x528] sm:$0xf]
      %v561 = vld [vmem:[%s209 + $0x52c] sm:$0xf]
      %v562 = vld [vmem:[%s209 + $0x530] sm:$0xf]
      %v563 = vld [vmem:[%s209 + $0x534] sm:$0xf]
      %v564 = vld [vmem:[%s209 + $0x538] sm:$0xf]
      %v565 = vld [vmem:[%s209 + $0x53c] sm:$0xf]
      %v566 = vld [vmem:[%s209 + $0x540] sm:$0xf]
      %v567 = vld [vmem:[%s209 + $0x544] sm:$0xf]
      %v568 = vld [vmem:[%s209 + $0x548] sm:$0xf]
      %v569 = vld [vmem:[%s209 + $0x54c] sm:$0xf]
      %v570 = vld [vmem:[%s209 + $0x550] sm:$0xf]
      %v571 = vld [vmem:[%s209 + $0x554] sm:$0xf]
      %v572 = vld [vmem:[%s209 + $0x558] sm:$0xf]
      %v573 = vld [vmem:[%s209 + $0x55c] sm:$0xf]
      %v574 = vld [vmem:[%s209 + $0x560] sm:$0xf]
      %v575 = vld [vmem:[%s209 + $0x564] sm:$0xf]
      %v576 = vld [vmem:[%s209 + $0x568] sm:$0xf]
      %v577 = vld [vmem:[%s209 + $0x56c] sm:$0xf]
      %v578 = vld [vmem:[%s209 + $0x570] sm:$0xf]
      %v579 = vld [vmem:[%s209 + $0x574] sm:$0xf]
      %v580 = vld [vmem:[%s209 + $0x578] sm:$0xf]
      %v581 = vld [vmem:[%s209 + $0x57c] sm:$0xf]
      %v582 = vld [vmem:[%s209 + $0x580] sm:$0xf]
      %v583 = vld [vmem:[%s209 + $0x584] sm:$0xf]
      %v584 = vld [vmem:[%s209 + $0x588] sm:$0xf]
      %v585 = vld [vmem:[%s209 + $0x58c] sm:$0xf]
      %v586 = vld [vmem:[%s209 + $0x590] sm:$0xf]
      %v587 = vld [vmem:[%s209 + $0x594] sm:$0xf]
      %v588 = vld [vmem:[%s209 + $0x598] sm:$0xf]
      %v589 = vld [vmem:[%s209 + $0x59c] sm:$0xf]
      %v590 = vld [vmem:[%s209 + $0x5a0] sm:$0xf]
      %v591 = vld [vmem:[%s209 + $0x5a4] sm:$0xf]
      %v592 = vld [vmem:[%s209 + $0x5a8] sm:$0xf]
      %v593 = vld [vmem:[%s209 + $0x5ac] sm:$0xf]
      %v594 = vld [vmem:[%s209 + $0x5b0] sm:$0xf]
      %v595 = vld [vmem:[%s209 + $0x5b4] sm:$0xf]
      %v596 = vld [vmem:[%s209 + $0x5b8] sm:$0xf]
      %v597 = vld [vmem:[%s209 + $0x5bc] sm:$0xf]
      %v598 = vld [vmem:[%s209 + $0x5c0] sm:$0xf]
      %v599 = vld [vmem:[%s209 + $0x5c4] sm:$0xf]
      %v600 = vld [vmem:[%s209 + $0x5c8] sm:$0xf]
      %v601 = vld [vmem:[%s209 + $0x5cc] sm:$0xf]
      %v602 = vld [vmem:[%s209 + $0x5d0] sm:$0xf]
      %v603 = vld [vmem:[%s209 + $0x5d4] sm:$0xf]
      %v604 = vld [vmem:[%s209 + $0x5d8] sm:$0xf]
      %v605 = vld [vmem:[%s209 + $0x5dc] sm:$0xf]
      %v606 = vld [vmem:[%s209 + $0x5e0] sm:$0xf]
      %v607 = vld [vmem:[%s209 + $0x5e4] sm:$0xf]
      %v608 = vld [vmem:[%s209 + $0x5e8] sm:$0xf]
      %v609 = vld [vmem:[%s209 + $0x5ec] sm:$0xf]
      %v610 = vld [vmem:[%s209 + $0x5f0] sm:$0xf]
      %v611 = vld [vmem:[%s209 + $0x5f4] sm:$0xf]
      %v612 = vld [vmem:[%s209 + $0x5f8] sm:$0xf]
      %v613 = vld [vmem:[%s209 + $0x5fc] sm:$0xf]
      %v614 = vld [vmem:[%s209 + $0x600] sm:$0xf]
      %v615 = vld [vmem:[%s209 + $0x604] sm:$0xf]
      %v616 = vld [vmem:[%s209 + $0x608] sm:$0xf]
      %v617 = vld [vmem:[%s209 + $0x60c] sm:$0xf]
      %v618 = vld [vmem:[%s209 + $0x610] sm:$0xf]
      %v619 = vld [vmem:[%s209 + $0x614] sm:$0xf]
      %v620 = vld [vmem:[%s209 + $0x618] sm:$0xf]
      %v621 = vld [vmem:[%s209 + $0x61c] sm:$0xf]
      %v622 = vld [vmem:[%s209 + $0x620] sm:$0xf]
      %v623 = vld [vmem:[%s209 + $0x624] sm:$0xf]
      %v624 = vld [vmem:[%s209 + $0x628] sm:$0xf]
      %v625 = vld [vmem:[%s209 + $0x62c] sm:$0xf]
      %v626 = vld [vmem:[%s209 + $0x630] sm:$0xf]
      %v627 = vld [vmem:[%s209 + $0x634] sm:$0xf]
      %v628 = vld [vmem:[%s209 + $0x638] sm:$0xf]
      %v629 = vld [vmem:[%s209 + $0x63c] sm:$0xf]
      %v630 = vld [vmem:[%s209 + $0x640] sm:$0xf]
      %v631 = vld [vmem:[%s209 + $0x644] sm:$0xf]
      %v632 = vld [vmem:[%s209 + $0x648] sm:$0xf]
      %v633 = vld [vmem:[%s209 + $0x64c] sm:$0xf]
      %v634 = vld [vmem:[%s209 + $0x650] sm:$0xf]
      %v635 = vld [vmem:[%s209 + $0x654] sm:$0xf]
      %v636 = vld [vmem:[%s209 + $0x658] sm:$0xf]
      %v637 = vld [vmem:[%s209 + $0x65c] sm:$0xf]
      %v638 = vld [vmem:[%s209 + $0x660] sm:$0xf]
      %v639 = vld [vmem:[%s209 + $0x664] sm:$0xf]
      %v640 = vld [vmem:[%s209 + $0x668] sm:$0xf]
      %v641 = vld [vmem:[%s209 + $0x66c] sm:$0xf]
      %v642 = vld [vmem:[%s209 + $0x670] sm:$0xf]
      %v643 = vld [vmem:[%s209 + $0x674] sm:$0xf]
      %v644 = vld [vmem:[%s209 + $0x678] sm:$0xf]
      %v645 = vld [vmem:[%s209 + $0x67c] sm:$0xf]
      %v646 = vld [vmem:[%s209 + $0x680] sm:$0xf]
      %v647 = vld [vmem:[%s209 + $0x684] sm:$0xf]
      %v648 = vld [vmem:[%s209 + $0x688] sm:$0xf]
      %v649 = vld [vmem:[%s209 + $0x68c] sm:$0xf]
      %v650 = vld [vmem:[%s209 + $0x690] sm:$0xf]
      %v651 = vld [vmem:[%s209 + $0x694] sm:$0xf]
      %v652 = vld [vmem:[%s209 + $0x698] sm:$0xf]
      %v653 = vld [vmem:[%s209 + $0x69c] sm:$0xf]
      %v654 = vld [vmem:[%s209 + $0x6a0] sm:$0xf]
      %v655 = vld [vmem:[%s209 + $0x6a4] sm:$0xf]
      %v656 = vld [vmem:[%s209 + $0x6a8] sm:$0xf]
      %v657 = vld [vmem:[%s209 + $0x6ac] sm:$0xf]
      %v658 = vld [vmem:[%s209 + $0x6b0] sm:$0xf]
      %v659 = vld [vmem:[%s209 + $0x6b4] sm:$0xf]
      %v660 = vld [vmem:[%s209 + $0x6b8] sm:$0xf]
      %v661 = vld [vmem:[%s209 + $0x6bc] sm:$0xf]
      %v662 = vld [vmem:[%s209 + $0x6c0] sm:$0xf]
      %v663 = vld [vmem:[%s209 + $0x6c4] sm:$0xf]
      %v664 = vld [vmem:[%s209 + $0x6c8] sm:$0xf]
      %v665 = vld [vmem:[%s209 + $0x6cc] sm:$0xf]
      %v666 = vld [vmem:[%s209 + $0x6d0] sm:$0xf]
      %v667 = vld [vmem:[%s209 + $0x6d4] sm:$0xf]
      %v668 = vld [vmem:[%s209 + $0x6d8] sm:$0xf]
      %v669 = vld [vmem:[%s209 + $0x6dc] sm:$0xf]
      %v670 = vld [vmem:[%s209 + $0x6e0] sm:$0xf]
      %v671 = vld [vmem:[%s209 + $0x6e4] sm:$0xf]
      %v672 = vld [vmem:[%s209 + $0x6e8] sm:$0xf]
      %v673 = vld [vmem:[%s209 + $0x6ec] sm:$0xf]
      %v674 = vld [vmem:[%s209 + $0x6f0] sm:$0xf]
      %v675 = vld [vmem:[%s209 + $0x6f4] sm:$0xf]
      %v676 = vld [vmem:[%s209 + $0x6f8] sm:$0xf]
      %v677 = vld [vmem:[%s209 + $0x6fc] sm:$0xf]
      %v678 = vld [vmem:[%s209 + $0x700] sm:$0xf]
      %v679 = vld [vmem:[%s209 + $0x704] sm:$0xf]
      %v680 = vld [vmem:[%s209 + $0x708] sm:$0xf]
      %v681 = vld [vmem:[%s209 + $0x70c] sm:$0xf]
      %v682 = vld [vmem:[%s209 + $0x710] sm:$0xf]
      %v683 = vld [vmem:[%s209 + $0x714] sm:$0xf]
      %v684 = vld [vmem:[%s209 + $0x718] sm:$0xf]
      %v685 = vld [vmem:[%s209 + $0x71c] sm:$0xf]
      %v686 = vld [vmem:[%s209 + $0x720] sm:$0xf]
      %v687 = vld [vmem:[%s209 + $0x724] sm:$0xf]
      %v688 = vld [vmem:[%s209 + $0x728] sm:$0xf]
      %v689 = vld [vmem:[%s209 + $0x72c] sm:$0xf]
      %v690 = vld [vmem:[%s209 + $0x730] sm:$0xf]
      %v691 = vld [vmem:[%s209 + $0x734] sm:$0xf]
      %v692 = vld [vmem:[%s209 + $0x738] sm:$0xf]
      %v693 = vld [vmem:[%s209 + $0x73c] sm:$0xf]
      %v694 = vld [vmem:[%s209 + $0x740] sm:$0xf]
      %v695 = vld [vmem:[%s209 + $0x744] sm:$0xf]
      %v696 = vld [vmem:[%s209 + $0x748] sm:$0xf]
      %v697 = vld [vmem:[%s209 + $0x74c] sm:$0xf]
      %v698 = vld [vmem:[%s209 + $0x750] sm:$0xf]
      %v699 = vld [vmem:[%s209 + $0x754] sm:$0xf]
      %v700 = vld [vmem:[%s209 + $0x758] sm:$0xf]
      %v701 = vld [vmem:[%s209 + $0x75c] sm:$0xf]
      %v702 = vld [vmem:[%s209 + $0x760] sm:$0xf]
      %v703 = vld [vmem:[%s209 + $0x764] sm:$0xf]
      %v704 = vld [vmem:[%s209 + $0x768] sm:$0xf]
      %v705 = vld [vmem:[%s209 + $0x76c] sm:$0xf]
      %v706 = vld [vmem:[%s209 + $0x770] sm:$0xf]
      %v707 = vld [vmem:[%s209 + $0x774] sm:$0xf]
      %v708 = vld [vmem:[%s209 + $0x778] sm:$0xf]
      %v709 = vld [vmem:[%s209 + $0x77c] sm:$0xf]
      %v710 = vld [vmem:[%s209 + $0x780] sm:$0xf]
      %v711 = vld [vmem:[%s209 + $0x784] sm:$0xf]
      %v712 = vld [vmem:[%s209 + $0x788] sm:$0xf]
      %v713 = vld [vmem:[%s209 + $0x78c] sm:$0xf]
      %v714 = vld [vmem:[%s209 + $0x790] sm:$0xf]
      %v715 = vld [vmem:[%s209 + $0x794] sm:$0xf]
      %v716 = vld [vmem:[%s209 + $0x798] sm:$0xf]
      %v717 = vld [vmem:[%s209 + $0x79c] sm:$0xf]
      %v718 = vld [vmem:[%s209 + $0x7a0] sm:$0xf]
      %v719 = vld [vmem:[%s209 + $0x7a4] sm:$0xf]
      %v720 = vld [vmem:[%s209 + $0x7a8] sm:$0xf]
      %v721 = vld [vmem:[%s209 + $0x7ac] sm:$0xf]
      %v722 = vld [vmem:[%s209 + $0x7b0] sm:$0xf]
      %v723 = vld [vmem:[%s209 + $0x7b4] sm:$0xf]
      %v724 = vld [vmem:[%s209 + $0x7b8] sm:$0xf]
      %v725 = vld [vmem:[%s209 + $0x7bc] sm:$0xf]
      %v726 = vld [vmem:[%s209 + $0x7c0] sm:$0xf]
      %v727 = vld [vmem:[%s209 + $0x7c4] sm:$0xf]
      %v728 = vld [vmem:[%s209 + $0x7c8] sm:$0xf]
      %v729 = vld [vmem:[%s209 + $0x7cc] sm:$0xf]
      %v730 = vld [vmem:[%s209 + $0x7d0] sm:$0xf]
      %v731 = vld [vmem:[%s209 + $0x7d4] sm:$0xf]
      %v732 = vld [vmem:[%s209 + $0x7d8] sm:$0xf]
      %v733 = vld [vmem:[%s209 + $0x7dc] sm:$0xf]
      %v734 = vld [vmem:[%s209 + $0x7e0] sm:$0xf]
      %v735 = vld [vmem:[%s209 + $0x7e4] sm:$0xf]
      %v736 = vld [vmem:[%s209 + $0x7e8] sm:$0xf]
      %v737 = vld [vmem:[%s209 + $0x7ec] sm:$0xf]
      %v738 = vld [vmem:[%s209 + $0x7f0] sm:$0xf]
      %v739 = vld [vmem:[%s209 + $0x7f4] sm:$0xf]
      %v740 = vld [vmem:[%s209 + $0x7f8] sm:$0xf]
      %v741 = vld [vmem:[%s209 + $0x7fc] sm:$0xf]
      %v742 = vld [vmem:[%s209 + $0x800] sm:$0xf]
      %v743 = vld [vmem:[%s209 + $0x804] sm:$0xf]
      %v744 = vld [vmem:[%s209 + $0x808] sm:$0xf]
      %v745 = vld [vmem:[%s209 + $0x80c] sm:$0xf]
      %v746 = vld [vmem:[%s209 + $0x810] sm:$0xf]
      %v747 = vld [vmem:[%s209 + $0x814] sm:$0xf]
      %v748 = vld [vmem:[%s209 + $0x818] sm:$0xf]
      %v749 = vld [vmem:[%s209 + $0x81c] sm:$0xf]
      %v750 = vld [vmem:[%s209 + $0x820] sm:$0xf]
      %v751 = vld [vmem:[%s209 + $0x824] sm:$0xf]
      %v752 = vld [vmem:[%s209 + $0x828] sm:$0xf]
      %v753 = vld [vmem:[%s209 + $0x82c] sm:$0xf]
      %v754 = vld [vmem:[%s209 + $0x830] sm:$0xf]
      %v755 = vld [vmem:[%s209 + $0x834] sm:$0xf]
      %v756 = vld [vmem:[%s209 + $0x838] sm:$0xf]
      %v757 = vld [vmem:[%s209 + $0x83c] sm:$0xf]
      %v758 = vld [vmem:[%s209 + $0x840] sm:$0xf]
      %v759 = vld [vmem:[%s209 + $0x844] sm:$0xf]
      %v760 = vld [vmem:[%s209 + $0x848] sm:$0xf]
      %v761 = vld [vmem:[%s209 + $0x84c] sm:$0xf]
      %v762 = vld [vmem:[%s209 + $0x850] sm:$0xf]
      %v763 = vld [vmem:[%s209 + $0x854] sm:$0xf]
      %v764 = vld [vmem:[%s209 + $0x858] sm:$0xf]
      %v765 = vld [vmem:[%s209 + $0x85c] sm:$0xf]
      %v766 = vld [vmem:[%s209 + $0x860] sm:$0xf]
      %v767 = vld [vmem:[%s209 + $0x864] sm:$0xf]
      %v768 = vld [vmem:[%s209 + $0x868] sm:$0xf]
      %v769 = vld [vmem:[%s209 + $0x86c] sm:$0xf]
      %v770 = vld [vmem:[%s209 + $0x870] sm:$0xf]
      %v771 = vld [vmem:[%s209 + $0x874] sm:$0xf]
      %v772 = vld [vmem:[%s209 + $0x878] sm:$0xf]
      %v773 = vld [vmem:[%s209 + $0x87c] sm:$0xf]
      %v774 = vld [vmem:[%s209 + $0x880] sm:$0xf]
      %v775 = vld [vmem:[%s209 + $0x884] sm:$0xf]
      %v776 = vld [vmem:[%s209 + $0x888] sm:$0xf]
      %v777 = vld [vmem:[%s209 + $0x88c] sm:$0xf]
      %v778 = vld [vmem:[%s209 + $0x890] sm:$0xf]
      %v779 = vld [vmem:[%s209 + $0x894] sm:$0xf]
      %v780 = vld [vmem:[%s209 + $0x898] sm:$0xf]
      %v781 = vld [vmem:[%s209 + $0x89c] sm:$0xf]
      %v782 = vld [vmem:[%s209 + $0x8a0] sm:$0xf]
      %v783 = vld [vmem:[%s209 + $0x8a4] sm:$0xf]
      %v784 = vld [vmem:[%s209 + $0x8a8] sm:$0xf]
      %v785 = vld [vmem:[%s209 + $0x8ac] sm:$0xf]
      %v786 = vld [vmem:[%s209 + $0x8b0] sm:$0xf]
      %v787 = vld [vmem:[%s209 + $0x8b4] sm:$0xf]
      %v788 = vld [vmem:[%s209 + $0x8b8] sm:$0xf]
      %v789 = vld [vmem:[%s209 + $0x8bc] sm:$0xf]
      %v790 = vld [vmem:[%s209 + $0x8c0] sm:$0xf]
      %v791 = vld [vmem:[%s209 + $0x8c4] sm:$0xf]
      %v792 = vld [vmem:[%s209 + $0x8c8] sm:$0xf]
      %v793 = vld [vmem:[%s209 + $0x8cc] sm:$0xf]
      %v794 = vld [vmem:[%s209 + $0x8d0] sm:$0xf]
      %v795 = vld [vmem:[%s209 + $0x8d4] sm:$0xf]
      %v796 = vld [vmem:[%s209 + $0x8d8] sm:$0xf]
      %v797 = vld [vmem:[%s209 + $0x8dc] sm:$0xf]
      %v798 = vld [vmem:[%s209 + $0x8e0] sm:$0xf]
      %v799 = vld [vmem:[%s209 + $0x8e4] sm:$0xf]
      %v800 = vld [vmem:[%s209 + $0x8e8] sm:$0xf]
      %v801 = vld [vmem:[%s209 + $0x8ec] sm:$0xf]
      %v802 = vld [vmem:[%s209 + $0x8f0] sm:$0xf]
      %v803 = vld [vmem:[%s209 + $0x8f4] sm:$0xf]
      %v804 = vld [vmem:[%s209 + $0x8f8] sm:$0xf]
      %v805 = vld [vmem:[%s209 + $0x8fc] sm:$0xf]
      %v806 = vld [vmem:[%s212] sm:$0x1]
      %v808 = vlaneseq
      %v809 = vshrl.u32 %v808, 7
      %v810 = vsub.s32 0, %v809
      %v811 = vrot.slane %v806, %v810
      %v822 = vcombine.high %v221, %v221
      %v824 = vunpack.c.l.s4 1983009808
      %v825 = vunpack.c.0.s8 %v824
      %v826 = vlaneseq
      %v827 = vshrl.u32 %v826, 7
      %v828 = vsub.s32 %v825, %v827
      %v829 = vrot.slane %v221, %v828
      %v831 = vunpack.c.l.s4 1983009808
      %v832 = vunpack.c.0.s8 %v831
      %v833 = vlaneseq
      %v834 = vshrl.u32 %v833, 7
      %v835 = vsub.s32 %v832, %v834
      %v836 = vrot.slane %v822, %v835
      %v837 = vcombine.high %v829, %v829
      %v838 = vcombine.high %v836, %v836
      %v839 = vcombine.high %v222, %v222
      %v841 = vunpack.c.l.s4 1983009808
      %v842 = vunpack.c.0.s8 %v841
      %v843 = vlaneseq
      %v844 = vshrl.u32 %v843, 7
      %v845 = vsub.s32 %v842, %v844
      %v846 = vrot.slane %v222, %v845
      %v848 = vunpack.c.l.s4 1983009808
      %v849 = vunpack.c.0.s8 %v848
      %v850 = vlaneseq
      %v851 = vshrl.u32 %v850, 7
      %v852 = vsub.s32 %v849, %v851
      %v853 = vrot.slane %v839, %v852
      %v854 = vcombine.high %v846, %v846
      %v855 = vcombine.high %v853, %v853
      %v856 = vcombine.high %v223, %v223
      %v858 = vunpack.c.l.s4 1983009808
      %v859 = vunpack.c.0.s8 %v858
      %v860 = vlaneseq
      %v861 = vshrl.u32 %v860, 7
      %v862 = vsub.s32 %v859, %v861
      %v863 = vrot.slane %v223, %v862
      %v865 = vunpack.c.l.s4 1983009808
      %v866 = vunpack.c.0.s8 %v865
      %v867 = vlaneseq
      %v868 = vshrl.u32 %v867, 7
      %v869 = vsub.s32 %v866, %v868
      %v870 = vrot.slane %v856, %v869
      %v871 = vcombine.high %v863, %v863
      %v872 = vcombine.high %v870, %v870
      %v873 = vcombine.high %v224, %v224
      %v875 = vunpack.c.l.s4 1983009808
      %v876 = vunpack.c.0.s8 %v875
      %v877 = vlaneseq
      %v878 = vshrl.u32 %v877, 7
      %v879 = vsub.s32 %v876, %v878
      %v880 = vrot.slane %v224, %v879
      %v882 = vunpack.c.l.s4 1983009808
      %v883 = vunpack.c.0.s8 %v882
      %v884 = vlaneseq
      %v885 = vshrl.u32 %v884, 7
      %v886 = vsub.s32 %v883, %v885
      %v887 = vrot.slane %v873, %v886
      %v888 = vcombine.high %v880, %v880
      %v889 = vcombine.high %v887, %v887
      %v890 = vcombine.high %v225, %v225
      %v892 = vunpack.c.l.s4 1983009808
      %v893 = vunpack.c.0.s8 %v892
      %v894 = vlaneseq
      %v895 = vshrl.u32 %v894, 7
      %v896 = vsub.s32 %v893, %v895
      %v897 = vrot.slane %v225, %v896
      %v899 = vunpack.c.l.s4 1983009808
      %v900 = vunpack.c.0.s8 %v899
      %v901 = vlaneseq
      %v902 = vshrl.u32 %v901, 7
      %v903 = vsub.s32 %v900, %v902
      %v904 = vrot.slane %v890, %v903
      %v905 = vcombine.high %v897, %v897
      %v906 = vcombine.high %v904, %v904
      %v907 = vcombine.high %v226, %v226
      %v909 = vunpack.c.l.s4 1983009808
      %v910 = vunpack.c.0.s8 %v909
      %v911 = vlaneseq
      %v912 = vshrl.u32 %v911, 7
      %v913 = vsub.s32 %v910, %v912
      %v914 = vrot.slane %v226, %v913
      %v916 = vunpack.c.l.s4 1983009808
      %v917 = vunpack.c.0.s8 %v916
      %v918 = vlaneseq
      %v919 = vshrl.u32 %v918, 7
      %v920 = vsub.s32 %v917, %v919
      %v921 = vrot.slane %v907, %v920
      %v922 = vcombine.high %v914, %v914
      %v923 = vcombine.high %v921, %v921
      %v924 = vcombine.high %v227, %v227
      %v926 = vunpack.c.l.s4 1983009808
      %v927 = vunpack.c.0.s8 %v926
      %v928 = vlaneseq
      %v929 = vshrl.u32 %v928, 7
      %v930 = vsub.s32 %v927, %v929
      %v931 = vrot.slane %v227, %v930
      %v933 = vunpack.c.l.s4 1983009808
      %v934 = vunpack.c.0.s8 %v933
      %v935 = vlaneseq
      %v936 = vshrl.u32 %v935, 7
      %v937 = vsub.s32 %v934, %v936
      %v938 = vrot.slane %v924, %v937
      %v939 = vcombine.high %v931, %v931
      %v940 = vcombine.high %v938, %v938
      %v941 = vcombine.high %v228, %v228
      %v943 = vunpack.c.l.s4 1983009808
      %v944 = vunpack.c.0.s8 %v943
      %v945 = vlaneseq
      %v946 = vshrl.u32 %v945, 7
      %v947 = vsub.s32 %v944, %v946
      %v948 = vrot.slane %v228, %v947
      %v950 = vunpack.c.l.s4 1983009808
      %v951 = vunpack.c.0.s8 %v950
      %v952 = vlaneseq
      %v953 = vshrl.u32 %v952, 7
      %v954 = vsub.s32 %v951, %v953
      %v955 = vrot.slane %v941, %v954
      %v956 = vcombine.high %v948, %v948
      %v957 = vcombine.high %v955, %v955
      %v958 = vcombine.high %v229, %v229
      %v960 = vunpack.c.l.s4 1983009808
      %v961 = vunpack.c.0.s8 %v960
      %v962 = vlaneseq
      %v963 = vshrl.u32 %v962, 7
      %v964 = vsub.s32 %v961, %v963
      %v965 = vrot.slane %v229, %v964
      %v967 = vunpack.c.l.s4 1983009808
      %v968 = vunpack.c.0.s8 %v967
      %v969 = vlaneseq
      %v970 = vshrl.u32 %v969, 7
      %v971 = vsub.s32 %v968, %v970
      %v972 = vrot.slane %v958, %v971
      %v973 = vcombine.high %v965, %v965
      %v974 = vcombine.high %v972, %v972
      %v1587 = vunpack.c.l.b16 %v230
      %v1588 = vunpack.c.l.b16 %v231
      %v1589 = vunpack.c.l.b16 %v232
      %v1590 = vunpack.c.l.b16 %v233
      %v1591 = vunpack.c.l.b16 %v234
      %v1592 = vunpack.c.l.b16 %v235
      %v1593 = vunpack.c.l.b16 %v236
      %v1594 = vunpack.c.l.b16 %v237
      %v1595 = vunpack.c.l.b16 %v238
      %v1596 = vunpack.c.l.b16 %v239
      %v1597 = vunpack.c.l.b16 %v240
      %v1598 = vunpack.c.l.b16 %v241
      %v1599 = vunpack.c.l.b16 %v242
      %v1600 = vunpack.c.l.b16 %v243
      %v1601 = vunpack.c.l.b16 %v244
      %v1602 = vunpack.c.l.b16 %v245
      %v1603 = vunpack.c.l.b16 %v246
      %v1604 = vunpack.c.l.b16 %v247
      %v1605 = vunpack.c.l.b16 %v248
      %v1606 = vunpack.c.l.b16 %v249
      %v1607 = vunpack.c.l.b16 %v250
      %v1608 = vunpack.c.l.b16 %v251
      %v1609 = vunpack.c.l.b16 %v252
      %v1610 = vunpack.c.l.b16 %v253
      %v1611 = vunpack.c.l.b16 %v254
      %v1612 = vunpack.c.l.b16 %v255
      %v1613 = vunpack.c.l.b16 %v256
      %v1614 = vunpack.c.l.b16 %v257
      %v1615 = vunpack.c.l.b16 %v258
      %v1616 = vunpack.c.l.b16 %v259
      %v1617 = vunpack.c.l.b16 %v260
      %v1618 = vunpack.c.l.b16 %v261
      %v1619 = vunpack.c.l.b16 %v262
      %v1620 = vunpack.c.l.b16 %v263
      %v1621 = vunpack.c.l.b16 %v264
      %v1622 = vunpack.c.l.b16 %v265
      %v1623 = vunpack.c.l.b16 %v266
      %v1624 = vunpack.c.l.b16 %v267
      %v1625 = vunpack.c.l.b16 %v268
      %v1626 = vunpack.c.l.b16 %v269
      %v1627 = vunpack.c.l.b16 %v270
      %v1628 = vunpack.c.l.b16 %v271
      %v1629 = vunpack.c.l.b16 %v272
      %v1630 = vunpack.c.l.b16 %v273
      %v1631 = vunpack.c.l.b16 %v274
      %v1632 = vunpack.c.l.b16 %v275
      %v1633 = vunpack.c.l.b16 %v276
      %v1634 = vunpack.c.l.b16 %v277
      %v1635 = vunpack.c.l.b16 %v278
      %v1636 = vunpack.c.l.b16 %v279
      %v1637 = vunpack.c.l.b16 %v280
      %v1638 = vunpack.c.l.b16 %v281
      %v1639 = vunpack.c.l.b16 %v282
      %v1640 = vunpack.c.l.b16 %v283
      %v1641 = vunpack.c.l.b16 %v284
      %v1642 = vunpack.c.l.b16 %v285
      %v1643 = vunpack.c.l.b16 %v286
      %v1644 = vunpack.c.l.b16 %v287
      %v1645 = vunpack.c.l.b16 %v288
      %v1646 = vunpack.c.l.b16 %v289
      %v1647 = vunpack.c.l.b16 %v290
      %v1648 = vunpack.c.l.b16 %v291
      %v1649 = vunpack.c.l.b16 %v292
      %v1650 = vunpack.c.l.b16 %v293
      %v1651 = vunpack.c.l.b16 %v294
      %v1652 = vunpack.c.l.b16 %v295
      %v1653 = vunpack.c.l.b16 %v296
      %v1654 = vunpack.c.l.b16 %v297
      %v1655 = vunpack.c.l.b16 %v298
      %v1656 = vunpack.c.l.b16 %v299
      %v1657 = vunpack.c.l.b16 %v300
      %v1658 = vunpack.c.l.b16 %v301
      %v1659 = vunpack.c.l.b16 %v302
      %v1660 = vunpack.c.l.b16 %v303
      %v1661 = vunpack.c.l.b16 %v304
      %v1662 = vunpack.c.l.b16 %v305
      %v1663 = vunpack.c.l.b16 %v306
      %v1664 = vunpack.c.l.b16 %v307
      %v1665 = vunpack.c.l.b16 %v308
      %v1666 = vunpack.c.l.b16 %v309
      %v1667 = vunpack.c.l.b16 %v310
      %v1668 = vunpack.c.l.b16 %v311
      %v1669 = vunpack.c.l.b16 %v312
      %v1670 = vunpack.c.l.b16 %v313
      %v1671 = vunpack.c.l.b16 %v314
      %v1672 = vunpack.c.l.b16 %v315
      %v1673 = vunpack.c.l.b16 %v316
      %v1674 = vunpack.c.l.b16 %v317
      %v1675 = vunpack.c.l.b16 %v318
      %v1676 = vunpack.c.l.b16 %v319
      %v1677 = vunpack.c.l.b16 %v320
      %v1678 = vunpack.c.l.b16 %v321
      %v1679 = vunpack.c.l.b16 %v322
      %v1680 = vunpack.c.l.b16 %v323
      %v1681 = vunpack.c.l.b16 %v324
      %v1682 = vunpack.c.l.b16 %v325
      %v1683 = vunpack.c.l.b16 %v326
      %v1684 = vunpack.c.l.b16 %v327
      %v1685 = vunpack.c.l.b16 %v328
      %v1686 = vunpack.c.l.b16 %v329
      %v1687 = vunpack.c.l.b16 %v330
      %v1688 = vunpack.c.l.b16 %v331
      %v1689 = vunpack.c.l.b16 %v332
      %v1690 = vunpack.c.l.b16 %v333
      %v1691 = vunpack.c.l.b16 %v334
      %v1692 = vunpack.c.l.b16 %v335
      %v1693 = vunpack.c.l.b16 %v336
      %v1694 = vunpack.c.l.b16 %v337
      %v1695 = vunpack.c.l.b16 %v338
      %v1696 = vunpack.c.l.b16 %v339
      %v1697 = vunpack.c.l.b16 %v340
      %v1698 = vunpack.c.l.b16 %v341
      %v1699 = vunpack.c.l.b16 %v342
      %v1700 = vunpack.c.l.b16 %v343
      %v1701 = vunpack.c.l.b16 %v344
      %v1702 = vunpack.c.l.b16 %v345
      %v1703 = vunpack.c.l.b16 %v346
      %v1704 = vunpack.c.l.b16 %v347
      %v1705 = vunpack.c.l.b16 %v348
      %v1706 = vunpack.c.l.b16 %v349
      %v1707 = vunpack.c.l.b16 %v350
      %v1708 = vunpack.c.l.b16 %v351
      %v1709 = vunpack.c.l.b16 %v352
      %v1710 = vunpack.c.l.b16 %v353
      %v1711 = vunpack.c.l.b16 %v354
      %v1712 = vunpack.c.l.b16 %v355
      %v1713 = vunpack.c.l.b16 %v356
      %v1714 = vunpack.c.l.b16 %v357
      %v1715 = vunpack.c.l.b16 %v358
      %v1716 = vunpack.c.l.b16 %v359
      %v1717 = vunpack.c.l.b16 %v360
      %v1718 = vunpack.c.l.b16 %v361
      %v1719 = vunpack.c.l.b16 %v362
      %v1720 = vunpack.c.l.b16 %v363
      %v1721 = vunpack.c.l.b16 %v364
      %v1722 = vunpack.c.l.b16 %v365
      %v1723 = vunpack.c.l.b16 %v366
      %v1724 = vunpack.c.l.b16 %v367
      %v1725 = vunpack.c.l.b16 %v368
      %v1726 = vunpack.c.l.b16 %v369
      %v1727 = vunpack.c.l.b16 %v370
      %v1728 = vunpack.c.l.b16 %v371
      %v1729 = vunpack.c.l.b16 %v372
      %v1730 = vunpack.c.l.b16 %v373
      %v1731 = vunpack.c.l.b16 %v374
      %v1732 = vunpack.c.l.b16 %v375
      %v1733 = vunpack.c.l.b16 %v376
      %v1734 = vunpack.c.l.b16 %v377
      %v1735 = vunpack.c.l.b16 %v378
      %v1736 = vunpack.c.l.b16 %v379
      %v1737 = vunpack.c.l.b16 %v380
      %v1738 = vunpack.c.l.b16 %v381
      %v1739 = vunpack.c.l.b16 %v382
      %v1740 = vunpack.c.l.b16 %v383
      %v1741 = vunpack.c.l.b16 %v384
      %v1742 = vunpack.c.l.b16 %v385
      %v1743 = vunpack.c.l.b16 %v386
      %v1744 = vunpack.c.l.b16 %v387
      %v1745 = vunpack.c.l.b16 %v388
      %v1746 = vunpack.c.l.b16 %v389
      %v1747 = vunpack.c.l.b16 %v390
      %v1748 = vunpack.c.l.b16 %v391
      %v1749 = vunpack.c.l.b16 %v392
      %v1750 = vunpack.c.l.b16 %v393
      %v1751 = vunpack.c.l.b16 %v394
      %v1752 = vunpack.c.l.b16 %v395
      %v1753 = vunpack.c.l.b16 %v396
      %v1754 = vunpack.c.l.b16 %v397
      %v1755 = vunpack.c.l.b16 %v398
      %v1756 = vunpack.c.l.b16 %v399
      %v1757 = vunpack.c.l.b16 %v400
      %v1758 = vunpack.c.l.b16 %v401
      %v1759 = vunpack.c.l.b16 %v402
      %v1760 = vunpack.c.l.b16 %v403
      %v1761 = vunpack.c.l.b16 %v404
      %v1762 = vunpack.c.l.b16 %v405
      %v1763 = vunpack.c.l.b16 %v406
      %v1764 = vunpack.c.l.b16 %v407
      %v1765 = vunpack.c.l.b16 %v408
      %v1766 = vunpack.c.l.b16 %v409
      %v1767 = vunpack.c.l.b16 %v410
      %v1768 = vunpack.c.l.b16 %v411
      %v1769 = vunpack.c.l.b16 %v412
      %v1770 = vunpack.c.l.b16 %v413
      %v1771 = vunpack.c.l.b16 %v414
      %v1772 = vunpack.c.l.b16 %v415
      %v1773 = vunpack.c.l.b16 %v416
      %v1774 = vunpack.c.l.b16 %v417
      %v1775 = vunpack.c.l.b16 %v418
      %v1776 = vunpack.c.l.b16 %v419
      %v1777 = vunpack.c.l.b16 %v420
      %v1778 = vunpack.c.l.b16 %v421
      %v1779 = vunpack.c.l.b16 %v422
      %v1780 = vunpack.c.l.b16 %v423
      %v1781 = vunpack.c.l.b16 %v424
      %v1782 = vunpack.c.l.b16 %v425
      %v1783 = vunpack.c.l.b16 %v426
      %v1784 = vunpack.c.l.b16 %v427
      %v1785 = vunpack.c.l.b16 %v428
      %v1786 = vunpack.c.l.b16 %v429
      %v1787 = vunpack.c.l.b16 %v430
      %v1788 = vunpack.c.l.b16 %v431
      %v1789 = vunpack.c.l.b16 %v432
      %v1790 = vunpack.c.l.b16 %v433
      %v1791 = vunpack.c.l.b16 %v434
      %v1792 = vunpack.c.l.b16 %v435
      %v1793 = vunpack.c.l.b16 %v436
      %v1794 = vunpack.c.l.b16 %v437
      %v1795 = vunpack.c.l.b16 %v438
      %v1796 = vunpack.c.l.b16 %v439
      %v1797 = vunpack.c.l.b16 %v440
      %v1798 = vunpack.c.l.b16 %v441
      %v1799 = vunpack.c.l.b16 %v442
      %v1800 = vunpack.c.l.b16 %v443
      %v1801 = vunpack.c.l.b16 %v444
      %v1802 = vunpack.c.l.b16 %v445
      %v1803 = vunpack.c.l.b16 %v446
      %v1804 = vunpack.c.l.b16 %v447
      %v1805 = vunpack.c.l.b16 %v448
      %v1806 = vunpack.c.l.b16 %v449
      %v1807 = vunpack.c.l.b16 %v450
      %v1808 = vunpack.c.l.b16 %v451
      %v1809 = vunpack.c.l.b16 %v452
      %v1810 = vunpack.c.l.b16 %v453
      %v1811 = vunpack.c.l.b16 %v454
      %v1812 = vunpack.c.l.b16 %v455
      %v1813 = vunpack.c.l.b16 %v456
      %v1814 = vunpack.c.l.b16 %v457
      %v1815 = vunpack.c.l.b16 %v458
      %v1816 = vunpack.c.l.b16 %v459
      %v1817 = vunpack.c.l.b16 %v460
      %v1818 = vunpack.c.l.b16 %v461
      %v1819 = vunpack.c.l.b16 %v462
      %v1820 = vunpack.c.l.b16 %v463
      %v1821 = vunpack.c.l.b16 %v464
      %v1822 = vunpack.c.l.b16 %v465
      %v1823 = vunpack.c.l.b16 %v466
      %v1824 = vunpack.c.l.b16 %v467
      %v1825 = vunpack.c.l.b16 %v468
      %v1826 = vunpack.c.l.b16 %v469
      %v1827 = vunpack.c.l.b16 %v470
      %v1828 = vunpack.c.l.b16 %v471
      %v1829 = vunpack.c.l.b16 %v472
      %v1830 = vunpack.c.l.b16 %v473
      %v1831 = vunpack.c.l.b16 %v474
      %v1832 = vunpack.c.l.b16 %v475
      %v1833 = vunpack.c.l.b16 %v476
      %v1834 = vunpack.c.l.b16 %v477
      %v1835 = vunpack.c.l.b16 %v478
      %v1836 = vunpack.c.l.b16 %v479
      %v1837 = vunpack.c.l.b16 %v480
      %v1838 = vunpack.c.l.b16 %v481
      %v1839 = vunpack.c.l.b16 %v482
      %v1840 = vunpack.c.l.b16 %v483
      %v1841 = vunpack.c.l.b16 %v484
      %v1842 = vunpack.c.l.b16 %v485
      %v1843 = vunpack.c.l.b16 %v486
      %v1844 = vunpack.c.l.b16 %v487
      %v1845 = vunpack.c.l.b16 %v488
      %v1846 = vunpack.c.l.b16 %v489
      %v1847 = vunpack.c.l.b16 %v490
      %v1848 = vunpack.c.l.b16 %v491
      %v1849 = vunpack.c.l.b16 %v492
      %v1850 = vunpack.c.l.b16 %v493
      %v1851 = vunpack.c.l.b16 %v494
      %v1852 = vunpack.c.l.b16 %v495
      %v1853 = vunpack.c.l.b16 %v496
      %v1854 = vunpack.c.l.b16 %v497
      %v1855 = vunpack.c.l.b16 %v498
      %v1856 = vunpack.c.l.b16 %v499
      %v1857 = vunpack.c.l.b16 %v500
      %v1858 = vunpack.c.l.b16 %v501
      %v1859 = vunpack.c.l.b16 %v502
      %v1860 = vunpack.c.l.b16 %v503
      %v1861 = vunpack.c.l.b16 %v504
      %v1862 = vunpack.c.l.b16 %v505
      %v1863 = vunpack.c.l.b16 %v506
      %v1864 = vunpack.c.l.b16 %v507
      %v1865 = vunpack.c.l.b16 %v508
      %v1866 = vunpack.c.l.b16 %v509
      %v1867 = vunpack.c.l.b16 %v510
      %v1868 = vunpack.c.l.b16 %v511
      %v1869 = vunpack.c.l.b16 %v512
      %v1870 = vunpack.c.l.b16 %v513
      %v1871 = vunpack.c.l.b16 %v514
      %v1872 = vunpack.c.l.b16 %v515
      %v1873 = vunpack.c.l.b16 %v516
      %v1874 = vunpack.c.l.b16 %v517
      %v1875 = vunpack.c.l.b16 %v518
      %v1876 = vunpack.c.l.b16 %v519
      %v1877 = vunpack.c.l.b16 %v520
      %v1878 = vunpack.c.l.b16 %v521
      %v1879 = vunpack.c.l.b16 %v522
      %v1880 = vunpack.c.l.b16 %v523
      %v1881 = vunpack.c.l.b16 %v524
      %v1882 = vunpack.c.l.b16 %v525
      %v1883 = vunpack.c.l.b16 %v526
      %v1884 = vunpack.c.l.b16 %v527
      %v1885 = vunpack.c.l.b16 %v528
      %v1886 = vunpack.c.l.b16 %v529
      %v1887 = vunpack.c.l.b16 %v530
      %v1888 = vunpack.c.l.b16 %v531
      %v1889 = vunpack.c.l.b16 %v532
      %v1890 = vunpack.c.l.b16 %v533
      %v1891 = vunpack.c.l.b16 %v534
      %v1892 = vunpack.c.l.b16 %v535
      %v1893 = vunpack.c.l.b16 %v536
      %v1894 = vunpack.c.l.b16 %v537
      %v1895 = vunpack.c.l.b16 %v538
      %v1896 = vunpack.c.l.b16 %v539
      %v1897 = vunpack.c.l.b16 %v540
      %v1898 = vunpack.c.l.b16 %v541
      %v1899 = vunpack.c.l.b16 %v542
      %v1900 = vunpack.c.l.b16 %v543
      %v1901 = vunpack.c.l.b16 %v544
      %v1902 = vunpack.c.l.b16 %v545
      %v1903 = vunpack.c.l.b16 %v546
      %v1904 = vunpack.c.l.b16 %v547
      %v1905 = vunpack.c.l.b16 %v548
      %v1906 = vunpack.c.l.b16 %v549
      %v1907 = vunpack.c.l.b16 %v550
      %v1908 = vunpack.c.l.b16 %v551
      %v1909 = vunpack.c.l.b16 %v552
      %v1910 = vunpack.c.l.b16 %v553
      %v1911 = vunpack.c.l.b16 %v554
      %v1912 = vunpack.c.l.b16 %v555
      %v1913 = vunpack.c.l.b16 %v556
      %v1914 = vunpack.c.l.b16 %v557
      %v1915 = vunpack.c.l.b16 %v558
      %v1916 = vunpack.c.l.b16 %v559
      %v1917 = vunpack.c.l.b16 %v560
      %v1918 = vunpack.c.l.b16 %v561
      %v1919 = vunpack.c.l.b16 %v562
      %v1920 = vunpack.c.l.b16 %v563
      %v1921 = vunpack.c.l.b16 %v564
      %v1922 = vunpack.c.l.b16 %v565
      %v1923 = vunpack.c.l.b16 %v566
      %v1924 = vunpack.c.l.b16 %v567
      %v1925 = vunpack.c.l.b16 %v568
      %v1926 = vunpack.c.l.b16 %v569
      %v1927 = vunpack.c.l.b16 %v570
      %v1928 = vunpack.c.l.b16 %v571
      %v1929 = vunpack.c.l.b16 %v572
      %v1930 = vunpack.c.l.b16 %v573
      %v1931 = vunpack.c.l.b16 %v574
      %v1932 = vunpack.c.l.b16 %v575
      %v1933 = vunpack.c.l.b16 %v576
      %v1934 = vunpack.c.l.b16 %v577
      %v1935 = vunpack.c.l.b16 %v578
      %v1936 = vunpack.c.l.b16 %v579
      %v1937 = vunpack.c.l.b16 %v580
      %v1938 = vunpack.c.l.b16 %v581
      %v1939 = vunpack.c.l.b16 %v582
      %v1940 = vunpack.c.l.b16 %v583
      %v1941 = vunpack.c.l.b16 %v584
      %v1942 = vunpack.c.l.b16 %v585
      %v1943 = vunpack.c.l.b16 %v586
      %v1944 = vunpack.c.l.b16 %v587
      %v1945 = vunpack.c.l.b16 %v588
      %v1946 = vunpack.c.l.b16 %v589
      %v1947 = vunpack.c.l.b16 %v590
      %v1948 = vunpack.c.l.b16 %v591
      %v1949 = vunpack.c.l.b16 %v592
      %v1950 = vunpack.c.l.b16 %v593
      %v1951 = vunpack.c.l.b16 %v594
      %v1952 = vunpack.c.l.b16 %v595
      %v1953 = vunpack.c.l.b16 %v596
      %v1954 = vunpack.c.l.b16 %v597
      %v1955 = vunpack.c.l.b16 %v598
      %v1956 = vunpack.c.l.b16 %v599
      %v1957 = vunpack.c.l.b16 %v600
      %v1958 = vunpack.c.l.b16 %v601
      %v1959 = vunpack.c.l.b16 %v602
      %v1960 = vunpack.c.l.b16 %v603
      %v1961 = vunpack.c.l.b16 %v604
      %v1962 = vunpack.c.l.b16 %v605
      %v1963 = vunpack.c.l.b16 %v606
      %v1964 = vunpack.c.l.b16 %v607
      %v1965 = vunpack.c.l.b16 %v608
      %v1966 = vunpack.c.l.b16 %v609
      %v1967 = vunpack.c.l.b16 %v610
      %v1968 = vunpack.c.l.b16 %v611
      %v1969 = vunpack.c.l.b16 %v612
      %v1970 = vunpack.c.l.b16 %v613
      %v1971 = vunpack.c.l.b16 %v614
      %v1972 = vunpack.c.l.b16 %v615
      %v1973 = vunpack.c.l.b16 %v616
      %v1974 = vunpack.c.l.b16 %v617
      %v1975 = vunpack.c.l.b16 %v618
      %v1976 = vunpack.c.l.b16 %v619
      %v1977 = vunpack.c.l.b16 %v620
      %v1978 = vunpack.c.l.b16 %v621
      %v1979 = vunpack.c.l.b16 %v622
      %v1980 = vunpack.c.l.b16 %v623
      %v1981 = vunpack.c.l.b16 %v624
      %v1982 = vunpack.c.l.b16 %v625
      %v1983 = vunpack.c.l.b16 %v626
      %v1984 = vunpack.c.l.b16 %v627
      %v1985 = vunpack.c.l.b16 %v628
      %v1986 = vunpack.c.l.b16 %v629
      %v1987 = vunpack.c.l.b16 %v630
      %v1988 = vunpack.c.l.b16 %v631
      %v1989 = vunpack.c.l.b16 %v632
      %v1990 = vunpack.c.l.b16 %v633
      %v1991 = vunpack.c.l.b16 %v634
      %v1992 = vunpack.c.l.b16 %v635
      %v1993 = vunpack.c.l.b16 %v636
      %v1994 = vunpack.c.l.b16 %v637
      %v1995 = vunpack.c.l.b16 %v638
      %v1996 = vunpack.c.l.b16 %v639
      %v1997 = vunpack.c.l.b16 %v640
      %v1998 = vunpack.c.l.b16 %v641
      %v1999 = vunpack.c.l.b16 %v642
      %v2000 = vunpack.c.l.b16 %v643
      %v2001 = vunpack.c.l.b16 %v644
      %v2002 = vunpack.c.l.b16 %v645
      %v2003 = vunpack.c.l.b16 %v646
      %v2004 = vunpack.c.l.b16 %v647
      %v2005 = vunpack.c.l.b16 %v648
      %v2006 = vunpack.c.l.b16 %v649
      %v2007 = vunpack.c.l.b16 %v650
      %v2008 = vunpack.c.l.b16 %v651
      %v2009 = vunpack.c.l.b16 %v652
      %v2010 = vunpack.c.l.b16 %v653
      %v2011 = vunpack.c.l.b16 %v654
      %v2012 = vunpack.c.l.b16 %v655
      %v2013 = vunpack.c.l.b16 %v656
      %v2014 = vunpack.c.l.b16 %v657
      %v2015 = vunpack.c.l.b16 %v658
      %v2016 = vunpack.c.l.b16 %v659
      %v2017 = vunpack.c.l.b16 %v660
      %v2018 = vunpack.c.l.b16 %v661
      %v2019 = vunpack.c.l.b16 %v662
      %v2020 = vunpack.c.l.b16 %v663
      %v2021 = vunpack.c.l.b16 %v664
      %v2022 = vunpack.c.l.b16 %v665
      %v2023 = vunpack.c.l.b16 %v666
      %v2024 = vunpack.c.l.b16 %v667
      %v2025 = vunpack.c.l.b16 %v668
      %v2026 = vunpack.c.l.b16 %v669
      %v2027 = vunpack.c.l.b16 %v670
      %v2028 = vunpack.c.l.b16 %v671
      %v2029 = vunpack.c.l.b16 %v672
      %v2030 = vunpack.c.l.b16 %v673
      %v2031 = vunpack.c.l.b16 %v674
      %v2032 = vunpack.c.l.b16 %v675
      %v2033 = vunpack.c.l.b16 %v676
      %v2034 = vunpack.c.l.b16 %v677
      %v2035 = vunpack.c.l.b16 %v678
      %v2036 = vunpack.c.l.b16 %v679
      %v2037 = vunpack.c.l.b16 %v680
      %v2038 = vunpack.c.l.b16 %v681
      %v2039 = vunpack.c.l.b16 %v682
      %v2040 = vunpack.c.l.b16 %v683
      %v2041 = vunpack.c.l.b16 %v684
      %v2042 = vunpack.c.l.b16 %v685
      %v2043 = vunpack.c.l.b16 %v686
      %v2044 = vunpack.c.l.b16 %v687
      %v2045 = vunpack.c.l.b16 %v688
      %v2046 = vunpack.c.l.b16 %v689
      %v2047 = vunpack.c.l.b16 %v690
      %v2048 = vunpack.c.l.b16 %v691
      %v2049 = vunpack.c.l.b16 %v692
      %v2050 = vunpack.c.l.b16 %v693
      %v2051 = vunpack.c.l.b16 %v694
      %v2052 = vunpack.c.l.b16 %v695
      %v2053 = vunpack.c.l.b16 %v696
      %v2054 = vunpack.c.l.b16 %v697
      %v2055 = vunpack.c.l.b16 %v698
      %v2056 = vunpack.c.l.b16 %v699
      %v2057 = vunpack.c.l.b16 %v700
      %v2058 = vunpack.c.l.b16 %v701
      %v2059 = vunpack.c.l.b16 %v702
      %v2060 = vunpack.c.l.b16 %v703
      %v2061 = vunpack.c.l.b16 %v704
      %v2062 = vunpack.c.l.b16 %v705
      %v2063 = vunpack.c.l.b16 %v706
      %v2064 = vunpack.c.l.b16 %v707
      %v2065 = vunpack.c.l.b16 %v708
      %v2066 = vunpack.c.l.b16 %v709
      %v2067 = vunpack.c.l.b16 %v710
      %v2068 = vunpack.c.l.b16 %v711
      %v2069 = vunpack.c.l.b16 %v712
      %v2070 = vunpack.c.l.b16 %v713
      %v2071 = vunpack.c.l.b16 %v714
      %v2072 = vunpack.c.l.b16 %v715
      %v2073 = vunpack.c.l.b16 %v716
      %v2074 = vunpack.c.l.b16 %v717
      %v2075 = vunpack.c.l.b16 %v718
      %v2076 = vunpack.c.l.b16 %v719
      %v2077 = vunpack.c.l.b16 %v720
      %v2078 = vunpack.c.l.b16 %v721
      %v2079 = vunpack.c.l.b16 %v722
      %v2080 = vunpack.c.l.b16 %v723
      %v2081 = vunpack.c.l.b16 %v724
      %v2082 = vunpack.c.l.b16 %v725
      %v2083 = vunpack.c.l.b16 %v726
      %v2084 = vunpack.c.l.b16 %v727
      %v2085 = vunpack.c.l.b16 %v728
      %v2086 = vunpack.c.l.b16 %v729
      %v2087 = vunpack.c.l.b16 %v730
      %v2088 = vunpack.c.l.b16 %v731
      %v2089 = vunpack.c.l.b16 %v732
      %v2090 = vunpack.c.l.b16 %v733
      %v2091 = vunpack.c.l.b16 %v734
      %v2092 = vunpack.c.l.b16 %v735
      %v2093 = vunpack.c.l.b16 %v736
      %v2094 = vunpack.c.l.b16 %v737
      %v2095 = vunpack.c.l.b16 %v738
      %v2096 = vunpack.c.l.b16 %v739
      %v2097 = vunpack.c.l.b16 %v740
      %v2098 = vunpack.c.l.b16 %v741
      %v2099 = vunpack.c.l.b16 %v742
      %v2100 = vunpack.c.l.b16 %v743
      %v2101 = vunpack.c.l.b16 %v744
      %v2102 = vunpack.c.l.b16 %v745
      %v2103 = vunpack.c.l.b16 %v746
      %v2104 = vunpack.c.l.b16 %v747
      %v2105 = vunpack.c.l.b16 %v748
      %v2106 = vunpack.c.l.b16 %v749
      %v2107 = vunpack.c.l.b16 %v750
      %v2108 = vunpack.c.l.b16 %v751
      %v2109 = vunpack.c.l.b16 %v752
      %v2110 = vunpack.c.l.b16 %v753
      %v2111 = vunpack.c.l.b16 %v754
      %v2112 = vunpack.c.l.b16 %v755
      %v2113 = vunpack.c.l.b16 %v756
      %v2114 = vunpack.c.l.b16 %v757
      %v2115 = vunpack.c.l.b16 %v758
      %v2116 = vunpack.c.l.b16 %v759
      %v2117 = vunpack.c.l.b16 %v760
      %v2118 = vunpack.c.l.b16 %v761
      %v2119 = vunpack.c.l.b16 %v762
      %v2120 = vunpack.c.l.b16 %v763
      %v2121 = vunpack.c.l.b16 %v764
      %v2122 = vunpack.c.l.b16 %v765
      %v2123 = vunpack.c.l.b16 %v766
      %v2124 = vunpack.c.l.b16 %v767
      %v2125 = vunpack.c.l.b16 %v768
      %v2126 = vunpack.c.l.b16 %v769
      %v2127 = vunpack.c.l.b16 %v770
      %v2128 = vunpack.c.l.b16 %v771
      %v2129 = vunpack.c.l.b16 %v772
      %v2130 = vunpack.c.l.b16 %v773
      %v2131 = vunpack.c.l.b16 %v774
      %v2132 = vunpack.c.l.b16 %v775
      %v2133 = vunpack.c.l.b16 %v776
      %v2134 = vunpack.c.l.b16 %v777
      %v2135 = vunpack.c.l.b16 %v778
      %v2136 = vunpack.c.l.b16 %v779
      %v2137 = vunpack.c.l.b16 %v780
      %v2138 = vunpack.c.l.b16 %v781
      %v2139 = vunpack.c.l.b16 %v782
      %v2140 = vunpack.c.l.b16 %v783
      %v2141 = vunpack.c.l.b16 %v784
      %v2142 = vunpack.c.l.b16 %v785
      %v2143 = vunpack.c.l.b16 %v786
      %v2144 = vunpack.c.l.b16 %v787
      %v2145 = vunpack.c.l.b16 %v788
      %v2146 = vunpack.c.l.b16 %v789
      %v2147 = vunpack.c.l.b16 %v790
      %v2148 = vunpack.c.l.b16 %v791
      %v2149 = vunpack.c.l.b16 %v792
      %v2150 = vunpack.c.l.b16 %v793
      %v2151 = vunpack.c.l.b16 %v794
      %v2152 = vunpack.c.l.b16 %v795
      %v2153 = vunpack.c.l.b16 %v796
      %v2154 = vunpack.c.l.b16 %v797
      %v2155 = vunpack.c.l.b16 %v798
      %v2156 = vunpack.c.l.b16 %v799
      %v2157 = vunpack.c.l.b16 %v800
      %v2158 = vunpack.c.l.b16 %v801
      %v2159 = vunpack.c.l.b16 %v802
      %v2160 = vunpack.c.l.b16 %v803
      %v2161 = vunpack.c.l.b16 %v804
      %v2162 = vunpack.c.l.b16 %v805
      %v2163 = vpack.c.b16 %v1588, %v1587
      %v2164 = vpack.c.b16 %v1590, %v1589
      %v2165 = vpack.c.b16 %v1592, %v1591
      %v2166 = vpack.c.b16 %v1594, %v1593
      %v2167 = vpack.c.b16 %v1596, %v1595
      %v2168 = vpack.c.b16 %v1598, %v1597
      %v2169 = vpack.c.b16 %v1600, %v1599
      %v2170 = vpack.c.b16 %v1602, %v1601
      %v2171 = vpack.c.b16 %v1604, %v1603
      %v2172 = vpack.c.b16 %v1606, %v1605
      %v2173 = vpack.c.b16 %v1608, %v1607
      %v2174 = vpack.c.b16 %v1610, %v1609
      %v2175 = vpack.c.b16 %v1612, %v1611
      %v2176 = vpack.c.b16 %v1614, %v1613
      %v2177 = vpack.c.b16 %v1616, %v1615
      %v2178 = vpack.c.b16 %v1618, %v1617
      %v2179 = vpack.c.b16 %v1620, %v1619
      %v2180 = vpack.c.b16 %v1622, %v1621
      %v2181 = vpack.c.b16 %v1624, %v1623
      %v2182 = vpack.c.b16 %v1626, %v1625
      %v2183 = vpack.c.b16 %v1628, %v1627
      %v2184 = vpack.c.b16 %v1630, %v1629
      %v2185 = vpack.c.b16 %v1632, %v1631
      %v2186 = vpack.c.b16 %v1634, %v1633
      %v2187 = vpack.c.b16 %v1636, %v1635
      %v2188 = vpack.c.b16 %v1638, %v1637
      %v2189 = vpack.c.b16 %v1640, %v1639
      %v2190 = vpack.c.b16 %v1642, %v1641
      %v2191 = vpack.c.b16 %v1644, %v1643
      %v2192 = vpack.c.b16 %v1646, %v1645
      %v2193 = vpack.c.b16 %v1648, %v1647
      %v2194 = vpack.c.b16 %v1650, %v1649
      %v2195 = vpack.c.b16 %v1652, %v1651
      %v2196 = vpack.c.b16 %v1654, %v1653
      %v2197 = vpack.c.b16 %v1656, %v1655
      %v2198 = vpack.c.b16 %v1658, %v1657
      %v2199 = vpack.c.b16 %v1660, %v1659
      %v2200 = vpack.c.b16 %v1662, %v1661
      %v2201 = vpack.c.b16 %v1664, %v1663
      %v2202 = vpack.c.b16 %v1666, %v1665
      %v2203 = vpack.c.b16 %v1668, %v1667
      %v2204 = vpack.c.b16 %v1670, %v1669
      %v2205 = vpack.c.b16 %v1672, %v1671
      %v2206 = vpack.c.b16 %v1674, %v1673
      %v2207 = vpack.c.b16 %v1676, %v1675
      %v2208 = vpack.c.b16 %v1678, %v1677
      %v2209 = vpack.c.b16 %v1680, %v1679
      %v2210 = vpack.c.b16 %v1682, %v1681
      %v2211 = vpack.c.b16 %v1684, %v1683
      %v2212 = vpack.c.b16 %v1686, %v1685
      %v2213 = vpack.c.b16 %v1688, %v1687
      %v2214 = vpack.c.b16 %v1690, %v1689
      %v2215 = vpack.c.b16 %v1692, %v1691
      %v2216 = vpack.c.b16 %v1694, %v1693
      %v2217 = vpack.c.b16 %v1696, %v1695
      %v2218 = vpack.c.b16 %v1698, %v1697
      %v2219 = vpack.c.b16 %v1700, %v1699
      %v2220 = vpack.c.b16 %v1702, %v1701
      %v2221 = vpack.c.b16 %v1704, %v1703
      %v2222 = vpack.c.b16 %v1706, %v1705
      %v2223 = vpack.c.b16 %v1708, %v1707
      %v2224 = vpack.c.b16 %v1710, %v1709
      %v2225 = vpack.c.b16 %v1712, %v1711
      %v2226 = vpack.c.b16 %v1714, %v1713
      %v2227 = vpack.c.b16 %v1716, %v1715
      %v2228 = vpack.c.b16 %v1718, %v1717
      %v2229 = vpack.c.b16 %v1720, %v1719
      %v2230 = vpack.c.b16 %v1722, %v1721
      %v2231 = vpack.c.b16 %v1724, %v1723
      %v2232 = vpack.c.b16 %v1726, %v1725
      %v2233 = vpack.c.b16 %v1728, %v1727
      %v2234 = vpack.c.b16 %v1730, %v1729
      %v2235 = vpack.c.b16 %v1732, %v1731
      %v2236 = vpack.c.b16 %v1734, %v1733
      %v2237 = vpack.c.b16 %v1736, %v1735
      %v2238 = vpack.c.b16 %v1738, %v1737
      %v2239 = vpack.c.b16 %v1740, %v1739
      %v2240 = vpack.c.b16 %v1742, %v1741
      %v2241 = vpack.c.b16 %v1744, %v1743
      %v2242 = vpack.c.b16 %v1746, %v1745
      %v2243 = vpack.c.b16 %v1748, %v1747
      %v2244 = vpack.c.b16 %v1750, %v1749
      %v2245 = vpack.c.b16 %v1752, %v1751
      %v2246 = vpack.c.b16 %v1754, %v1753
      %v2247 = vpack.c.b16 %v1756, %v1755
      %v2248 = vpack.c.b16 %v1758, %v1757
      %v2249 = vpack.c.b16 %v1760, %v1759
      %v2250 = vpack.c.b16 %v1762, %v1761
      %v2251 = vpack.c.b16 %v1764, %v1763
      %v2252 = vpack.c.b16 %v1766, %v1765
      %v2253 = vpack.c.b16 %v1768, %v1767
      %v2254 = vpack.c.b16 %v1770, %v1769
      %v2255 = vpack.c.b16 %v1772, %v1771
      %v2256 = vpack.c.b16 %v1774, %v1773
      %v2257 = vpack.c.b16 %v1776, %v1775
      %v2258 = vpack.c.b16 %v1778, %v1777
      %v2259 = vpack.c.b16 %v1780, %v1779
      %v2260 = vpack.c.b16 %v1782, %v1781
      %v2261 = vpack.c.b16 %v1784, %v1783
      %v2262 = vpack.c.b16 %v1786, %v1785
      %v2263 = vpack.c.b16 %v1788, %v1787
      %v2264 = vpack.c.b16 %v1790, %v1789
      %v2265 = vpack.c.b16 %v1792, %v1791
      %v2266 = vpack.c.b16 %v1794, %v1793
      %v2267 = vpack.c.b16 %v1796, %v1795
      %v2268 = vpack.c.b16 %v1798, %v1797
      %v2269 = vpack.c.b16 %v1800, %v1799
      %v2270 = vpack.c.b16 %v1802, %v1801
      %v2271 = vpack.c.b16 %v1804, %v1803
      %v2272 = vpack.c.b16 %v1806, %v1805
      %v2273 = vpack.c.b16 %v1808, %v1807
      %v2274 = vpack.c.b16 %v1810, %v1809
      %v2275 = vpack.c.b16 %v1812, %v1811
      %v2276 = vpack.c.b16 %v1814, %v1813
      %v2277 = vpack.c.b16 %v1816, %v1815
      %v2278 = vpack.c.b16 %v1818, %v1817
      %v2279 = vpack.c.b16 %v1820, %v1819
      %v2280 = vpack.c.b16 %v1822, %v1821
      %v2281 = vpack.c.b16 %v1824, %v1823
      %v2282 = vpack.c.b16 %v1826, %v1825
      %v2283 = vpack.c.b16 %v1828, %v1827
      %v2284 = vpack.c.b16 %v1830, %v1829
      %v2285 = vpack.c.b16 %v1832, %v1831
      %v2286 = vpack.c.b16 %v1834, %v1833
      %v2287 = vpack.c.b16 %v1836, %v1835
      %v2288 = vpack.c.b16 %v1838, %v1837
      %v2289 = vpack.c.b16 %v1840, %v1839
      %v2290 = vpack.c.b16 %v1842, %v1841
      %v2291 = vpack.c.b16 %v1844, %v1843
      %v2292 = vpack.c.b16 %v1846, %v1845
      %v2293 = vpack.c.b16 %v1848, %v1847
      %v2294 = vpack.c.b16 %v1850, %v1849
      %v2295 = vpack.c.b16 %v1852, %v1851
      %v2296 = vpack.c.b16 %v1854, %v1853
      %v2297 = vpack.c.b16 %v1856, %v1855
      %v2298 = vpack.c.b16 %v1858, %v1857
      %v2299 = vpack.c.b16 %v1860, %v1859
      %v2300 = vpack.c.b16 %v1862, %v1861
      %v2301 = vpack.c.b16 %v1864, %v1863
      %v2302 = vpack.c.b16 %v1866, %v1865
      %v2303 = vpack.c.b16 %v1868, %v1867
      %v2304 = vpack.c.b16 %v1870, %v1869
      %v2305 = vpack.c.b16 %v1872, %v1871
      %v2306 = vpack.c.b16 %v1874, %v1873
      %v2307 = vpack.c.b16 %v1876, %v1875
      %v2308 = vpack.c.b16 %v1878, %v1877
      %v2309 = vpack.c.b16 %v1880, %v1879
      %v2310 = vpack.c.b16 %v1882, %v1881
      %v2311 = vpack.c.b16 %v1884, %v1883
      %v2312 = vpack.c.b16 %v1886, %v1885
      %v2313 = vpack.c.b16 %v1888, %v1887
      %v2314 = vpack.c.b16 %v1890, %v1889
      %v2315 = vpack.c.b16 %v1892, %v1891
      %v2316 = vpack.c.b16 %v1894, %v1893
      %v2317 = vpack.c.b16 %v1896, %v1895
      %v2318 = vpack.c.b16 %v1898, %v1897
      %v2319 = vpack.c.b16 %v1900, %v1899
      %v2320 = vpack.c.b16 %v1902, %v1901
      %v2321 = vpack.c.b16 %v1904, %v1903
      %v2322 = vpack.c.b16 %v1906, %v1905
      %v2323 = vpack.c.b16 %v1908, %v1907
      %v2324 = vpack.c.b16 %v1910, %v1909
      %v2325 = vpack.c.b16 %v1912, %v1911
      %v2326 = vpack.c.b16 %v1914, %v1913
      %v2327 = vpack.c.b16 %v1916, %v1915
      %v2328 = vpack.c.b16 %v1918, %v1917
      %v2329 = vpack.c.b16 %v1920, %v1919
      %v2330 = vpack.c.b16 %v1922, %v1921
      %v2331 = vpack.c.b16 %v1924, %v1923
      %v2332 = vpack.c.b16 %v1926, %v1925
      %v2333 = vpack.c.b16 %v1928, %v1927
      %v2334 = vpack.c.b16 %v1930, %v1929
      %v2335 = vpack.c.b16 %v1932, %v1931
      %v2336 = vpack.c.b16 %v1934, %v1933
      %v2337 = vpack.c.b16 %v1936, %v1935
      %v2338 = vpack.c.b16 %v1938, %v1937
      %v2339 = vpack.c.b16 %v1940, %v1939
      %v2340 = vpack.c.b16 %v1942, %v1941
      %v2341 = vpack.c.b16 %v1944, %v1943
      %v2342 = vpack.c.b16 %v1946, %v1945
      %v2343 = vpack.c.b16 %v1948, %v1947
      %v2344 = vpack.c.b16 %v1950, %v1949
      %v2345 = vpack.c.b16 %v1952, %v1951
      %v2346 = vpack.c.b16 %v1954, %v1953
      %v2347 = vpack.c.b16 %v1956, %v1955
      %v2348 = vpack.c.b16 %v1958, %v1957
      %v2349 = vpack.c.b16 %v1960, %v1959
      %v2350 = vpack.c.b16 %v1962, %v1961
      %v2351 = vpack.c.b16 %v1964, %v1963
      %v2352 = vpack.c.b16 %v1966, %v1965
      %v2353 = vpack.c.b16 %v1968, %v1967
      %v2354 = vpack.c.b16 %v1970, %v1969
      %v2355 = vpack.c.b16 %v1972, %v1971
      %v2356 = vpack.c.b16 %v1974, %v1973
      %v2357 = vpack.c.b16 %v1976, %v1975
      %v2358 = vpack.c.b16 %v1978, %v1977
      %v2359 = vpack.c.b16 %v1980, %v1979
      %v2360 = vpack.c.b16 %v1982, %v1981
      %v2361 = vpack.c.b16 %v1984, %v1983
      %v2362 = vpack.c.b16 %v1986, %v1985
      %v2363 = vpack.c.b16 %v1988, %v1987
      %v2364 = vpack.c.b16 %v1990, %v1989
      %v2365 = vpack.c.b16 %v1992, %v1991
      %v2366 = vpack.c.b16 %v1994, %v1993
      %v2367 = vpack.c.b16 %v1996, %v1995
      %v2368 = vpack.c.b16 %v1998, %v1997
      %v2369 = vpack.c.b16 %v2000, %v1999
      %v2370 = vpack.c.b16 %v2002, %v2001
      %v2371 = vpack.c.b16 %v2004, %v2003
      %v2372 = vpack.c.b16 %v2006, %v2005
      %v2373 = vpack.c.b16 %v2008, %v2007
      %v2374 = vpack.c.b16 %v2010, %v2009
      %v2375 = vpack.c.b16 %v2012, %v2011
      %v2376 = vpack.c.b16 %v2014, %v2013
      %v2377 = vpack.c.b16 %v2016, %v2015
      %v2378 = vpack.c.b16 %v2018, %v2017
      %v2379 = vpack.c.b16 %v2020, %v2019
      %v2380 = vpack.c.b16 %v2022, %v2021
      %v2381 = vpack.c.b16 %v2024, %v2023
      %v2382 = vpack.c.b16 %v2026, %v2025
      %v2383 = vpack.c.b16 %v2028, %v2027
      %v2384 = vpack.c.b16 %v2030, %v2029
      %v2385 = vpack.c.b16 %v2032, %v2031
      %v2386 = vpack.c.b16 %v2034, %v2033
      %v2387 = vpack.c.b16 %v2036, %v2035
      %v2388 = vpack.c.b16 %v2038, %v2037
      %v2389 = vpack.c.b16 %v2040, %v2039
      %v2390 = vpack.c.b16 %v2042, %v2041
      %v2391 = vpack.c.b16 %v2044, %v2043
      %v2392 = vpack.c.b16 %v2046, %v2045
      %v2393 = vpack.c.b16 %v2048, %v2047
      %v2394 = vpack.c.b16 %v2050, %v2049
      %v2395 = vpack.c.b16 %v2052, %v2051
      %v2396 = vpack.c.b16 %v2054, %v2053
      %v2397 = vpack.c.b16 %v2056, %v2055
      %v2398 = vpack.c.b16 %v2058, %v2057
      %v2399 = vpack.c.b16 %v2060, %v2059
      %v2400 = vpack.c.b16 %v2062, %v2061
      %v2401 = vpack.c.b16 %v2064, %v2063
      %v2402 = vpack.c.b16 %v2066, %v2065
      %v2403 = vpack.c.b16 %v2068, %v2067
      %v2404 = vpack.c.b16 %v2070, %v2069
      %v2405 = vpack.c.b16 %v2072, %v2071
      %v2406 = vpack.c.b16 %v2074, %v2073
      %v2407 = vpack.c.b16 %v2076, %v2075
      %v2408 = vpack.c.b16 %v2078, %v2077
      %v2409 = vpack.c.b16 %v2080, %v2079
      %v2410 = vpack.c.b16 %v2082, %v2081
      %v2411 = vpack.c.b16 %v2084, %v2083
      %v2412 = vpack.c.b16 %v2086, %v2085
      %v2413 = vpack.c.b16 %v2088, %v2087
      %v2414 = vpack.c.b16 %v2090, %v2089
      %v2415 = vpack.c.b16 %v2092, %v2091
      %v2416 = vpack.c.b16 %v2094, %v2093
      %v2417 = vpack.c.b16 %v2096, %v2095
      %v2418 = vpack.c.b16 %v2098, %v2097
      %v2419 = vpack.c.b16 %v2100, %v2099
      %v2420 = vpack.c.b16 %v2102, %v2101
      %v2421 = vpack.c.b16 %v2104, %v2103
      %v2422 = vpack.c.b16 %v2106, %v2105
      %v2423 = vpack.c.b16 %v2108, %v2107
      %v2424 = vpack.c.b16 %v2110, %v2109
      %v2425 = vpack.c.b16 %v2112, %v2111
      %v2426 = vpack.c.b16 %v2114, %v2113
      %v2427 = vpack.c.b16 %v2116, %v2115
      %v2428 = vpack.c.b16 %v2118, %v2117
      %v2429 = vpack.c.b16 %v2120, %v2119
      %v2430 = vpack.c.b16 %v2122, %v2121
      %v2431 = vpack.c.b16 %v2124, %v2123
      %v2432 = vpack.c.b16 %v2126, %v2125
      %v2433 = vpack.c.b16 %v2128, %v2127
      %v2434 = vpack.c.b16 %v2130, %v2129
      %v2435 = vpack.c.b16 %v2132, %v2131
      %v2436 = vpack.c.b16 %v2134, %v2133
      %v2437 = vpack.c.b16 %v2136, %v2135
      %v2438 = vpack.c.b16 %v2138, %v2137
      %v2439 = vpack.c.b16 %v2140, %v2139
      %v2440 = vpack.c.b16 %v2142, %v2141
      %v2441 = vpack.c.b16 %v2144, %v2143
      %v2442 = vpack.c.b16 %v2146, %v2145
      %v2443 = vpack.c.b16 %v2148, %v2147
      %v2444 = vpack.c.b16 %v2150, %v2149
      %v2445 = vpack.c.b16 %v2152, %v2151
      %v2446 = vpack.c.b16 %v2154, %v2153
      %v2447 = vpack.c.b16 %v2156, %v2155
      %v2448 = vpack.c.b16 %v2158, %v2157
      %v2449 = vpack.c.b16 %v2160, %v2159
      %v2450 = vpack.c.b16 %v2162, %v2161
      %2739 = vmatprep.subr.bf16.mxu0 0
      %2740 = vmatpush1.bf16.msra.mxu0 %v2170
      %2741 = vmatprep.subr.bf16.mxu0 0
      %2742 = vmatpush1.bf16.msra.mxu0 %v2169
      %2743 = vmatprep.subr.bf16.mxu0 0
      %2744 = vmatpush1.bf16.msra.mxu0 %v2168
      %2745 = vmatprep.subr.bf16.mxu0 0
      %2746 = vmatpush1.bf16.msra.mxu0 %v2167
      %2747 = vmatprep.subr.bf16.mxu0 0
      %2748 = vmatpush1.bf16.msra.mxu0 %v2166
      %2749 = vmatprep.subr.bf16.mxu0 0
      %2750 = vmatpush1.bf16.msra.mxu0 %v2165
      %2751 = vmatprep.subr.bf16.mxu0 0
      %2752 = vmatpush1.bf16.msra.mxu0 %v2164
      %2753 = vmatprep.subr.bf16.mxu0 0
      %2754 = vmatpush1.bf16.msra.mxu0 %v2163
      %2755 = vmatprep.subr.bf16.mxu0 0
      %2756 = vmatpush2.bf16.msra.mxu0 %v2178
      %2757 = vmatprep.subr.bf16.mxu0 0
      %2758 = vmatpush2.bf16.msra.mxu0 %v2177
      %2759 = vmatprep.subr.bf16.mxu0 0
      %2760 = vmatpush2.bf16.msra.mxu0 %v2176
      %2761 = vmatprep.subr.bf16.mxu0 0
      %2762 = vmatpush2.bf16.msra.mxu0 %v2175
      %2763 = vmatprep.subr.bf16.mxu0 0
      %2764 = vmatpush2.bf16.msra.mxu0 %v2174
      %2765 = vmatprep.subr.bf16.mxu0 0
      %2766 = vmatpush2.bf16.msra.mxu0 %v2173
      %2767 = vmatprep.subr.bf16.mxu0 0
      %2768 = vmatpush2.bf16.msra.mxu0 %v2172
      %2769 = vmatprep.subr.bf16.mxu0 0
      %2770 = vmatpush2.bf16.msra.mxu0 %v2171
      %2771 = vmatprep.mubr.bf16.mxu0 %v837
      %2772 = vmatmul.mubr.bf16.gmra.mxu0 %v829
      %v2773 = vpop.f32.mrf.mxu0
      %v2774 = vadd.f32 %v811, %v2773
      %v2775 = vpop.f32.mrf.mxu0
      %v2776 = vpop.f32.mrf.mxu0
      %v2777 = vpop.f32.mrf.mxu0
      %2778 = vdwg.mxu0
      %2779 = vmatprep.subr.bf16.mxu0 0
      %2780 = vmatpush1.bf16.msra.mxu0 %v2186
      %2781 = vmatprep.subr.bf16.mxu0 0
      %2782 = vmatpush1.bf16.msra.mxu0 %v2185
      %2783 = vmatprep.subr.bf16.mxu0 0
      %2784 = vmatpush1.bf16.msra.mxu0 %v2184
      %2785 = vmatprep.subr.bf16.mxu0 0
      %2786 = vmatpush1.bf16.msra.mxu0 %v2183
      %2787 = vmatprep.subr.bf16.mxu0 0
      %2788 = vmatpush1.bf16.msra.mxu0 %v2182
      %2789 = vmatprep.subr.bf16.mxu0 0
      %2790 = vmatpush1.bf16.msra.mxu0 %v2181
      %2791 = vmatprep.subr.bf16.mxu0 0
      %2792 = vmatpush1.bf16.msra.mxu0 %v2180
      %2793 = vmatprep.subr.bf16.mxu0 0
      %2794 = vmatpush1.bf16.msra.mxu0 %v2179
      %2795 = vmatprep.subr.bf16.mxu0 0
      %2796 = vmatpush2.bf16.msra.mxu0 %v2194
      %2797 = vmatprep.subr.bf16.mxu0 0
      %2798 = vmatpush2.bf16.msra.mxu0 %v2193
      %2799 = vmatprep.subr.bf16.mxu0 0
      %2800 = vmatpush2.bf16.msra.mxu0 %v2192
      %2801 = vmatprep.subr.bf16.mxu0 0
      %2802 = vmatpush2.bf16.msra.mxu0 %v2191
      %2803 = vmatprep.subr.bf16.mxu0 0
      %2804 = vmatpush2.bf16.msra.mxu0 %v2190
      %2805 = vmatprep.subr.bf16.mxu0 0
      %2806 = vmatpush2.bf16.msra.mxu0 %v2189
      %2807 = vmatprep.subr.bf16.mxu0 0
      %2808 = vmatpush2.bf16.msra.mxu0 %v2188
      %2809 = vmatprep.subr.bf16.mxu0 0
      %2810 = vmatpush2.bf16.msra.mxu0 %v2187
      %2811 = vmatprep.mubr.bf16.mxu0 %v838
      %2812 = vmatmul.mubr.bf16.gmra.mxu0 %v836
      %v2813 = vpop.f32.mrf.mxu0
      %v2814 = vadd.f32 %v2774, %v2813
      %v2815 = vpop.f32.mrf.mxu0
      %v2816 = vpop.f32.mrf.mxu0
      %v2817 = vpop.f32.mrf.mxu0
      %2818 = vdwg.mxu0
      %2819 = vmatprep.subr.bf16.mxu0 0
      %2820 = vmatpush1.bf16.msra.mxu0 %v2202
      %2821 = vmatprep.subr.bf16.mxu0 0
      %2822 = vmatpush1.bf16.msra.mxu0 %v2201
      %2823 = vmatprep.subr.bf16.mxu0 0
      %2824 = vmatpush1.bf16.msra.mxu0 %v2200
      %2825 = vmatprep.subr.bf16.mxu0 0
      %2826 = vmatpush1.bf16.msra.mxu0 %v2199
      %2827 = vmatprep.subr.bf16.mxu0 0
      %2828 = vmatpush1.bf16.msra.mxu0 %v2198
      %2829 = vmatprep.subr.bf16.mxu0 0
      %2830 = vmatpush1.bf16.msra.mxu0 %v2197
      %2831 = vmatprep.subr.bf16.mxu0 0
      %2832 = vmatpush1.bf16.msra.mxu0 %v2196
      %2833 = vmatprep.subr.bf16.mxu0 0
      %2834 = vmatpush1.bf16.msra.mxu0 %v2195
      %2835 = vmatprep.subr.bf16.mxu0 0
      %2836 = vmatpush2.bf16.msra.mxu0 %v2210
      %2837 = vmatprep.subr.bf16.mxu0 0
      %2838 = vmatpush2.bf16.msra.mxu0 %v2209
      %2839 = vmatprep.subr.bf16.mxu0 0
      %2840 = vmatpush2.bf16.msra.mxu0 %v2208
      %2841 = vmatprep.subr.bf16.mxu0 0
      %2842 = vmatpush2.bf16.msra.mxu0 %v2207
      %2843 = vmatprep.subr.bf16.mxu0 0
      %2844 = vmatpush2.bf16.msra.mxu0 %v2206
      %2845 = vmatprep.subr.bf16.mxu0 0
      %2846 = vmatpush2.bf16.msra.mxu0 %v2205
      %2847 = vmatprep.subr.bf16.mxu0 0
      %2848 = vmatpush2.bf16.msra.mxu0 %v2204
      %2849 = vmatprep.subr.bf16.mxu0 0
      %2850 = vmatpush2.bf16.msra.mxu0 %v2203
      %2851 = vmatprep.mubr.bf16.mxu0 %v854
      %2852 = vmatmul.mubr.bf16.gmra.mxu0 %v846
      %v2853 = vpop.f32.mrf.mxu0
      %v2854 = vadd.f32 %v2814, %v2853
      %v2855 = vpop.f32.mrf.mxu0
      %v2856 = vpop.f32.mrf.mxu0
      %v2857 = vpop.f32.mrf.mxu0
      %2858 = vdwg.mxu0
      %2859 = vmatprep.subr.bf16.mxu0 0
      %2860 = vmatpush1.bf16.msra.mxu0 %v2218
      %2861 = vmatprep.subr.bf16.mxu0 0
      %2862 = vmatpush1.bf16.msra.mxu0 %v2217
      %2863 = vmatprep.subr.bf16.mxu0 0
      %2864 = vmatpush1.bf16.msra.mxu0 %v2216
      %2865 = vmatprep.subr.bf16.mxu0 0
      %2866 = vmatpush1.bf16.msra.mxu0 %v2215
      %2867 = vmatprep.subr.bf16.mxu0 0
      %2868 = vmatpush1.bf16.msra.mxu0 %v2214
      %2869 = vmatprep.subr.bf16.mxu0 0
      %2870 = vmatpush1.bf16.msra.mxu0 %v2213
      %2871 = vmatprep.subr.bf16.mxu0 0
      %2872 = vmatpush1.bf16.msra.mxu0 %v2212
      %2873 = vmatprep.subr.bf16.mxu0 0
      %2874 = vmatpush1.bf16.msra.mxu0 %v2211
      %2875 = vmatprep.subr.bf16.mxu0 0
      %2876 = vmatpush2.bf16.msra.mxu0 %v2226
      %2877 = vmatprep.subr.bf16.mxu0 0
      %2878 = vmatpush2.bf16.msra.mxu0 %v2225
      %2879 = vmatprep.subr.bf16.mxu0 0
      %2880 = vmatpush2.bf16.msra.mxu0 %v2224
      %2881 = vmatprep.subr.bf16.mxu0 0
      %2882 = vmatpush2.bf16.msra.mxu0 %v2223
      %2883 = vmatprep.subr.bf16.mxu0 0
      %2884 = vmatpush2.bf16.msra.mxu0 %v2222
      %2885 = vmatprep.subr.bf16.mxu0 0
      %2886 = vmatpush2.bf16.msra.mxu0 %v2221
      %2887 = vmatprep.subr.bf16.mxu0 0
      %2888 = vmatpush2.bf16.msra.mxu0 %v2220
      %2889 = vmatprep.subr.bf16.mxu0 0
      %2890 = vmatpush2.bf16.msra.mxu0 %v2219
      %2891 = vmatprep.mubr.bf16.mxu0 %v855
      %2892 = vmatmul.mubr.bf16.gmra.mxu0 %v853
      %v2893 = vpop.f32.mrf.mxu0
      %v2894 = vadd.f32 %v2854, %v2893
      %v2895 = vpop.f32.mrf.mxu0
      %v2896 = vpop.f32.mrf.mxu0
      %v2897 = vpop.f32.mrf.mxu0
      %2898 = vdwg.mxu0
      %2899 = vmatprep.subr.bf16.mxu0 0
      %2900 = vmatpush1.bf16.msra.mxu0 %v2234
      %2901 = vmatprep.subr.bf16.mxu0 0
      %2902 = vmatpush1.bf16.msra.mxu0 %v2233
      %2903 = vmatprep.subr.bf16.mxu0 0
      %2904 = vmatpush1.bf16.msra.mxu0 %v2232
      %2905 = vmatprep.subr.bf16.mxu0 0
      %2906 = vmatpush1.bf16.msra.mxu0 %v2231
      %2907 = vmatprep.subr.bf16.mxu0 0
      %2908 = vmatpush1.bf16.msra.mxu0 %v2230
      %2909 = vmatprep.subr.bf16.mxu0 0
      %2910 = vmatpush1.bf16.msra.mxu0 %v2229
      %2911 = vmatprep.subr.bf16.mxu0 0
      %2912 = vmatpush1.bf16.msra.mxu0 %v2228
      %2913 = vmatprep.subr.bf16.mxu0 0
      %2914 = vmatpush1.bf16.msra.mxu0 %v2227
      %2915 = vmatprep.subr.bf16.mxu0 0
      %2916 = vmatpush2.bf16.msra.mxu0 %v2242
      %2917 = vmatprep.subr.bf16.mxu0 0
      %2918 = vmatpush2.bf16.msra.mxu0 %v2241
      %2919 = vmatprep.subr.bf16.mxu0 0
      %2920 = vmatpush2.bf16.msra.mxu0 %v2240
      %2921 = vmatprep.subr.bf16.mxu0 0
      %2922 = vmatpush2.bf16.msra.mxu0 %v2239
      %2923 = vmatprep.subr.bf16.mxu0 0
      %2924 = vmatpush2.bf16.msra.mxu0 %v2238
      %2925 = vmatprep.subr.bf16.mxu0 0
      %2926 = vmatpush2.bf16.msra.mxu0 %v2237
      %2927 = vmatprep.subr.bf16.mxu0 0
      %2928 = vmatpush2.bf16.msra.mxu0 %v2236
      %2929 = vmatprep.subr.bf16.mxu0 0
      %2930 = vmatpush2.bf16.msra.mxu0 %v2235
      %2931 = vmatprep.mubr.bf16.mxu0 %v871
      %2932 = vmatmul.mubr.bf16.gmra.mxu0 %v863
      %v2933 = vpop.f32.mrf.mxu0
      %v2934 = vadd.f32 %v2894, %v2933
      %v2935 = vpop.f32.mrf.mxu0
      %v2936 = vpop.f32.mrf.mxu0
      %v2937 = vpop.f32.mrf.mxu0
      %2938 = vdwg.mxu0
      %2939 = vmatprep.subr.bf16.mxu0 0
      %2940 = vmatpush1.bf16.msra.mxu0 %v2250
      %2941 = vmatprep.subr.bf16.mxu0 0
      %2942 = vmatpush1.bf16.msra.mxu0 %v2249
      %2943 = vmatprep.subr.bf16.mxu0 0
      %2944 = vmatpush1.bf16.msra.mxu0 %v2248
      %2945 = vmatprep.subr.bf16.mxu0 0
      %2946 = vmatpush1.bf16.msra.mxu0 %v2247
      %2947 = vmatprep.subr.bf16.mxu0 0
      %2948 = vmatpush1.bf16.msra.mxu0 %v2246
      %2949 = vmatprep.subr.bf16.mxu0 0
      %2950 = vmatpush1.bf16.msra.mxu0 %v2245
      %2951 = vmatprep.subr.bf16.mxu0 0
      %2952 = vmatpush1.bf16.msra.mxu0 %v2244
      %2953 = vmatprep.subr.bf16.mxu0 0
      %2954 = vmatpush1.bf16.msra.mxu0 %v2243
      %2955 = vmatprep.subr.bf16.mxu0 0
      %2956 = vmatpush2.bf16.msra.mxu0 %v2258
      %2957 = vmatprep.subr.bf16.mxu0 0
      %2958 = vmatpush2.bf16.msra.mxu0 %v2257
      %2959 = vmatprep.subr.bf16.mxu0 0
      %2960 = vmatpush2.bf16.msra.mxu0 %v2256
      %2961 = vmatprep.subr.bf16.mxu0 0
      %2962 = vmatpush2.bf16.msra.mxu0 %v2255
      %2963 = vmatprep.subr.bf16.mxu0 0
      %2964 = vmatpush2.bf16.msra.mxu0 %v2254
      %2965 = vmatprep.subr.bf16.mxu0 0
      %2966 = vmatpush2.bf16.msra.mxu0 %v2253
      %2967 = vmatprep.subr.bf16.mxu0 0
      %2968 = vmatpush2.bf16.msra.mxu0 %v2252
      %2969 = vmatprep.subr.bf16.mxu0 0
      %2970 = vmatpush2.bf16.msra.mxu0 %v2251
      %2971 = vmatprep.mubr.bf16.mxu0 %v872
      %2972 = vmatmul.mubr.bf16.gmra.mxu0 %v870
      %v2973 = vpop.f32.mrf.mxu0
      %v2974 = vadd.f32 %v2934, %v2973
      %v2975 = vpop.f32.mrf.mxu0
      %v2976 = vpop.f32.mrf.mxu0
      %v2977 = vpop.f32.mrf.mxu0
      %2978 = vdwg.mxu0
      %2979 = vmatprep.subr.bf16.mxu0 0
      %2980 = vmatpush1.bf16.msra.mxu0 %v2266
      %2981 = vmatprep.subr.bf16.mxu0 0
      %2982 = vmatpush1.bf16.msra.mxu0 %v2265
      %2983 = vmatprep.subr.bf16.mxu0 0
      %2984 = vmatpush1.bf16.msra.mxu0 %v2264
      %2985 = vmatprep.subr.bf16.mxu0 0
      %2986 = vmatpush1.bf16.msra.mxu0 %v2263
      %2987 = vmatprep.subr.bf16.mxu0 0
      %2988 = vmatpush1.bf16.msra.mxu0 %v2262
      %2989 = vmatprep.subr.bf16.mxu0 0
      %2990 = vmatpush1.bf16.msra.mxu0 %v2261
      %2991 = vmatprep.subr.bf16.mxu0 0
      %2992 = vmatpush1.bf16.msra.mxu0 %v2260
      %2993 = vmatprep.subr.bf16.mxu0 0
      %2994 = vmatpush1.bf16.msra.mxu0 %v2259
      %2995 = vmatprep.subr.bf16.mxu0 0
      %2996 = vmatpush2.bf16.msra.mxu0 %v2274
      %2997 = vmatprep.subr.bf16.mxu0 0
      %2998 = vmatpush2.bf16.msra.mxu0 %v2273
      %2999 = vmatprep.subr.bf16.mxu0 0
      %3000 = vmatpush2.bf16.msra.mxu0 %v2272
      %3001 = vmatprep.subr.bf16.mxu0 0
      %3002 = vmatpush2.bf16.msra.mxu0 %v2271
      %3003 = vmatprep.subr.bf16.mxu0 0
      %3004 = vmatpush2.bf16.msra.mxu0 %v2270
      %3005 = vmatprep.subr.bf16.mxu0 0
      %3006 = vmatpush2.bf16.msra.mxu0 %v2269
      %3007 = vmatprep.subr.bf16.mxu0 0
      %3008 = vmatpush2.bf16.msra.mxu0 %v2268
      %3009 = vmatprep.subr.bf16.mxu0 0
      %3010 = vmatpush2.bf16.msra.mxu0 %v2267
      %3011 = vmatprep.mubr.bf16.mxu0 %v888
      %3012 = vmatmul.mubr.bf16.gmra.mxu0 %v880
      %v3013 = vpop.f32.mrf.mxu0
      %v3014 = vadd.f32 %v2974, %v3013
      %v3015 = vpop.f32.mrf.mxu0
      %v3016 = vpop.f32.mrf.mxu0
      %v3017 = vpop.f32.mrf.mxu0
      %3018 = vdwg.mxu0
      %3019 = vmatprep.subr.bf16.mxu0 0
      %3020 = vmatpush1.bf16.msra.mxu0 %v2282
      %3021 = vmatprep.subr.bf16.mxu0 0
      %3022 = vmatpush1.bf16.msra.mxu0 %v2281
      %3023 = vmatprep.subr.bf16.mxu0 0
      %3024 = vmatpush1.bf16.msra.mxu0 %v2280
      %3025 = vmatprep.subr.bf16.mxu0 0
      %3026 = vmatpush1.bf16.msra.mxu0 %v2279
      %3027 = vmatprep.subr.bf16.mxu0 0
      %3028 = vmatpush1.bf16.msra.mxu0 %v2278
      %3029 = vmatprep.subr.bf16.mxu0 0
      %3030 = vmatpush1.bf16.msra.mxu0 %v2277
      %3031 = vmatprep.subr.bf16.mxu0 0
      %3032 = vmatpush1.bf16.msra.mxu0 %v2276
      %3033 = vmatprep.subr.bf16.mxu0 0
      %3034 = vmatpush1.bf16.msra.mxu0 %v2275
      %3035 = vmatprep.subr.bf16.mxu0 0
      %3036 = vmatpush2.bf16.msra.mxu0 %v2290
      %3037 = vmatprep.subr.bf16.mxu0 0
      %3038 = vmatpush2.bf16.msra.mxu0 %v2289
      %3039 = vmatprep.subr.bf16.mxu0 0
      %3040 = vmatpush2.bf16.msra.mxu0 %v2288
      %3041 = vmatprep.subr.bf16.mxu0 0
      %3042 = vmatpush2.bf16.msra.mxu0 %v2287
      %3043 = vmatprep.subr.bf16.mxu0 0
      %3044 = vmatpush2.bf16.msra.mxu0 %v2286
      %3045 = vmatprep.subr.bf16.mxu0 0
      %3046 = vmatpush2.bf16.msra.mxu0 %v2285
      %3047 = vmatprep.subr.bf16.mxu0 0
      %3048 = vmatpush2.bf16.msra.mxu0 %v2284
      %3049 = vmatprep.subr.bf16.mxu0 0
      %3050 = vmatpush2.bf16.msra.mxu0 %v2283
      %3051 = vmatprep.mubr.bf16.mxu0 %v889
      %3052 = vmatmul.mubr.bf16.gmra.mxu0 %v887
      %v3053 = vpop.f32.mrf.mxu0
      %v3054 = vadd.f32 %v3014, %v3053
      %v3055 = vpop.f32.mrf.mxu0
      %v3056 = vpop.f32.mrf.mxu0
      %v3057 = vpop.f32.mrf.mxu0
      %3058 = vdwg.mxu0
      %3059 = vmatprep.subr.bf16.mxu0 0
      %3060 = vmatpush1.bf16.msra.mxu0 %v2298
      %3061 = vmatprep.subr.bf16.mxu0 0
      %3062 = vmatpush1.bf16.msra.mxu0 %v2297
      %3063 = vmatprep.subr.bf16.mxu0 0
      %3064 = vmatpush1.bf16.msra.mxu0 %v2296
      %3065 = vmatprep.subr.bf16.mxu0 0
      %3066 = vmatpush1.bf16.msra.mxu0 %v2295
      %3067 = vmatprep.subr.bf16.mxu0 0
      %3068 = vmatpush1.bf16.msra.mxu0 %v2294
      %3069 = vmatprep.subr.bf16.mxu0 0
      %3070 = vmatpush1.bf16.msra.mxu0 %v2293
      %3071 = vmatprep.subr.bf16.mxu0 0
      %3072 = vmatpush1.bf16.msra.mxu0 %v2292
      %3073 = vmatprep.subr.bf16.mxu0 0
      %3074 = vmatpush1.bf16.msra.mxu0 %v2291
      %3075 = vmatprep.subr.bf16.mxu0 0
      %3076 = vmatpush2.bf16.msra.mxu0 %v2306
      %3077 = vmatprep.subr.bf16.mxu0 0
      %3078 = vmatpush2.bf16.msra.mxu0 %v2305
      %3079 = vmatprep.subr.bf16.mxu0 0
      %3080 = vmatpush2.bf16.msra.mxu0 %v2304
      %3081 = vmatprep.subr.bf16.mxu0 0
      %3082 = vmatpush2.bf16.msra.mxu0 %v2303
      %3083 = vmatprep.subr.bf16.mxu0 0
      %3084 = vmatpush2.bf16.msra.mxu0 %v2302
      %3085 = vmatprep.subr.bf16.mxu0 0
      %3086 = vmatpush2.bf16.msra.mxu0 %v2301
      %3087 = vmatprep.subr.bf16.mxu0 0
      %3088 = vmatpush2.bf16.msra.mxu0 %v2300
      %3089 = vmatprep.subr.bf16.mxu0 0
      %3090 = vmatpush2.bf16.msra.mxu0 %v2299
      %3091 = vmatprep.mubr.bf16.mxu0 %v905
      %3092 = vmatmul.mubr.bf16.gmra.mxu0 %v897
      %v3093 = vpop.f32.mrf.mxu0
      %v3094 = vadd.f32 %v3054, %v3093
      %v3095 = vpop.f32.mrf.mxu0
      %v3096 = vpop.f32.mrf.mxu0
      %v3097 = vpop.f32.mrf.mxu0
      %3098 = vdwg.mxu0
      %3099 = vmatprep.subr.bf16.mxu0 0
      %3100 = vmatpush1.bf16.msra.mxu0 %v2314
      %3101 = vmatprep.subr.bf16.mxu0 0
      %3102 = vmatpush1.bf16.msra.mxu0 %v2313
      %3103 = vmatprep.subr.bf16.mxu0 0
      %3104 = vmatpush1.bf16.msra.mxu0 %v2312
      %3105 = vmatprep.subr.bf16.mxu0 0
      %3106 = vmatpush1.bf16.msra.mxu0 %v2311
      %3107 = vmatprep.subr.bf16.mxu0 0
      %3108 = vmatpush1.bf16.msra.mxu0 %v2310
      %3109 = vmatprep.subr.bf16.mxu0 0
      %3110 = vmatpush1.bf16.msra.mxu0 %v2309
      %3111 = vmatprep.subr.bf16.mxu0 0
      %3112 = vmatpush1.bf16.msra.mxu0 %v2308
      %3113 = vmatprep.subr.bf16.mxu0 0
      %3114 = vmatpush1.bf16.msra.mxu0 %v2307
      %3115 = vmatprep.subr.bf16.mxu0 0
      %3116 = vmatpush2.bf16.msra.mxu0 %v2322
      %3117 = vmatprep.subr.bf16.mxu0 0
      %3118 = vmatpush2.bf16.msra.mxu0 %v2321
      %3119 = vmatprep.subr.bf16.mxu0 0
      %3120 = vmatpush2.bf16.msra.mxu0 %v2320
      %3121 = vmatprep.subr.bf16.mxu0 0
      %3122 = vmatpush2.bf16.msra.mxu0 %v2319
      %3123 = vmatprep.subr.bf16.mxu0 0
      %3124 = vmatpush2.bf16.msra.mxu0 %v2318
      %3125 = vmatprep.subr.bf16.mxu0 0
      %3126 = vmatpush2.bf16.msra.mxu0 %v2317
      %3127 = vmatprep.subr.bf16.mxu0 0
      %3128 = vmatpush2.bf16.msra.mxu0 %v2316
      %3129 = vmatprep.subr.bf16.mxu0 0
      %3130 = vmatpush2.bf16.msra.mxu0 %v2315
      %3131 = vmatprep.mubr.bf16.mxu0 %v906
      %3132 = vmatmul.mubr.bf16.gmra.mxu0 %v904
      %v3133 = vpop.f32.mrf.mxu0
      %v3134 = vadd.f32 %v3094, %v3133
      %v3135 = vpop.f32.mrf.mxu0
      %v3136 = vpop.f32.mrf.mxu0
      %v3137 = vpop.f32.mrf.mxu0
      %3138 = vdwg.mxu0
      %3139 = vmatprep.subr.bf16.mxu0 0
      %3140 = vmatpush1.bf16.msra.mxu0 %v2330
      %3141 = vmatprep.subr.bf16.mxu0 0
      %3142 = vmatpush1.bf16.msra.mxu0 %v2329
      %3143 = vmatprep.subr.bf16.mxu0 0
      %3144 = vmatpush1.bf16.msra.mxu0 %v2328
      %3145 = vmatprep.subr.bf16.mxu0 0
      %3146 = vmatpush1.bf16.msra.mxu0 %v2327
      %3147 = vmatprep.subr.bf16.mxu0 0
      %3148 = vmatpush1.bf16.msra.mxu0 %v2326
      %3149 = vmatprep.subr.bf16.mxu0 0
      %3150 = vmatpush1.bf16.msra.mxu0 %v2325
      %3151 = vmatprep.subr.bf16.mxu0 0
      %3152 = vmatpush1.bf16.msra.mxu0 %v2324
      %3153 = vmatprep.subr.bf16.mxu0 0
      %3154 = vmatpush1.bf16.msra.mxu0 %v2323
      %3155 = vmatprep.subr.bf16.mxu0 0
      %3156 = vmatpush2.bf16.msra.mxu0 %v2338
      %3157 = vmatprep.subr.bf16.mxu0 0
      %3158 = vmatpush2.bf16.msra.mxu0 %v2337
      %3159 = vmatprep.subr.bf16.mxu0 0
      %3160 = vmatpush2.bf16.msra.mxu0 %v2336
      %3161 = vmatprep.subr.bf16.mxu0 0
      %3162 = vmatpush2.bf16.msra.mxu0 %v2335
      %3163 = vmatprep.subr.bf16.mxu0 0
      %3164 = vmatpush2.bf16.msra.mxu0 %v2334
      %3165 = vmatprep.subr.bf16.mxu0 0
      %3166 = vmatpush2.bf16.msra.mxu0 %v2333
      %3167 = vmatprep.subr.bf16.mxu0 0
      %3168 = vmatpush2.bf16.msra.mxu0 %v2332
      %3169 = vmatprep.subr.bf16.mxu0 0
      %3170 = vmatpush2.bf16.msra.mxu0 %v2331
      %3171 = vmatprep.mubr.bf16.mxu0 %v922
      %3172 = vmatmul.mubr.bf16.gmra.mxu0 %v914
      %v3173 = vpop.f32.mrf.mxu0
      %v3174 = vadd.f32 %v3134, %v3173
      %v3175 = vpop.f32.mrf.mxu0
      %v3176 = vpop.f32.mrf.mxu0
      %v3177 = vpop.f32.mrf.mxu0
      %3178 = vdwg.mxu0
      %3179 = vmatprep.subr.bf16.mxu0 0
      %3180 = vmatpush1.bf16.msra.mxu0 %v2346
      %3181 = vmatprep.subr.bf16.mxu0 0
      %3182 = vmatpush1.bf16.msra.mxu0 %v2345
      %3183 = vmatprep.subr.bf16.mxu0 0
      %3184 = vmatpush1.bf16.msra.mxu0 %v2344
      %3185 = vmatprep.subr.bf16.mxu0 0
      %3186 = vmatpush1.bf16.msra.mxu0 %v2343
      %3187 = vmatprep.subr.bf16.mxu0 0
      %3188 = vmatpush1.bf16.msra.mxu0 %v2342
      %3189 = vmatprep.subr.bf16.mxu0 0
      %3190 = vmatpush1.bf16.msra.mxu0 %v2341
      %3191 = vmatprep.subr.bf16.mxu0 0
      %3192 = vmatpush1.bf16.msra.mxu0 %v2340
      %3193 = vmatprep.subr.bf16.mxu0 0
      %3194 = vmatpush1.bf16.msra.mxu0 %v2339
      %3195 = vmatprep.subr.bf16.mxu0 0
      %3196 = vmatpush2.bf16.msra.mxu0 %v2354
      %3197 = vmatprep.subr.bf16.mxu0 0
      %3198 = vmatpush2.bf16.msra.mxu0 %v2353
      %3199 = vmatprep.subr.bf16.mxu0 0
      %3200 = vmatpush2.bf16.msra.mxu0 %v2352
      %3201 = vmatprep.subr.bf16.mxu0 0
      %3202 = vmatpush2.bf16.msra.mxu0 %v2351
      %3203 = vmatprep.subr.bf16.mxu0 0
      %3204 = vmatpush2.bf16.msra.mxu0 %v2350
      %3205 = vmatprep.subr.bf16.mxu0 0
      %3206 = vmatpush2.bf16.msra.mxu0 %v2349
      %3207 = vmatprep.subr.bf16.mxu0 0
      %3208 = vmatpush2.bf16.msra.mxu0 %v2348
      %3209 = vmatprep.subr.bf16.mxu0 0
      %3210 = vmatpush2.bf16.msra.mxu0 %v2347
      %3211 = vmatprep.mubr.bf16.mxu0 %v923
      %3212 = vmatmul.mubr.bf16.gmra.mxu0 %v921
      %v3213 = vpop.f32.mrf.mxu0
      %v3214 = vadd.f32 %v3174, %v3213
      %v3215 = vpop.f32.mrf.mxu0
      %v3216 = vpop.f32.mrf.mxu0
      %v3217 = vpop.f32.mrf.mxu0
      %3218 = vdwg.mxu0
      %3219 = vmatprep.subr.bf16.mxu0 0
      %3220 = vmatpush1.bf16.msra.mxu0 %v2362
      %3221 = vmatprep.subr.bf16.mxu0 0
      %3222 = vmatpush1.bf16.msra.mxu0 %v2361
      %3223 = vmatprep.subr.bf16.mxu0 0
      %3224 = vmatpush1.bf16.msra.mxu0 %v2360
      %3225 = vmatprep.subr.bf16.mxu0 0
      %3226 = vmatpush1.bf16.msra.mxu0 %v2359
      %3227 = vmatprep.subr.bf16.mxu0 0
      %3228 = vmatpush1.bf16.msra.mxu0 %v2358
      %3229 = vmatprep.subr.bf16.mxu0 0
      %3230 = vmatpush1.bf16.msra.mxu0 %v2357
      %3231 = vmatprep.subr.bf16.mxu0 0
      %3232 = vmatpush1.bf16.msra.mxu0 %v2356
      %3233 = vmatprep.subr.bf16.mxu0 0
      %3234 = vmatpush1.bf16.msra.mxu0 %v2355
      %3235 = vmatprep.subr.bf16.mxu0 0
      %3236 = vmatpush2.bf16.msra.mxu0 %v2370
      %3237 = vmatprep.subr.bf16.mxu0 0
      %3238 = vmatpush2.bf16.msra.mxu0 %v2369
      %3239 = vmatprep.subr.bf16.mxu0 0
      %3240 = vmatpush2.bf16.msra.mxu0 %v2368
      %3241 = vmatprep.subr.bf16.mxu0 0
      %3242 = vmatpush2.bf16.msra.mxu0 %v2367
      %3243 = vmatprep.subr.bf16.mxu0 0
      %3244 = vmatpush2.bf16.msra.mxu0 %v2366
      %3245 = vmatprep.subr.bf16.mxu0 0
      %3246 = vmatpush2.bf16.msra.mxu0 %v2365
      %3247 = vmatprep.subr.bf16.mxu0 0
      %3248 = vmatpush2.bf16.msra.mxu0 %v2364
      %3249 = vmatprep.subr.bf16.mxu0 0
      %3250 = vmatpush2.bf16.msra.mxu0 %v2363
      %3251 = vmatprep.mubr.bf16.mxu0 %v939
      %3252 = vmatmul.mubr.bf16.gmra.mxu0 %v931
      %v3253 = vpop.f32.mrf.mxu0
      %v3254 = vadd.f32 %v3214, %v3253
      %v3255 = vpop.f32.mrf.mxu0
      %v3256 = vpop.f32.mrf.mxu0
      %v3257 = vpop.f32.mrf.mxu0
      %3258 = vdwg.mxu0
      %3259 = vmatprep.subr.bf16.mxu0 0
      %3260 = vmatpush1.bf16.msra.mxu0 %v2378
      %3261 = vmatprep.subr.bf16.mxu0 0
      %3262 = vmatpush1.bf16.msra.mxu0 %v2377
      %3263 = vmatprep.subr.bf16.mxu0 0
      %3264 = vmatpush1.bf16.msra.mxu0 %v2376
      %3265 = vmatprep.subr.bf16.mxu0 0
      %3266 = vmatpush1.bf16.msra.mxu0 %v2375
      %3267 = vmatprep.subr.bf16.mxu0 0
      %3268 = vmatpush1.bf16.msra.mxu0 %v2374
      %3269 = vmatprep.subr.bf16.mxu0 0
      %3270 = vmatpush1.bf16.msra.mxu0 %v2373
      %3271 = vmatprep.subr.bf16.mxu0 0
      %3272 = vmatpush1.bf16.msra.mxu0 %v2372
      %3273 = vmatprep.subr.bf16.mxu0 0
      %3274 = vmatpush1.bf16.msra.mxu0 %v2371
      %3275 = vmatprep.subr.bf16.mxu0 0
      %3276 = vmatpush2.bf16.msra.mxu0 %v2386
      %3277 = vmatprep.subr.bf16.mxu0 0
      %3278 = vmatpush2.bf16.msra.mxu0 %v2385
      %3279 = vmatprep.subr.bf16.mxu0 0
      %3280 = vmatpush2.bf16.msra.mxu0 %v2384
      %3281 = vmatprep.subr.bf16.mxu0 0
      %3282 = vmatpush2.bf16.msra.mxu0 %v2383
      %3283 = vmatprep.subr.bf16.mxu0 0
      %3284 = vmatpush2.bf16.msra.mxu0 %v2382
      %3285 = vmatprep.subr.bf16.mxu0 0
      %3286 = vmatpush2.bf16.msra.mxu0 %v2381
      %3287 = vmatprep.subr.bf16.mxu0 0
      %3288 = vmatpush2.bf16.msra.mxu0 %v2380
      %3289 = vmatprep.subr.bf16.mxu0 0
      %3290 = vmatpush2.bf16.msra.mxu0 %v2379
      %3291 = vmatprep.mubr.bf16.mxu0 %v940
      %3292 = vmatmul.mubr.bf16.gmra.mxu0 %v938
      %v3293 = vpop.f32.mrf.mxu0
      %v3294 = vadd.f32 %v3254, %v3293
      %v3295 = vpop.f32.mrf.mxu0
      %v3296 = vpop.f32.mrf.mxu0
      %v3297 = vpop.f32.mrf.mxu0
      %3298 = vdwg.mxu0
      %3299 = vmatprep.subr.bf16.mxu0 0
      %3300 = vmatpush1.bf16.msra.mxu0 %v2394
      %3301 = vmatprep.subr.bf16.mxu0 0
      %3302 = vmatpush1.bf16.msra.mxu0 %v2393
      %3303 = vmatprep.subr.bf16.mxu0 0
      %3304 = vmatpush1.bf16.msra.mxu0 %v2392
      %3305 = vmatprep.subr.bf16.mxu0 0
      %3306 = vmatpush1.bf16.msra.mxu0 %v2391
      %3307 = vmatprep.subr.bf16.mxu0 0
      %3308 = vmatpush1.bf16.msra.mxu0 %v2390
      %3309 = vmatprep.subr.bf16.mxu0 0
      %3310 = vmatpush1.bf16.msra.mxu0 %v2389
      %3311 = vmatprep.subr.bf16.mxu0 0
      %3312 = vmatpush1.bf16.msra.mxu0 %v2388
      %3313 = vmatprep.subr.bf16.mxu0 0
      %3314 = vmatpush1.bf16.msra.mxu0 %v2387
      %3315 = vmatprep.subr.bf16.mxu0 0
      %3316 = vmatpush2.bf16.msra.mxu0 %v2402
      %3317 = vmatprep.subr.bf16.mxu0 0
      %3318 = vmatpush2.bf16.msra.mxu0 %v2401
      %3319 = vmatprep.subr.bf16.mxu0 0
      %3320 = vmatpush2.bf16.msra.mxu0 %v2400
      %3321 = vmatprep.subr.bf16.mxu0 0
      %3322 = vmatpush2.bf16.msra.mxu0 %v2399
      %3323 = vmatprep.subr.bf16.mxu0 0
      %3324 = vmatpush2.bf16.msra.mxu0 %v2398
      %3325 = vmatprep.subr.bf16.mxu0 0
      %3326 = vmatpush2.bf16.msra.mxu0 %v2397
      %3327 = vmatprep.subr.bf16.mxu0 0
      %3328 = vmatpush2.bf16.msra.mxu0 %v2396
      %3329 = vmatprep.subr.bf16.mxu0 0
      %3330 = vmatpush2.bf16.msra.mxu0 %v2395
      %3331 = vmatprep.mubr.bf16.mxu0 %v956
      %3332 = vmatmul.mubr.bf16.gmra.mxu0 %v948
      %v3333 = vpop.f32.mrf.mxu0
      %v3334 = vadd.f32 %v3294, %v3333
      %v3335 = vpop.f32.mrf.mxu0
      %v3336 = vpop.f32.mrf.mxu0
      %v3337 = vpop.f32.mrf.mxu0
      %3338 = vdwg.mxu0
      %3339 = vmatprep.subr.bf16.mxu0 0
      %3340 = vmatpush1.bf16.msra.mxu0 %v2410
      %3341 = vmatprep.subr.bf16.mxu0 0
      %3342 = vmatpush1.bf16.msra.mxu0 %v2409
      %3343 = vmatprep.subr.bf16.mxu0 0
      %3344 = vmatpush1.bf16.msra.mxu0 %v2408
      %3345 = vmatprep.subr.bf16.mxu0 0
      %3346 = vmatpush1.bf16.msra.mxu0 %v2407
      %3347 = vmatprep.subr.bf16.mxu0 0
      %3348 = vmatpush1.bf16.msra.mxu0 %v2406
      %3349 = vmatprep.subr.bf16.mxu0 0
      %3350 = vmatpush1.bf16.msra.mxu0 %v2405
      %3351 = vmatprep.subr.bf16.mxu0 0
      %3352 = vmatpush1.bf16.msra.mxu0 %v2404
      %3353 = vmatprep.subr.bf16.mxu0 0
      %3354 = vmatpush1.bf16.msra.mxu0 %v2403
      %3355 = vmatprep.subr.bf16.mxu0 0
      %3356 = vmatpush2.bf16.msra.mxu0 %v2418
      %3357 = vmatprep.subr.bf16.mxu0 0
      %3358 = vmatpush2.bf16.msra.mxu0 %v2417
      %3359 = vmatprep.subr.bf16.mxu0 0
      %3360 = vmatpush2.bf16.msra.mxu0 %v2416
      %3361 = vmatprep.subr.bf16.mxu0 0
      %3362 = vmatpush2.bf16.msra.mxu0 %v2415
      %3363 = vmatprep.subr.bf16.mxu0 0
      %3364 = vmatpush2.bf16.msra.mxu0 %v2414
      %3365 = vmatprep.subr.bf16.mxu0 0
      %3366 = vmatpush2.bf16.msra.mxu0 %v2413
      %3367 = vmatprep.subr.bf16.mxu0 0
      %3368 = vmatpush2.bf16.msra.mxu0 %v2412
      %3369 = vmatprep.subr.bf16.mxu0 0
      %3370 = vmatpush2.bf16.msra.mxu0 %v2411
      %3371 = vmatprep.mubr.bf16.mxu0 %v957
      %3372 = vmatmul.mubr.bf16.gmra.mxu0 %v955
      %v3373 = vpop.f32.mrf.mxu0
      %v3374 = vadd.f32 %v3334, %v3373
      %v3375 = vpop.f32.mrf.mxu0
      %v3376 = vpop.f32.mrf.mxu0
      %v3377 = vpop.f32.mrf.mxu0
      %3378 = vdwg.mxu0
      %3379 = vmatprep.subr.bf16.mxu0 0
      %3380 = vmatpush1.bf16.msra.mxu0 %v2426
      %3381 = vmatprep.subr.bf16.mxu0 0
      %3382 = vmatpush1.bf16.msra.mxu0 %v2425
      %3383 = vmatprep.subr.bf16.mxu0 0
      %3384 = vmatpush1.bf16.msra.mxu0 %v2424
      %3385 = vmatprep.subr.bf16.mxu0 0
      %3386 = vmatpush1.bf16.msra.mxu0 %v2423
      %3387 = vmatprep.subr.bf16.mxu0 0
      %3388 = vmatpush1.bf16.msra.mxu0 %v2422
      %3389 = vmatprep.subr.bf16.mxu0 0
      %3390 = vmatpush1.bf16.msra.mxu0 %v2421
      %3391 = vmatprep.subr.bf16.mxu0 0
      %3392 = vmatpush1.bf16.msra.mxu0 %v2420
      %3393 = vmatprep.subr.bf16.mxu0 0
      %3394 = vmatpush1.bf16.msra.mxu0 %v2419
      %3395 = vmatprep.subr.bf16.mxu0 0
      %3396 = vmatpush2.bf16.msra.mxu0 %v2434
      %3397 = vmatprep.subr.bf16.mxu0 0
      %3398 = vmatpush2.bf16.msra.mxu0 %v2433
      %3399 = vmatprep.subr.bf16.mxu0 0
      %3400 = vmatpush2.bf16.msra.mxu0 %v2432
      %3401 = vmatprep.subr.bf16.mxu0 0
      %3402 = vmatpush2.bf16.msra.mxu0 %v2431
      %3403 = vmatprep.subr.bf16.mxu0 0
      %3404 = vmatpush2.bf16.msra.mxu0 %v2430
      %3405 = vmatprep.subr.bf16.mxu0 0
      %3406 = vmatpush2.bf16.msra.mxu0 %v2429
      %3407 = vmatprep.subr.bf16.mxu0 0
      %3408 = vmatpush2.bf16.msra.mxu0 %v2428
      %3409 = vmatprep.subr.bf16.mxu0 0
      %3410 = vmatpush2.bf16.msra.mxu0 %v2427
      %3411 = vmatprep.mubr.bf16.mxu0 %v973
      %3412 = vmatmul.mubr.bf16.gmra.mxu0 %v965
      %v3413 = vpop.f32.mrf.mxu0
      %v3414 = vadd.f32 %v3374, %v3413
      %v3415 = vpop.f32.mrf.mxu0
      %v3416 = vpop.f32.mrf.mxu0
      %v3417 = vpop.f32.mrf.mxu0
      %3418 = vdwg.mxu0
      %3419 = vmatprep.subr.bf16.mxu0 0
      %3420 = vmatpush1.bf16.msra.mxu0 %v2442
      %3421 = vmatprep.subr.bf16.mxu0 0
      %3422 = vmatpush1.bf16.msra.mxu0 %v2441
      %3423 = vmatprep.subr.bf16.mxu0 0
      %3424 = vmatpush1.bf16.msra.mxu0 %v2440
      %3425 = vmatprep.subr.bf16.mxu0 0
      %3426 = vmatpush1.bf16.msra.mxu0 %v2439
      %3427 = vmatprep.subr.bf16.mxu0 0
      %3428 = vmatpush1.bf16.msra.mxu0 %v2438
      %3429 = vmatprep.subr.bf16.mxu0 0
      %3430 = vmatpush1.bf16.msra.mxu0 %v2437
      %3431 = vmatprep.subr.bf16.mxu0 0
      %3432 = vmatpush1.bf16.msra.mxu0 %v2436
      %3433 = vmatprep.subr.bf16.mxu0 0
      %3434 = vmatpush1.bf16.msra.mxu0 %v2435
      %3435 = vmatprep.subr.bf16.mxu0 0
      %3436 = vmatpush2.bf16.msra.mxu0 %v2450
      %3437 = vmatprep.subr.bf16.mxu0 0
      %3438 = vmatpush2.bf16.msra.mxu0 %v2449
      %3439 = vmatprep.subr.bf16.mxu0 0
      %3440 = vmatpush2.bf16.msra.mxu0 %v2448
      %3441 = vmatprep.subr.bf16.mxu0 0
      %3442 = vmatpush2.bf16.msra.mxu0 %v2447
      %3443 = vmatprep.subr.bf16.mxu0 0
      %3444 = vmatpush2.bf16.msra.mxu0 %v2446
      %3445 = vmatprep.subr.bf16.mxu0 0
      %3446 = vmatpush2.bf16.msra.mxu0 %v2445
      %3447 = vmatprep.subr.bf16.mxu0 0
      %3448 = vmatpush2.bf16.msra.mxu0 %v2444
      %3449 = vmatprep.subr.bf16.mxu0 0
      %3450 = vmatpush2.bf16.msra.mxu0 %v2443
      %3451 = vmatprep.mubr.bf16.mxu0 %v974
      %3452 = vmatmul.mubr.bf16.gmra.mxu0 %v972
      %v3453 = vpop.f32.mrf.mxu0
      %v3454 = vadd.f32 %v3414, %v3453
      %v3455 = vpop.f32.mrf.mxu0
      %v3456 = vpop.f32.mrf.mxu0
      %v3457 = vpop.f32.mrf.mxu0
      %3458 = vdwg.mxu0
      %v3459 = vxor.u32 %v3454, 2147483648
      %v3460 = vmul.f32 %v3459, 1.442695
      %v3461 = vpow.pop %v3460
      %v3462 = vadd.f32 %v3461, 1.0
      %v3463 = vrcp.pop %v3462
      %v3464 = vmul.f32 1.0, %v3463
      %3465 = vst [vmem:[%s219] sm:$0xf] %v3464
      %p3466 = scmp.lt.s32.totalorder %s18, 1
      %s3467 = scalar_select %p3466, %s18, 1
      %p3468 = scmp.lt.s32.totalorder %s19, 0
      %s3469 = scalar_select %p3468, %s19, 0
      %s3470 = sadd.s32 %s3469, %s3467
      %s3471 = smul.addr %s3470, 4
      %s3472 = scalar_lea.vmem %s3, %s3471
      // Predicated region
      $region33: #{discriminator_forward.9} parent=31 // pred_check
        %p3473 = pneg %p124
      $region34: #{discriminator_forward.9} parent=31 // pred_check_branch
        %3475 = sbr.rel (%p3473) target = $region36
      $region35: #{discriminator_forward.9} parent=31 // pred_region
        _
      $region36: #{discriminator_forward.9} parent=31 // pred_fallthru
        _
    $region32: #{discriminator_forward.9} parent=5 // pred_fallthru
      _
    %p3476 = scmp.le.s32.totalorder 2, %s9
    // Predicated region
    $region37: #{discriminator_forward.9} parent=5 // pred_check
      %p3477 = pneg %p3476
    $region38: #{discriminator_forward.9} parent=5 // pred_check_branch
      %3479 = sbr.rel (%p3477) target = $region40
    $region39: #{discriminator_forward.9} parent=5 // pred_region
      %s3480 = ssub.s32 %s9, 2
      // Predicated region
      $region41: #{discriminator_forward.9} parent=39 // pred_check
        %p3481 = pneg %p130
      $region42: #{discriminator_forward.9} parent=39 // pred_check_branch
        %3483 = sbr.rel (%p3481) target = $region44
      $region43: #{discriminator_forward.9} parent=39 // pred_region
        %p3484 = scmp.lt.s32.totalorder %s20, 1
        %s3485 = scalar_select %p3484, %s20, 1
        %p3486 = scmp.lt.s32.totalorder %s21, 0
        %s3487 = scalar_select %p3486, %s21, 0
        %s3488 = sadd.s32 %s3487, %s3485
        %s3489 = smul.addr %s3488, 4
        %s3490 = scalar_lea.vmem %s3, %s3489
      $region44: #{discriminator_forward.9} parent=39 // pred_fallthru
        _
    $region40: #{discriminator_forward.9} parent=5 // pred_fallthru
      _
  $region6: #{discriminator_forward.9} parent=0 // loop_footer
    %s13 = sadd.s32 1, %s9
  $region7: #{discriminator_forward.9} parent=0 // loop_footer_branch
    %8 = sbr.rel target = $region3
  $region8: #{discriminator_forward.9} parent=0 // loop_exit
    _

</llo_original>
